<compile_context>
chip_gen: v7x
topology: tpu7x:2x2x1
jax: 0.10.0
libtpu: 0.0.40
codegen_flags: <defaults>
</compile_context>

<pallas_src>
import jax
import jax.numpy as jnp
from jax import lax
from jax.experimental import pallas as pl
from jax.experimental.pallas import tpu as pltpu

BN_EPS = 1e-5


# ---------------------------------------------------------------------------
# Fused Pallas kernel: conv1 -> BN1 -> ReLU -> conv2 -> BN2 -> +x -> ReLU
# ---------------------------------------------------------------------------
def _identi_block_kernel(x_ref, w1_ref, w2_ref, g1_ref, b1_ref, g2_ref, b2_ref,
                         out_ref, pad_ref, col_ref):
    # x_ref  : (N, H, W, C)      NHWC input (also the residual source)
    # w1_ref : (9*C, C)          conv1 weights, row = (ky*3 + kx)*C + ci
    # w2_ref : (9*C, C)          conv2 weights
    # g*/b*  : (1, C)            BatchNorm gamma / beta
    # out_ref: (C, N*H*W)        channels-major, lane-dense output slab
    # pad_ref: (N, H+2, W+2, C)  VMEM scratch: zero-padded activation (halo)
    # col_ref: (N*H*W, 9*C)      VMEM scratch: im2col patch matrix
    N, H, W, C = x_ref.shape
    NHW = N * H * W
    inv_nhw = 1.0 / NHW

    # Zero the halo scratch once; the 1-pixel border stays zero for both convs.
    pad_ref[...] = jnp.zeros_like(pad_ref)

    def conv3x3(w_ref):
        # im2col: the 9 shifted HxW windows of the padded activation laid out
        # along the channel (lane) axis, then ONE MXU matmul with K = 9*C.
        for dy in range(3):
            for dx in range(3):
                k = dy * 3 + dx
                col_ref[:, k * C:(k + 1) * C] = (
                    pad_ref[:, dy:dy + H, dx:dx + W, :].reshape(NHW, C))
        # Keep f32 operands for exact parity with the f32 reference; on v6e/v7x
        # casting patches + weights to bf16 (preferred_element_type=f32 kept)
        # would double MXU throughput.
        return jnp.dot(col_ref[...], w_ref[...],
                       preferred_element_type=jnp.float32)

    def bn_affine(h, g_ref, b_ref):
        # Training-mode BatchNorm folded into a per-channel affine:
        #   scale = gamma * rsqrt(var + eps); shift = beta - mean * scale.
        # One-pass biased variance via E[h^2] - mean^2.  (For large tensors the
        # column sums could be routed to the MXU as ones @ h / ones @ (h*h).)
        mean = jnp.sum(h, axis=0, keepdims=True) * inv_nhw           # (1, C)
        ex2 = jnp.sum(h * h, axis=0, keepdims=True) * inv_nhw        # (1, C)
        var = ex2 - mean * mean
        scale = g_ref[...] * lax.rsqrt(var + BN_EPS)                 # EUP rsqrt
        shift = b_ref[...] - mean * scale
        return h * scale + shift                                     # (NHW, C)

    x = x_ref[...].astype(jnp.float32)

    # ---- conv1 -> BN1 -> ReLU ---------------------------------------------
    pad_ref[:, 1:H + 1, 1:W + 1, :] = x
    a1 = jnp.maximum(bn_affine(conv3x3(w1_ref), g1_ref, b1_ref), 0.0)

    # ---- conv2 -> BN2 -> + identity -> ReLU ---------------------------------
    pad_ref[:, 1:H + 1, 1:W + 1, :] = a1.reshape(N, H, W, C)
    y = bn_affine(conv3x3(w2_ref), g2_ref, b2_ref) + x.reshape(NHW, C)
    y = jnp.maximum(y, 0.0)

    # Lane-dense store: (NHW, C) -> (C, NHW); the wrapper un-permutes to NCHW.
    out_ref[...] = y.T.astype(out_ref.dtype)


# ---------------------------------------------------------------------------
# Wrapper (NCHW in / NCHW out, PyTorch convention)
# ---------------------------------------------------------------------------
@jax.jit
def identi_block(x_nchw, params):
    """Fused IdentiBlock forward.  Input/output: NCHW float32."""
    N, C, H, W = x_nchw.shape
    assert params["w1"].shape == (C, C, 3, 3), "residual add needs Cin == Cout"

    x_nhwc = jnp.transpose(x_nchw, (0, 2, 3, 1))

    def to_k9c(w_oihw):                      # (Cout,Cin,3,3) -> (9*Cin, Cout)
        return jnp.transpose(w_oihw, (2, 3, 1, 0)).reshape(9 * C, C)

    w1 = to_k9c(params["w1"])
    w2 = to_k9c(params["w2"])
    g1 = params["bn1_g"].reshape(1, C)
    b1 = params["bn1_b"].reshape(1, C)
    g2 = params["bn2_g"].reshape(1, C)
    b2 = params["bn2_b"].reshape(1, C)

    vmem = pl.BlockSpec(memory_space=pltpu.MemorySpace.VMEM)
    out = pl.pallas_call(
        _identi_block_kernel,
        out_shape=jax.ShapeDtypeStruct((C, N * H * W), jnp.float32),
        in_specs=[vmem] * 7,
        out_specs=vmem,
        scratch_shapes=[
            pltpu.VMEM((N, H + 2, W + 2, C), jnp.float32),   # padded activation
            pltpu.VMEM((N * H * W, 9 * C), jnp.float32),     # im2col patches
        ],
    )(x_nhwc, w1, w2, g1, b1, g2, b2)

    # (C, N*H*W) -> NCHW; the reshape is free, the transpose is one tiny XLA op.
    return jnp.transpose(out.reshape(C, N, H, W), (1, 0, 2, 3))


# ---------------------------------------------------------------------------
# Parameter construction (PyTorch shapes: conv OIHW without bias, BN affine)
# ---------------------------------------------------------------------------
def init_identi_block_params(key, channels):
    k1, k2 = jax.random.split(key)
    fan_in = 9.0 * channels
    return {
        "w1": jax.random.normal(k1, (channels, channels, 3, 3), jnp.float32)
              / jnp.sqrt(fan_in),
        "w2": jax.random.normal(k2, (channels, channels, 3, 3), jnp.float32)
              / jnp.sqrt(fan_in),
        "bn1_g": jnp.ones((channels,), jnp.float32),
        "bn1_b": jnp.zeros((channels,), jnp.float32),
        "bn2_g": jnp.ones((channels,), jnp.float32),
        "bn2_b": jnp.zeros((channels,), jnp.float32),
    }


# ---------------------------------------------------------------------------
# Pure-JAX reference (independent path via lax.conv_general_dilated)
# ---------------------------------------------------------------------------
def identi_block_ref(x_nchw, params):
    x = jnp.transpose(x_nchw, (0, 2, 3, 1))                 # NHWC

    def conv(h, w_oihw):
        rhs = jnp.transpose(w_oihw, (2, 3, 1, 0))           # HWIO
        return lax.conv_general_dilated(
            h, rhs, window_strides=(1, 1), padding="SAME",
            dimension_numbers=("NHWC", "HWIO", "NHWC"))

    def bn(h, g, b):
        mean = h.mean(axis=(0, 1, 2), keepdims=True)
        var = ((h - mean) ** 2).mean(axis=(0, 1, 2), keepdims=True)
        return ((h - mean) / jnp.sqrt(var + BN_EPS) * g.reshape(1, 1, 1, -1)
                + b.reshape(1, 1, 1, -1))

    a1 = jnp.maximum(bn(conv(x, params["w1"]),
                        params["bn1_g"], params["bn1_b"]), 0.0)
    y = bn(conv(a1, params["w2"]), params["bn2_g"], params["bn2_b"]) + x
    return jnp.transpose(jnp.maximum(y, 0.0), (0, 3, 1, 2))


if __name__ == "__main__":
    key = jax.random.PRNGKey(0)
    k_x, k_p = jax.random.split(key)

    N, C, H, W = 2, 4, 16, 16          # residual add requires Cin == Cout
    x = jax.random.normal(k_x, (N, C, H, W), jnp.float32)
    params = init_identi_block_params(k_p, C)

    out = jax.block_until_ready(identi_block(x, params))
    assert out.shape == (N, C, H, W), out.shape

    ref = identi_block_ref(x, params)
    max_err = float(jnp.max(jnp.abs(out - ref)))
    assert jnp.allclose(out, ref, atol=1e-4, rtol=1e-4), max_err

    print("KERNEL_OK")
</pallas_src>

<mosaic_0001>
module attributes {stable_mosaic.version = 11 : i64} {
  func.func @_identi_block_kernel(%arg0: memref<2x16x16x4xf32, #tpu.memory_space<vmem>>, %arg1: memref<36x4xf32, #tpu.memory_space<vmem>>, %arg2: memref<36x4xf32, #tpu.memory_space<vmem>>, %arg3: memref<1x4xf32, #tpu.memory_space<vmem>>, %arg4: memref<1x4xf32, #tpu.memory_space<vmem>>, %arg5: memref<1x4xf32, #tpu.memory_space<vmem>>, %arg6: memref<1x4xf32, #tpu.memory_space<vmem>>, %arg7: memref<4x512xf32, #tpu.memory_space<vmem>>, %arg8: memref<2x18x18x4xf32, #tpu.memory_space<vmem>>, %arg9: memref<512x36xf32, #tpu.memory_space<vmem>>) attributes {dimension_semantics = [], scalar_prefetch = 0 : i64, scratch_operands = 2 : i64, tpu.core_type = #tpu.core_type<tc>} {
    %cst = arith.constant 0.000000e+00 : f32
    %0 = vector.broadcast %cst : f32 to vector<2x18x18x4xf32>
    %c0 = arith.constant 0 : index
    %c0_0 = arith.constant 0 : index
    %c0_1 = arith.constant 0 : index
    %c0_2 = arith.constant 0 : index
    %1 = vector.load %arg8[%c0, %c0_0, %c0_1, %c0_2] : memref<2x18x18x4xf32, #tpu.memory_space<vmem>>, vector<2x18x18x4xf32>
    tpu.vector_store %arg8[%c0, %c0_0, %c0_1, %c0_2], %0 {strides = array<i32>} : memref<2x18x18x4xf32, #tpu.memory_space<vmem>>, vector<2x18x18x4xf32>,
    %c0_3 = arith.constant 0 : index
    %c0_4 = arith.constant 0 : index
    %c0_5 = arith.constant 0 : index
    %c0_6 = arith.constant 0 : index
    %2 = vector.load %arg0[%c0_3, %c0_4, %c0_5, %c0_6] : memref<2x16x16x4xf32, #tpu.memory_space<vmem>>, vector<2x16x16x4xf32>
    %c0_7 = arith.constant 0 : index
    %c1 = arith.constant 1 : index
    %c1_8 = arith.constant 1 : index
    %c0_9 = arith.constant 0 : index
    %3 = vector.load %arg8[%c0_7, %c1, %c1_8, %c0_9] : memref<2x18x18x4xf32, #tpu.memory_space<vmem>>, vector<2x16x16x4xf32>
    tpu.vector_store %arg8[%c0_7, %c1, %c1_8, %c0_9], %2 {strides = array<i32>} : memref<2x18x18x4xf32, #tpu.memory_space<vmem>>, vector<2x16x16x4xf32>,
    %c0_10 = arith.constant 0 : index
    %c0_11 = arith.constant 0 : index
    %c0_12 = arith.constant 0 : index
    %c0_13 = arith.constant 0 : index
    %4 = vector.load %arg8[%c0_10, %c0_11, %c0_12, %c0_13] : memref<2x18x18x4xf32, #tpu.memory_space<vmem>>, vector<2x16x16x4xf32>
    %5 = vector.shape_cast %4 : vector<2x16x16x4xf32> to vector<512x4xf32>
    %c0_14 = arith.constant 0 : index
    %c0_15 = arith.constant 0 : index
    %6 = vector.load %arg9[%c0_14, %c0_15] : memref<512x36xf32, #tpu.memory_space<vmem>>, vector<512x4xf32>
    tpu.vector_store %arg9[%c0_14, %c0_15], %5 {strides = array<i32>} : memref<512x36xf32, #tpu.memory_space<vmem>>, vector<512x4xf32>,
    %c0_16 = arith.constant 0 : index
    %c0_17 = arith.constant 0 : index
    %c1_18 = arith.constant 1 : index
    %c0_19 = arith.constant 0 : index
    %7 = vector.load %arg8[%c0_16, %c0_17, %c1_18, %c0_19] : memref<2x18x18x4xf32, #tpu.memory_space<vmem>>, vector<2x16x16x4xf32>
    %8 = vector.shape_cast %7 : vector<2x16x16x4xf32> to vector<512x4xf32>
    %c0_20 = arith.constant 0 : index
    %c4 = arith.constant 4 : index
    %9 = vector.load %arg9[%c0_20, %c4] : memref<512x36xf32, #tpu.memory_space<vmem>>, vector<512x4xf32>
    tpu.vector_store %arg9[%c0_20, %c4], %8 {strides = array<i32>} : memref<512x36xf32, #tpu.memory_space<vmem>>, vector<512x4xf32>,
    %c0_21 = arith.constant 0 : index
    %c0_22 = arith.constant 0 : index
    %c2 = arith.constant 2 : index
    %c0_23 = arith.constant 0 : index
    %10 = vector.load %arg8[%c0_21, %c0_22, %c2, %c0_23] : memref<2x18x18x4xf32, #tpu.memory_space<vmem>>, vector<2x16x16x4xf32>
    %11 = vector.shape_cast %10 : vector<2x16x16x4xf32> to vector<512x4xf32>
    %c0_24 = arith.constant 0 : index
    %c8 = arith.constant 8 : index
    %12 = vector.load %arg9[%c0_24, %c8] : memref<512x36xf32, #tpu.memory_space<vmem>>, vector<512x4xf32>
    tpu.vector_store %arg9[%c0_24, %c8], %11 {strides = array<i32>} : memref<512x36xf32, #tpu.memory_space<vmem>>, vector<512x4xf32>,
    %c0_25 = arith.constant 0 : index
    %c1_26 = arith.constant 1 : index
    %c0_27 = arith.constant 0 : index
    %c0_28 = arith.constant 0 : index
    %13 = vector.load %arg8[%c0_25, %c1_26, %c0_27, %c0_28] : memref<2x18x18x4xf32, #tpu.memory_space<vmem>>, vector<2x16x16x4xf32>
    %14 = vector.shape_cast %13 : vector<2x16x16x4xf32> to vector<512x4xf32>
    %c0_29 = arith.constant 0 : index
    %c12 = arith.constant 12 : index
    %15 = vector.load %arg9[%c0_29, %c12] : memref<512x36xf32, #tpu.memory_space<vmem>>, vector<512x4xf32>
    tpu.vector_store %arg9[%c0_29, %c12], %14 {strides = array<i32>} : memref<512x36xf32, #tpu.memory_space<vmem>>, vector<512x4xf32>,
    %c0_30 = arith.constant 0 : index
    %c1_31 = arith.constant 1 : index
    %c1_32 = arith.constant 1 : index
    %c0_33 = arith.constant 0 : index
    %16 = vector.load %arg8[%c0_30, %c1_31, %c1_32, %c0_33] : memref<2x18x18x4xf32, #tpu.memory_space<vmem>>, vector<2x16x16x4xf32>
    %17 = vector.shape_cast %16 : vector<2x16x16x4xf32> to vector<512x4xf32>
    %c0_34 = arith.constant 0 : index
    %c16 = arith.constant 16 : index
    %18 = vector.load %arg9[%c0_34, %c16] : memref<512x36xf32, #tpu.memory_space<vmem>>, vector<512x4xf32>
    tpu.vector_store %arg9[%c0_34, %c16], %17 {strides = array<i32>} : memref<512x36xf32, #tpu.memory_space<vmem>>, vector<512x4xf32>,
    %c0_35 = arith.constant 0 : index
    %c1_36 = arith.constant 1 : index
    %c2_37 = arith.constant 2 : index
    %c0_38 = arith.constant 0 : index
    %19 = vector.load %arg8[%c0_35, %c1_36, %c2_37, %c0_38] : memref<2x18x18x4xf32, #tpu.memory_space<vmem>>, vector<2x16x16x4xf32>
    %20 = vector.shape_cast %19 : vector<2x16x16x4xf32> to vector<512x4xf32>
    %c0_39 = arith.constant 0 : index
    %c20 = arith.constant 20 : index
    %21 = vector.load %arg9[%c0_39, %c20] : memref<512x36xf32, #tpu.memory_space<vmem>>, vector<512x4xf32>
    tpu.vector_store %arg9[%c0_39, %c20], %20 {strides = array<i32>} : memref<512x36xf32, #tpu.memory_space<vmem>>, vector<512x4xf32>,
    %c0_40 = arith.constant 0 : index
    %c2_41 = arith.constant 2 : index
    %c0_42 = arith.constant 0 : index
    %c0_43 = arith.constant 0 : index
    %22 = vector.load %arg8[%c0_40, %c2_41, %c0_42, %c0_43] : memref<2x18x18x4xf32, #tpu.memory_space<vmem>>, vector<2x16x16x4xf32>
    %23 = vector.shape_cast %22 : vector<2x16x16x4xf32> to vector<512x4xf32>
    %c0_44 = arith.constant 0 : index
    %c24 = arith.constant 24 : index
    %24 = vector.load %arg9[%c0_44, %c24] : memref<512x36xf32, #tpu.memory_space<vmem>>, vector<512x4xf32>
    tpu.vector_store %arg9[%c0_44, %c24], %23 {strides = array<i32>} : memref<512x36xf32, #tpu.memory_space<vmem>>, vector<512x4xf32>,
    %c0_45 = arith.constant 0 : index
    %c2_46 = arith.constant 2 : index
    %c1_47 = arith.constant 1 : index
    %c0_48 = arith.constant 0 : index
    %25 = vector.load %arg8[%c0_45, %c2_46, %c1_47, %c0_48] : memref<2x18x18x4xf32, #tpu.memory_space<vmem>>, vector<2x16x16x4xf32>
    %26 = vector.shape_cast %25 : vector<2x16x16x4xf32> to vector<512x4xf32>
    %c0_49 = arith.constant 0 : index
    %c28 = arith.constant 28 : index
    %27 = vector.load %arg9[%c0_49, %c28] : memref<512x36xf32, #tpu.memory_space<vmem>>, vector<512x4xf32>
    tpu.vector_store %arg9[%c0_49, %c28], %26 {strides = array<i32>} : memref<512x36xf32, #tpu.memory_space<vmem>>, vector<512x4xf32>,
    %c0_50 = arith.constant 0 : index
    %c2_51 = arith.constant 2 : index
    %c2_52 = arith.constant 2 : index
    %c0_53 = arith.constant 0 : index
    %28 = vector.load %arg8[%c0_50, %c2_51, %c2_52, %c0_53] : memref<2x18x18x4xf32, #tpu.memory_space<vmem>>, vector<2x16x16x4xf32>
    %29 = vector.shape_cast %28 : vector<2x16x16x4xf32> to vector<512x4xf32>
    %c0_54 = arith.constant 0 : index
    %c32 = arith.constant 32 : index
    %30 = vector.load %arg9[%c0_54, %c32] : memref<512x36xf32, #tpu.memory_space<vmem>>, vector<512x4xf32>
    tpu.vector_store %arg9[%c0_54, %c32], %29 {strides = array<i32>} : memref<512x36xf32, #tpu.memory_space<vmem>>, vector<512x4xf32>,
    %c0_55 = arith.constant 0 : index
    %c0_56 = arith.constant 0 : index
    %31 = vector.load %arg9[%c0_55, %c0_56] : memref<512x36xf32, #tpu.memory_space<vmem>>, vector<512x36xf32>
    %c0_57 = arith.constant 0 : index
    %c0_58 = arith.constant 0 : index
    %32 = vector.load %arg1[%c0_57, %c0_58] : memref<36x4xf32, #tpu.memory_space<vmem>>, vector<36x4xf32>
    %cst_59 = arith.constant dense<0.000000e+00> : vector<512x4xf32>
    %33 = tpu.matmul %31, %32, %cst_59 {dimension_numbers = #tpu.dot_dimension_numbers<[1], [0], [0], [1], [0, 0, 1, 1], [], []>} : vector<512x36xf32>, vector<36x4xf32>, vector<512x4xf32> -> vector<512x4xf32>
    %cst_60 = arith.constant dense<0.000000e+00> : vector<4xf32>
    %34 = vector.multi_reduction <add>, %33, %cst_60 [0] : vector<512x4xf32> to vector<4xf32>
    %35 = vector.shape_cast %34 : vector<4xf32> to vector<1x4xf32>
    %cst_61 = arith.constant 0.001953125 : f32
    %36 = vector.broadcast %cst_61 : f32 to vector<1x4xf32>
    %37 = arith.mulf %35, %36 : vector<1x4xf32>
    %38 = arith.mulf %33, %33 : vector<512x4xf32>
    %cst_62 = arith.constant dense<0.000000e+00> : vector<4xf32>
    %39 = vector.multi_reduction <add>, %38, %cst_62 [0] : vector<512x4xf32> to vector<4xf32>
    %40 = vector.shape_cast %39 : vector<4xf32> to vector<1x4xf32>
    %cst_63 = arith.constant 0.001953125 : f32
    %41 = vector.broadcast %cst_63 : f32 to vector<1x4xf32>
    %42 = arith.mulf %40, %41 : vector<1x4xf32>
    %43 = arith.mulf %37, %37 : vector<1x4xf32>
    %44 = arith.subf %42, %43 : vector<1x4xf32>
    %c0_64 = arith.constant 0 : index
    %c0_65 = arith.constant 0 : index
    %45 = vector.load %arg3[%c0_64, %c0_65] : memref<1x4xf32, #tpu.memory_space<vmem>>, vector<1x4xf32>
    %cst_66 = arith.constant 9.99999974E-6 : f32
    %46 = vector.broadcast %cst_66 : f32 to vector<1x4xf32>
    %47 = arith.addf %44, %46 : vector<1x4xf32>
    %48 = math.rsqrt %47 : vector<1x4xf32>
    %49 = arith.mulf %45, %48 : vector<1x4xf32>
    %c0_67 = arith.constant 0 : index
    %c0_68 = arith.constant 0 : index
    %50 = vector.load %arg4[%c0_67, %c0_68] : memref<1x4xf32, #tpu.memory_space<vmem>>, vector<1x4xf32>
    %51 = arith.mulf %37, %49 : vector<1x4xf32>
    %52 = arith.subf %50, %51 : vector<1x4xf32>
    %53 = vector.broadcast %49 : vector<1x4xf32> to vector<512x4xf32>
    %54 = arith.mulf %33, %53 : vector<512x4xf32>
    %55 = vector.broadcast %52 : vector<1x4xf32> to vector<512x4xf32>
    %56 = arith.addf %54, %55 : vector<512x4xf32>
    %cst_69 = arith.constant 0.000000e+00 : f32
    %57 = vector.broadcast %cst_69 : f32 to vector<512x4xf32>
    %58 = arith.maximumf %56, %57 : vector<512x4xf32>
    %59 = vector.shape_cast %58 : vector<512x4xf32> to vector<2x16x16x4xf32>
    %c0_70 = arith.constant 0 : index
    %c1_71 = arith.constant 1 : index
    %c1_72 = arith.constant 1 : index
    %c0_73 = arith.constant 0 : index
    %60 = vector.load %arg8[%c0_70, %c1_71, %c1_72, %c0_73] : memref<2x18x18x4xf32, #tpu.memory_space<vmem>>, vector<2x16x16x4xf32>
    tpu.vector_store %arg8[%c0_70, %c1_71, %c1_72, %c0_73], %59 {strides = array<i32>} : memref<2x18x18x4xf32, #tpu.memory_space<vmem>>, vector<2x16x16x4xf32>,
    %c0_74 = arith.constant 0 : index
    %c0_75 = arith.constant 0 : index
    %c0_76 = arith.constant 0 : index
    %c0_77 = arith.constant 0 : index
    %61 = vector.load %arg8[%c0_74, %c0_75, %c0_76, %c0_77] : memref<2x18x18x4xf32, #tpu.memory_space<vmem>>, vector<2x16x16x4xf32>
    %62 = vector.shape_cast %61 : vector<2x16x16x4xf32> to vector<512x4xf32>
    %c0_78 = arith.constant 0 : index
    %c0_79 = arith.constant 0 : index
    %63 = vector.load %arg9[%c0_78, %c0_79] : memref<512x36xf32, #tpu.memory_space<vmem>>, vector<512x4xf32>
    tpu.vector_store %arg9[%c0_78, %c0_79], %62 {strides = array<i32>} : memref<512x36xf32, #tpu.memory_space<vmem>>, vector<512x4xf32>,
    %c0_80 = arith.constant 0 : index
    %c0_81 = arith.constant 0 : index
    %c1_82 = arith.constant 1 : index
    %c0_83 = arith.constant 0 : index
    %64 = vector.load %arg8[%c0_80, %c0_81, %c1_82, %c0_83] : memref<2x18x18x4xf32, #tpu.memory_space<vmem>>, vector<2x16x16x4xf32>
    %65 = vector.shape_cast %64 : vector<2x16x16x4xf32> to vector<512x4xf32>
    %c0_84 = arith.constant 0 : index
    %c4_85 = arith.constant 4 : index
    %66 = vector.load %arg9[%c0_84, %c4_85] : memref<512x36xf32, #tpu.memory_space<vmem>>, vector<512x4xf32>
    tpu.vector_store %arg9[%c0_84, %c4_85], %65 {strides = array<i32>} : memref<512x36xf32, #tpu.memory_space<vmem>>, vector<512x4xf32>,
    %c0_86 = arith.constant 0 : index
    %c0_87 = arith.constant 0 : index
    %c2_88 = arith.constant 2 : index
    %c0_89 = arith.constant 0 : index
    %67 = vector.load %arg8[%c0_86, %c0_87, %c2_88, %c0_89] : memref<2x18x18x4xf32, #tpu.memory_space<vmem>>, vector<2x16x16x4xf32>
    %68 = vector.shape_cast %67 : vector<2x16x16x4xf32> to vector<512x4xf32>
    %c0_90 = arith.constant 0 : index
    %c8_91 = arith.constant 8 : index
    %69 = vector.load %arg9[%c0_90, %c8_91] : memref<512x36xf32, #tpu.memory_space<vmem>>, vector<512x4xf32>
    tpu.vector_store %arg9[%c0_90, %c8_91], %68 {strides = array<i32>} : memref<512x36xf32, #tpu.memory_space<vmem>>, vector<512x4xf32>,
    %c0_92 = arith.constant 0 : index
    %c1_93 = arith.constant 1 : index
    %c0_94 = arith.constant 0 : index
    %c0_95 = arith.constant 0 : index
    %70 = vector.load %arg8[%c0_92, %c1_93, %c0_94, %c0_95] : memref<2x18x18x4xf32, #tpu.memory_space<vmem>>, vector<2x16x16x4xf32>
    %71 = vector.shape_cast %70 : vector<2x16x16x4xf32> to vector<512x4xf32>
    %c0_96 = arith.constant 0 : index
    %c12_97 = arith.constant 12 : index
    %72 = vector.load %arg9[%c0_96, %c12_97] : memref<512x36xf32, #tpu.memory_space<vmem>>, vector<512x4xf32>
    tpu.vector_store %arg9[%c0_96, %c12_97], %71 {strides = array<i32>} : memref<512x36xf32, #tpu.memory_space<vmem>>, vector<512x4xf32>,
    %c0_98 = arith.constant 0 : index
    %c1_99 = arith.constant 1 : index
    %c1_100 = arith.constant 1 : index
    %c0_101 = arith.constant 0 : index
    %73 = vector.load %arg8[%c0_98, %c1_99, %c1_100, %c0_101] : memref<2x18x18x4xf32, #tpu.memory_space<vmem>>, vector<2x16x16x4xf32>
    %74 = vector.shape_cast %73 : vector<2x16x16x4xf32> to vector<512x4xf32>
    %c0_102 = arith.constant 0 : index
    %c16_103 = arith.constant 16 : index
    %75 = vector.load %arg9[%c0_102, %c16_103] : memref<512x36xf32, #tpu.memory_space<vmem>>, vector<512x4xf32>
    tpu.vector_store %arg9[%c0_102, %c16_103], %74 {strides = array<i32>} : memref<512x36xf32, #tpu.memory_space<vmem>>, vector<512x4xf32>,
    %c0_104 = arith.constant 0 : index
    %c1_105 = arith.constant 1 : index
    %c2_106 = arith.constant 2 : index
    %c0_107 = arith.constant 0 : index
    %76 = vector.load %arg8[%c0_104, %c1_105, %c2_106, %c0_107] : memref<2x18x18x4xf32, #tpu.memory_space<vmem>>, vector<2x16x16x4xf32>
    %77 = vector.shape_cast %76 : vector<2x16x16x4xf32> to vector<512x4xf32>
    %c0_108 = arith.constant 0 : index
    %c20_109 = arith.constant 20 : index
    %78 = vector.load %arg9[%c0_108, %c20_109] : memref<512x36xf32, #tpu.memory_space<vmem>>, vector<512x4xf32>
    tpu.vector_store %arg9[%c0_108, %c20_109], %77 {strides = array<i32>} : memref<512x36xf32, #tpu.memory_space<vmem>>, vector<512x4xf32>,
    %c0_110 = arith.constant 0 : index
    %c2_111 = arith.constant 2 : index
    %c0_112 = arith.constant 0 : index
    %c0_113 = arith.constant 0 : index
    %79 = vector.load %arg8[%c0_110, %c2_111, %c0_112, %c0_113] : memref<2x18x18x4xf32, #tpu.memory_space<vmem>>, vector<2x16x16x4xf32>
    %80 = vector.shape_cast %79 : vector<2x16x16x4xf32> to vector<512x4xf32>
    %c0_114 = arith.constant 0 : index
    %c24_115 = arith.constant 24 : index
    %81 = vector.load %arg9[%c0_114, %c24_115] : memref<512x36xf32, #tpu.memory_space<vmem>>, vector<512x4xf32>
    tpu.vector_store %arg9[%c0_114, %c24_115], %80 {strides = array<i32>} : memref<512x36xf32, #tpu.memory_space<vmem>>, vector<512x4xf32>,
    %c0_116 = arith.constant 0 : index
    %c2_117 = arith.constant 2 : index
    %c1_118 = arith.constant 1 : index
    %c0_119 = arith.constant 0 : index
    %82 = vector.load %arg8[%c0_116, %c2_117, %c1_118, %c0_119] : memref<2x18x18x4xf32, #tpu.memory_space<vmem>>, vector<2x16x16x4xf32>
    %83 = vector.shape_cast %82 : vector<2x16x16x4xf32> to vector<512x4xf32>
    %c0_120 = arith.constant 0 : index
    %c28_121 = arith.constant 28 : index
    %84 = vector.load %arg9[%c0_120, %c28_121] : memref<512x36xf32, #tpu.memory_space<vmem>>, vector<512x4xf32>
    tpu.vector_store %arg9[%c0_120, %c28_121], %83 {strides = array<i32>} : memref<512x36xf32, #tpu.memory_space<vmem>>, vector<512x4xf32>,
    %c0_122 = arith.constant 0 : index
    %c2_123 = arith.constant 2 : index
    %c2_124 = arith.constant 2 : index
    %c0_125 = arith.constant 0 : index
    %85 = vector.load %arg8[%c0_122, %c2_123, %c2_124, %c0_125] : memref<2x18x18x4xf32, #tpu.memory_space<vmem>>, vector<2x16x16x4xf32>
    %86 = vector.shape_cast %85 : vector<2x16x16x4xf32> to vector<512x4xf32>
    %c0_126 = arith.constant 0 : index
    %c32_127 = arith.constant 32 : index
    %87 = vector.load %arg9[%c0_126, %c32_127] : memref<512x36xf32, #tpu.memory_space<vmem>>, vector<512x4xf32>
    tpu.vector_store %arg9[%c0_126, %c32_127], %86 {strides = array<i32>} : memref<512x36xf32, #tpu.memory_space<vmem>>, vector<512x4xf32>,
    %c0_128 = arith.constant 0 : index
    %c0_129 = arith.constant 0 : index
    %88 = vector.load %arg9[%c0_128, %c0_129] : memref<512x36xf32, #tpu.memory_space<vmem>>, vector<512x36xf32>
    %c0_130 = arith.constant 0 : index
    %c0_131 = arith.constant 0 : index
    %89 = vector.load %arg2[%c0_130, %c0_131] : memref<36x4xf32, #tpu.memory_space<vmem>>, vector<36x4xf32>
    %cst_132 = arith.constant dense<0.000000e+00> : vector<512x4xf32>
    %90 = tpu.matmul %88, %89, %cst_132 {dimension_numbers = #tpu.dot_dimension_numbers<[1], [0], [0], [1], [0, 0, 1, 1], [], []>} : vector<512x36xf32>, vector<36x4xf32>, vector<512x4xf32> -> vector<512x4xf32>
    %cst_133 = arith.constant dense<0.000000e+00> : vector<4xf32>
    %91 = vector.multi_reduction <add>, %90, %cst_133 [0] : vector<512x4xf32> to vector<4xf32>
    %92 = vector.shape_cast %91 : vector<4xf32> to vector<1x4xf32>
    %cst_134 = arith.constant 0.001953125 : f32
    %93 = vector.broadcast %cst_134 : f32 to vector<1x4xf32>
    %94 = arith.mulf %92, %93 : vector<1x4xf32>
    %95 = arith.mulf %90, %90 : vector<512x4xf32>
    %cst_135 = arith.constant dense<0.000000e+00> : vector<4xf32>
    %96 = vector.multi_reduction <add>, %95, %cst_135 [0] : vector<512x4xf32> to vector<4xf32>
    %97 = vector.shape_cast %96 : vector<4xf32> to vector<1x4xf32>
    %cst_136 = arith.constant 0.001953125 : f32
    %98 = vector.broadcast %cst_136 : f32 to vector<1x4xf32>
    %99 = arith.mulf %97, %98 : vector<1x4xf32>
    %100 = arith.mulf %94, %94 : vector<1x4xf32>
    %101 = arith.subf %99, %100 : vector<1x4xf32>
    %c0_137 = arith.constant 0 : index
    %c0_138 = arith.constant 0 : index
    %102 = vector.load %arg5[%c0_137, %c0_138] : memref<1x4xf32, #tpu.memory_space<vmem>>, vector<1x4xf32>
    %cst_139 = arith.constant 9.99999974E-6 : f32
    %103 = vector.broadcast %cst_139 : f32 to vector<1x4xf32>
    %104 = arith.addf %101, %103 : vector<1x4xf32>
    %105 = math.rsqrt %104 : vector<1x4xf32>
    %106 = arith.mulf %102, %105 : vector<1x4xf32>
    %c0_140 = arith.constant 0 : index
    %c0_141 = arith.constant 0 : index
    %107 = vector.load %arg6[%c0_140, %c0_141] : memref<1x4xf32, #tpu.memory_space<vmem>>, vector<1x4xf32>
    %108 = arith.mulf %94, %106 : vector<1x4xf32>
    %109 = arith.subf %107, %108 : vector<1x4xf32>
    %110 = vector.broadcast %106 : vector<1x4xf32> to vector<512x4xf32>
    %111 = arith.mulf %90, %110 : vector<512x4xf32>
    %112 = vector.broadcast %109 : vector<1x4xf32> to vector<512x4xf32>
    %113 = arith.addf %111, %112 : vector<512x4xf32>
    %114 = vector.shape_cast %2 : vector<2x16x16x4xf32> to vector<512x4xf32>
    %115 = arith.addf %113, %114 : vector<512x4xf32>
    %cst_142 = arith.constant 0.000000e+00 : f32
    %116 = vector.broadcast %cst_142 : f32 to vector<512x4xf32>
    %117 = arith.maximumf %115, %116 : vector<512x4xf32>
    %118 = tpu.transpose %117, [1, 0] : vector<512x4xf32> -> vector<4x512xf32>
    %c0_143 = arith.constant 0 : index
    %c0_144 = arith.constant 0 : index
    %119 = vector.load %arg7[%c0_143, %c0_144] : memref<4x512xf32, #tpu.memory_space<vmem>>, vector<4x512xf32>
    tpu.vector_store %arg7[%c0_143, %c0_144], %118 {strides = array<i32>} : memref<4x512xf32, #tpu.memory_space<vmem>>, vector<4x512xf32>,
    return
  }
}

</mosaic_0001>

<llo_original>
// kernel: identi_block.1
$region0: #{identi_block.1}
  #allocation0 [shape = 'u32[]', space=smem, size = 0x4, offset = 0x4, fixed_abs, tag = 'smem constant byte address 0x4 - core index']
  #allocation1 [shape = 'u32[144,128]{1,0:T(1,128)}', space=vmem, size = 0x12000, scoped, tag = 'internal scratch']
  #allocation2 [shape = 'f32[2,18,18,4]{3,2,1,0:T(8,128)}', space=vmem, size = 0x6c000, scoped, tag = 'scratch operand']
  #allocation3 [shape = 'f32[512,36]{1,0:T(8,128)}', space=vmem, size = 0x40000, scoped, tag = 'scratch operand']
  %s0 = inlined_call_operand.vmem [shape: f32[2,16,16,4], index: 0, kind: input, shape index: {}]
  %s1 = inlined_call_operand.vmem [shape: f32[36,4], index: 1, kind: input, shape index: {}]
  %s2 = inlined_call_operand.vmem [shape: f32[36,4], index: 2, kind: input, shape index: {}]
  %s3 = inlined_call_operand.vmem [shape: f32[1,4], index: 3, kind: input, shape index: {}]
  %s4 = inlined_call_operand.vmem [shape: f32[1,4], index: 4, kind: input, shape index: {}]
  %s5 = inlined_call_operand.vmem [shape: f32[1,4], index: 5, kind: input, shape index: {}]
  %s6 = inlined_call_operand.vmem [shape: f32[1,4], index: 6, kind: input, shape index: {}]
  %s7 = inlined_call_operand.vmem [shape: f32[4,512], index: 7, kind: output, shape index: {}]
  %s8 = sld [smem:[#allocation0]]
  $region38: #{identi_block.1} parent=0
    _
  %s10 = ssub.s32 1, %s8
  %s11 = scalar_select 0, %s10, %s8
  // Predicated region
  $region2: #{identi_block.1} parent=0 // pred_check
    _
  $region3: #{identi_block.1} parent=0 // pred_check_branch
    %13 = sbr.rel (0) target = $region5
  $region4: #{identi_block.1} parent=0 // pred_region
    _
  $region5: #{identi_block.1} parent=0 // pred_fallthru
    _
  // Predicated region
  $region6: #{identi_block.1} parent=0 // pred_check
    _
  $region7: #{identi_block.1} parent=0 // pred_check_branch
    %15 = sbr.rel (0) target = $region9
  $region8: #{identi_block.1} parent=0 // pred_region
    _
  $region9: #{identi_block.1} parent=0 // pred_fallthru
    _
  // Predicated region
  $region10: #{identi_block.1} parent=0 // pred_check
    _
  $region11: #{identi_block.1} parent=0 // pred_check_branch
    %17 = sbr.rel (0) target = $region13
  $region12: #{identi_block.1} parent=0 // pred_region
    _
  $region13: #{identi_block.1} parent=0 // pred_fallthru
    _
  // Predicated region
  $region14: #{identi_block.1} parent=0 // pred_check
    _
  $region15: #{identi_block.1} parent=0 // pred_check_branch
    %19 = sbr.rel (0) target = $region17
  $region16: #{identi_block.1} parent=0 // pred_region
    _
  $region17: #{identi_block.1} parent=0 // pred_fallthru
    _
  // Predicated region
  $region18: #{identi_block.1} parent=0 // pred_check
    _
  $region19: #{identi_block.1} parent=0 // pred_check_branch
    %21 = sbr.rel (0) target = $region21
  $region20: #{identi_block.1} parent=0 // pred_region
    _
  $region21: #{identi_block.1} parent=0 // pred_fallthru
    _
  // Predicated region
  $region22: #{identi_block.1} parent=0 // pred_check
    _
  $region23: #{identi_block.1} parent=0 // pred_check_branch
    %23 = sbr.rel (0) target = $region25
  $region24: #{identi_block.1} parent=0 // pred_region
    _
  $region25: #{identi_block.1} parent=0 // pred_fallthru
    _
  // Predicated region
  $region26: #{identi_block.1} parent=0 // pred_check
    _
  $region27: #{identi_block.1} parent=0 // pred_check_branch
    %25 = sbr.rel (0) target = $region29
  $region28: #{identi_block.1} parent=0 // pred_region
    _
  $region29: #{identi_block.1} parent=0 // pred_fallthru
    _
  %vm26 = vcmask 31744
  %27 = vst.msk [vmem:[#allocation2] sm:$0xff] %vm26, 0.0
  %28 = vst.msk [vmem:[#allocation2 + $0x8] sm:$0xff] %vm26, 0.0
  %vm29 = vcmask 25600
  %30 = vst.msk [vmem:[#allocation2 + $0x10] sm:$0x3] %vm29, 0.0
  %31 = vst.msk [vmem:[#allocation2 + $0x18] sm:$0xff] %vm26, 0.0
  %32 = vst.msk [vmem:[#allocation2 + $0x20] sm:$0xff] %vm26, 0.0
  %33 = vst.msk [vmem:[#allocation2 + $0x28] sm:$0x3] %vm29, 0.0
  %34 = vst.msk [vmem:[#allocation2 + $0x30] sm:$0xff] %vm26, 0.0
  %35 = vst.msk [vmem:[#allocation2 + $0x38] sm:$0xff] %vm26, 0.0
  %36 = vst.msk [vmem:[#allocation2 + $0x40] sm:$0x3] %vm29, 0.0
  %37 = vst.msk [vmem:[#allocation2 + $0x48] sm:$0xff] %vm26, 0.0
  %38 = vst.msk [vmem:[#allocation2 + $0x50] sm:$0xff] %vm26, 0.0
  %39 = vst.msk [vmem:[#allocation2 + $0x58] sm:$0x3] %vm29, 0.0
  %40 = vst.msk [vmem:[#allocation2 + $0x60] sm:$0xff] %vm26, 0.0
  %41 = vst.msk [vmem:[#allocation2 + $0x68] sm:$0xff] %vm26, 0.0
  %42 = vst.msk [vmem:[#allocation2 + $0x70] sm:$0x3] %vm29, 0.0
  %43 = vst.msk [vmem:[#allocation2 + $0x78] sm:$0xff] %vm26, 0.0
  %44 = vst.msk [vmem:[#allocation2 + $0x80] sm:$0xff] %vm26, 0.0
  %45 = vst.msk [vmem:[#allocation2 + $0x88] sm:$0x3] %vm29, 0.0
  %46 = vst.msk [vmem:[#allocation2 + $0x90] sm:$0xff] %vm26, 0.0
  %47 = vst.msk [vmem:[#allocation2 + $0x98] sm:$0xff] %vm26, 0.0
  %48 = vst.msk [vmem:[#allocation2 + $0xa0] sm:$0x3] %vm29, 0.0
  %49 = vst.msk [vmem:[#allocation2 + $0xa8] sm:$0xff] %vm26, 0.0
  %50 = vst.msk [vmem:[#allocation2 + $0xb0] sm:$0xff] %vm26, 0.0
  %51 = vst.msk [vmem:[#allocation2 + $0xb8] sm:$0x3] %vm29, 0.0
  %52 = vst.msk [vmem:[#allocation2 + $0xc0] sm:$0xff] %vm26, 0.0
  %53 = vst.msk [vmem:[#allocation2 + $0xc8] sm:$0xff] %vm26, 0.0
  %54 = vst.msk [vmem:[#allocation2 + $0xd0] sm:$0x3] %vm29, 0.0
  %55 = vst.msk [vmem:[#allocation2 + $0xd8] sm:$0xff] %vm26, 0.0
  %56 = vst.msk [vmem:[#allocation2 + $0xe0] sm:$0xff] %vm26, 0.0
  %57 = vst.msk [vmem:[#allocation2 + $0xe8] sm:$0x3] %vm29, 0.0
  %58 = vst.msk [vmem:[#allocation2 + $0xf0] sm:$0xff] %vm26, 0.0
  %59 = vst.msk [vmem:[#allocation2 + $0xf8] sm:$0xff] %vm26, 0.0
  %60 = vst.msk [vmem:[#allocation2 + $0x100] sm:$0x3] %vm29, 0.0
  %61 = vst.msk [vmem:[#allocation2 + $0x108] sm:$0xff] %vm26, 0.0
  %62 = vst.msk [vmem:[#allocation2 + $0x110] sm:$0xff] %vm26, 0.0
  %63 = vst.msk [vmem:[#allocation2 + $0x118] sm:$0x3] %vm29, 0.0
  %64 = vst.msk [vmem:[#allocation2 + $0x120] sm:$0xff] %vm26, 0.0
  %65 = vst.msk [vmem:[#allocation2 + $0x128] sm:$0xff] %vm26, 0.0
  %66 = vst.msk [vmem:[#allocation2 + $0x130] sm:$0x3] %vm29, 0.0
  %67 = vst.msk [vmem:[#allocation2 + $0x138] sm:$0xff] %vm26, 0.0
  %68 = vst.msk [vmem:[#allocation2 + $0x140] sm:$0xff] %vm26, 0.0
  %69 = vst.msk [vmem:[#allocation2 + $0x148] sm:$0x3] %vm29, 0.0
  %70 = vst.msk [vmem:[#allocation2 + $0x150] sm:$0xff] %vm26, 0.0
  %71 = vst.msk [vmem:[#allocation2 + $0x158] sm:$0xff] %vm26, 0.0
  %72 = vst.msk [vmem:[#allocation2 + $0x160] sm:$0x3] %vm29, 0.0
  %73 = vst.msk [vmem:[#allocation2 + $0x168] sm:$0xff] %vm26, 0.0
  %74 = vst.msk [vmem:[#allocation2 + $0x170] sm:$0xff] %vm26, 0.0
  %75 = vst.msk [vmem:[#allocation2 + $0x178] sm:$0x3] %vm29, 0.0
  %76 = vst.msk [vmem:[#allocation2 + $0x180] sm:$0xff] %vm26, 0.0
  %77 = vst.msk [vmem:[#allocation2 + $0x188] sm:$0xff] %vm26, 0.0
  %78 = vst.msk [vmem:[#allocation2 + $0x190] sm:$0x3] %vm29, 0.0
  %79 = vst.msk [vmem:[#allocation2 + $0x198] sm:$0xff] %vm26, 0.0
  %80 = vst.msk [vmem:[#allocation2 + $0x1a0] sm:$0xff] %vm26, 0.0
  %81 = vst.msk [vmem:[#allocation2 + $0x1a8] sm:$0x3] %vm29, 0.0
  %82 = vst.msk [vmem:[#allocation2 + $0x1b0] sm:$0xff] %vm26, 0.0
  %83 = vst.msk [vmem:[#allocation2 + $0x1b8] sm:$0xff] %vm26, 0.0
  %84 = vst.msk [vmem:[#allocation2 + $0x1c0] sm:$0x3] %vm29, 0.0
  %85 = vst.msk [vmem:[#allocation2 + $0x1c8] sm:$0xff] %vm26, 0.0
  %86 = vst.msk [vmem:[#allocation2 + $0x1d0] sm:$0xff] %vm26, 0.0
  %87 = vst.msk [vmem:[#allocation2 + $0x1d8] sm:$0x3] %vm29, 0.0
  %88 = vst.msk [vmem:[#allocation2 + $0x1e0] sm:$0xff] %vm26, 0.0
  %89 = vst.msk [vmem:[#allocation2 + $0x1e8] sm:$0xff] %vm26, 0.0
  %90 = vst.msk [vmem:[#allocation2 + $0x1f0] sm:$0x3] %vm29, 0.0
  %91 = vst.msk [vmem:[#allocation2 + $0x1f8] sm:$0xff] %vm26, 0.0
  %92 = vst.msk [vmem:[#allocation2 + $0x200] sm:$0xff] %vm26, 0.0
  %93 = vst.msk [vmem:[#allocation2 + $0x208] sm:$0x3] %vm29, 0.0
  %94 = vst.msk [vmem:[#allocation2 + $0x210] sm:$0xff] %vm26, 0.0
  %95 = vst.msk [vmem:[#allocation2 + $0x218] sm:$0xff] %vm26, 0.0
  %96 = vst.msk [vmem:[#allocation2 + $0x220] sm:$0x3] %vm29, 0.0
  %97 = vst.msk [vmem:[#allocation2 + $0x228] sm:$0xff] %vm26, 0.0
  %98 = vst.msk [vmem:[#allocation2 + $0x230] sm:$0xff] %vm26, 0.0
  %99 = vst.msk [vmem:[#allocation2 + $0x238] sm:$0x3] %vm29, 0.0
  %100 = vst.msk [vmem:[#allocation2 + $0x240] sm:$0xff] %vm26, 0.0
  %101 = vst.msk [vmem:[#allocation2 + $0x248] sm:$0xff] %vm26, 0.0
  %102 = vst.msk [vmem:[#allocation2 + $0x250] sm:$0x3] %vm29, 0.0
  %103 = vst.msk [vmem:[#allocation2 + $0x258] sm:$0xff] %vm26, 0.0
  %104 = vst.msk [vmem:[#allocation2 + $0x260] sm:$0xff] %vm26, 0.0
  %105 = vst.msk [vmem:[#allocation2 + $0x268] sm:$0x3] %vm29, 0.0
  %106 = vst.msk [vmem:[#allocation2 + $0x270] sm:$0xff] %vm26, 0.0
  %107 = vst.msk [vmem:[#allocation2 + $0x278] sm:$0xff] %vm26, 0.0
  %108 = vst.msk [vmem:[#allocation2 + $0x280] sm:$0x3] %vm29, 0.0
  %109 = vst.msk [vmem:[#allocation2 + $0x288] sm:$0xff] %vm26, 0.0
  %110 = vst.msk [vmem:[#allocation2 + $0x290] sm:$0xff] %vm26, 0.0
  %111 = vst.msk [vmem:[#allocation2 + $0x298] sm:$0x3] %vm29, 0.0
  %112 = vst.msk [vmem:[#allocation2 + $0x2a0] sm:$0xff] %vm26, 0.0
  %113 = vst.msk [vmem:[#allocation2 + $0x2a8] sm:$0xff] %vm26, 0.0
  %114 = vst.msk [vmem:[#allocation2 + $0x2b0] sm:$0x3] %vm29, 0.0
  %115 = vst.msk [vmem:[#allocation2 + $0x2b8] sm:$0xff] %vm26, 0.0
  %116 = vst.msk [vmem:[#allocation2 + $0x2c0] sm:$0xff] %vm26, 0.0
  %117 = vst.msk [vmem:[#allocation2 + $0x2c8] sm:$0x3] %vm29, 0.0
  %118 = vst.msk [vmem:[#allocation2 + $0x2d0] sm:$0xff] %vm26, 0.0
  %119 = vst.msk [vmem:[#allocation2 + $0x2d8] sm:$0xff] %vm26, 0.0
  %120 = vst.msk [vmem:[#allocation2 + $0x2e0] sm:$0x3] %vm29, 0.0
  %121 = vst.msk [vmem:[#allocation2 + $0x2e8] sm:$0xff] %vm26, 0.0
  %122 = vst.msk [vmem:[#allocation2 + $0x2f0] sm:$0xff] %vm26, 0.0
  %123 = vst.msk [vmem:[#allocation2 + $0x2f8] sm:$0x3] %vm29, 0.0
  %124 = vst.msk [vmem:[#allocation2 + $0x300] sm:$0xff] %vm26, 0.0
  %125 = vst.msk [vmem:[#allocation2 + $0x308] sm:$0xff] %vm26, 0.0
  %126 = vst.msk [vmem:[#allocation2 + $0x310] sm:$0x3] %vm29, 0.0
  %127 = vst.msk [vmem:[#allocation2 + $0x318] sm:$0xff] %vm26, 0.0
  %128 = vst.msk [vmem:[#allocation2 + $0x320] sm:$0xff] %vm26, 0.0
  %129 = vst.msk [vmem:[#allocation2 + $0x328] sm:$0x3] %vm29, 0.0
  %130 = vst.msk [vmem:[#allocation2 + $0x330] sm:$0xff] %vm26, 0.0
  %131 = vst.msk [vmem:[#allocation2 + $0x338] sm:$0xff] %vm26, 0.0
  %132 = vst.msk [vmem:[#allocation2 + $0x340] sm:$0x3] %vm29, 0.0
  %133 = vst.msk [vmem:[#allocation2 + $0x348] sm:$0xff] %vm26, 0.0
  %134 = vst.msk [vmem:[#allocation2 + $0x350] sm:$0xff] %vm26, 0.0
  %135 = vst.msk [vmem:[#allocation2 + $0x358] sm:$0x3] %vm29, 0.0
  %v136 = vld [vmem:[%s0] sm:$0xff]
  %v137 = vld [vmem:[%s0 + $0x8] sm:$0xff]
  %v138 = vld [vmem:[%s0 + $0x10] sm:$0xff]
  %v139 = vld [vmem:[%s0 + $0x18] sm:$0xff]
  %v140 = vld [vmem:[%s0 + $0x20] sm:$0xff]
  %v141 = vld [vmem:[%s0 + $0x28] sm:$0xff]
  %v142 = vld [vmem:[%s0 + $0x30] sm:$0xff]
  %v143 = vld [vmem:[%s0 + $0x38] sm:$0xff]
  %v144 = vld [vmem:[%s0 + $0x40] sm:$0xff]
  %v145 = vld [vmem:[%s0 + $0x48] sm:$0xff]
  %v146 = vld [vmem:[%s0 + $0x50] sm:$0xff]
  %v147 = vld [vmem:[%s0 + $0x58] sm:$0xff]
  %v148 = vld [vmem:[%s0 + $0x60] sm:$0xff]
  %v149 = vld [vmem:[%s0 + $0x68] sm:$0xff]
  %v150 = vld [vmem:[%s0 + $0x70] sm:$0xff]
  %v151 = vld [vmem:[%s0 + $0x78] sm:$0xff]
  %v152 = vld [vmem:[%s0 + $0x80] sm:$0xff]
  %v153 = vld [vmem:[%s0 + $0x88] sm:$0xff]
  %v154 = vld [vmem:[%s0 + $0x90] sm:$0xff]
  %v155 = vld [vmem:[%s0 + $0x98] sm:$0xff]
  %v156 = vld [vmem:[%s0 + $0xa0] sm:$0xff]
  %v157 = vld [vmem:[%s0 + $0xa8] sm:$0xff]
  %v158 = vld [vmem:[%s0 + $0xb0] sm:$0xff]
  %v159 = vld [vmem:[%s0 + $0xb8] sm:$0xff]
  %v160 = vld [vmem:[%s0 + $0xc0] sm:$0xff]
  %v161 = vld [vmem:[%s0 + $0xc8] sm:$0xff]
  %v162 = vld [vmem:[%s0 + $0xd0] sm:$0xff]
  %v163 = vld [vmem:[%s0 + $0xd8] sm:$0xff]
  %v164 = vld [vmem:[%s0 + $0xe0] sm:$0xff]
  %v165 = vld [vmem:[%s0 + $0xe8] sm:$0xff]
  %v166 = vld [vmem:[%s0 + $0xf0] sm:$0xff]
  %v167 = vld [vmem:[%s0 + $0xf8] sm:$0xff]
  %v168 = vld [vmem:[%s0 + $0x100] sm:$0xff]
  %v169 = vld [vmem:[%s0 + $0x108] sm:$0xff]
  %v170 = vld [vmem:[%s0 + $0x110] sm:$0xff]
  %v171 = vld [vmem:[%s0 + $0x118] sm:$0xff]
  %v172 = vld [vmem:[%s0 + $0x120] sm:$0xff]
  %v173 = vld [vmem:[%s0 + $0x128] sm:$0xff]
  %v174 = vld [vmem:[%s0 + $0x130] sm:$0xff]
  %v175 = vld [vmem:[%s0 + $0x138] sm:$0xff]
  %v176 = vld [vmem:[%s0 + $0x140] sm:$0xff]
  %v177 = vld [vmem:[%s0 + $0x148] sm:$0xff]
  %v178 = vld [vmem:[%s0 + $0x150] sm:$0xff]
  %v179 = vld [vmem:[%s0 + $0x158] sm:$0xff]
  %v180 = vld [vmem:[%s0 + $0x160] sm:$0xff]
  %v181 = vld [vmem:[%s0 + $0x168] sm:$0xff]
  %v182 = vld [vmem:[%s0 + $0x170] sm:$0xff]
  %v183 = vld [vmem:[%s0 + $0x178] sm:$0xff]
  %v184 = vld [vmem:[%s0 + $0x180] sm:$0xff]
  %v185 = vld [vmem:[%s0 + $0x188] sm:$0xff]
  %v186 = vld [vmem:[%s0 + $0x190] sm:$0xff]
  %v187 = vld [vmem:[%s0 + $0x198] sm:$0xff]
  %v188 = vld [vmem:[%s0 + $0x1a0] sm:$0xff]
  %v189 = vld [vmem:[%s0 + $0x1a8] sm:$0xff]
  %v190 = vld [vmem:[%s0 + $0x1b0] sm:$0xff]
  %v191 = vld [vmem:[%s0 + $0x1b8] sm:$0xff]
  %v192 = vld [vmem:[%s0 + $0x1c0] sm:$0xff]
  %v193 = vld [vmem:[%s0 + $0x1c8] sm:$0xff]
  %v194 = vld [vmem:[%s0 + $0x1d0] sm:$0xff]
  %v195 = vld [vmem:[%s0 + $0x1d8] sm:$0xff]
  %v196 = vld [vmem:[%s0 + $0x1e0] sm:$0xff]
  %v197 = vld [vmem:[%s0 + $0x1e8] sm:$0xff]
  %v198 = vld [vmem:[%s0 + $0x1f0] sm:$0xff]
  %v199 = vld [vmem:[%s0 + $0x1f8] sm:$0xff]
  %s200 = scalar_lea.vmem [#allocation2], 24
  %201 = vst.msk [vmem:[%s200 + $0x1] sm:$0xff] %vm26, %v136
  %202 = vst.msk [vmem:[%s200 + $0x9] sm:$0xff] %vm26, %v137
  %203 = vst.msk [vmem:[%s200 + $0x19] sm:$0xff] %vm26, %v138
  %204 = vst.msk [vmem:[%s200 + $0x21] sm:$0xff] %vm26, %v139
  %205 = vst.msk [vmem:[%s200 + $0x31] sm:$0xff] %vm26, %v140
  %206 = vst.msk [vmem:[%s200 + $0x39] sm:$0xff] %vm26, %v141
  %207 = vst.msk [vmem:[%s200 + $0x49] sm:$0xff] %vm26, %v142
  %208 = vst.msk [vmem:[%s200 + $0x51] sm:$0xff] %vm26, %v143
  %209 = vst.msk [vmem:[%s200 + $0x61] sm:$0xff] %vm26, %v144
  %210 = vst.msk [vmem:[%s200 + $0x69] sm:$0xff] %vm26, %v145
  %211 = vst.msk [vmem:[%s200 + $0x79] sm:$0xff] %vm26, %v146
  %212 = vst.msk [vmem:[%s200 + $0x81] sm:$0xff] %vm26, %v147
  %213 = vst.msk [vmem:[%s200 + $0x91] sm:$0xff] %vm26, %v148
  %214 = vst.msk [vmem:[%s200 + $0x99] sm:$0xff] %vm26, %v149
  %215 = vst.msk [vmem:[%s200 + $0xa9] sm:$0xff] %vm26, %v150
  %216 = vst.msk [vmem:[%s200 + $0xb1] sm:$0xff] %vm26, %v151
  %217 = vst.msk [vmem:[%s200 + $0xc1] sm:$0xff] %vm26, %v152
  %218 = vst.msk [vmem:[%s200 + $0xc9] sm:$0xff] %vm26, %v153
  %219 = vst.msk [vmem:[%s200 + $0xd9] sm:$0xff] %vm26, %v154
  %220 = vst.msk [vmem:[%s200 + $0xe1] sm:$0xff] %vm26, %v155
  %221 = vst.msk [vmem:[%s200 + $0xf1] sm:$0xff] %vm26, %v156
  %222 = vst.msk [vmem:[%s200 + $0xf9] sm:$0xff] %vm26, %v157
  %223 = vst.msk [vmem:[%s200 + $0x109] sm:$0xff] %vm26, %v158
  %224 = vst.msk [vmem:[%s200 + $0x111] sm:$0xff] %vm26, %v159
  %225 = vst.msk [vmem:[%s200 + $0x121] sm:$0xff] %vm26, %v160
  %226 = vst.msk [vmem:[%s200 + $0x129] sm:$0xff] %vm26, %v161
  %227 = vst.msk [vmem:[%s200 + $0x139] sm:$0xff] %vm26, %v162
  %228 = vst.msk [vmem:[%s200 + $0x141] sm:$0xff] %vm26, %v163
  %229 = vst.msk [vmem:[%s200 + $0x151] sm:$0xff] %vm26, %v164
  %230 = vst.msk [vmem:[%s200 + $0x159] sm:$0xff] %vm26, %v165
  %231 = vst.msk [vmem:[%s200 + $0x169] sm:$0xff] %vm26, %v166
  %232 = vst.msk [vmem:[%s200 + $0x171] sm:$0xff] %vm26, %v167
  %233 = vst.msk [vmem:[%s200 + $0x1b1] sm:$0xff] %vm26, %v168
  %234 = vst.msk [vmem:[%s200 + $0x1b9] sm:$0xff] %vm26, %v169
  %235 = vst.msk [vmem:[%s200 + $0x1c9] sm:$0xff] %vm26, %v170
  %236 = vst.msk [vmem:[%s200 + $0x1d1] sm:$0xff] %vm26, %v171
  %237 = vst.msk [vmem:[%s200 + $0x1e1] sm:$0xff] %vm26, %v172
  %238 = vst.msk [vmem:[%s200 + $0x1e9] sm:$0xff] %vm26, %v173
  %239 = vst.msk [vmem:[%s200 + $0x1f9] sm:$0xff] %vm26, %v174
  %240 = vst.msk [vmem:[%s200 + $0x201] sm:$0xff] %vm26, %v175
  %241 = vst.msk [vmem:[%s200 + $0x211] sm:$0xff] %vm26, %v176
  %242 = vst.msk [vmem:[%s200 + $0x219] sm:$0xff] %vm26, %v177
  %243 = vst.msk [vmem:[%s200 + $0x229] sm:$0xff] %vm26, %v178
  %244 = vst.msk [vmem:[%s200 + $0x231] sm:$0xff] %vm26, %v179
  %245 = vst.msk [vmem:[%s200 + $0x241] sm:$0xff] %vm26, %v180
  %246 = vst.msk [vmem:[%s200 + $0x249] sm:$0xff] %vm26, %v181
  %247 = vst.msk [vmem:[%s200 + $0x259] sm:$0xff] %vm26, %v182
  %248 = vst.msk [vmem:[%s200 + $0x261] sm:$0xff] %vm26, %v183
  %249 = vst.msk [vmem:[%s200 + $0x271] sm:$0xff] %vm26, %v184
  %250 = vst.msk [vmem:[%s200 + $0x279] sm:$0xff] %vm26, %v185
  %251 = vst.msk [vmem:[%s200 + $0x289] sm:$0xff] %vm26, %v186
  %252 = vst.msk [vmem:[%s200 + $0x291] sm:$0xff] %vm26, %v187
  %253 = vst.msk [vmem:[%s200 + $0x2a1] sm:$0xff] %vm26, %v188
  %254 = vst.msk [vmem:[%s200 + $0x2a9] sm:$0xff] %vm26, %v189
  %255 = vst.msk [vmem:[%s200 + $0x2b9] sm:$0xff] %vm26, %v190
  %256 = vst.msk [vmem:[%s200 + $0x2c1] sm:$0xff] %vm26, %v191
  %257 = vst.msk [vmem:[%s200 + $0x2d1] sm:$0xff] %vm26, %v192
  %258 = vst.msk [vmem:[%s200 + $0x2d9] sm:$0xff] %vm26, %v193
  %259 = vst.msk [vmem:[%s200 + $0x2e9] sm:$0xff] %vm26, %v194
  %260 = vst.msk [vmem:[%s200 + $0x2f1] sm:$0xff] %vm26, %v195
  %261 = vst.msk [vmem:[%s200 + $0x301] sm:$0xff] %vm26, %v196
  %262 = vst.msk [vmem:[%s200 + $0x309] sm:$0xff] %vm26, %v197
  %263 = vst.msk [vmem:[%s200 + $0x319] sm:$0xff] %vm26, %v198
  %264 = vst.msk [vmem:[%s200 + $0x321] sm:$0xff] %vm26, %v199
  %v265 = vld [vmem:[#allocation2] sm:$0xff]
  %v266 = vld [vmem:[#allocation2 + $0x8] sm:$0xff]
  %v267 = vld [vmem:[#allocation2 + $0x18] sm:$0xff]
  %v268 = vld [vmem:[#allocation2 + $0x20] sm:$0xff]
  %v269 = vld [vmem:[#allocation2 + $0x30] sm:$0xff]
  %v270 = vld [vmem:[#allocation2 + $0x38] sm:$0xff]
  %v271 = vld [vmem:[#allocation2 + $0x48] sm:$0xff]
  %v272 = vld [vmem:[#allocation2 + $0x50] sm:$0xff]
  %v273 = vld [vmem:[#allocation2 + $0x60] sm:$0xff]
  %v274 = vld [vmem:[#allocation2 + $0x68] sm:$0xff]
  %v275 = vld [vmem:[#allocation2 + $0x78] sm:$0xff]
  %v276 = vld [vmem:[#allocation2 + $0x80] sm:$0xff]
  %v277 = vld [vmem:[#allocation2 + $0x90] sm:$0xff]
  %v278 = vld [vmem:[#allocation2 + $0x98] sm:$0xff]
  %v279 = vld [vmem:[#allocation2 + $0xa8] sm:$0xff]
  %v280 = vld [vmem:[#allocation2 + $0xb0] sm:$0xff]
  %v281 = vld [vmem:[#allocation2 + $0xc0] sm:$0xff]
  %v282 = vld [vmem:[#allocation2 + $0xc8] sm:$0xff]
  %v283 = vld [vmem:[#allocation2 + $0xd8] sm:$0xff]
  %v284 = vld [vmem:[#allocation2 + $0xe0] sm:$0xff]
  %v285 = vld [vmem:[#allocation2 + $0xf0] sm:$0xff]
  %v286 = vld [vmem:[#allocation2 + $0xf8] sm:$0xff]
  %v287 = vld [vmem:[#allocation2 + $0x108] sm:$0xff]
  %v288 = vld [vmem:[#allocation2 + $0x110] sm:$0xff]
  %v289 = vld [vmem:[#allocation2 + $0x120] sm:$0xff]
  %v290 = vld [vmem:[#allocation2 + $0x128] sm:$0xff]
  %v291 = vld [vmem:[#allocation2 + $0x138] sm:$0xff]
  %v292 = vld [vmem:[#allocation2 + $0x140] sm:$0xff]
  %v293 = vld [vmem:[#allocation2 + $0x150] sm:$0xff]
  %v294 = vld [vmem:[#allocation2 + $0x158] sm:$0xff]
  %v295 = vld [vmem:[#allocation2 + $0x168] sm:$0xff]
  %v296 = vld [vmem:[#allocation2 + $0x170] sm:$0xff]
  %v297 = vld [vmem:[#allocation2 + $0x1b0] sm:$0xff]
  %v298 = vld [vmem:[#allocation2 + $0x1b8] sm:$0xff]
  %v299 = vld [vmem:[#allocation2 + $0x1c8] sm:$0xff]
  %v300 = vld [vmem:[#allocation2 + $0x1d0] sm:$0xff]
  %v301 = vld [vmem:[#allocation2 + $0x1e0] sm:$0xff]
  %v302 = vld [vmem:[#allocation2 + $0x1e8] sm:$0xff]
  %v303 = vld [vmem:[#allocation2 + $0x1f8] sm:$0xff]
  %v304 = vld [vmem:[#allocation2 + $0x200] sm:$0xff]
  %v305 = vld [vmem:[#allocation2 + $0x210] sm:$0xff]
  %v306 = vld [vmem:[#allocation2 + $0x218] sm:$0xff]
  %v307 = vld [vmem:[#allocation2 + $0x228] sm:$0xff]
  %v308 = vld [vmem:[#allocation2 + $0x230] sm:$0xff]
  %v309 = vld [vmem:[#allocation2 + $0x240] sm:$0xff]
  %v310 = vld [vmem:[#allocation2 + $0x248] sm:$0xff]
  %v311 = vld [vmem:[#allocation2 + $0x258] sm:$0xff]
  %v312 = vld [vmem:[#allocation2 + $0x260] sm:$0xff]
  %v313 = vld [vmem:[#allocation2 + $0x270] sm:$0xff]
  %v314 = vld [vmem:[#allocation2 + $0x278] sm:$0xff]
  %v315 = vld [vmem:[#allocation2 + $0x288] sm:$0xff]
  %v316 = vld [vmem:[#allocation2 + $0x290] sm:$0xff]
  %v317 = vld [vmem:[#allocation2 + $0x2a0] sm:$0xff]
  %v318 = vld [vmem:[#allocation2 + $0x2a8] sm:$0xff]
  %v319 = vld [vmem:[#allocation2 + $0x2b8] sm:$0xff]
  %v320 = vld [vmem:[#allocation2 + $0x2c0] sm:$0xff]
  %v321 = vld [vmem:[#allocation2 + $0x2d0] sm:$0xff]
  %v322 = vld [vmem:[#allocation2 + $0x2d8] sm:$0xff]
  %v323 = vld [vmem:[#allocation2 + $0x2e8] sm:$0xff]
  %v324 = vld [vmem:[#allocation2 + $0x2f0] sm:$0xff]
  %v325 = vld [vmem:[#allocation2 + $0x300] sm:$0xff]
  %v326 = vld [vmem:[#allocation2 + $0x308] sm:$0xff]
  %v327 = vld [vmem:[#allocation2 + $0x318] sm:$0xff]
  %v328 = vld [vmem:[#allocation2 + $0x320] sm:$0xff]
  %329 = vst.msk [vmem:[#allocation3] sm:$0xff] %vm26, %v265
  %330 = vst.msk [vmem:[#allocation3 + $0x8] sm:$0xff] %vm26, %v266
  %331 = vst.msk [vmem:[#allocation3 + $0x10] sm:$0xff] %vm26, %v267
  %332 = vst.msk [vmem:[#allocation3 + $0x18] sm:$0xff] %vm26, %v268
  %333 = vst.msk [vmem:[#allocation3 + $0x20] sm:$0xff] %vm26, %v269
  %334 = vst.msk [vmem:[#allocation3 + $0x28] sm:$0xff] %vm26, %v270
  %335 = vst.msk [vmem:[#allocation3 + $0x30] sm:$0xff] %vm26, %v271
  %336 = vst.msk [vmem:[#allocation3 + $0x38] sm:$0xff] %vm26, %v272
  %337 = vst.msk [vmem:[#allocation3 + $0x40] sm:$0xff] %vm26, %v273
  %338 = vst.msk [vmem:[#allocation3 + $0x48] sm:$0xff] %vm26, %v274
  %339 = vst.msk [vmem:[#allocation3 + $0x50] sm:$0xff] %vm26, %v275
  %340 = vst.msk [vmem:[#allocation3 + $0x58] sm:$0xff] %vm26, %v276
  %341 = vst.msk [vmem:[#allocation3 + $0x60] sm:$0xff] %vm26, %v277
  %342 = vst.msk [vmem:[#allocation3 + $0x68] sm:$0xff] %vm26, %v278
  %343 = vst.msk [vmem:[#allocation3 + $0x70] sm:$0xff] %vm26, %v279
  %344 = vst.msk [vmem:[#allocation3 + $0x78] sm:$0xff] %vm26, %v280
  %345 = vst.msk [vmem:[#allocation3 + $0x80] sm:$0xff] %vm26, %v281
  %346 = vst.msk [vmem:[#allocation3 + $0x88] sm:$0xff] %vm26, %v282
  %347 = vst.msk [vmem:[#allocation3 + $0x90] sm:$0xff] %vm26, %v283
  %348 = vst.msk [vmem:[#allocation3 + $0x98] sm:$0xff] %vm26, %v284
  %349 = vst.msk [vmem:[#allocation3 + $0xa0] sm:$0xff] %vm26, %v285
  %350 = vst.msk [vmem:[#allocation3 + $0xa8] sm:$0xff] %vm26, %v286
  %351 = vst.msk [vmem:[#allocation3 + $0xb0] sm:$0xff] %vm26, %v287
  %352 = vst.msk [vmem:[#allocation3 + $0xb8] sm:$0xff] %vm26, %v288
  %353 = vst.msk [vmem:[#allocation3 + $0xc0] sm:$0xff] %vm26, %v289
  %354 = vst.msk [vmem:[#allocation3 + $0xc8] sm:$0xff] %vm26, %v290
  %355 = vst.msk [vmem:[#allocation3 + $0xd0] sm:$0xff] %vm26, %v291
  %356 = vst.msk [vmem:[#allocation3 + $0xd8] sm:$0xff] %vm26, %v292
  %357 = vst.msk [vmem:[#allocation3 + $0xe0] sm:$0xff] %vm26, %v293
  %358 = vst.msk [vmem:[#allocation3 + $0xe8] sm:$0xff] %vm26, %v294
  %359 = vst.msk [vmem:[#allocation3 + $0xf0] sm:$0xff] %vm26, %v295
  %360 = vst.msk [vmem:[#allocation3 + $0xf8] sm:$0xff] %vm26, %v296
  %361 = vst.msk [vmem:[#allocation3 + $0x100] sm:$0xff] %vm26, %v297
  %362 = vst.msk [vmem:[#allocation3 + $0x108] sm:$0xff] %vm26, %v298
  %363 = vst.msk [vmem:[#allocation3 + $0x110] sm:$0xff] %vm26, %v299
  %364 = vst.msk [vmem:[#allocation3 + $0x118] sm:$0xff] %vm26, %v300
  %365 = vst.msk [vmem:[#allocation3 + $0x120] sm:$0xff] %vm26, %v301
  %366 = vst.msk [vmem:[#allocation3 + $0x128] sm:$0xff] %vm26, %v302
  %367 = vst.msk [vmem:[#allocation3 + $0x130] sm:$0xff] %vm26, %v303
  %368 = vst.msk [vmem:[#allocation3 + $0x138] sm:$0xff] %vm26, %v304
  %369 = vst.msk [vmem:[#allocation3 + $0x140] sm:$0xff] %vm26, %v305
  %370 = vst.msk [vmem:[#allocation3 + $0x148] sm:$0xff] %vm26, %v306
  %371 = vst.msk [vmem:[#allocation3 + $0x150] sm:$0xff] %vm26, %v307
  %372 = vst.msk [vmem:[#allocation3 + $0x158] sm:$0xff] %vm26, %v308
  %373 = vst.msk [vmem:[#allocation3 + $0x160] sm:$0xff] %vm26, %v309
  %374 = vst.msk [vmem:[#allocation3 + $0x168] sm:$0xff] %vm26, %v310
  %375 = vst.msk [vmem:[#allocation3 + $0x170] sm:$0xff] %vm26, %v311
  %376 = vst.msk [vmem:[#allocation3 + $0x178] sm:$0xff] %vm26, %v312
  %377 = vst.msk [vmem:[#allocation3 + $0x180] sm:$0xff] %vm26, %v313
  %378 = vst.msk [vmem:[#allocation3 + $0x188] sm:$0xff] %vm26, %v314
  %379 = vst.msk [vmem:[#allocation3 + $0x190] sm:$0xff] %vm26, %v315
  %380 = vst.msk [vmem:[#allocation3 + $0x198] sm:$0xff] %vm26, %v316
  %381 = vst.msk [vmem:[#allocation3 + $0x1a0] sm:$0xff] %vm26, %v317
  %382 = vst.msk [vmem:[#allocation3 + $0x1a8] sm:$0xff] %vm26, %v318
  %383 = vst.msk [vmem:[#allocation3 + $0x1b0] sm:$0xff] %vm26, %v319
  %384 = vst.msk [vmem:[#allocation3 + $0x1b8] sm:$0xff] %vm26, %v320
  %385 = vst.msk [vmem:[#allocation3 + $0x1c0] sm:$0xff] %vm26, %v321
  %386 = vst.msk [vmem:[#allocation3 + $0x1c8] sm:$0xff] %vm26, %v322
  %387 = vst.msk [vmem:[#allocation3 + $0x1d0] sm:$0xff] %vm26, %v323
  %388 = vst.msk [vmem:[#allocation3 + $0x1d8] sm:$0xff] %vm26, %v324
  %389 = vst.msk [vmem:[#allocation3 + $0x1e0] sm:$0xff] %vm26, %v325
  %390 = vst.msk [vmem:[#allocation3 + $0x1e8] sm:$0xff] %vm26, %v326
  %391 = vst.msk [vmem:[#allocation3 + $0x1f0] sm:$0xff] %vm26, %v327
  %392 = vst.msk [vmem:[#allocation3 + $0x1f8] sm:$0xff] %vm26, %v328
  %v393 = vld [vmem:[#allocation2 + $0x1] sm:$0xff]
  %v394 = vld [vmem:[#allocation2 + $0x9] sm:$0xff]
  %v395 = vld [vmem:[#allocation2 + $0x19] sm:$0xff]
  %v396 = vld [vmem:[#allocation2 + $0x21] sm:$0xff]
  %v397 = vld [vmem:[#allocation2 + $0x31] sm:$0xff]
  %v398 = vld [vmem:[#allocation2 + $0x39] sm:$0xff]
  %v399 = vld [vmem:[#allocation2 + $0x49] sm:$0xff]
  %v400 = vld [vmem:[#allocation2 + $0x51] sm:$0xff]
  %v401 = vld [vmem:[#allocation2 + $0x61] sm:$0xff]
  %v402 = vld [vmem:[#allocation2 + $0x69] sm:$0xff]
  %v403 = vld [vmem:[#allocation2 + $0x79] sm:$0xff]
  %v404 = vld [vmem:[#allocation2 + $0x81] sm:$0xff]
  %v405 = vld [vmem:[#allocation2 + $0x91] sm:$0xff]
  %v406 = vld [vmem:[#allocation2 + $0x99] sm:$0xff]
  %v407 = vld [vmem:[#allocation2 + $0xa9] sm:$0xff]
  %v408 = vld [vmem:[#allocation2 + $0xb1] sm:$0xff]
  %v409 = vld [vmem:[#allocation2 + $0xc1] sm:$0xff]
  %v410 = vld [vmem:[#allocation2 + $0xc9] sm:$0xff]
  %v411 = vld [vmem:[#allocation2 + $0xd9] sm:$0xff]
  %v412 = vld [vmem:[#allocation2 + $0xe1] sm:$0xff]
  %v413 = vld [vmem:[#allocation2 + $0xf1] sm:$0xff]
  %v414 = vld [vmem:[#allocation2 + $0xf9] sm:$0xff]
  %v415 = vld [vmem:[#allocation2 + $0x109] sm:$0xff]
  %v416 = vld [vmem:[#allocation2 + $0x111] sm:$0xff]
  %v417 = vld [vmem:[#allocation2 + $0x121] sm:$0xff]
  %v418 = vld [vmem:[#allocation2 + $0x129] sm:$0xff]
  %v419 = vld [vmem:[#allocation2 + $0x139] sm:$0xff]
  %v420 = vld [vmem:[#allocation2 + $0x141] sm:$0xff]
  %v421 = vld [vmem:[#allocation2 + $0x151] sm:$0xff]
  %v422 = vld [vmem:[#allocation2 + $0x159] sm:$0xff]
  %v423 = vld [vmem:[#allocation2 + $0x169] sm:$0xff]
  %v424 = vld [vmem:[#allocation2 + $0x171] sm:$0xff]
  %v425 = vld [vmem:[#allocation2 + $0x1b1] sm:$0xff]
  %v426 = vld [vmem:[#allocation2 + $0x1b9] sm:$0xff]
  %v427 = vld [vmem:[#allocation2 + $0x1c9] sm:$0xff]
  %v428 = vld [vmem:[#allocation2 + $0x1d1] sm:$0xff]
  %v429 = vld [vmem:[#allocation2 + $0x1e1] sm:$0xff]
  %v430 = vld [vmem:[#allocation2 + $0x1e9] sm:$0xff]
  %v431 = vld [vmem:[#allocation2 + $0x1f9] sm:$0xff]
  %v432 = vld [vmem:[#allocation2 + $0x201] sm:$0xff]
  %v433 = vld [vmem:[#allocation2 + $0x211] sm:$0xff]
  %v434 = vld [vmem:[#allocation2 + $0x219] sm:$0xff]
  %v435 = vld [vmem:[#allocation2 + $0x229] sm:$0xff]
  %v436 = vld [vmem:[#allocation2 + $0x231] sm:$0xff]
  %v437 = vld [vmem:[#allocation2 + $0x241] sm:$0xff]
  %v438 = vld [vmem:[#allocation2 + $0x249] sm:$0xff]
  %v439 = vld [vmem:[#allocation2 + $0x259] sm:$0xff]
  %v440 = vld [vmem:[#allocation2 + $0x261] sm:$0xff]
  %v441 = vld [vmem:[#allocation2 + $0x271] sm:$0xff]
  %v442 = vld [vmem:[#allocation2 + $0x279] sm:$0xff]
  %v443 = vld [vmem:[#allocation2 + $0x289] sm:$0xff]
  %v444 = vld [vmem:[#allocation2 + $0x291] sm:$0xff]
  %v445 = vld [vmem:[#allocation2 + $0x2a1] sm:$0xff]
  %v446 = vld [vmem:[#allocation2 + $0x2a9] sm:$0xff]
  %v447 = vld [vmem:[#allocation2 + $0x2b9] sm:$0xff]
  %v448 = vld [vmem:[#allocation2 + $0x2c1] sm:$0xff]
  %v449 = vld [vmem:[#allocation2 + $0x2d1] sm:$0xff]
  %v450 = vld [vmem:[#allocation2 + $0x2d9] sm:$0xff]
  %v451 = vld [vmem:[#allocation2 + $0x2e9] sm:$0xff]
  %v452 = vld [vmem:[#allocation2 + $0x2f1] sm:$0xff]
  %v453 = vld [vmem:[#allocation2 + $0x301] sm:$0xff]
  %v454 = vld [vmem:[#allocation2 + $0x309] sm:$0xff]
  %v455 = vld [vmem:[#allocation2 + $0x319] sm:$0xff]
  %v456 = vld [vmem:[#allocation2 + $0x321] sm:$0xff]
  %521 = vrot.lane.b32.xlu0 %v393, 4
  %v522 = vpop.permute.xlu0 %521
  %523 = vrot.lane.b32.xlu0 %v394, 4
  %v524 = vpop.permute.xlu0 %523
  %525 = vrot.lane.b32.xlu0 %v395, 4
  %v526 = vpop.permute.xlu0 %525
  %527 = vrot.lane.b32.xlu0 %v396, 4
  %v528 = vpop.permute.xlu0 %527
  %529 = vrot.lane.b32.xlu0 %v397, 4
  %v530 = vpop.permute.xlu0 %529
  %531 = vrot.lane.b32.xlu0 %v398, 4
  %v532 = vpop.permute.xlu0 %531
  %533 = vrot.lane.b32.xlu0 %v399, 4
  %v534 = vpop.permute.xlu0 %533
  %535 = vrot.lane.b32.xlu0 %v400, 4
  %v536 = vpop.permute.xlu0 %535
  %537 = vrot.lane.b32.xlu0 %v401, 4
  %v538 = vpop.permute.xlu0 %537
  %539 = vrot.lane.b32.xlu0 %v402, 4
  %v540 = vpop.permute.xlu0 %539
  %541 = vrot.lane.b32.xlu0 %v403, 4
  %v542 = vpop.permute.xlu0 %541
  %543 = vrot.lane.b32.xlu0 %v404, 4
  %v544 = vpop.permute.xlu0 %543
  %545 = vrot.lane.b32.xlu0 %v405, 4
  %v546 = vpop.permute.xlu0 %545
  %547 = vrot.lane.b32.xlu0 %v406, 4
  %v548 = vpop.permute.xlu0 %547
  %549 = vrot.lane.b32.xlu0 %v407, 4
  %v550 = vpop.permute.xlu0 %549
  %551 = vrot.lane.b32.xlu0 %v408, 4
  %v552 = vpop.permute.xlu0 %551
  %553 = vrot.lane.b32.xlu0 %v409, 4
  %v554 = vpop.permute.xlu0 %553
  %555 = vrot.lane.b32.xlu0 %v410, 4
  %v556 = vpop.permute.xlu0 %555
  %557 = vrot.lane.b32.xlu0 %v411, 4
  %v558 = vpop.permute.xlu0 %557
  %559 = vrot.lane.b32.xlu0 %v412, 4
  %v560 = vpop.permute.xlu0 %559
  %561 = vrot.lane.b32.xlu0 %v413, 4
  %v562 = vpop.permute.xlu0 %561
  %563 = vrot.lane.b32.xlu0 %v414, 4
  %v564 = vpop.permute.xlu0 %563
  %565 = vrot.lane.b32.xlu0 %v415, 4
  %v566 = vpop.permute.xlu0 %565
  %567 = vrot.lane.b32.xlu0 %v416, 4
  %v568 = vpop.permute.xlu0 %567
  %569 = vrot.lane.b32.xlu0 %v417, 4
  %v570 = vpop.permute.xlu0 %569
  %571 = vrot.lane.b32.xlu0 %v418, 4
  %v572 = vpop.permute.xlu0 %571
  %573 = vrot.lane.b32.xlu0 %v419, 4
  %v574 = vpop.permute.xlu0 %573
  %575 = vrot.lane.b32.xlu0 %v420, 4
  %v576 = vpop.permute.xlu0 %575
  %577 = vrot.lane.b32.xlu0 %v421, 4
  %v578 = vpop.permute.xlu0 %577
  %579 = vrot.lane.b32.xlu0 %v422, 4
  %v580 = vpop.permute.xlu0 %579
  %581 = vrot.lane.b32.xlu0 %v423, 4
  %v582 = vpop.permute.xlu0 %581
  %583 = vrot.lane.b32.xlu0 %v424, 4
  %v584 = vpop.permute.xlu0 %583
  %585 = vrot.lane.b32.xlu0 %v425, 4
  %v586 = vpop.permute.xlu0 %585
  %587 = vrot.lane.b32.xlu0 %v426, 4
  %v588 = vpop.permute.xlu0 %587
  %589 = vrot.lane.b32.xlu0 %v427, 4
  %v590 = vpop.permute.xlu0 %589
  %591 = vrot.lane.b32.xlu0 %v428, 4
  %v592 = vpop.permute.xlu0 %591
  %593 = vrot.lane.b32.xlu0 %v429, 4
  %v594 = vpop.permute.xlu0 %593
  %595 = vrot.lane.b32.xlu0 %v430, 4
  %v596 = vpop.permute.xlu0 %595
  %597 = vrot.lane.b32.xlu0 %v431, 4
  %v598 = vpop.permute.xlu0 %597
  %599 = vrot.lane.b32.xlu0 %v432, 4
  %v600 = vpop.permute.xlu0 %599
  %601 = vrot.lane.b32.xlu0 %v433, 4
  %v602 = vpop.permute.xlu0 %601
  %603 = vrot.lane.b32.xlu0 %v434, 4
  %v604 = vpop.permute.xlu0 %603
  %605 = vrot.lane.b32.xlu0 %v435, 4
  %v606 = vpop.permute.xlu0 %605
  %607 = vrot.lane.b32.xlu0 %v436, 4
  %v608 = vpop.permute.xlu0 %607
  %609 = vrot.lane.b32.xlu0 %v437, 4
  %v610 = vpop.permute.xlu0 %609
  %611 = vrot.lane.b32.xlu0 %v438, 4
  %v612 = vpop.permute.xlu0 %611
  %613 = vrot.lane.b32.xlu0 %v439, 4
  %v614 = vpop.permute.xlu0 %613
  %615 = vrot.lane.b32.xlu0 %v440, 4
  %v616 = vpop.permute.xlu0 %615
  %617 = vrot.lane.b32.xlu0 %v441, 4
  %v618 = vpop.permute.xlu0 %617
  %619 = vrot.lane.b32.xlu0 %v442, 4
  %v620 = vpop.permute.xlu0 %619
  %621 = vrot.lane.b32.xlu0 %v443, 4
  %v622 = vpop.permute.xlu0 %621
  %623 = vrot.lane.b32.xlu0 %v444, 4
  %v624 = vpop.permute.xlu0 %623
  %625 = vrot.lane.b32.xlu0 %v445, 4
  %v626 = vpop.permute.xlu0 %625
  %627 = vrot.lane.b32.xlu0 %v446, 4
  %v628 = vpop.permute.xlu0 %627
  %629 = vrot.lane.b32.xlu0 %v447, 4
  %v630 = vpop.permute.xlu0 %629
  %631 = vrot.lane.b32.xlu0 %v448, 4
  %v632 = vpop.permute.xlu0 %631
  %633 = vrot.lane.b32.xlu0 %v449, 4
  %v634 = vpop.permute.xlu0 %633
  %635 = vrot.lane.b32.xlu0 %v450, 4
  %v636 = vpop.permute.xlu0 %635
  %637 = vrot.lane.b32.xlu0 %v451, 4
  %v638 = vpop.permute.xlu0 %637
  %639 = vrot.lane.b32.xlu0 %v452, 4
  %v640 = vpop.permute.xlu0 %639
  %641 = vrot.lane.b32.xlu0 %v453, 4
  %v642 = vpop.permute.xlu0 %641
  %643 = vrot.lane.b32.xlu0 %v454, 4
  %v644 = vpop.permute.xlu0 %643
  %645 = vrot.lane.b32.xlu0 %v455, 4
  %v646 = vpop.permute.xlu0 %645
  %647 = vrot.lane.b32.xlu0 %v456, 4
  %v648 = vpop.permute.xlu0 %647
  %vm713 = vcmask 64544
  %714 = vst.msk [vmem:[#allocation3] sm:$0xff] %vm713, %v522
  %715 = vst.msk [vmem:[#allocation3 + $0x8] sm:$0xff] %vm713, %v524
  %716 = vst.msk [vmem:[#allocation3 + $0x10] sm:$0xff] %vm713, %v526
  %717 = vst.msk [vmem:[#allocation3 + $0x18] sm:$0xff] %vm713, %v528
  %718 = vst.msk [vmem:[#allocation3 + $0x20] sm:$0xff] %vm713, %v530
  %719 = vst.msk [vmem:[#allocation3 + $0x28] sm:$0xff] %vm713, %v532
  %720 = vst.msk [vmem:[#allocation3 + $0x30] sm:$0xff] %vm713, %v534
  %721 = vst.msk [vmem:[#allocation3 + $0x38] sm:$0xff] %vm713, %v536
  %722 = vst.msk [vmem:[#allocation3 + $0x40] sm:$0xff] %vm713, %v538
  %723 = vst.msk [vmem:[#allocation3 + $0x48] sm:$0xff] %vm713, %v540
  %724 = vst.msk [vmem:[#allocation3 + $0x50] sm:$0xff] %vm713, %v542
  %725 = vst.msk [vmem:[#allocation3 + $0x58] sm:$0xff] %vm713, %v544
  %726 = vst.msk [vmem:[#allocation3 + $0x60] sm:$0xff] %vm713, %v546
  %727 = vst.msk [vmem:[#allocation3 + $0x68] sm:$0xff] %vm713, %v548
  %728 = vst.msk [vmem:[#allocation3 + $0x70] sm:$0xff] %vm713, %v550
  %729 = vst.msk [vmem:[#allocation3 + $0x78] sm:$0xff] %vm713, %v552
  %730 = vst.msk [vmem:[#allocation3 + $0x80] sm:$0xff] %vm713, %v554
  %731 = vst.msk [vmem:[#allocation3 + $0x88] sm:$0xff] %vm713, %v556
  %732 = vst.msk [vmem:[#allocation3 + $0x90] sm:$0xff] %vm713, %v558
  %733 = vst.msk [vmem:[#allocation3 + $0x98] sm:$0xff] %vm713, %v560
  %734 = vst.msk [vmem:[#allocation3 + $0xa0] sm:$0xff] %vm713, %v562
  %735 = vst.msk [vmem:[#allocation3 + $0xa8] sm:$0xff] %vm713, %v564
  %736 = vst.msk [vmem:[#allocation3 + $0xb0] sm:$0xff] %vm713, %v566
  %737 = vst.msk [vmem:[#allocation3 + $0xb8] sm:$0xff] %vm713, %v568
  %738 = vst.msk [vmem:[#allocation3 + $0xc0] sm:$0xff] %vm713, %v570
  %739 = vst.msk [vmem:[#allocation3 + $0xc8] sm:$0xff] %vm713, %v572
  %740 = vst.msk [vmem:[#allocation3 + $0xd0] sm:$0xff] %vm713, %v574
  %741 = vst.msk [vmem:[#allocation3 + $0xd8] sm:$0xff] %vm713, %v576
  %742 = vst.msk [vmem:[#allocation3 + $0xe0] sm:$0xff] %vm713, %v578
  %743 = vst.msk [vmem:[#allocation3 + $0xe8] sm:$0xff] %vm713, %v580
  %744 = vst.msk [vmem:[#allocation3 + $0xf0] sm:$0xff] %vm713, %v582
  %745 = vst.msk [vmem:[#allocation3 + $0xf8] sm:$0xff] %vm713, %v584
  %746 = vst.msk [vmem:[#allocation3 + $0x100] sm:$0xff] %vm713, %v586
  %747 = vst.msk [vmem:[#allocation3 + $0x108] sm:$0xff] %vm713, %v588
  %748 = vst.msk [vmem:[#allocation3 + $0x110] sm:$0xff] %vm713, %v590
  %749 = vst.msk [vmem:[#allocation3 + $0x118] sm:$0xff] %vm713, %v592
  %750 = vst.msk [vmem:[#allocation3 + $0x120] sm:$0xff] %vm713, %v594
  %751 = vst.msk [vmem:[#allocation3 + $0x128] sm:$0xff] %vm713, %v596
  %752 = vst.msk [vmem:[#allocation3 + $0x130] sm:$0xff] %vm713, %v598
  %753 = vst.msk [vmem:[#allocation3 + $0x138] sm:$0xff] %vm713, %v600
  %754 = vst.msk [vmem:[#allocation3 + $0x140] sm:$0xff] %vm713, %v602
  %755 = vst.msk [vmem:[#allocation3 + $0x148] sm:$0xff] %vm713, %v604
  %756 = vst.msk [vmem:[#allocation3 + $0x150] sm:$0xff] %vm713, %v606
  %757 = vst.msk [vmem:[#allocation3 + $0x158] sm:$0xff] %vm713, %v608
  %758 = vst.msk [vmem:[#allocation3 + $0x160] sm:$0xff] %vm713, %v610
  %759 = vst.msk [vmem:[#allocation3 + $0x168] sm:$0xff] %vm713, %v612
  %760 = vst.msk [vmem:[#allocation3 + $0x170] sm:$0xff] %vm713, %v614
  %761 = vst.msk [vmem:[#allocation3 + $0x178] sm:$0xff] %vm713, %v616
  %762 = vst.msk [vmem:[#allocation3 + $0x180] sm:$0xff] %vm713, %v618
  %763 = vst.msk [vmem:[#allocation3 + $0x188] sm:$0xff] %vm713, %v620
  %764 = vst.msk [vmem:[#allocation3 + $0x190] sm:$0xff] %vm713, %v622
  %765 = vst.msk [vmem:[#allocation3 + $0x198] sm:$0xff] %vm713, %v624
  %766 = vst.msk [vmem:[#allocation3 + $0x1a0] sm:$0xff] %vm713, %v626
  %767 = vst.msk [vmem:[#allocation3 + $0x1a8] sm:$0xff] %vm713, %v628
  %768 = vst.msk [vmem:[#allocation3 + $0x1b0] sm:$0xff] %vm713, %v630
  %769 = vst.msk [vmem:[#allocation3 + $0x1b8] sm:$0xff] %vm713, %v632
  %770 = vst.msk [vmem:[#allocation3 + $0x1c0] sm:$0xff] %vm713, %v634
  %771 = vst.msk [vmem:[#allocation3 + $0x1c8] sm:$0xff] %vm713, %v636
  %772 = vst.msk [vmem:[#allocation3 + $0x1d0] sm:$0xff] %vm713, %v638
  %773 = vst.msk [vmem:[#allocation3 + $0x1d8] sm:$0xff] %vm713, %v640
  %774 = vst.msk [vmem:[#allocation3 + $0x1e0] sm:$0xff] %vm713, %v642
  %775 = vst.msk [vmem:[#allocation3 + $0x1e8] sm:$0xff] %vm713, %v644
  %776 = vst.msk [vmem:[#allocation3 + $0x1f0] sm:$0xff] %vm713, %v646
  %777 = vst.msk [vmem:[#allocation3 + $0x1f8] sm:$0xff] %vm713, %v648
  %v778 = vld [vmem:[#allocation2 + $0x2] sm:$0xff]
  %v779 = vld [vmem:[#allocation2 + $0xa] sm:$0xff]
  %v780 = vld [vmem:[#allocation2 + $0x1a] sm:$0xff]
  %v781 = vld [vmem:[#allocation2 + $0x22] sm:$0xff]
  %v782 = vld [vmem:[#allocation2 + $0x32] sm:$0xff]
  %v783 = vld [vmem:[#allocation2 + $0x3a] sm:$0xff]
  %v784 = vld [vmem:[#allocation2 + $0x4a] sm:$0xff]
  %v785 = vld [vmem:[#allocation2 + $0x52] sm:$0xff]
  %v786 = vld [vmem:[#allocation2 + $0x62] sm:$0xff]
  %v787 = vld [vmem:[#allocation2 + $0x6a] sm:$0xff]
  %v788 = vld [vmem:[#allocation2 + $0x7a] sm:$0xff]
  %v789 = vld [vmem:[#allocation2 + $0x82] sm:$0xff]
  %v790 = vld [vmem:[#allocation2 + $0x92] sm:$0xff]
  %v791 = vld [vmem:[#allocation2 + $0x9a] sm:$0xff]
  %v792 = vld [vmem:[#allocation2 + $0xaa] sm:$0xff]
  %v793 = vld [vmem:[#allocation2 + $0xb2] sm:$0xff]
  %v794 = vld [vmem:[#allocation2 + $0xc2] sm:$0xff]
  %v795 = vld [vmem:[#allocation2 + $0xca] sm:$0xff]
  %v796 = vld [vmem:[#allocation2 + $0xda] sm:$0xff]
  %v797 = vld [vmem:[#allocation2 + $0xe2] sm:$0xff]
  %v798 = vld [vmem:[#allocation2 + $0xf2] sm:$0xff]
  %v799 = vld [vmem:[#allocation2 + $0xfa] sm:$0xff]
  %v800 = vld [vmem:[#allocation2 + $0x10a] sm:$0xff]
  %v801 = vld [vmem:[#allocation2 + $0x112] sm:$0xff]
  %v802 = vld [vmem:[#allocation2 + $0x122] sm:$0xff]
  %v803 = vld [vmem:[#allocation2 + $0x12a] sm:$0xff]
  %v804 = vld [vmem:[#allocation2 + $0x13a] sm:$0xff]
  %v805 = vld [vmem:[#allocation2 + $0x142] sm:$0xff]
  %v806 = vld [vmem:[#allocation2 + $0x152] sm:$0xff]
  %v807 = vld [vmem:[#allocation2 + $0x15a] sm:$0xff]
  %v808 = vld [vmem:[#allocation2 + $0x16a] sm:$0xff]
  %v809 = vld [vmem:[#allocation2 + $0x172] sm:$0xff]
  %v810 = vld [vmem:[#allocation2 + $0x1b2] sm:$0xff]
  %v811 = vld [vmem:[#allocation2 + $0x1ba] sm:$0xff]
  %v812 = vld [vmem:[#allocation2 + $0x1ca] sm:$0xff]
  %v813 = vld [vmem:[#allocation2 + $0x1d2] sm:$0xff]
  %v814 = vld [vmem:[#allocation2 + $0x1e2] sm:$0xff]
  %v815 = vld [vmem:[#allocation2 + $0x1ea] sm:$0xff]
  %v816 = vld [vmem:[#allocation2 + $0x1fa] sm:$0xff]
  %v817 = vld [vmem:[#allocation2 + $0x202] sm:$0xff]
  %v818 = vld [vmem:[#allocation2 + $0x212] sm:$0xff]
  %v819 = vld [vmem:[#allocation2 + $0x21a] sm:$0xff]
  %v820 = vld [vmem:[#allocation2 + $0x22a] sm:$0xff]
  %v821 = vld [vmem:[#allocation2 + $0x232] sm:$0xff]
  %v822 = vld [vmem:[#allocation2 + $0x242] sm:$0xff]
  %v823 = vld [vmem:[#allocation2 + $0x24a] sm:$0xff]
  %v824 = vld [vmem:[#allocation2 + $0x25a] sm:$0xff]
  %v825 = vld [vmem:[#allocation2 + $0x262] sm:$0xff]
  %v826 = vld [vmem:[#allocation2 + $0x272] sm:$0xff]
  %v827 = vld [vmem:[#allocation2 + $0x27a] sm:$0xff]
  %v828 = vld [vmem:[#allocation2 + $0x28a] sm:$0xff]
  %v829 = vld [vmem:[#allocation2 + $0x292] sm:$0xff]
  %v830 = vld [vmem:[#allocation2 + $0x2a2] sm:$0xff]
  %v831 = vld [vmem:[#allocation2 + $0x2aa] sm:$0xff]
  %v832 = vld [vmem:[#allocation2 + $0x2ba] sm:$0xff]
  %v833 = vld [vmem:[#allocation2 + $0x2c2] sm:$0xff]
  %v834 = vld [vmem:[#allocation2 + $0x2d2] sm:$0xff]
  %v835 = vld [vmem:[#allocation2 + $0x2da] sm:$0xff]
  %v836 = vld [vmem:[#allocation2 + $0x2ea] sm:$0xff]
  %v837 = vld [vmem:[#allocation2 + $0x2f2] sm:$0xff]
  %v838 = vld [vmem:[#allocation2 + $0x302] sm:$0xff]
  %v839 = vld [vmem:[#allocation2 + $0x30a] sm:$0xff]
  %v840 = vld [vmem:[#allocation2 + $0x31a] sm:$0xff]
  %v841 = vld [vmem:[#allocation2 + $0x322] sm:$0xff]
  %906 = vrot.lane.b32.xlu0 %v778, 8
  %v907 = vpop.permute.xlu0 %906
  %908 = vrot.lane.b32.xlu0 %v779, 8
  %v909 = vpop.permute.xlu0 %908
  %910 = vrot.lane.b32.xlu0 %v780, 8
  %v911 = vpop.permute.xlu0 %910
  %912 = vrot.lane.b32.xlu0 %v781, 8
  %v913 = vpop.permute.xlu0 %912
  %914 = vrot.lane.b32.xlu0 %v782, 8
  %v915 = vpop.permute.xlu0 %914
  %916 = vrot.lane.b32.xlu0 %v783, 8
  %v917 = vpop.permute.xlu0 %916
  %918 = vrot.lane.b32.xlu0 %v784, 8
  %v919 = vpop.permute.xlu0 %918
  %920 = vrot.lane.b32.xlu0 %v785, 8
  %v921 = vpop.permute.xlu0 %920
  %922 = vrot.lane.b32.xlu0 %v786, 8
  %v923 = vpop.permute.xlu0 %922
  %924 = vrot.lane.b32.xlu0 %v787, 8
  %v925 = vpop.permute.xlu0 %924
  %926 = vrot.lane.b32.xlu0 %v788, 8
  %v927 = vpop.permute.xlu0 %926
  %928 = vrot.lane.b32.xlu0 %v789, 8
  %v929 = vpop.permute.xlu0 %928
  %930 = vrot.lane.b32.xlu0 %v790, 8
  %v931 = vpop.permute.xlu0 %930
  %932 = vrot.lane.b32.xlu0 %v791, 8
  %v933 = vpop.permute.xlu0 %932
  %934 = vrot.lane.b32.xlu0 %v792, 8
  %v935 = vpop.permute.xlu0 %934
  %936 = vrot.lane.b32.xlu0 %v793, 8
  %v937 = vpop.permute.xlu0 %936
  %938 = vrot.lane.b32.xlu0 %v794, 8
  %v939 = vpop.permute.xlu0 %938
  %940 = vrot.lane.b32.xlu0 %v795, 8
  %v941 = vpop.permute.xlu0 %940
  %942 = vrot.lane.b32.xlu0 %v796, 8
  %v943 = vpop.permute.xlu0 %942
  %944 = vrot.lane.b32.xlu0 %v797, 8
  %v945 = vpop.permute.xlu0 %944
  %946 = vrot.lane.b32.xlu0 %v798, 8
  %v947 = vpop.permute.xlu0 %946
  %948 = vrot.lane.b32.xlu0 %v799, 8
  %v949 = vpop.permute.xlu0 %948
  %950 = vrot.lane.b32.xlu0 %v800, 8
  %v951 = vpop.permute.xlu0 %950
  %952 = vrot.lane.b32.xlu0 %v801, 8
  %v953 = vpop.permute.xlu0 %952
  %954 = vrot.lane.b32.xlu0 %v802, 8
  %v955 = vpop.permute.xlu0 %954
  %956 = vrot.lane.b32.xlu0 %v803, 8
  %v957 = vpop.permute.xlu0 %956
  %958 = vrot.lane.b32.xlu0 %v804, 8
  %v959 = vpop.permute.xlu0 %958
  %960 = vrot.lane.b32.xlu0 %v805, 8
  %v961 = vpop.permute.xlu0 %960
  %962 = vrot.lane.b32.xlu0 %v806, 8
  %v963 = vpop.permute.xlu0 %962
  %964 = vrot.lane.b32.xlu0 %v807, 8
  %v965 = vpop.permute.xlu0 %964
  %966 = vrot.lane.b32.xlu0 %v808, 8
  %v967 = vpop.permute.xlu0 %966
  %968 = vrot.lane.b32.xlu0 %v809, 8
  %v969 = vpop.permute.xlu0 %968
  %970 = vrot.lane.b32.xlu0 %v810, 8
  %v971 = vpop.permute.xlu0 %970
  %972 = vrot.lane.b32.xlu0 %v811, 8
  %v973 = vpop.permute.xlu0 %972
  %974 = vrot.lane.b32.xlu0 %v812, 8
  %v975 = vpop.permute.xlu0 %974
  %976 = vrot.lane.b32.xlu0 %v813, 8
  %v977 = vpop.permute.xlu0 %976
  %978 = vrot.lane.b32.xlu0 %v814, 8
  %v979 = vpop.permute.xlu0 %978
  %980 = vrot.lane.b32.xlu0 %v815, 8
  %v981 = vpop.permute.xlu0 %980
  %982 = vrot.lane.b32.xlu0 %v816, 8
  %v983 = vpop.permute.xlu0 %982
  %984 = vrot.lane.b32.xlu0 %v817, 8
  %v985 = vpop.permute.xlu0 %984
  %986 = vrot.lane.b32.xlu0 %v818, 8
  %v987 = vpop.permute.xlu0 %986
  %988 = vrot.lane.b32.xlu0 %v819, 8
  %v989 = vpop.permute.xlu0 %988
  %990 = vrot.lane.b32.xlu0 %v820, 8
  %v991 = vpop.permute.xlu0 %990
  %992 = vrot.lane.b32.xlu0 %v821, 8
  %v993 = vpop.permute.xlu0 %992
  %994 = vrot.lane.b32.xlu0 %v822, 8
  %v995 = vpop.permute.xlu0 %994
  %996 = vrot.lane.b32.xlu0 %v823, 8
  %v997 = vpop.permute.xlu0 %996
  %998 = vrot.lane.b32.xlu0 %v824, 8
  %v999 = vpop.permute.xlu0 %998
  %1000 = vrot.lane.b32.xlu0 %v825, 8
  %v1001 = vpop.permute.xlu0 %1000
  %1002 = vrot.lane.b32.xlu0 %v826, 8
  %v1003 = vpop.permute.xlu0 %1002
  %1004 = vrot.lane.b32.xlu0 %v827, 8
  %v1005 = vpop.permute.xlu0 %1004
  %1006 = vrot.lane.b32.xlu0 %v828, 8
  %v1007 = vpop.permute.xlu0 %1006
  %1008 = vrot.lane.b32.xlu0 %v829, 8
  %v1009 = vpop.permute.xlu0 %1008
  %1010 = vrot.lane.b32.xlu0 %v830, 8
  %v1011 = vpop.permute.xlu0 %1010
  %1012 = vrot.lane.b32.xlu0 %v831, 8
  %v1013 = vpop.permute.xlu0 %1012
  %1014 = vrot.lane.b32.xlu0 %v832, 8
  %v1015 = vpop.permute.xlu0 %1014
  %1016 = vrot.lane.b32.xlu0 %v833, 8
  %v1017 = vpop.permute.xlu0 %1016
  %1018 = vrot.lane.b32.xlu0 %v834, 8
  %v1019 = vpop.permute.xlu0 %1018
  %1020 = vrot.lane.b32.xlu0 %v835, 8
  %v1021 = vpop.permute.xlu0 %1020
  %1022 = vrot.lane.b32.xlu0 %v836, 8
  %v1023 = vpop.permute.xlu0 %1022
  %1024 = vrot.lane.b32.xlu0 %v837, 8
  %v1025 = vpop.permute.xlu0 %1024
  %1026 = vrot.lane.b32.xlu0 %v838, 8
  %v1027 = vpop.permute.xlu0 %1026
  %1028 = vrot.lane.b32.xlu0 %v839, 8
  %v1029 = vpop.permute.xlu0 %1028
  %1030 = vrot.lane.b32.xlu0 %v840, 8
  %v1031 = vpop.permute.xlu0 %1030
  %1032 = vrot.lane.b32.xlu0 %v841, 8
  %v1033 = vpop.permute.xlu0 %1032
  %vm1098 = vcmask 97344
  %1099 = vst.msk [vmem:[#allocation3] sm:$0xff] %vm1098, %v907
  %1100 = vst.msk [vmem:[#allocation3 + $0x8] sm:$0xff] %vm1098, %v909
  %1101 = vst.msk [vmem:[#allocation3 + $0x10] sm:$0xff] %vm1098, %v911
  %1102 = vst.msk [vmem:[#allocation3 + $0x18] sm:$0xff] %vm1098, %v913
  %1103 = vst.msk [vmem:[#allocation3 + $0x20] sm:$0xff] %vm1098, %v915
  %1104 = vst.msk [vmem:[#allocation3 + $0x28] sm:$0xff] %vm1098, %v917
  %1105 = vst.msk [vmem:[#allocation3 + $0x30] sm:$0xff] %vm1098, %v919
  %1106 = vst.msk [vmem:[#allocation3 + $0x38] sm:$0xff] %vm1098, %v921
  %1107 = vst.msk [vmem:[#allocation3 + $0x40] sm:$0xff] %vm1098, %v923
  %1108 = vst.msk [vmem:[#allocation3 + $0x48] sm:$0xff] %vm1098, %v925
  %1109 = vst.msk [vmem:[#allocation3 + $0x50] sm:$0xff] %vm1098, %v927
  %1110 = vst.msk [vmem:[#allocation3 + $0x58] sm:$0xff] %vm1098, %v929
  %1111 = vst.msk [vmem:[#allocation3 + $0x60] sm:$0xff] %vm1098, %v931
  %1112 = vst.msk [vmem:[#allocation3 + $0x68] sm:$0xff] %vm1098, %v933
  %1113 = vst.msk [vmem:[#allocation3 + $0x70] sm:$0xff] %vm1098, %v935
  %1114 = vst.msk [vmem:[#allocation3 + $0x78] sm:$0xff] %vm1098, %v937
  %1115 = vst.msk [vmem:[#allocation3 + $0x80] sm:$0xff] %vm1098, %v939
  %1116 = vst.msk [vmem:[#allocation3 + $0x88] sm:$0xff] %vm1098, %v941
  %1117 = vst.msk [vmem:[#allocation3 + $0x90] sm:$0xff] %vm1098, %v943
  %1118 = vst.msk [vmem:[#allocation3 + $0x98] sm:$0xff] %vm1098, %v945
  %1119 = vst.msk [vmem:[#allocation3 + $0xa0] sm:$0xff] %vm1098, %v947
  %1120 = vst.msk [vmem:[#allocation3 + $0xa8] sm:$0xff] %vm1098, %v949
  %1121 = vst.msk [vmem:[#allocation3 + $0xb0] sm:$0xff] %vm1098, %v951
  %1122 = vst.msk [vmem:[#allocation3 + $0xb8] sm:$0xff] %vm1098, %v953
  %1123 = vst.msk [vmem:[#allocation3 + $0xc0] sm:$0xff] %vm1098, %v955
  %1124 = vst.msk [vmem:[#allocation3 + $0xc8] sm:$0xff] %vm1098, %v957
  %1125 = vst.msk [vmem:[#allocation3 + $0xd0] sm:$0xff] %vm1098, %v959
  %1126 = vst.msk [vmem:[#allocation3 + $0xd8] sm:$0xff] %vm1098, %v961
  %1127 = vst.msk [vmem:[#allocation3 + $0xe0] sm:$0xff] %vm1098, %v963
  %1128 = vst.msk [vmem:[#allocation3 + $0xe8] sm:$0xff] %vm1098, %v965
  %1129 = vst.msk [vmem:[#allocation3 + $0xf0] sm:$0xff] %vm1098, %v967
  %1130 = vst.msk [vmem:[#allocation3 + $0xf8] sm:$0xff] %vm1098, %v969
  %1131 = vst.msk [vmem:[#allocation3 + $0x100] sm:$0xff] %vm1098, %v971
  %1132 = vst.msk [vmem:[#allocation3 + $0x108] sm:$0xff] %vm1098, %v973
  %1133 = vst.msk [vmem:[#allocation3 + $0x110] sm:$0xff] %vm1098, %v975
  %1134 = vst.msk [vmem:[#allocation3 + $0x118] sm:$0xff] %vm1098, %v977
  %1135 = vst.msk [vmem:[#allocation3 + $0x120] sm:$0xff] %vm1098, %v979
  %1136 = vst.msk [vmem:[#allocation3 + $0x128] sm:$0xff] %vm1098, %v981
  %1137 = vst.msk [vmem:[#allocation3 + $0x130] sm:$0xff] %vm1098, %v983
  %1138 = vst.msk [vmem:[#allocation3 + $0x138] sm:$0xff] %vm1098, %v985
  %1139 = vst.msk [vmem:[#allocation3 + $0x140] sm:$0xff] %vm1098, %v987
  %1140 = vst.msk [vmem:[#allocation3 + $0x148] sm:$0xff] %vm1098, %v989
  %1141 = vst.msk [vmem:[#allocation3 + $0x150] sm:$0xff] %vm1098, %v991
  %1142 = vst.msk [vmem:[#allocation3 + $0x158] sm:$0xff] %vm1098, %v993
  %1143 = vst.msk [vmem:[#allocation3 + $0x160] sm:$0xff] %vm1098, %v995
  %1144 = vst.msk [vmem:[#allocation3 + $0x168] sm:$0xff] %vm1098, %v997
  %1145 = vst.msk [vmem:[#allocation3 + $0x170] sm:$0xff] %vm1098, %v999
  %1146 = vst.msk [vmem:[#allocation3 + $0x178] sm:$0xff] %vm1098, %v1001
  %1147 = vst.msk [vmem:[#allocation3 + $0x180] sm:$0xff] %vm1098, %v1003
  %1148 = vst.msk [vmem:[#allocation3 + $0x188] sm:$0xff] %vm1098, %v1005
  %1149 = vst.msk [vmem:[#allocation3 + $0x190] sm:$0xff] %vm1098, %v1007
  %1150 = vst.msk [vmem:[#allocation3 + $0x198] sm:$0xff] %vm1098, %v1009
  %1151 = vst.msk [vmem:[#allocation3 + $0x1a0] sm:$0xff] %vm1098, %v1011
  %1152 = vst.msk [vmem:[#allocation3 + $0x1a8] sm:$0xff] %vm1098, %v1013
  %1153 = vst.msk [vmem:[#allocation3 + $0x1b0] sm:$0xff] %vm1098, %v1015
  %1154 = vst.msk [vmem:[#allocation3 + $0x1b8] sm:$0xff] %vm1098, %v1017
  %1155 = vst.msk [vmem:[#allocation3 + $0x1c0] sm:$0xff] %vm1098, %v1019
  %1156 = vst.msk [vmem:[#allocation3 + $0x1c8] sm:$0xff] %vm1098, %v1021
  %1157 = vst.msk [vmem:[#allocation3 + $0x1d0] sm:$0xff] %vm1098, %v1023
  %1158 = vst.msk [vmem:[#allocation3 + $0x1d8] sm:$0xff] %vm1098, %v1025
  %1159 = vst.msk [vmem:[#allocation3 + $0x1e0] sm:$0xff] %vm1098, %v1027
  %1160 = vst.msk [vmem:[#allocation3 + $0x1e8] sm:$0xff] %vm1098, %v1029
  %1161 = vst.msk [vmem:[#allocation3 + $0x1f0] sm:$0xff] %vm1098, %v1031
  %1162 = vst.msk [vmem:[#allocation3 + $0x1f8] sm:$0xff] %vm1098, %v1033
  %v1163 = vld [vmem:[%s200] sm:$0xff]
  %v1164 = vld [vmem:[%s200 + $0x8] sm:$0xff]
  %v1165 = vld [vmem:[%s200 + $0x18] sm:$0xff]
  %v1166 = vld [vmem:[%s200 + $0x20] sm:$0xff]
  %v1167 = vld [vmem:[%s200 + $0x30] sm:$0xff]
  %v1168 = vld [vmem:[%s200 + $0x38] sm:$0xff]
  %v1169 = vld [vmem:[%s200 + $0x48] sm:$0xff]
  %v1170 = vld [vmem:[%s200 + $0x50] sm:$0xff]
  %v1171 = vld [vmem:[%s200 + $0x60] sm:$0xff]
  %v1172 = vld [vmem:[%s200 + $0x68] sm:$0xff]
  %v1173 = vld [vmem:[%s200 + $0x78] sm:$0xff]
  %v1174 = vld [vmem:[%s200 + $0x80] sm:$0xff]
  %v1175 = vld [vmem:[%s200 + $0x90] sm:$0xff]
  %v1176 = vld [vmem:[%s200 + $0x98] sm:$0xff]
  %v1177 = vld [vmem:[%s200 + $0xa8] sm:$0xff]
  %v1178 = vld [vmem:[%s200 + $0xb0] sm:$0xff]
  %v1179 = vld [vmem:[%s200 + $0xc0] sm:$0xff]
  %v1180 = vld [vmem:[%s200 + $0xc8] sm:$0xff]
  %v1181 = vld [vmem:[%s200 + $0xd8] sm:$0xff]
  %v1182 = vld [vmem:[%s200 + $0xe0] sm:$0xff]
  %v1183 = vld [vmem:[%s200 + $0xf0] sm:$0xff]
  %v1184 = vld [vmem:[%s200 + $0xf8] sm:$0xff]
  %v1185 = vld [vmem:[%s200 + $0x108] sm:$0xff]
  %v1186 = vld [vmem:[%s200 + $0x110] sm:$0xff]
  %v1187 = vld [vmem:[%s200 + $0x120] sm:$0xff]
  %v1188 = vld [vmem:[%s200 + $0x128] sm:$0xff]
  %v1189 = vld [vmem:[%s200 + $0x138] sm:$0xff]
  %v1190 = vld [vmem:[%s200 + $0x140] sm:$0xff]
  %v1191 = vld [vmem:[%s200 + $0x150] sm:$0xff]
  %v1192 = vld [vmem:[%s200 + $0x158] sm:$0xff]
  %v1193 = vld [vmem:[%s200 + $0x168] sm:$0xff]
  %v1194 = vld [vmem:[%s200 + $0x170] sm:$0xff]
  %v1195 = vld [vmem:[%s200 + $0x1b0] sm:$0xff]
  %v1196 = vld [vmem:[%s200 + $0x1b8] sm:$0xff]
  %v1197 = vld [vmem:[%s200 + $0x1c8] sm:$0xff]
  %v1198 = vld [vmem:[%s200 + $0x1d0] sm:$0xff]
  %v1199 = vld [vmem:[%s200 + $0x1e0] sm:$0xff]
  %v1200 = vld [vmem:[%s200 + $0x1e8] sm:$0xff]
  %v1201 = vld [vmem:[%s200 + $0x1f8] sm:$0xff]
  %v1202 = vld [vmem:[%s200 + $0x200] sm:$0xff]
  %v1203 = vld [vmem:[%s200 + $0x210] sm:$0xff]
  %v1204 = vld [vmem:[%s200 + $0x218] sm:$0xff]
  %v1205 = vld [vmem:[%s200 + $0x228] sm:$0xff]
  %v1206 = vld [vmem:[%s200 + $0x230] sm:$0xff]
  %v1207 = vld [vmem:[%s200 + $0x240] sm:$0xff]
  %v1208 = vld [vmem:[%s200 + $0x248] sm:$0xff]
  %v1209 = vld [vmem:[%s200 + $0x258] sm:$0xff]
  %v1210 = vld [vmem:[%s200 + $0x260] sm:$0xff]
  %v1211 = vld [vmem:[%s200 + $0x270] sm:$0xff]
  %v1212 = vld [vmem:[%s200 + $0x278] sm:$0xff]
  %v1213 = vld [vmem:[%s200 + $0x288] sm:$0xff]
  %v1214 = vld [vmem:[%s200 + $0x290] sm:$0xff]
  %v1215 = vld [vmem:[%s200 + $0x2a0] sm:$0xff]
  %v1216 = vld [vmem:[%s200 + $0x2a8] sm:$0xff]
  %v1217 = vld [vmem:[%s200 + $0x2b8] sm:$0xff]
  %v1218 = vld [vmem:[%s200 + $0x2c0] sm:$0xff]
  %v1219 = vld [vmem:[%s200 + $0x2d0] sm:$0xff]
  %v1220 = vld [vmem:[%s200 + $0x2d8] sm:$0xff]
  %v1221 = vld [vmem:[%s200 + $0x2e8] sm:$0xff]
  %v1222 = vld [vmem:[%s200 + $0x2f0] sm:$0xff]
  %v1223 = vld [vmem:[%s200 + $0x300] sm:$0xff]
  %v1224 = vld [vmem:[%s200 + $0x308] sm:$0xff]
  %v1225 = vld [vmem:[%s200 + $0x318] sm:$0xff]
  %v1226 = vld [vmem:[%s200 + $0x320] sm:$0xff]
  %1291 = vrot.lane.b32.xlu0 %v1163, 12
  %v1292 = vpop.permute.xlu0 %1291
  %1293 = vrot.lane.b32.xlu0 %v1164, 12
  %v1294 = vpop.permute.xlu0 %1293
  %1295 = vrot.lane.b32.xlu0 %v1165, 12
  %v1296 = vpop.permute.xlu0 %1295
  %1297 = vrot.lane.b32.xlu0 %v1166, 12
  %v1298 = vpop.permute.xlu0 %1297
  %1299 = vrot.lane.b32.xlu0 %v1167, 12
  %v1300 = vpop.permute.xlu0 %1299
  %1301 = vrot.lane.b32.xlu0 %v1168, 12
  %v1302 = vpop.permute.xlu0 %1301
  %1303 = vrot.lane.b32.xlu0 %v1169, 12
  %v1304 = vpop.permute.xlu0 %1303
  %1305 = vrot.lane.b32.xlu0 %v1170, 12
  %v1306 = vpop.permute.xlu0 %1305
  %1307 = vrot.lane.b32.xlu0 %v1171, 12
  %v1308 = vpop.permute.xlu0 %1307
  %1309 = vrot.lane.b32.xlu0 %v1172, 12
  %v1310 = vpop.permute.xlu0 %1309
  %1311 = vrot.lane.b32.xlu0 %v1173, 12
  %v1312 = vpop.permute.xlu0 %1311
  %1313 = vrot.lane.b32.xlu0 %v1174, 12
  %v1314 = vpop.permute.xlu0 %1313
  %1315 = vrot.lane.b32.xlu0 %v1175, 12
  %v1316 = vpop.permute.xlu0 %1315
  %1317 = vrot.lane.b32.xlu0 %v1176, 12
  %v1318 = vpop.permute.xlu0 %1317
  %1319 = vrot.lane.b32.xlu0 %v1177, 12
  %v1320 = vpop.permute.xlu0 %1319
  %1321 = vrot.lane.b32.xlu0 %v1178, 12
  %v1322 = vpop.permute.xlu0 %1321
  %1323 = vrot.lane.b32.xlu0 %v1179, 12
  %v1324 = vpop.permute.xlu0 %1323
  %1325 = vrot.lane.b32.xlu0 %v1180, 12
  %v1326 = vpop.permute.xlu0 %1325
  %1327 = vrot.lane.b32.xlu0 %v1181, 12
  %v1328 = vpop.permute.xlu0 %1327
  %1329 = vrot.lane.b32.xlu0 %v1182, 12
  %v1330 = vpop.permute.xlu0 %1329
  %1331 = vrot.lane.b32.xlu0 %v1183, 12
  %v1332 = vpop.permute.xlu0 %1331
  %1333 = vrot.lane.b32.xlu0 %v1184, 12
  %v1334 = vpop.permute.xlu0 %1333
  %1335 = vrot.lane.b32.xlu0 %v1185, 12
  %v1336 = vpop.permute.xlu0 %1335
  %1337 = vrot.lane.b32.xlu0 %v1186, 12
  %v1338 = vpop.permute.xlu0 %1337
  %1339 = vrot.lane.b32.xlu0 %v1187, 12
  %v1340 = vpop.permute.xlu0 %1339
  %1341 = vrot.lane.b32.xlu0 %v1188, 12
  %v1342 = vpop.permute.xlu0 %1341
  %1343 = vrot.lane.b32.xlu0 %v1189, 12
  %v1344 = vpop.permute.xlu0 %1343
  %1345 = vrot.lane.b32.xlu0 %v1190, 12
  %v1346 = vpop.permute.xlu0 %1345
  %1347 = vrot.lane.b32.xlu0 %v1191, 12
  %v1348 = vpop.permute.xlu0 %1347
  %1349 = vrot.lane.b32.xlu0 %v1192, 12
  %v1350 = vpop.permute.xlu0 %1349
  %1351 = vrot.lane.b32.xlu0 %v1193, 12
  %v1352 = vpop.permute.xlu0 %1351
  %1353 = vrot.lane.b32.xlu0 %v1194, 12
  %v1354 = vpop.permute.xlu0 %1353
  %1355 = vrot.lane.b32.xlu0 %v1195, 12
  %v1356 = vpop.permute.xlu0 %1355
  %1357 = vrot.lane.b32.xlu0 %v1196, 12
  %v1358 = vpop.permute.xlu0 %1357
  %1359 = vrot.lane.b32.xlu0 %v1197, 12
  %v1360 = vpop.permute.xlu0 %1359
  %1361 = vrot.lane.b32.xlu0 %v1198, 12
  %v1362 = vpop.permute.xlu0 %1361
  %1363 = vrot.lane.b32.xlu0 %v1199, 12
  %v1364 = vpop.permute.xlu0 %1363
  %1365 = vrot.lane.b32.xlu0 %v1200, 12
  %v1366 = vpop.permute.xlu0 %1365
  %1367 = vrot.lane.b32.xlu0 %v1201, 12
  %v1368 = vpop.permute.xlu0 %1367
  %1369 = vrot.lane.b32.xlu0 %v1202, 12
  %v1370 = vpop.permute.xlu0 %1369
  %1371 = vrot.lane.b32.xlu0 %v1203, 12
  %v1372 = vpop.permute.xlu0 %1371
  %1373 = vrot.lane.b32.xlu0 %v1204, 12
  %v1374 = vpop.permute.xlu0 %1373
  %1375 = vrot.lane.b32.xlu0 %v1205, 12
  %v1376 = vpop.permute.xlu0 %1375
  %1377 = vrot.lane.b32.xlu0 %v1206, 12
  %v1378 = vpop.permute.xlu0 %1377
  %1379 = vrot.lane.b32.xlu0 %v1207, 12
  %v1380 = vpop.permute.xlu0 %1379
  %1381 = vrot.lane.b32.xlu0 %v1208, 12
  %v1382 = vpop.permute.xlu0 %1381
  %1383 = vrot.lane.b32.xlu0 %v1209, 12
  %v1384 = vpop.permute.xlu0 %1383
  %1385 = vrot.lane.b32.xlu0 %v1210, 12
  %v1386 = vpop.permute.xlu0 %1385
  %1387 = vrot.lane.b32.xlu0 %v1211, 12
  %v1388 = vpop.permute.xlu0 %1387
  %1389 = vrot.lane.b32.xlu0 %v1212, 12
  %v1390 = vpop.permute.xlu0 %1389
  %1391 = vrot.lane.b32.xlu0 %v1213, 12
  %v1392 = vpop.permute.xlu0 %1391
  %1393 = vrot.lane.b32.xlu0 %v1214, 12
  %v1394 = vpop.permute.xlu0 %1393
  %1395 = vrot.lane.b32.xlu0 %v1215, 12
  %v1396 = vpop.permute.xlu0 %1395
  %1397 = vrot.lane.b32.xlu0 %v1216, 12
  %v1398 = vpop.permute.xlu0 %1397
  %1399 = vrot.lane.b32.xlu0 %v1217, 12
  %v1400 = vpop.permute.xlu0 %1399
  %1401 = vrot.lane.b32.xlu0 %v1218, 12
  %v1402 = vpop.permute.xlu0 %1401
  %1403 = vrot.lane.b32.xlu0 %v1219, 12
  %v1404 = vpop.permute.xlu0 %1403
  %1405 = vrot.lane.b32.xlu0 %v1220, 12
  %v1406 = vpop.permute.xlu0 %1405
  %1407 = vrot.lane.b32.xlu0 %v1221, 12
  %v1408 = vpop.permute.xlu0 %1407
  %1409 = vrot.lane.b32.xlu0 %v1222, 12
  %v1410 = vpop.permute.xlu0 %1409
  %1411 = vrot.lane.b32.xlu0 %v1223, 12
  %v1412 = vpop.permute.xlu0 %1411
  %1413 = vrot.lane.b32.xlu0 %v1224, 12
  %v1414 = vpop.permute.xlu0 %1413
  %1415 = vrot.lane.b32.xlu0 %v1225, 12
  %v1416 = vpop.permute.xlu0 %1415
  %1417 = vrot.lane.b32.xlu0 %v1226, 12
  %v1418 = vpop.permute.xlu0 %1417
  %vm1483 = vcmask 130144
  %1484 = vst.msk [vmem:[#allocation3] sm:$0xff] %vm1483, %v1292
  %1485 = vst.msk [vmem:[#allocation3 + $0x8] sm:$0xff] %vm1483, %v1294
  %1486 = vst.msk [vmem:[#allocation3 + $0x10] sm:$0xff] %vm1483, %v1296
  %1487 = vst.msk [vmem:[#allocation3 + $0x18] sm:$0xff] %vm1483, %v1298
  %1488 = vst.msk [vmem:[#allocation3 + $0x20] sm:$0xff] %vm1483, %v1300
  %1489 = vst.msk [vmem:[#allocation3 + $0x28] sm:$0xff] %vm1483, %v1302
  %1490 = vst.msk [vmem:[#allocation3 + $0x30] sm:$0xff] %vm1483, %v1304
  %1491 = vst.msk [vmem:[#allocation3 + $0x38] sm:$0xff] %vm1483, %v1306
  %1492 = vst.msk [vmem:[#allocation3 + $0x40] sm:$0xff] %vm1483, %v1308
  %1493 = vst.msk [vmem:[#allocation3 + $0x48] sm:$0xff] %vm1483, %v1310
  %1494 = vst.msk [vmem:[#allocation3 + $0x50] sm:$0xff] %vm1483, %v1312
  %1495 = vst.msk [vmem:[#allocation3 + $0x58] sm:$0xff] %vm1483, %v1314
  %1496 = vst.msk [vmem:[#allocation3 + $0x60] sm:$0xff] %vm1483, %v1316
  %1497 = vst.msk [vmem:[#allocation3 + $0x68] sm:$0xff] %vm1483, %v1318
  %1498 = vst.msk [vmem:[#allocation3 + $0x70] sm:$0xff] %vm1483, %v1320
  %1499 = vst.msk [vmem:[#allocation3 + $0x78] sm:$0xff] %vm1483, %v1322
  %1500 = vst.msk [vmem:[#allocation3 + $0x80] sm:$0xff] %vm1483, %v1324
  %1501 = vst.msk [vmem:[#allocation3 + $0x88] sm:$0xff] %vm1483, %v1326
  %1502 = vst.msk [vmem:[#allocation3 + $0x90] sm:$0xff] %vm1483, %v1328
  %1503 = vst.msk [vmem:[#allocation3 + $0x98] sm:$0xff] %vm1483, %v1330
  %1504 = vst.msk [vmem:[#allocation3 + $0xa0] sm:$0xff] %vm1483, %v1332
  %1505 = vst.msk [vmem:[#allocation3 + $0xa8] sm:$0xff] %vm1483, %v1334
  %1506 = vst.msk [vmem:[#allocation3 + $0xb0] sm:$0xff] %vm1483, %v1336
  %1507 = vst.msk [vmem:[#allocation3 + $0xb8] sm:$0xff] %vm1483, %v1338
  %1508 = vst.msk [vmem:[#allocation3 + $0xc0] sm:$0xff] %vm1483, %v1340
  %1509 = vst.msk [vmem:[#allocation3 + $0xc8] sm:$0xff] %vm1483, %v1342
  %1510 = vst.msk [vmem:[#allocation3 + $0xd0] sm:$0xff] %vm1483, %v1344
  %1511 = vst.msk [vmem:[#allocation3 + $0xd8] sm:$0xff] %vm1483, %v1346
  %1512 = vst.msk [vmem:[#allocation3 + $0xe0] sm:$0xff] %vm1483, %v1348
  %1513 = vst.msk [vmem:[#allocation3 + $0xe8] sm:$0xff] %vm1483, %v1350
  %1514 = vst.msk [vmem:[#allocation3 + $0xf0] sm:$0xff] %vm1483, %v1352
  %1515 = vst.msk [vmem:[#allocation3 + $0xf8] sm:$0xff] %vm1483, %v1354
  %1516 = vst.msk [vmem:[#allocation3 + $0x100] sm:$0xff] %vm1483, %v1356
  %1517 = vst.msk [vmem:[#allocation3 + $0x108] sm:$0xff] %vm1483, %v1358
  %1518 = vst.msk [vmem:[#allocation3 + $0x110] sm:$0xff] %vm1483, %v1360
  %1519 = vst.msk [vmem:[#allocation3 + $0x118] sm:$0xff] %vm1483, %v1362
  %1520 = vst.msk [vmem:[#allocation3 + $0x120] sm:$0xff] %vm1483, %v1364
  %1521 = vst.msk [vmem:[#allocation3 + $0x128] sm:$0xff] %vm1483, %v1366
  %1522 = vst.msk [vmem:[#allocation3 + $0x130] sm:$0xff] %vm1483, %v1368
  %1523 = vst.msk [vmem:[#allocation3 + $0x138] sm:$0xff] %vm1483, %v1370
  %1524 = vst.msk [vmem:[#allocation3 + $0x140] sm:$0xff] %vm1483, %v1372
  %1525 = vst.msk [vmem:[#allocation3 + $0x148] sm:$0xff] %vm1483, %v1374
  %1526 = vst.msk [vmem:[#allocation3 + $0x150] sm:$0xff] %vm1483, %v1376
  %1527 = vst.msk [vmem:[#allocation3 + $0x158] sm:$0xff] %vm1483, %v1378
  %1528 = vst.msk [vmem:[#allocation3 + $0x160] sm:$0xff] %vm1483, %v1380
  %1529 = vst.msk [vmem:[#allocation3 + $0x168] sm:$0xff] %vm1483, %v1382
  %1530 = vst.msk [vmem:[#allocation3 + $0x170] sm:$0xff] %vm1483, %v1384
  %1531 = vst.msk [vmem:[#allocation3 + $0x178] sm:$0xff] %vm1483, %v1386
  %1532 = vst.msk [vmem:[#allocation3 + $0x180] sm:$0xff] %vm1483, %v1388
  %1533 = vst.msk [vmem:[#allocation3 + $0x188] sm:$0xff] %vm1483, %v1390
  %1534 = vst.msk [vmem:[#allocation3 + $0x190] sm:$0xff] %vm1483, %v1392
  %1535 = vst.msk [vmem:[#allocation3 + $0x198] sm:$0xff] %vm1483, %v1394
  %1536 = vst.msk [vmem:[#allocation3 + $0x1a0] sm:$0xff] %vm1483, %v1396
  %1537 = vst.msk [vmem:[#allocation3 + $0x1a8] sm:$0xff] %vm1483, %v1398
  %1538 = vst.msk [vmem:[#allocation3 + $0x1b0] sm:$0xff] %vm1483, %v1400
  %1539 = vst.msk [vmem:[#allocation3 + $0x1b8] sm:$0xff] %vm1483, %v1402
  %1540 = vst.msk [vmem:[#allocation3 + $0x1c0] sm:$0xff] %vm1483, %v1404
  %1541 = vst.msk [vmem:[#allocation3 + $0x1c8] sm:$0xff] %vm1483, %v1406
  %1542 = vst.msk [vmem:[#allocation3 + $0x1d0] sm:$0xff] %vm1483, %v1408
  %1543 = vst.msk [vmem:[#allocation3 + $0x1d8] sm:$0xff] %vm1483, %v1410
  %1544 = vst.msk [vmem:[#allocation3 + $0x1e0] sm:$0xff] %vm1483, %v1412
  %1545 = vst.msk [vmem:[#allocation3 + $0x1e8] sm:$0xff] %vm1483, %v1414
  %1546 = vst.msk [vmem:[#allocation3 + $0x1f0] sm:$0xff] %vm1483, %v1416
  %1547 = vst.msk [vmem:[#allocation3 + $0x1f8] sm:$0xff] %vm1483, %v1418
  %v1548 = vld [vmem:[%s200 + $0x1] sm:$0xff]
  %v1549 = vld [vmem:[%s200 + $0x9] sm:$0xff]
  %v1550 = vld [vmem:[%s200 + $0x19] sm:$0xff]
  %v1551 = vld [vmem:[%s200 + $0x21] sm:$0xff]
  %v1552 = vld [vmem:[%s200 + $0x31] sm:$0xff]
  %v1553 = vld [vmem:[%s200 + $0x39] sm:$0xff]
  %v1554 = vld [vmem:[%s200 + $0x49] sm:$0xff]
  %v1555 = vld [vmem:[%s200 + $0x51] sm:$0xff]
  %v1556 = vld [vmem:[%s200 + $0x61] sm:$0xff]
  %v1557 = vld [vmem:[%s200 + $0x69] sm:$0xff]
  %v1558 = vld [vmem:[%s200 + $0x79] sm:$0xff]
  %v1559 = vld [vmem:[%s200 + $0x81] sm:$0xff]
  %v1560 = vld [vmem:[%s200 + $0x91] sm:$0xff]
  %v1561 = vld [vmem:[%s200 + $0x99] sm:$0xff]
  %v1562 = vld [vmem:[%s200 + $0xa9] sm:$0xff]
  %v1563 = vld [vmem:[%s200 + $0xb1] sm:$0xff]
  %v1564 = vld [vmem:[%s200 + $0xc1] sm:$0xff]
  %v1565 = vld [vmem:[%s200 + $0xc9] sm:$0xff]
  %v1566 = vld [vmem:[%s200 + $0xd9] sm:$0xff]
  %v1567 = vld [vmem:[%s200 + $0xe1] sm:$0xff]
  %v1568 = vld [vmem:[%s200 + $0xf1] sm:$0xff]
  %v1569 = vld [vmem:[%s200 + $0xf9] sm:$0xff]
  %v1570 = vld [vmem:[%s200 + $0x109] sm:$0xff]
  %v1571 = vld [vmem:[%s200 + $0x111] sm:$0xff]
  %v1572 = vld [vmem:[%s200 + $0x121] sm:$0xff]
  %v1573 = vld [vmem:[%s200 + $0x129] sm:$0xff]
  %v1574 = vld [vmem:[%s200 + $0x139] sm:$0xff]
  %v1575 = vld [vmem:[%s200 + $0x141] sm:$0xff]
  %v1576 = vld [vmem:[%s200 + $0x151] sm:$0xff]
  %v1577 = vld [vmem:[%s200 + $0x159] sm:$0xff]
  %v1578 = vld [vmem:[%s200 + $0x169] sm:$0xff]
  %v1579 = vld [vmem:[%s200 + $0x171] sm:$0xff]
  %v1580 = vld [vmem:[%s200 + $0x1b1] sm:$0xff]
  %v1581 = vld [vmem:[%s200 + $0x1b9] sm:$0xff]
  %v1582 = vld [vmem:[%s200 + $0x1c9] sm:$0xff]
  %v1583 = vld [vmem:[%s200 + $0x1d1] sm:$0xff]
  %v1584 = vld [vmem:[%s200 + $0x1e1] sm:$0xff]
  %v1585 = vld [vmem:[%s200 + $0x1e9] sm:$0xff]
  %v1586 = vld [vmem:[%s200 + $0x1f9] sm:$0xff]
  %v1587 = vld [vmem:[%s200 + $0x201] sm:$0xff]
  %v1588 = vld [vmem:[%s200 + $0x211] sm:$0xff]
  %v1589 = vld [vmem:[%s200 + $0x219] sm:$0xff]
  %v1590 = vld [vmem:[%s200 + $0x229] sm:$0xff]
  %v1591 = vld [vmem:[%s200 + $0x231] sm:$0xff]
  %v1592 = vld [vmem:[%s200 + $0x241] sm:$0xff]
  %v1593 = vld [vmem:[%s200 + $0x249] sm:$0xff]
  %v1594 = vld [vmem:[%s200 + $0x259] sm:$0xff]
  %v1595 = vld [vmem:[%s200 + $0x261] sm:$0xff]
  %v1596 = vld [vmem:[%s200 + $0x271] sm:$0xff]
  %v1597 = vld [vmem:[%s200 + $0x279] sm:$0xff]
  %v1598 = vld [vmem:[%s200 + $0x289] sm:$0xff]
  %v1599 = vld [vmem:[%s200 + $0x291] sm:$0xff]
  %v1600 = vld [vmem:[%s200 + $0x2a1] sm:$0xff]
  %v1601 = vld [vmem:[%s200 + $0x2a9] sm:$0xff]
  %v1602 = vld [vmem:[%s200 + $0x2b9] sm:$0xff]
  %v1603 = vld [vmem:[%s200 + $0x2c1] sm:$0xff]
  %v1604 = vld [vmem:[%s200 + $0x2d1] sm:$0xff]
  %v1605 = vld [vmem:[%s200 + $0x2d9] sm:$0xff]
  %v1606 = vld [vmem:[%s200 + $0x2e9] sm:$0xff]
  %v1607 = vld [vmem:[%s200 + $0x2f1] sm:$0xff]
  %v1608 = vld [vmem:[%s200 + $0x301] sm:$0xff]
  %v1609 = vld [vmem:[%s200 + $0x309] sm:$0xff]
  %v1610 = vld [vmem:[%s200 + $0x319] sm:$0xff]
  %v1611 = vld [vmem:[%s200 + $0x321] sm:$0xff]
  %1676 = vrot.lane.b32.xlu0 %v1548, 16
  %v1677 = vpop.permute.xlu0 %1676
  %1678 = vrot.lane.b32.xlu0 %v1549, 16
  %v1679 = vpop.permute.xlu0 %1678
  %1680 = vrot.lane.b32.xlu0 %v1550, 16
  %v1681 = vpop.permute.xlu0 %1680
  %1682 = vrot.lane.b32.xlu0 %v1551, 16
  %v1683 = vpop.permute.xlu0 %1682
  %1684 = vrot.lane.b32.xlu0 %v1552, 16
  %v1685 = vpop.permute.xlu0 %1684
  %1686 = vrot.lane.b32.xlu0 %v1553, 16
  %v1687 = vpop.permute.xlu0 %1686
  %1688 = vrot.lane.b32.xlu0 %v1554, 16
  %v1689 = vpop.permute.xlu0 %1688
  %1690 = vrot.lane.b32.xlu0 %v1555, 16
  %v1691 = vpop.permute.xlu0 %1690
  %1692 = vrot.lane.b32.xlu0 %v1556, 16
  %v1693 = vpop.permute.xlu0 %1692
  %1694 = vrot.lane.b32.xlu0 %v1557, 16
  %v1695 = vpop.permute.xlu0 %1694
  %1696 = vrot.lane.b32.xlu0 %v1558, 16
  %v1697 = vpop.permute.xlu0 %1696
  %1698 = vrot.lane.b32.xlu0 %v1559, 16
  %v1699 = vpop.permute.xlu0 %1698
  %1700 = vrot.lane.b32.xlu0 %v1560, 16
  %v1701 = vpop.permute.xlu0 %1700
  %1702 = vrot.lane.b32.xlu0 %v1561, 16
  %v1703 = vpop.permute.xlu0 %1702
  %1704 = vrot.lane.b32.xlu0 %v1562, 16
  %v1705 = vpop.permute.xlu0 %1704
  %1706 = vrot.lane.b32.xlu0 %v1563, 16
  %v1707 = vpop.permute.xlu0 %1706
  %1708 = vrot.lane.b32.xlu0 %v1564, 16
  %v1709 = vpop.permute.xlu0 %1708
  %1710 = vrot.lane.b32.xlu0 %v1565, 16
  %v1711 = vpop.permute.xlu0 %1710
  %1712 = vrot.lane.b32.xlu0 %v1566, 16
  %v1713 = vpop.permute.xlu0 %1712
  %1714 = vrot.lane.b32.xlu0 %v1567, 16
  %v1715 = vpop.permute.xlu0 %1714
  %1716 = vrot.lane.b32.xlu0 %v1568, 16
  %v1717 = vpop.permute.xlu0 %1716
  %1718 = vrot.lane.b32.xlu0 %v1569, 16
  %v1719 = vpop.permute.xlu0 %1718
  %1720 = vrot.lane.b32.xlu0 %v1570, 16
  %v1721 = vpop.permute.xlu0 %1720
  %1722 = vrot.lane.b32.xlu0 %v1571, 16
  %v1723 = vpop.permute.xlu0 %1722
  %1724 = vrot.lane.b32.xlu0 %v1572, 16
  %v1725 = vpop.permute.xlu0 %1724
  %1726 = vrot.lane.b32.xlu0 %v1573, 16
  %v1727 = vpop.permute.xlu0 %1726
  %1728 = vrot.lane.b32.xlu0 %v1574, 16
  %v1729 = vpop.permute.xlu0 %1728
  %1730 = vrot.lane.b32.xlu0 %v1575, 16
  %v1731 = vpop.permute.xlu0 %1730
  %1732 = vrot.lane.b32.xlu0 %v1576, 16
  %v1733 = vpop.permute.xlu0 %1732
  %1734 = vrot.lane.b32.xlu0 %v1577, 16
  %v1735 = vpop.permute.xlu0 %1734
  %1736 = vrot.lane.b32.xlu0 %v1578, 16
  %v1737 = vpop.permute.xlu0 %1736
  %1738 = vrot.lane.b32.xlu0 %v1579, 16
  %v1739 = vpop.permute.xlu0 %1738
  %1740 = vrot.lane.b32.xlu0 %v1580, 16
  %v1741 = vpop.permute.xlu0 %1740
  %1742 = vrot.lane.b32.xlu0 %v1581, 16
  %v1743 = vpop.permute.xlu0 %1742
  %1744 = vrot.lane.b32.xlu0 %v1582, 16
  %v1745 = vpop.permute.xlu0 %1744
  %1746 = vrot.lane.b32.xlu0 %v1583, 16
  %v1747 = vpop.permute.xlu0 %1746
  %1748 = vrot.lane.b32.xlu0 %v1584, 16
  %v1749 = vpop.permute.xlu0 %1748
  %1750 = vrot.lane.b32.xlu0 %v1585, 16
  %v1751 = vpop.permute.xlu0 %1750
  %1752 = vrot.lane.b32.xlu0 %v1586, 16
  %v1753 = vpop.permute.xlu0 %1752
  %1754 = vrot.lane.b32.xlu0 %v1587, 16
  %v1755 = vpop.permute.xlu0 %1754
  %1756 = vrot.lane.b32.xlu0 %v1588, 16
  %v1757 = vpop.permute.xlu0 %1756
  %1758 = vrot.lane.b32.xlu0 %v1589, 16
  %v1759 = vpop.permute.xlu0 %1758
  %1760 = vrot.lane.b32.xlu0 %v1590, 16
  %v1761 = vpop.permute.xlu0 %1760
  %1762 = vrot.lane.b32.xlu0 %v1591, 16
  %v1763 = vpop.permute.xlu0 %1762
  %1764 = vrot.lane.b32.xlu0 %v1592, 16
  %v1765 = vpop.permute.xlu0 %1764
  %1766 = vrot.lane.b32.xlu0 %v1593, 16
  %v1767 = vpop.permute.xlu0 %1766
  %1768 = vrot.lane.b32.xlu0 %v1594, 16
  %v1769 = vpop.permute.xlu0 %1768
  %1770 = vrot.lane.b32.xlu0 %v1595, 16
  %v1771 = vpop.permute.xlu0 %1770
  %1772 = vrot.lane.b32.xlu0 %v1596, 16
  %v1773 = vpop.permute.xlu0 %1772
  %1774 = vrot.lane.b32.xlu0 %v1597, 16
  %v1775 = vpop.permute.xlu0 %1774
  %1776 = vrot.lane.b32.xlu0 %v1598, 16
  %v1777 = vpop.permute.xlu0 %1776
  %1778 = vrot.lane.b32.xlu0 %v1599, 16
  %v1779 = vpop.permute.xlu0 %1778
  %1780 = vrot.lane.b32.xlu0 %v1600, 16
  %v1781 = vpop.permute.xlu0 %1780
  %1782 = vrot.lane.b32.xlu0 %v1601, 16
  %v1783 = vpop.permute.xlu0 %1782
  %1784 = vrot.lane.b32.xlu0 %v1602, 16
  %v1785 = vpop.permute.xlu0 %1784
  %1786 = vrot.lane.b32.xlu0 %v1603, 16
  %v1787 = vpop.permute.xlu0 %1786
  %1788 = vrot.lane.b32.xlu0 %v1604, 16
  %v1789 = vpop.permute.xlu0 %1788
  %1790 = vrot.lane.b32.xlu0 %v1605, 16
  %v1791 = vpop.permute.xlu0 %1790
  %1792 = vrot.lane.b32.xlu0 %v1606, 16
  %v1793 = vpop.permute.xlu0 %1792
  %1794 = vrot.lane.b32.xlu0 %v1607, 16
  %v1795 = vpop.permute.xlu0 %1794
  %1796 = vrot.lane.b32.xlu0 %v1608, 16
  %v1797 = vpop.permute.xlu0 %1796
  %1798 = vrot.lane.b32.xlu0 %v1609, 16
  %v1799 = vpop.permute.xlu0 %1798
  %1800 = vrot.lane.b32.xlu0 %v1610, 16
  %v1801 = vpop.permute.xlu0 %1800
  %1802 = vrot.lane.b32.xlu0 %v1611, 16
  %v1803 = vpop.permute.xlu0 %1802
  %vm1868 = vcmask 162944
  %1869 = vst.msk [vmem:[#allocation3] sm:$0xff] %vm1868, %v1677
  %1870 = vst.msk [vmem:[#allocation3 + $0x8] sm:$0xff] %vm1868, %v1679
  %1871 = vst.msk [vmem:[#allocation3 + $0x10] sm:$0xff] %vm1868, %v1681
  %1872 = vst.msk [vmem:[#allocation3 + $0x18] sm:$0xff] %vm1868, %v1683
  %1873 = vst.msk [vmem:[#allocation3 + $0x20] sm:$0xff] %vm1868, %v1685
  %1874 = vst.msk [vmem:[#allocation3 + $0x28] sm:$0xff] %vm1868, %v1687
  %1875 = vst.msk [vmem:[#allocation3 + $0x30] sm:$0xff] %vm1868, %v1689
  %1876 = vst.msk [vmem:[#allocation3 + $0x38] sm:$0xff] %vm1868, %v1691
  %1877 = vst.msk [vmem:[#allocation3 + $0x40] sm:$0xff] %vm1868, %v1693
  %1878 = vst.msk [vmem:[#allocation3 + $0x48] sm:$0xff] %vm1868, %v1695
  %1879 = vst.msk [vmem:[#allocation3 + $0x50] sm:$0xff] %vm1868, %v1697
  %1880 = vst.msk [vmem:[#allocation3 + $0x58] sm:$0xff] %vm1868, %v1699
  %1881 = vst.msk [vmem:[#allocation3 + $0x60] sm:$0xff] %vm1868, %v1701
  %1882 = vst.msk [vmem:[#allocation3 + $0x68] sm:$0xff] %vm1868, %v1703
  %1883 = vst.msk [vmem:[#allocation3 + $0x70] sm:$0xff] %vm1868, %v1705
  %1884 = vst.msk [vmem:[#allocation3 + $0x78] sm:$0xff] %vm1868, %v1707
  %1885 = vst.msk [vmem:[#allocation3 + $0x80] sm:$0xff] %vm1868, %v1709
  %1886 = vst.msk [vmem:[#allocation3 + $0x88] sm:$0xff] %vm1868, %v1711
  %1887 = vst.msk [vmem:[#allocation3 + $0x90] sm:$0xff] %vm1868, %v1713
  %1888 = vst.msk [vmem:[#allocation3 + $0x98] sm:$0xff] %vm1868, %v1715
  %1889 = vst.msk [vmem:[#allocation3 + $0xa0] sm:$0xff] %vm1868, %v1717
  %1890 = vst.msk [vmem:[#allocation3 + $0xa8] sm:$0xff] %vm1868, %v1719
  %1891 = vst.msk [vmem:[#allocation3 + $0xb0] sm:$0xff] %vm1868, %v1721
  %1892 = vst.msk [vmem:[#allocation3 + $0xb8] sm:$0xff] %vm1868, %v1723
  %1893 = vst.msk [vmem:[#allocation3 + $0xc0] sm:$0xff] %vm1868, %v1725
  %1894 = vst.msk [vmem:[#allocation3 + $0xc8] sm:$0xff] %vm1868, %v1727
  %1895 = vst.msk [vmem:[#allocation3 + $0xd0] sm:$0xff] %vm1868, %v1729
  %1896 = vst.msk [vmem:[#allocation3 + $0xd8] sm:$0xff] %vm1868, %v1731
  %1897 = vst.msk [vmem:[#allocation3 + $0xe0] sm:$0xff] %vm1868, %v1733
  %1898 = vst.msk [vmem:[#allocation3 + $0xe8] sm:$0xff] %vm1868, %v1735
  %1899 = vst.msk [vmem:[#allocation3 + $0xf0] sm:$0xff] %vm1868, %v1737
  %1900 = vst.msk [vmem:[#allocation3 + $0xf8] sm:$0xff] %vm1868, %v1739
  %1901 = vst.msk [vmem:[#allocation3 + $0x100] sm:$0xff] %vm1868, %v1741
  %1902 = vst.msk [vmem:[#allocation3 + $0x108] sm:$0xff] %vm1868, %v1743
  %1903 = vst.msk [vmem:[#allocation3 + $0x110] sm:$0xff] %vm1868, %v1745
  %1904 = vst.msk [vmem:[#allocation3 + $0x118] sm:$0xff] %vm1868, %v1747
  %1905 = vst.msk [vmem:[#allocation3 + $0x120] sm:$0xff] %vm1868, %v1749
  %1906 = vst.msk [vmem:[#allocation3 + $0x128] sm:$0xff] %vm1868, %v1751
  %1907 = vst.msk [vmem:[#allocation3 + $0x130] sm:$0xff] %vm1868, %v1753
  %1908 = vst.msk [vmem:[#allocation3 + $0x138] sm:$0xff] %vm1868, %v1755
  %1909 = vst.msk [vmem:[#allocation3 + $0x140] sm:$0xff] %vm1868, %v1757
  %1910 = vst.msk [vmem:[#allocation3 + $0x148] sm:$0xff] %vm1868, %v1759
  %1911 = vst.msk [vmem:[#allocation3 + $0x150] sm:$0xff] %vm1868, %v1761
  %1912 = vst.msk [vmem:[#allocation3 + $0x158] sm:$0xff] %vm1868, %v1763
  %1913 = vst.msk [vmem:[#allocation3 + $0x160] sm:$0xff] %vm1868, %v1765
  %1914 = vst.msk [vmem:[#allocation3 + $0x168] sm:$0xff] %vm1868, %v1767
  %1915 = vst.msk [vmem:[#allocation3 + $0x170] sm:$0xff] %vm1868, %v1769
  %1916 = vst.msk [vmem:[#allocation3 + $0x178] sm:$0xff] %vm1868, %v1771
  %1917 = vst.msk [vmem:[#allocation3 + $0x180] sm:$0xff] %vm1868, %v1773
  %1918 = vst.msk [vmem:[#allocation3 + $0x188] sm:$0xff] %vm1868, %v1775
  %1919 = vst.msk [vmem:[#allocation3 + $0x190] sm:$0xff] %vm1868, %v1777
  %1920 = vst.msk [vmem:[#allocation3 + $0x198] sm:$0xff] %vm1868, %v1779
  %1921 = vst.msk [vmem:[#allocation3 + $0x1a0] sm:$0xff] %vm1868, %v1781
  %1922 = vst.msk [vmem:[#allocation3 + $0x1a8] sm:$0xff] %vm1868, %v1783
  %1923 = vst.msk [vmem:[#allocation3 + $0x1b0] sm:$0xff] %vm1868, %v1785
  %1924 = vst.msk [vmem:[#allocation3 + $0x1b8] sm:$0xff] %vm1868, %v1787
  %1925 = vst.msk [vmem:[#allocation3 + $0x1c0] sm:$0xff] %vm1868, %v1789
  %1926 = vst.msk [vmem:[#allocation3 + $0x1c8] sm:$0xff] %vm1868, %v1791
  %1927 = vst.msk [vmem:[#allocation3 + $0x1d0] sm:$0xff] %vm1868, %v1793
  %1928 = vst.msk [vmem:[#allocation3 + $0x1d8] sm:$0xff] %vm1868, %v1795
  %1929 = vst.msk [vmem:[#allocation3 + $0x1e0] sm:$0xff] %vm1868, %v1797
  %1930 = vst.msk [vmem:[#allocation3 + $0x1e8] sm:$0xff] %vm1868, %v1799
  %1931 = vst.msk [vmem:[#allocation3 + $0x1f0] sm:$0xff] %vm1868, %v1801
  %1932 = vst.msk [vmem:[#allocation3 + $0x1f8] sm:$0xff] %vm1868, %v1803
  %v1933 = vld [vmem:[%s200 + $0x2] sm:$0xff]
  %v1934 = vld [vmem:[%s200 + $0xa] sm:$0xff]
  %v1935 = vld [vmem:[%s200 + $0x1a] sm:$0xff]
  %v1936 = vld [vmem:[%s200 + $0x22] sm:$0xff]
  %v1937 = vld [vmem:[%s200 + $0x32] sm:$0xff]
  %v1938 = vld [vmem:[%s200 + $0x3a] sm:$0xff]
  %v1939 = vld [vmem:[%s200 + $0x4a] sm:$0xff]
  %v1940 = vld [vmem:[%s200 + $0x52] sm:$0xff]
  %v1941 = vld [vmem:[%s200 + $0x62] sm:$0xff]
  %v1942 = vld [vmem:[%s200 + $0x6a] sm:$0xff]
  %v1943 = vld [vmem:[%s200 + $0x7a] sm:$0xff]
  %v1944 = vld [vmem:[%s200 + $0x82] sm:$0xff]
  %v1945 = vld [vmem:[%s200 + $0x92] sm:$0xff]
  %v1946 = vld [vmem:[%s200 + $0x9a] sm:$0xff]
  %v1947 = vld [vmem:[%s200 + $0xaa] sm:$0xff]
  %v1948 = vld [vmem:[%s200 + $0xb2] sm:$0xff]
  %v1949 = vld [vmem:[%s200 + $0xc2] sm:$0xff]
  %v1950 = vld [vmem:[%s200 + $0xca] sm:$0xff]
  %v1951 = vld [vmem:[%s200 + $0xda] sm:$0xff]
  %v1952 = vld [vmem:[%s200 + $0xe2] sm:$0xff]
  %v1953 = vld [vmem:[%s200 + $0xf2] sm:$0xff]
  %v1954 = vld [vmem:[%s200 + $0xfa] sm:$0xff]
  %v1955 = vld [vmem:[%s200 + $0x10a] sm:$0xff]
  %v1956 = vld [vmem:[%s200 + $0x112] sm:$0xff]
  %v1957 = vld [vmem:[%s200 + $0x122] sm:$0xff]
  %v1958 = vld [vmem:[%s200 + $0x12a] sm:$0xff]
  %v1959 = vld [vmem:[%s200 + $0x13a] sm:$0xff]
  %v1960 = vld [vmem:[%s200 + $0x142] sm:$0xff]
  %v1961 = vld [vmem:[%s200 + $0x152] sm:$0xff]
  %v1962 = vld [vmem:[%s200 + $0x15a] sm:$0xff]
  %v1963 = vld [vmem:[%s200 + $0x16a] sm:$0xff]
  %v1964 = vld [vmem:[%s200 + $0x172] sm:$0xff]
  %v1965 = vld [vmem:[%s200 + $0x1b2] sm:$0xff]
  %v1966 = vld [vmem:[%s200 + $0x1ba] sm:$0xff]
  %v1967 = vld [vmem:[%s200 + $0x1ca] sm:$0xff]
  %v1968 = vld [vmem:[%s200 + $0x1d2] sm:$0xff]
  %v1969 = vld [vmem:[%s200 + $0x1e2] sm:$0xff]
  %v1970 = vld [vmem:[%s200 + $0x1ea] sm:$0xff]
  %v1971 = vld [vmem:[%s200 + $0x1fa] sm:$0xff]
  %v1972 = vld [vmem:[%s200 + $0x202] sm:$0xff]
  %v1973 = vld [vmem:[%s200 + $0x212] sm:$0xff]
  %v1974 = vld [vmem:[%s200 + $0x21a] sm:$0xff]
  %v1975 = vld [vmem:[%s200 + $0x22a] sm:$0xff]
  %v1976 = vld [vmem:[%s200 + $0x232] sm:$0xff]
  %v1977 = vld [vmem:[%s200 + $0x242] sm:$0xff]
  %v1978 = vld [vmem:[%s200 + $0x24a] sm:$0xff]
  %v1979 = vld [vmem:[%s200 + $0x25a] sm:$0xff]
  %v1980 = vld [vmem:[%s200 + $0x262] sm:$0xff]
  %v1981 = vld [vmem:[%s200 + $0x272] sm:$0xff]
  %v1982 = vld [vmem:[%s200 + $0x27a] sm:$0xff]
  %v1983 = vld [vmem:[%s200 + $0x28a] sm:$0xff]
  %v1984 = vld [vmem:[%s200 + $0x292] sm:$0xff]
  %v1985 = vld [vmem:[%s200 + $0x2a2] sm:$0xff]
  %v1986 = vld [vmem:[%s200 + $0x2aa] sm:$0xff]
  %v1987 = vld [vmem:[%s200 + $0x2ba] sm:$0xff]
  %v1988 = vld [vmem:[%s200 + $0x2c2] sm:$0xff]
  %v1989 = vld [vmem:[%s200 + $0x2d2] sm:$0xff]
  %v1990 = vld [vmem:[%s200 + $0x2da] sm:$0xff]
  %v1991 = vld [vmem:[%s200 + $0x2ea] sm:$0xff]
  %v1992 = vld [vmem:[%s200 + $0x2f2] sm:$0xff]
  %v1993 = vld [vmem:[%s200 + $0x302] sm:$0xff]
  %v1994 = vld [vmem:[%s200 + $0x30a] sm:$0xff]
  %v1995 = vld [vmem:[%s200 + $0x31a] sm:$0xff]
  %v1996 = vld [vmem:[%s200 + $0x322] sm:$0xff]
  %2061 = vrot.lane.b32.xlu0 %v1933, 20
  %v2062 = vpop.permute.xlu0 %2061
  %2063 = vrot.lane.b32.xlu0 %v1934, 20
  %v2064 = vpop.permute.xlu0 %2063
  %2065 = vrot.lane.b32.xlu0 %v1935, 20
  %v2066 = vpop.permute.xlu0 %2065
  %2067 = vrot.lane.b32.xlu0 %v1936, 20
  %v2068 = vpop.permute.xlu0 %2067
  %2069 = vrot.lane.b32.xlu0 %v1937, 20
  %v2070 = vpop.permute.xlu0 %2069
  %2071 = vrot.lane.b32.xlu0 %v1938, 20
  %v2072 = vpop.permute.xlu0 %2071
  %2073 = vrot.lane.b32.xlu0 %v1939, 20
  %v2074 = vpop.permute.xlu0 %2073
  %2075 = vrot.lane.b32.xlu0 %v1940, 20
  %v2076 = vpop.permute.xlu0 %2075
  %2077 = vrot.lane.b32.xlu0 %v1941, 20
  %v2078 = vpop.permute.xlu0 %2077
  %2079 = vrot.lane.b32.xlu0 %v1942, 20
  %v2080 = vpop.permute.xlu0 %2079
  %2081 = vrot.lane.b32.xlu0 %v1943, 20
  %v2082 = vpop.permute.xlu0 %2081
  %2083 = vrot.lane.b32.xlu0 %v1944, 20
  %v2084 = vpop.permute.xlu0 %2083
  %2085 = vrot.lane.b32.xlu0 %v1945, 20
  %v2086 = vpop.permute.xlu0 %2085
  %2087 = vrot.lane.b32.xlu0 %v1946, 20
  %v2088 = vpop.permute.xlu0 %2087
  %2089 = vrot.lane.b32.xlu0 %v1947, 20
  %v2090 = vpop.permute.xlu0 %2089
  %2091 = vrot.lane.b32.xlu0 %v1948, 20
  %v2092 = vpop.permute.xlu0 %2091
  %2093 = vrot.lane.b32.xlu0 %v1949, 20
  %v2094 = vpop.permute.xlu0 %2093
  %2095 = vrot.lane.b32.xlu0 %v1950, 20
  %v2096 = vpop.permute.xlu0 %2095
  %2097 = vrot.lane.b32.xlu0 %v1951, 20
  %v2098 = vpop.permute.xlu0 %2097
  %2099 = vrot.lane.b32.xlu0 %v1952, 20
  %v2100 = vpop.permute.xlu0 %2099
  %2101 = vrot.lane.b32.xlu0 %v1953, 20
  %v2102 = vpop.permute.xlu0 %2101
  %2103 = vrot.lane.b32.xlu0 %v1954, 20
  %v2104 = vpop.permute.xlu0 %2103
  %2105 = vrot.lane.b32.xlu0 %v1955, 20
  %v2106 = vpop.permute.xlu0 %2105
  %2107 = vrot.lane.b32.xlu0 %v1956, 20
  %v2108 = vpop.permute.xlu0 %2107
  %2109 = vrot.lane.b32.xlu0 %v1957, 20
  %v2110 = vpop.permute.xlu0 %2109
  %2111 = vrot.lane.b32.xlu0 %v1958, 20
  %v2112 = vpop.permute.xlu0 %2111
  %2113 = vrot.lane.b32.xlu0 %v1959, 20
  %v2114 = vpop.permute.xlu0 %2113
  %2115 = vrot.lane.b32.xlu0 %v1960, 20
  %v2116 = vpop.permute.xlu0 %2115
  %2117 = vrot.lane.b32.xlu0 %v1961, 20
  %v2118 = vpop.permute.xlu0 %2117
  %2119 = vrot.lane.b32.xlu0 %v1962, 20
  %v2120 = vpop.permute.xlu0 %2119
  %2121 = vrot.lane.b32.xlu0 %v1963, 20
  %v2122 = vpop.permute.xlu0 %2121
  %2123 = vrot.lane.b32.xlu0 %v1964, 20
  %v2124 = vpop.permute.xlu0 %2123
  %2125 = vrot.lane.b32.xlu0 %v1965, 20
  %v2126 = vpop.permute.xlu0 %2125
  %2127 = vrot.lane.b32.xlu0 %v1966, 20
  %v2128 = vpop.permute.xlu0 %2127
  %2129 = vrot.lane.b32.xlu0 %v1967, 20
  %v2130 = vpop.permute.xlu0 %2129
  %2131 = vrot.lane.b32.xlu0 %v1968, 20
  %v2132 = vpop.permute.xlu0 %2131
  %2133 = vrot.lane.b32.xlu0 %v1969, 20
  %v2134 = vpop.permute.xlu0 %2133
  %2135 = vrot.lane.b32.xlu0 %v1970, 20
  %v2136 = vpop.permute.xlu0 %2135
  %2137 = vrot.lane.b32.xlu0 %v1971, 20
  %v2138 = vpop.permute.xlu0 %2137
  %2139 = vrot.lane.b32.xlu0 %v1972, 20
  %v2140 = vpop.permute.xlu0 %2139
  %2141 = vrot.lane.b32.xlu0 %v1973, 20
  %v2142 = vpop.permute.xlu0 %2141
  %2143 = vrot.lane.b32.xlu0 %v1974, 20
  %v2144 = vpop.permute.xlu0 %2143
  %2145 = vrot.lane.b32.xlu0 %v1975, 20
  %v2146 = vpop.permute.xlu0 %2145
  %2147 = vrot.lane.b32.xlu0 %v1976, 20
  %v2148 = vpop.permute.xlu0 %2147
  %2149 = vrot.lane.b32.xlu0 %v1977, 20
  %v2150 = vpop.permute.xlu0 %2149
  %2151 = vrot.lane.b32.xlu0 %v1978, 20
  %v2152 = vpop.permute.xlu0 %2151
  %2153 = vrot.lane.b32.xlu0 %v1979, 20
  %v2154 = vpop.permute.xlu0 %2153
  %2155 = vrot.lane.b32.xlu0 %v1980, 20
  %v2156 = vpop.permute.xlu0 %2155
  %2157 = vrot.lane.b32.xlu0 %v1981, 20
  %v2158 = vpop.permute.xlu0 %2157
  %2159 = vrot.lane.b32.xlu0 %v1982, 20
  %v2160 = vpop.permute.xlu0 %2159
  %2161 = vrot.lane.b32.xlu0 %v1983, 20
  %v2162 = vpop.permute.xlu0 %2161
  %2163 = vrot.lane.b32.xlu0 %v1984, 20
  %v2164 = vpop.permute.xlu0 %2163
  %2165 = vrot.lane.b32.xlu0 %v1985, 20
  %v2166 = vpop.permute.xlu0 %2165
  %2167 = vrot.lane.b32.xlu0 %v1986, 20
  %v2168 = vpop.permute.xlu0 %2167
  %2169 = vrot.lane.b32.xlu0 %v1987, 20
  %v2170 = vpop.permute.xlu0 %2169
  %2171 = vrot.lane.b32.xlu0 %v1988, 20
  %v2172 = vpop.permute.xlu0 %2171
  %2173 = vrot.lane.b32.xlu0 %v1989, 20
  %v2174 = vpop.permute.xlu0 %2173
  %2175 = vrot.lane.b32.xlu0 %v1990, 20
  %v2176 = vpop.permute.xlu0 %2175
  %2177 = vrot.lane.b32.xlu0 %v1991, 20
  %v2178 = vpop.permute.xlu0 %2177
  %2179 = vrot.lane.b32.xlu0 %v1992, 20
  %v2180 = vpop.permute.xlu0 %2179
  %2181 = vrot.lane.b32.xlu0 %v1993, 20
  %v2182 = vpop.permute.xlu0 %2181
  %2183 = vrot.lane.b32.xlu0 %v1994, 20
  %v2184 = vpop.permute.xlu0 %2183
  %2185 = vrot.lane.b32.xlu0 %v1995, 20
  %v2186 = vpop.permute.xlu0 %2185
  %2187 = vrot.lane.b32.xlu0 %v1996, 20
  %v2188 = vpop.permute.xlu0 %2187
  %vm2253 = vcmask 195744
  %2254 = vst.msk [vmem:[#allocation3] sm:$0xff] %vm2253, %v2062
  %2255 = vst.msk [vmem:[#allocation3 + $0x8] sm:$0xff] %vm2253, %v2064
  %2256 = vst.msk [vmem:[#allocation3 + $0x10] sm:$0xff] %vm2253, %v2066
  %2257 = vst.msk [vmem:[#allocation3 + $0x18] sm:$0xff] %vm2253, %v2068
  %2258 = vst.msk [vmem:[#allocation3 + $0x20] sm:$0xff] %vm2253, %v2070
  %2259 = vst.msk [vmem:[#allocation3 + $0x28] sm:$0xff] %vm2253, %v2072
  %2260 = vst.msk [vmem:[#allocation3 + $0x30] sm:$0xff] %vm2253, %v2074
  %2261 = vst.msk [vmem:[#allocation3 + $0x38] sm:$0xff] %vm2253, %v2076
  %2262 = vst.msk [vmem:[#allocation3 + $0x40] sm:$0xff] %vm2253, %v2078
  %2263 = vst.msk [vmem:[#allocation3 + $0x48] sm:$0xff] %vm2253, %v2080
  %2264 = vst.msk [vmem:[#allocation3 + $0x50] sm:$0xff] %vm2253, %v2082
  %2265 = vst.msk [vmem:[#allocation3 + $0x58] sm:$0xff] %vm2253, %v2084
  %2266 = vst.msk [vmem:[#allocation3 + $0x60] sm:$0xff] %vm2253, %v2086
  %2267 = vst.msk [vmem:[#allocation3 + $0x68] sm:$0xff] %vm2253, %v2088
  %2268 = vst.msk [vmem:[#allocation3 + $0x70] sm:$0xff] %vm2253, %v2090
  %2269 = vst.msk [vmem:[#allocation3 + $0x78] sm:$0xff] %vm2253, %v2092
  %2270 = vst.msk [vmem:[#allocation3 + $0x80] sm:$0xff] %vm2253, %v2094
  %2271 = vst.msk [vmem:[#allocation3 + $0x88] sm:$0xff] %vm2253, %v2096
  %2272 = vst.msk [vmem:[#allocation3 + $0x90] sm:$0xff] %vm2253, %v2098
  %2273 = vst.msk [vmem:[#allocation3 + $0x98] sm:$0xff] %vm2253, %v2100
  %2274 = vst.msk [vmem:[#allocation3 + $0xa0] sm:$0xff] %vm2253, %v2102
  %2275 = vst.msk [vmem:[#allocation3 + $0xa8] sm:$0xff] %vm2253, %v2104
  %2276 = vst.msk [vmem:[#allocation3 + $0xb0] sm:$0xff] %vm2253, %v2106
  %2277 = vst.msk [vmem:[#allocation3 + $0xb8] sm:$0xff] %vm2253, %v2108
  %2278 = vst.msk [vmem:[#allocation3 + $0xc0] sm:$0xff] %vm2253, %v2110
  %2279 = vst.msk [vmem:[#allocation3 + $0xc8] sm:$0xff] %vm2253, %v2112
  %2280 = vst.msk [vmem:[#allocation3 + $0xd0] sm:$0xff] %vm2253, %v2114
  %2281 = vst.msk [vmem:[#allocation3 + $0xd8] sm:$0xff] %vm2253, %v2116
  %2282 = vst.msk [vmem:[#allocation3 + $0xe0] sm:$0xff] %vm2253, %v2118
  %2283 = vst.msk [vmem:[#allocation3 + $0xe8] sm:$0xff] %vm2253, %v2120
  %2284 = vst.msk [vmem:[#allocation3 + $0xf0] sm:$0xff] %vm2253, %v2122
  %2285 = vst.msk [vmem:[#allocation3 + $0xf8] sm:$0xff] %vm2253, %v2124
  %2286 = vst.msk [vmem:[#allocation3 + $0x100] sm:$0xff] %vm2253, %v2126
  %2287 = vst.msk [vmem:[#allocation3 + $0x108] sm:$0xff] %vm2253, %v2128
  %2288 = vst.msk [vmem:[#allocation3 + $0x110] sm:$0xff] %vm2253, %v2130
  %2289 = vst.msk [vmem:[#allocation3 + $0x118] sm:$0xff] %vm2253, %v2132
  %2290 = vst.msk [vmem:[#allocation3 + $0x120] sm:$0xff] %vm2253, %v2134
  %2291 = vst.msk [vmem:[#allocation3 + $0x128] sm:$0xff] %vm2253, %v2136
  %2292 = vst.msk [vmem:[#allocation3 + $0x130] sm:$0xff] %vm2253, %v2138
  %2293 = vst.msk [vmem:[#allocation3 + $0x138] sm:$0xff] %vm2253, %v2140
  %2294 = vst.msk [vmem:[#allocation3 + $0x140] sm:$0xff] %vm2253, %v2142
  %2295 = vst.msk [vmem:[#allocation3 + $0x148] sm:$0xff] %vm2253, %v2144
  %2296 = vst.msk [vmem:[#allocation3 + $0x150] sm:$0xff] %vm2253, %v2146
  %2297 = vst.msk [vmem:[#allocation3 + $0x158] sm:$0xff] %vm2253, %v2148
  %2298 = vst.msk [vmem:[#allocation3 + $0x160] sm:$0xff] %vm2253, %v2150
  %2299 = vst.msk [vmem:[#allocation3 + $0x168] sm:$0xff] %vm2253, %v2152
  %2300 = vst.msk [vmem:[#allocation3 + $0x170] sm:$0xff] %vm2253, %v2154
  %2301 = vst.msk [vmem:[#allocation3 + $0x178] sm:$0xff] %vm2253, %v2156
  %2302 = vst.msk [vmem:[#allocation3 + $0x180] sm:$0xff] %vm2253, %v2158
  %2303 = vst.msk [vmem:[#allocation3 + $0x188] sm:$0xff] %vm2253, %v2160
  %2304 = vst.msk [vmem:[#allocation3 + $0x190] sm:$0xff] %vm2253, %v2162
  %2305 = vst.msk [vmem:[#allocation3 + $0x198] sm:$0xff] %vm2253, %v2164
  %2306 = vst.msk [vmem:[#allocation3 + $0x1a0] sm:$0xff] %vm2253, %v2166
  %2307 = vst.msk [vmem:[#allocation3 + $0x1a8] sm:$0xff] %vm2253, %v2168
  %2308 = vst.msk [vmem:[#allocation3 + $0x1b0] sm:$0xff] %vm2253, %v2170
  %2309 = vst.msk [vmem:[#allocation3 + $0x1b8] sm:$0xff] %vm2253, %v2172
  %2310 = vst.msk [vmem:[#allocation3 + $0x1c0] sm:$0xff] %vm2253, %v2174
  %2311 = vst.msk [vmem:[#allocation3 + $0x1c8] sm:$0xff] %vm2253, %v2176
  %2312 = vst.msk [vmem:[#allocation3 + $0x1d0] sm:$0xff] %vm2253, %v2178
  %2313 = vst.msk [vmem:[#allocation3 + $0x1d8] sm:$0xff] %vm2253, %v2180
  %2314 = vst.msk [vmem:[#allocation3 + $0x1e0] sm:$0xff] %vm2253, %v2182
  %2315 = vst.msk [vmem:[#allocation3 + $0x1e8] sm:$0xff] %vm2253, %v2184
  %2316 = vst.msk [vmem:[#allocation3 + $0x1f0] sm:$0xff] %vm2253, %v2186
  %2317 = vst.msk [vmem:[#allocation3 + $0x1f8] sm:$0xff] %vm2253, %v2188
  %s2318 = scalar_lea.vmem [#allocation2], 48
  %v2319 = vld [vmem:[%s2318] sm:$0xff]
  %v2320 = vld [vmem:[%s2318 + $0x8] sm:$0xff]
  %v2321 = vld [vmem:[%s2318 + $0x18] sm:$0xff]
  %v2322 = vld [vmem:[%s2318 + $0x20] sm:$0xff]
  %v2323 = vld [vmem:[%s2318 + $0x30] sm:$0xff]
  %v2324 = vld [vmem:[%s2318 + $0x38] sm:$0xff]
  %v2325 = vld [vmem:[%s2318 + $0x48] sm:$0xff]
  %v2326 = vld [vmem:[%s2318 + $0x50] sm:$0xff]
  %v2327 = vld [vmem:[%s2318 + $0x60] sm:$0xff]
  %v2328 = vld [vmem:[%s2318 + $0x68] sm:$0xff]
  %v2329 = vld [vmem:[%s2318 + $0x78] sm:$0xff]
  %v2330 = vld [vmem:[%s2318 + $0x80] sm:$0xff]
  %v2331 = vld [vmem:[%s2318 + $0x90] sm:$0xff]
  %v2332 = vld [vmem:[%s2318 + $0x98] sm:$0xff]
  %v2333 = vld [vmem:[%s2318 + $0xa8] sm:$0xff]
  %v2334 = vld [vmem:[%s2318 + $0xb0] sm:$0xff]
  %v2335 = vld [vmem:[%s2318 + $0xc0] sm:$0xff]
  %v2336 = vld [vmem:[%s2318 + $0xc8] sm:$0xff]
  %v2337 = vld [vmem:[%s2318 + $0xd8] sm:$0xff]
  %v2338 = vld [vmem:[%s2318 + $0xe0] sm:$0xff]
  %v2339 = vld [vmem:[%s2318 + $0xf0] sm:$0xff]
  %v2340 = vld [vmem:[%s2318 + $0xf8] sm:$0xff]
  %v2341 = vld [vmem:[%s2318 + $0x108] sm:$0xff]
  %v2342 = vld [vmem:[%s2318 + $0x110] sm:$0xff]
  %v2343 = vld [vmem:[%s2318 + $0x120] sm:$0xff]
  %v2344 = vld [vmem:[%s2318 + $0x128] sm:$0xff]
  %v2345 = vld [vmem:[%s2318 + $0x138] sm:$0xff]
  %v2346 = vld [vmem:[%s2318 + $0x140] sm:$0xff]
  %v2347 = vld [vmem:[%s2318 + $0x150] sm:$0xff]
  %v2348 = vld [vmem:[%s2318 + $0x158] sm:$0xff]
  %v2349 = vld [vmem:[%s2318 + $0x168] sm:$0xff]
  %v2350 = vld [vmem:[%s2318 + $0x170] sm:$0xff]
  %v2351 = vld [vmem:[%s2318 + $0x1b0] sm:$0xff]
  %v2352 = vld [vmem:[%s2318 + $0x1b8] sm:$0xff]
  %v2353 = vld [vmem:[%s2318 + $0x1c8] sm:$0xff]
  %v2354 = vld [vmem:[%s2318 + $0x1d0] sm:$0xff]
  %v2355 = vld [vmem:[%s2318 + $0x1e0] sm:$0xff]
  %v2356 = vld [vmem:[%s2318 + $0x1e8] sm:$0xff]
  %v2357 = vld [vmem:[%s2318 + $0x1f8] sm:$0xff]
  %v2358 = vld [vmem:[%s2318 + $0x200] sm:$0xff]
  %v2359 = vld [vmem:[%s2318 + $0x210] sm:$0xff]
  %v2360 = vld [vmem:[%s2318 + $0x218] sm:$0xff]
  %v2361 = vld [vmem:[%s2318 + $0x228] sm:$0xff]
  %v2362 = vld [vmem:[%s2318 + $0x230] sm:$0xff]
  %v2363 = vld [vmem:[%s2318 + $0x240] sm:$0xff]
  %v2364 = vld [vmem:[%s2318 + $0x248] sm:$0xff]
  %v2365 = vld [vmem:[%s2318 + $0x258] sm:$0xff]
  %v2366 = vld [vmem:[%s2318 + $0x260] sm:$0xff]
  %v2367 = vld [vmem:[%s2318 + $0x270] sm:$0xff]
  %v2368 = vld [vmem:[%s2318 + $0x278] sm:$0xff]
  %v2369 = vld [vmem:[%s2318 + $0x288] sm:$0xff]
  %v2370 = vld [vmem:[%s2318 + $0x290] sm:$0xff]
  %v2371 = vld [vmem:[%s2318 + $0x2a0] sm:$0xff]
  %v2372 = vld [vmem:[%s2318 + $0x2a8] sm:$0xff]
  %v2373 = vld [vmem:[%s2318 + $0x2b8] sm:$0xff]
  %v2374 = vld [vmem:[%s2318 + $0x2c0] sm:$0xff]
  %v2375 = vld [vmem:[%s2318 + $0x2d0] sm:$0xff]
  %v2376 = vld [vmem:[%s2318 + $0x2d8] sm:$0xff]
  %v2377 = vld [vmem:[%s2318 + $0x2e8] sm:$0xff]
  %v2378 = vld [vmem:[%s2318 + $0x2f0] sm:$0xff]
  %v2379 = vld [vmem:[%s2318 + $0x300] sm:$0xff]
  %v2380 = vld [vmem:[%s2318 + $0x308] sm:$0xff]
  %v2381 = vld [vmem:[%s2318 + $0x318] sm:$0xff]
  %v2382 = vld [vmem:[%s2318 + $0x320] sm:$0xff]
  %2447 = vrot.lane.b32.xlu0 %v2319, 24
  %v2448 = vpop.permute.xlu0 %2447
  %2449 = vrot.lane.b32.xlu0 %v2320, 24
  %v2450 = vpop.permute.xlu0 %2449
  %2451 = vrot.lane.b32.xlu0 %v2321, 24
  %v2452 = vpop.permute.xlu0 %2451
  %2453 = vrot.lane.b32.xlu0 %v2322, 24
  %v2454 = vpop.permute.xlu0 %2453
  %2455 = vrot.lane.b32.xlu0 %v2323, 24
  %v2456 = vpop.permute.xlu0 %2455
  %2457 = vrot.lane.b32.xlu0 %v2324, 24
  %v2458 = vpop.permute.xlu0 %2457
  %2459 = vrot.lane.b32.xlu0 %v2325, 24
  %v2460 = vpop.permute.xlu0 %2459
  %2461 = vrot.lane.b32.xlu0 %v2326, 24
  %v2462 = vpop.permute.xlu0 %2461
  %2463 = vrot.lane.b32.xlu0 %v2327, 24
  %v2464 = vpop.permute.xlu0 %2463
  %2465 = vrot.lane.b32.xlu0 %v2328, 24
  %v2466 = vpop.permute.xlu0 %2465
  %2467 = vrot.lane.b32.xlu0 %v2329, 24
  %v2468 = vpop.permute.xlu0 %2467
  %2469 = vrot.lane.b32.xlu0 %v2330, 24
  %v2470 = vpop.permute.xlu0 %2469
  %2471 = vrot.lane.b32.xlu0 %v2331, 24
  %v2472 = vpop.permute.xlu0 %2471
  %2473 = vrot.lane.b32.xlu0 %v2332, 24
  %v2474 = vpop.permute.xlu0 %2473
  %2475 = vrot.lane.b32.xlu0 %v2333, 24
  %v2476 = vpop.permute.xlu0 %2475
  %2477 = vrot.lane.b32.xlu0 %v2334, 24
  %v2478 = vpop.permute.xlu0 %2477
  %2479 = vrot.lane.b32.xlu0 %v2335, 24
  %v2480 = vpop.permute.xlu0 %2479
  %2481 = vrot.lane.b32.xlu0 %v2336, 24
  %v2482 = vpop.permute.xlu0 %2481
  %2483 = vrot.lane.b32.xlu0 %v2337, 24
  %v2484 = vpop.permute.xlu0 %2483
  %2485 = vrot.lane.b32.xlu0 %v2338, 24
  %v2486 = vpop.permute.xlu0 %2485
  %2487 = vrot.lane.b32.xlu0 %v2339, 24
  %v2488 = vpop.permute.xlu0 %2487
  %2489 = vrot.lane.b32.xlu0 %v2340, 24
  %v2490 = vpop.permute.xlu0 %2489
  %2491 = vrot.lane.b32.xlu0 %v2341, 24
  %v2492 = vpop.permute.xlu0 %2491
  %2493 = vrot.lane.b32.xlu0 %v2342, 24
  %v2494 = vpop.permute.xlu0 %2493
  %2495 = vrot.lane.b32.xlu0 %v2343, 24
  %v2496 = vpop.permute.xlu0 %2495
  %2497 = vrot.lane.b32.xlu0 %v2344, 24
  %v2498 = vpop.permute.xlu0 %2497
  %2499 = vrot.lane.b32.xlu0 %v2345, 24
  %v2500 = vpop.permute.xlu0 %2499
  %2501 = vrot.lane.b32.xlu0 %v2346, 24
  %v2502 = vpop.permute.xlu0 %2501
  %2503 = vrot.lane.b32.xlu0 %v2347, 24
  %v2504 = vpop.permute.xlu0 %2503
  %2505 = vrot.lane.b32.xlu0 %v2348, 24
  %v2506 = vpop.permute.xlu0 %2505
  %2507 = vrot.lane.b32.xlu0 %v2349, 24
  %v2508 = vpop.permute.xlu0 %2507
  %2509 = vrot.lane.b32.xlu0 %v2350, 24
  %v2510 = vpop.permute.xlu0 %2509
  %2511 = vrot.lane.b32.xlu0 %v2351, 24
  %v2512 = vpop.permute.xlu0 %2511
  %2513 = vrot.lane.b32.xlu0 %v2352, 24
  %v2514 = vpop.permute.xlu0 %2513
  %2515 = vrot.lane.b32.xlu0 %v2353, 24
  %v2516 = vpop.permute.xlu0 %2515
  %2517 = vrot.lane.b32.xlu0 %v2354, 24
  %v2518 = vpop.permute.xlu0 %2517
  %2519 = vrot.lane.b32.xlu0 %v2355, 24
  %v2520 = vpop.permute.xlu0 %2519
  %2521 = vrot.lane.b32.xlu0 %v2356, 24
  %v2522 = vpop.permute.xlu0 %2521
  %2523 = vrot.lane.b32.xlu0 %v2357, 24
  %v2524 = vpop.permute.xlu0 %2523
  %2525 = vrot.lane.b32.xlu0 %v2358, 24
  %v2526 = vpop.permute.xlu0 %2525
  %2527 = vrot.lane.b32.xlu0 %v2359, 24
  %v2528 = vpop.permute.xlu0 %2527
  %2529 = vrot.lane.b32.xlu0 %v2360, 24
  %v2530 = vpop.permute.xlu0 %2529
  %2531 = vrot.lane.b32.xlu0 %v2361, 24
  %v2532 = vpop.permute.xlu0 %2531
  %2533 = vrot.lane.b32.xlu0 %v2362, 24
  %v2534 = vpop.permute.xlu0 %2533
  %2535 = vrot.lane.b32.xlu0 %v2363, 24
  %v2536 = vpop.permute.xlu0 %2535
  %2537 = vrot.lane.b32.xlu0 %v2364, 24
  %v2538 = vpop.permute.xlu0 %2537
  %2539 = vrot.lane.b32.xlu0 %v2365, 24
  %v2540 = vpop.permute.xlu0 %2539
  %2541 = vrot.lane.b32.xlu0 %v2366, 24
  %v2542 = vpop.permute.xlu0 %2541
  %2543 = vrot.lane.b32.xlu0 %v2367, 24
  %v2544 = vpop.permute.xlu0 %2543
  %2545 = vrot.lane.b32.xlu0 %v2368, 24
  %v2546 = vpop.permute.xlu0 %2545
  %2547 = vrot.lane.b32.xlu0 %v2369, 24
  %v2548 = vpop.permute.xlu0 %2547
  %2549 = vrot.lane.b32.xlu0 %v2370, 24
  %v2550 = vpop.permute.xlu0 %2549
  %2551 = vrot.lane.b32.xlu0 %v2371, 24
  %v2552 = vpop.permute.xlu0 %2551
  %2553 = vrot.lane.b32.xlu0 %v2372, 24
  %v2554 = vpop.permute.xlu0 %2553
  %2555 = vrot.lane.b32.xlu0 %v2373, 24
  %v2556 = vpop.permute.xlu0 %2555
  %2557 = vrot.lane.b32.xlu0 %v2374, 24
  %v2558 = vpop.permute.xlu0 %2557
  %2559 = vrot.lane.b32.xlu0 %v2375, 24
  %v2560 = vpop.permute.xlu0 %2559
  %2561 = vrot.lane.b32.xlu0 %v2376, 24
  %v2562 = vpop.permute.xlu0 %2561
  %2563 = vrot.lane.b32.xlu0 %v2377, 24
  %v2564 = vpop.permute.xlu0 %2563
  %2565 = vrot.lane.b32.xlu0 %v2378, 24
  %v2566 = vpop.permute.xlu0 %2565
  %2567 = vrot.lane.b32.xlu0 %v2379, 24
  %v2568 = vpop.permute.xlu0 %2567
  %2569 = vrot.lane.b32.xlu0 %v2380, 24
  %v2570 = vpop.permute.xlu0 %2569
  %2571 = vrot.lane.b32.xlu0 %v2381, 24
  %v2572 = vpop.permute.xlu0 %2571
  %2573 = vrot.lane.b32.xlu0 %v2382, 24
  %v2574 = vpop.permute.xlu0 %2573
  %vm2639 = vcmask 228544
  %2640 = vst.msk [vmem:[#allocation3] sm:$0xff] %vm2639, %v2448
  %2641 = vst.msk [vmem:[#allocation3 + $0x8] sm:$0xff] %vm2639, %v2450
  %2642 = vst.msk [vmem:[#allocation3 + $0x10] sm:$0xff] %vm2639, %v2452
  %2643 = vst.msk [vmem:[#allocation3 + $0x18] sm:$0xff] %vm2639, %v2454
  %2644 = vst.msk [vmem:[#allocation3 + $0x20] sm:$0xff] %vm2639, %v2456
  %2645 = vst.msk [vmem:[#allocation3 + $0x28] sm:$0xff] %vm2639, %v2458
  %2646 = vst.msk [vmem:[#allocation3 + $0x30] sm:$0xff] %vm2639, %v2460
  %2647 = vst.msk [vmem:[#allocation3 + $0x38] sm:$0xff] %vm2639, %v2462
  %2648 = vst.msk [vmem:[#allocation3 + $0x40] sm:$0xff] %vm2639, %v2464
  %2649 = vst.msk [vmem:[#allocation3 + $0x48] sm:$0xff] %vm2639, %v2466
  %2650 = vst.msk [vmem:[#allocation3 + $0x50] sm:$0xff] %vm2639, %v2468
  %2651 = vst.msk [vmem:[#allocation3 + $0x58] sm:$0xff] %vm2639, %v2470
  %2652 = vst.msk [vmem:[#allocation3 + $0x60] sm:$0xff] %vm2639, %v2472
  %2653 = vst.msk [vmem:[#allocation3 + $0x68] sm:$0xff] %vm2639, %v2474
  %2654 = vst.msk [vmem:[#allocation3 + $0x70] sm:$0xff] %vm2639, %v2476
  %2655 = vst.msk [vmem:[#allocation3 + $0x78] sm:$0xff] %vm2639, %v2478
  %2656 = vst.msk [vmem:[#allocation3 + $0x80] sm:$0xff] %vm2639, %v2480
  %2657 = vst.msk [vmem:[#allocation3 + $0x88] sm:$0xff] %vm2639, %v2482
  %2658 = vst.msk [vmem:[#allocation3 + $0x90] sm:$0xff] %vm2639, %v2484
  %2659 = vst.msk [vmem:[#allocation3 + $0x98] sm:$0xff] %vm2639, %v2486
  %2660 = vst.msk [vmem:[#allocation3 + $0xa0] sm:$0xff] %vm2639, %v2488
  %2661 = vst.msk [vmem:[#allocation3 + $0xa8] sm:$0xff] %vm2639, %v2490
  %2662 = vst.msk [vmem:[#allocation3 + $0xb0] sm:$0xff] %vm2639, %v2492
  %2663 = vst.msk [vmem:[#allocation3 + $0xb8] sm:$0xff] %vm2639, %v2494
  %2664 = vst.msk [vmem:[#allocation3 + $0xc0] sm:$0xff] %vm2639, %v2496
  %2665 = vst.msk [vmem:[#allocation3 + $0xc8] sm:$0xff] %vm2639, %v2498
  %2666 = vst.msk [vmem:[#allocation3 + $0xd0] sm:$0xff] %vm2639, %v2500
  %2667 = vst.msk [vmem:[#allocation3 + $0xd8] sm:$0xff] %vm2639, %v2502
  %2668 = vst.msk [vmem:[#allocation3 + $0xe0] sm:$0xff] %vm2639, %v2504
  %2669 = vst.msk [vmem:[#allocation3 + $0xe8] sm:$0xff] %vm2639, %v2506
  %2670 = vst.msk [vmem:[#allocation3 + $0xf0] sm:$0xff] %vm2639, %v2508
  %2671 = vst.msk [vmem:[#allocation3 + $0xf8] sm:$0xff] %vm2639, %v2510
  %2672 = vst.msk [vmem:[#allocation3 + $0x100] sm:$0xff] %vm2639, %v2512
  %2673 = vst.msk [vmem:[#allocation3 + $0x108] sm:$0xff] %vm2639, %v2514
  %2674 = vst.msk [vmem:[#allocation3 + $0x110] sm:$0xff] %vm2639, %v2516
  %2675 = vst.msk [vmem:[#allocation3 + $0x118] sm:$0xff] %vm2639, %v2518
  %2676 = vst.msk [vmem:[#allocation3 + $0x120] sm:$0xff] %vm2639, %v2520
  %2677 = vst.msk [vmem:[#allocation3 + $0x128] sm:$0xff] %vm2639, %v2522
  %2678 = vst.msk [vmem:[#allocation3 + $0x130] sm:$0xff] %vm2639, %v2524
  %2679 = vst.msk [vmem:[#allocation3 + $0x138] sm:$0xff] %vm2639, %v2526
  %2680 = vst.msk [vmem:[#allocation3 + $0x140] sm:$0xff] %vm2639, %v2528
  %2681 = vst.msk [vmem:[#allocation3 + $0x148] sm:$0xff] %vm2639, %v2530
  %2682 = vst.msk [vmem:[#allocation3 + $0x150] sm:$0xff] %vm2639, %v2532
  %2683 = vst.msk [vmem:[#allocation3 + $0x158] sm:$0xff] %vm2639, %v2534
  %2684 = vst.msk [vmem:[#allocation3 + $0x160] sm:$0xff] %vm2639, %v2536
  %2685 = vst.msk [vmem:[#allocation3 + $0x168] sm:$0xff] %vm2639, %v2538
  %2686 = vst.msk [vmem:[#allocation3 + $0x170] sm:$0xff] %vm2639, %v2540
  %2687 = vst.msk [vmem:[#allocation3 + $0x178] sm:$0xff] %vm2639, %v2542
  %2688 = vst.msk [vmem:[#allocation3 + $0x180] sm:$0xff] %vm2639, %v2544
  %2689 = vst.msk [vmem:[#allocation3 + $0x188] sm:$0xff] %vm2639, %v2546
  %2690 = vst.msk [vmem:[#allocation3 + $0x190] sm:$0xff] %vm2639, %v2548
  %2691 = vst.msk [vmem:[#allocation3 + $0x198] sm:$0xff] %vm2639, %v2550
  %2692 = vst.msk [vmem:[#allocation3 + $0x1a0] sm:$0xff] %vm2639, %v2552
  %2693 = vst.msk [vmem:[#allocation3 + $0x1a8] sm:$0xff] %vm2639, %v2554
  %2694 = vst.msk [vmem:[#allocation3 + $0x1b0] sm:$0xff] %vm2639, %v2556
  %2695 = vst.msk [vmem:[#allocation3 + $0x1b8] sm:$0xff] %vm2639, %v2558
  %2696 = vst.msk [vmem:[#allocation3 + $0x1c0] sm:$0xff] %vm2639, %v2560
  %2697 = vst.msk [vmem:[#allocation3 + $0x1c8] sm:$0xff] %vm2639, %v2562
  %2698 = vst.msk [vmem:[#allocation3 + $0x1d0] sm:$0xff] %vm2639, %v2564
  %2699 = vst.msk [vmem:[#allocation3 + $0x1d8] sm:$0xff] %vm2639, %v2566
  %2700 = vst.msk [vmem:[#allocation3 + $0x1e0] sm:$0xff] %vm2639, %v2568
  %2701 = vst.msk [vmem:[#allocation3 + $0x1e8] sm:$0xff] %vm2639, %v2570
  %2702 = vst.msk [vmem:[#allocation3 + $0x1f0] sm:$0xff] %vm2639, %v2572
  %2703 = vst.msk [vmem:[#allocation3 + $0x1f8] sm:$0xff] %vm2639, %v2574
  %v2704 = vld [vmem:[%s2318 + $0x1] sm:$0xff]
  %v2705 = vld [vmem:[%s2318 + $0x9] sm:$0xff]
  %v2706 = vld [vmem:[%s2318 + $0x19] sm:$0xff]
  %v2707 = vld [vmem:[%s2318 + $0x21] sm:$0xff]
  %v2708 = vld [vmem:[%s2318 + $0x31] sm:$0xff]
  %v2709 = vld [vmem:[%s2318 + $0x39] sm:$0xff]
  %v2710 = vld [vmem:[%s2318 + $0x49] sm:$0xff]
  %v2711 = vld [vmem:[%s2318 + $0x51] sm:$0xff]
  %v2712 = vld [vmem:[%s2318 + $0x61] sm:$0xff]
  %v2713 = vld [vmem:[%s2318 + $0x69] sm:$0xff]
  %v2714 = vld [vmem:[%s2318 + $0x79] sm:$0xff]
  %v2715 = vld [vmem:[%s2318 + $0x81] sm:$0xff]
  %v2716 = vld [vmem:[%s2318 + $0x91] sm:$0xff]
  %v2717 = vld [vmem:[%s2318 + $0x99] sm:$0xff]
  %v2718 = vld [vmem:[%s2318 + $0xa9] sm:$0xff]
  %v2719 = vld [vmem:[%s2318 + $0xb1] sm:$0xff]
  %v2720 = vld [vmem:[%s2318 + $0xc1] sm:$0xff]
  %v2721 = vld [vmem:[%s2318 + $0xc9] sm:$0xff]
  %v2722 = vld [vmem:[%s2318 + $0xd9] sm:$0xff]
  %v2723 = vld [vmem:[%s2318 + $0xe1] sm:$0xff]
  %v2724 = vld [vmem:[%s2318 + $0xf1] sm:$0xff]
  %v2725 = vld [vmem:[%s2318 + $0xf9] sm:$0xff]
  %v2726 = vld [vmem:[%s2318 + $0x109] sm:$0xff]
  %v2727 = vld [vmem:[%s2318 + $0x111] sm:$0xff]
  %v2728 = vld [vmem:[%s2318 + $0x121] sm:$0xff]
  %v2729 = vld [vmem:[%s2318 + $0x129] sm:$0xff]
  %v2730 = vld [vmem:[%s2318 + $0x139] sm:$0xff]
  %v2731 = vld [vmem:[%s2318 + $0x141] sm:$0xff]
  %v2732 = vld [vmem:[%s2318 + $0x151] sm:$0xff]
  %v2733 = vld [vmem:[%s2318 + $0x159] sm:$0xff]
  %v2734 = vld [vmem:[%s2318 + $0x169] sm:$0xff]
  %v2735 = vld [vmem:[%s2318 + $0x171] sm:$0xff]
  %v2736 = vld [vmem:[%s2318 + $0x1b1] sm:$0xff]
  %v2737 = vld [vmem:[%s2318 + $0x1b9] sm:$0xff]
  %v2738 = vld [vmem:[%s2318 + $0x1c9] sm:$0xff]
  %v2739 = vld [vmem:[%s2318 + $0x1d1] sm:$0xff]
  %v2740 = vld [vmem:[%s2318 + $0x1e1] sm:$0xff]
  %v2741 = vld [vmem:[%s2318 + $0x1e9] sm:$0xff]
  %v2742 = vld [vmem:[%s2318 + $0x1f9] sm:$0xff]
  %v2743 = vld [vmem:[%s2318 + $0x201] sm:$0xff]
  %v2744 = vld [vmem:[%s2318 + $0x211] sm:$0xff]
  %v2745 = vld [vmem:[%s2318 + $0x219] sm:$0xff]
  %v2746 = vld [vmem:[%s2318 + $0x229] sm:$0xff]
  %v2747 = vld [vmem:[%s2318 + $0x231] sm:$0xff]
  %v2748 = vld [vmem:[%s2318 + $0x241] sm:$0xff]
  %v2749 = vld [vmem:[%s2318 + $0x249] sm:$0xff]
  %v2750 = vld [vmem:[%s2318 + $0x259] sm:$0xff]
  %v2751 = vld [vmem:[%s2318 + $0x261] sm:$0xff]
  %v2752 = vld [vmem:[%s2318 + $0x271] sm:$0xff]
  %v2753 = vld [vmem:[%s2318 + $0x279] sm:$0xff]
  %v2754 = vld [vmem:[%s2318 + $0x289] sm:$0xff]
  %v2755 = vld [vmem:[%s2318 + $0x291] sm:$0xff]
  %v2756 = vld [vmem:[%s2318 + $0x2a1] sm:$0xff]
  %v2757 = vld [vmem:[%s2318 + $0x2a9] sm:$0xff]
  %v2758 = vld [vmem:[%s2318 + $0x2b9] sm:$0xff]
  %v2759 = vld [vmem:[%s2318 + $0x2c1] sm:$0xff]
  %v2760 = vld [vmem:[%s2318 + $0x2d1] sm:$0xff]
  %v2761 = vld [vmem:[%s2318 + $0x2d9] sm:$0xff]
  %v2762 = vld [vmem:[%s2318 + $0x2e9] sm:$0xff]
  %v2763 = vld [vmem:[%s2318 + $0x2f1] sm:$0xff]
  %v2764 = vld [vmem:[%s2318 + $0x301] sm:$0xff]
  %v2765 = vld [vmem:[%s2318 + $0x309] sm:$0xff]
  %v2766 = vld [vmem:[%s2318 + $0x319] sm:$0xff]
  %v2767 = vld [vmem:[%s2318 + $0x321] sm:$0xff]
  %2832 = vrot.lane.b32.xlu0 %v2704, 28
  %v2833 = vpop.permute.xlu0 %2832
  %2834 = vrot.lane.b32.xlu0 %v2705, 28
  %v2835 = vpop.permute.xlu0 %2834
  %2836 = vrot.lane.b32.xlu0 %v2706, 28
  %v2837 = vpop.permute.xlu0 %2836
  %2838 = vrot.lane.b32.xlu0 %v2707, 28
  %v2839 = vpop.permute.xlu0 %2838
  %2840 = vrot.lane.b32.xlu0 %v2708, 28
  %v2841 = vpop.permute.xlu0 %2840
  %2842 = vrot.lane.b32.xlu0 %v2709, 28
  %v2843 = vpop.permute.xlu0 %2842
  %2844 = vrot.lane.b32.xlu0 %v2710, 28
  %v2845 = vpop.permute.xlu0 %2844
  %2846 = vrot.lane.b32.xlu0 %v2711, 28
  %v2847 = vpop.permute.xlu0 %2846
  %2848 = vrot.lane.b32.xlu0 %v2712, 28
  %v2849 = vpop.permute.xlu0 %2848
  %2850 = vrot.lane.b32.xlu0 %v2713, 28
  %v2851 = vpop.permute.xlu0 %2850
  %2852 = vrot.lane.b32.xlu0 %v2714, 28
  %v2853 = vpop.permute.xlu0 %2852
  %2854 = vrot.lane.b32.xlu0 %v2715, 28
  %v2855 = vpop.permute.xlu0 %2854
  %2856 = vrot.lane.b32.xlu0 %v2716, 28
  %v2857 = vpop.permute.xlu0 %2856
  %2858 = vrot.lane.b32.xlu0 %v2717, 28
  %v2859 = vpop.permute.xlu0 %2858
  %2860 = vrot.lane.b32.xlu0 %v2718, 28
  %v2861 = vpop.permute.xlu0 %2860
  %2862 = vrot.lane.b32.xlu0 %v2719, 28
  %v2863 = vpop.permute.xlu0 %2862
  %2864 = vrot.lane.b32.xlu0 %v2720, 28
  %v2865 = vpop.permute.xlu0 %2864
  %2866 = vrot.lane.b32.xlu0 %v2721, 28
  %v2867 = vpop.permute.xlu0 %2866
  %2868 = vrot.lane.b32.xlu0 %v2722, 28
  %v2869 = vpop.permute.xlu0 %2868
  %2870 = vrot.lane.b32.xlu0 %v2723, 28
  %v2871 = vpop.permute.xlu0 %2870
  %2872 = vrot.lane.b32.xlu0 %v2724, 28
  %v2873 = vpop.permute.xlu0 %2872
  %2874 = vrot.lane.b32.xlu0 %v2725, 28
  %v2875 = vpop.permute.xlu0 %2874
  %2876 = vrot.lane.b32.xlu0 %v2726, 28
  %v2877 = vpop.permute.xlu0 %2876
  %2878 = vrot.lane.b32.xlu0 %v2727, 28
  %v2879 = vpop.permute.xlu0 %2878
  %2880 = vrot.lane.b32.xlu0 %v2728, 28
  %v2881 = vpop.permute.xlu0 %2880
  %2882 = vrot.lane.b32.xlu0 %v2729, 28
  %v2883 = vpop.permute.xlu0 %2882
  %2884 = vrot.lane.b32.xlu0 %v2730, 28
  %v2885 = vpop.permute.xlu0 %2884
  %2886 = vrot.lane.b32.xlu0 %v2731, 28
  %v2887 = vpop.permute.xlu0 %2886
  %2888 = vrot.lane.b32.xlu0 %v2732, 28
  %v2889 = vpop.permute.xlu0 %2888
  %2890 = vrot.lane.b32.xlu0 %v2733, 28
  %v2891 = vpop.permute.xlu0 %2890
  %2892 = vrot.lane.b32.xlu0 %v2734, 28
  %v2893 = vpop.permute.xlu0 %2892
  %2894 = vrot.lane.b32.xlu0 %v2735, 28
  %v2895 = vpop.permute.xlu0 %2894
  %2896 = vrot.lane.b32.xlu0 %v2736, 28
  %v2897 = vpop.permute.xlu0 %2896
  %2898 = vrot.lane.b32.xlu0 %v2737, 28
  %v2899 = vpop.permute.xlu0 %2898
  %2900 = vrot.lane.b32.xlu0 %v2738, 28
  %v2901 = vpop.permute.xlu0 %2900
  %2902 = vrot.lane.b32.xlu0 %v2739, 28
  %v2903 = vpop.permute.xlu0 %2902
  %2904 = vrot.lane.b32.xlu0 %v2740, 28
  %v2905 = vpop.permute.xlu0 %2904
  %2906 = vrot.lane.b32.xlu0 %v2741, 28
  %v2907 = vpop.permute.xlu0 %2906
  %2908 = vrot.lane.b32.xlu0 %v2742, 28
  %v2909 = vpop.permute.xlu0 %2908
  %2910 = vrot.lane.b32.xlu0 %v2743, 28
  %v2911 = vpop.permute.xlu0 %2910
  %2912 = vrot.lane.b32.xlu0 %v2744, 28
  %v2913 = vpop.permute.xlu0 %2912
  %2914 = vrot.lane.b32.xlu0 %v2745, 28
  %v2915 = vpop.permute.xlu0 %2914
  %2916 = vrot.lane.b32.xlu0 %v2746, 28
  %v2917 = vpop.permute.xlu0 %2916
  %2918 = vrot.lane.b32.xlu0 %v2747, 28
  %v2919 = vpop.permute.xlu0 %2918
  %2920 = vrot.lane.b32.xlu0 %v2748, 28
  %v2921 = vpop.permute.xlu0 %2920
  %2922 = vrot.lane.b32.xlu0 %v2749, 28
  %v2923 = vpop.permute.xlu0 %2922
  %2924 = vrot.lane.b32.xlu0 %v2750, 28
  %v2925 = vpop.permute.xlu0 %2924
  %2926 = vrot.lane.b32.xlu0 %v2751, 28
  %v2927 = vpop.permute.xlu0 %2926
  %2928 = vrot.lane.b32.xlu0 %v2752, 28
  %v2929 = vpop.permute.xlu0 %2928
  %2930 = vrot.lane.b32.xlu0 %v2753, 28
  %v2931 = vpop.permute.xlu0 %2930
  %2932 = vrot.lane.b32.xlu0 %v2754, 28
  %v2933 = vpop.permute.xlu0 %2932
  %2934 = vrot.lane.b32.xlu0 %v2755, 28
  %v2935 = vpop.permute.xlu0 %2934
  %2936 = vrot.lane.b32.xlu0 %v2756, 28
  %v2937 = vpop.permute.xlu0 %2936
  %2938 = vrot.lane.b32.xlu0 %v2757, 28
  %v2939 = vpop.permute.xlu0 %2938
  %2940 = vrot.lane.b32.xlu0 %v2758, 28
  %v2941 = vpop.permute.xlu0 %2940
  %2942 = vrot.lane.b32.xlu0 %v2759, 28
  %v2943 = vpop.permute.xlu0 %2942
  %2944 = vrot.lane.b32.xlu0 %v2760, 28
  %v2945 = vpop.permute.xlu0 %2944
  %2946 = vrot.lane.b32.xlu0 %v2761, 28
  %v2947 = vpop.permute.xlu0 %2946
  %2948 = vrot.lane.b32.xlu0 %v2762, 28
  %v2949 = vpop.permute.xlu0 %2948
  %2950 = vrot.lane.b32.xlu0 %v2763, 28
  %v2951 = vpop.permute.xlu0 %2950
  %2952 = vrot.lane.b32.xlu0 %v2764, 28
  %v2953 = vpop.permute.xlu0 %2952
  %2954 = vrot.lane.b32.xlu0 %v2765, 28
  %v2955 = vpop.permute.xlu0 %2954
  %2956 = vrot.lane.b32.xlu0 %v2766, 28
  %v2957 = vpop.permute.xlu0 %2956
  %2958 = vrot.lane.b32.xlu0 %v2767, 28
  %v2959 = vpop.permute.xlu0 %2958
  %vm3024 = vcmask 261344
  %3025 = vst.msk [vmem:[#allocation3] sm:$0xff] %vm3024, %v2833
  %3026 = vst.msk [vmem:[#allocation3 + $0x8] sm:$0xff] %vm3024, %v2835
  %3027 = vst.msk [vmem:[#allocation3 + $0x10] sm:$0xff] %vm3024, %v2837
  %3028 = vst.msk [vmem:[#allocation3 + $0x18] sm:$0xff] %vm3024, %v2839
  %3029 = vst.msk [vmem:[#allocation3 + $0x20] sm:$0xff] %vm3024, %v2841
  %3030 = vst.msk [vmem:[#allocation3 + $0x28] sm:$0xff] %vm3024, %v2843
  %3031 = vst.msk [vmem:[#allocation3 + $0x30] sm:$0xff] %vm3024, %v2845
  %3032 = vst.msk [vmem:[#allocation3 + $0x38] sm:$0xff] %vm3024, %v2847
  %3033 = vst.msk [vmem:[#allocation3 + $0x40] sm:$0xff] %vm3024, %v2849
  %3034 = vst.msk [vmem:[#allocation3 + $0x48] sm:$0xff] %vm3024, %v2851
  %3035 = vst.msk [vmem:[#allocation3 + $0x50] sm:$0xff] %vm3024, %v2853
  %3036 = vst.msk [vmem:[#allocation3 + $0x58] sm:$0xff] %vm3024, %v2855
  %3037 = vst.msk [vmem:[#allocation3 + $0x60] sm:$0xff] %vm3024, %v2857
  %3038 = vst.msk [vmem:[#allocation3 + $0x68] sm:$0xff] %vm3024, %v2859
  %3039 = vst.msk [vmem:[#allocation3 + $0x70] sm:$0xff] %vm3024, %v2861
  %3040 = vst.msk [vmem:[#allocation3 + $0x78] sm:$0xff] %vm3024, %v2863
  %3041 = vst.msk [vmem:[#allocation3 + $0x80] sm:$0xff] %vm3024, %v2865
  %3042 = vst.msk [vmem:[#allocation3 + $0x88] sm:$0xff] %vm3024, %v2867
  %3043 = vst.msk [vmem:[#allocation3 + $0x90] sm:$0xff] %vm3024, %v2869
  %3044 = vst.msk [vmem:[#allocation3 + $0x98] sm:$0xff] %vm3024, %v2871
  %3045 = vst.msk [vmem:[#allocation3 + $0xa0] sm:$0xff] %vm3024, %v2873
  %3046 = vst.msk [vmem:[#allocation3 + $0xa8] sm:$0xff] %vm3024, %v2875
  %3047 = vst.msk [vmem:[#allocation3 + $0xb0] sm:$0xff] %vm3024, %v2877
  %3048 = vst.msk [vmem:[#allocation3 + $0xb8] sm:$0xff] %vm3024, %v2879
  %3049 = vst.msk [vmem:[#allocation3 + $0xc0] sm:$0xff] %vm3024, %v2881
  %3050 = vst.msk [vmem:[#allocation3 + $0xc8] sm:$0xff] %vm3024, %v2883
  %3051 = vst.msk [vmem:[#allocation3 + $0xd0] sm:$0xff] %vm3024, %v2885
  %3052 = vst.msk [vmem:[#allocation3 + $0xd8] sm:$0xff] %vm3024, %v2887
  %3053 = vst.msk [vmem:[#allocation3 + $0xe0] sm:$0xff] %vm3024, %v2889
  %3054 = vst.msk [vmem:[#allocation3 + $0xe8] sm:$0xff] %vm3024, %v2891
  %3055 = vst.msk [vmem:[#allocation3 + $0xf0] sm:$0xff] %vm3024, %v2893
  %3056 = vst.msk [vmem:[#allocation3 + $0xf8] sm:$0xff] %vm3024, %v2895
  %3057 = vst.msk [vmem:[#allocation3 + $0x100] sm:$0xff] %vm3024, %v2897
  %3058 = vst.msk [vmem:[#allocation3 + $0x108] sm:$0xff] %vm3024, %v2899
  %3059 = vst.msk [vmem:[#allocation3 + $0x110] sm:$0xff] %vm3024, %v2901
  %3060 = vst.msk [vmem:[#allocation3 + $0x118] sm:$0xff] %vm3024, %v2903
  %3061 = vst.msk [vmem:[#allocation3 + $0x120] sm:$0xff] %vm3024, %v2905
  %3062 = vst.msk [vmem:[#allocation3 + $0x128] sm:$0xff] %vm3024, %v2907
  %3063 = vst.msk [vmem:[#allocation3 + $0x130] sm:$0xff] %vm3024, %v2909
  %3064 = vst.msk [vmem:[#allocation3 + $0x138] sm:$0xff] %vm3024, %v2911
  %3065 = vst.msk [vmem:[#allocation3 + $0x140] sm:$0xff] %vm3024, %v2913
  %3066 = vst.msk [vmem:[#allocation3 + $0x148] sm:$0xff] %vm3024, %v2915
  %3067 = vst.msk [vmem:[#allocation3 + $0x150] sm:$0xff] %vm3024, %v2917
  %3068 = vst.msk [vmem:[#allocation3 + $0x158] sm:$0xff] %vm3024, %v2919
  %3069 = vst.msk [vmem:[#allocation3 + $0x160] sm:$0xff] %vm3024, %v2921
  %3070 = vst.msk [vmem:[#allocation3 + $0x168] sm:$0xff] %vm3024, %v2923
  %3071 = vst.msk [vmem:[#allocation3 + $0x170] sm:$0xff] %vm3024, %v2925
  %3072 = vst.msk [vmem:[#allocation3 + $0x178] sm:$0xff] %vm3024, %v2927
  %3073 = vst.msk [vmem:[#allocation3 + $0x180] sm:$0xff] %vm3024, %v2929
  %3074 = vst.msk [vmem:[#allocation3 + $0x188] sm:$0xff] %vm3024, %v2931
  %3075 = vst.msk [vmem:[#allocation3 + $0x190] sm:$0xff] %vm3024, %v2933
  %3076 = vst.msk [vmem:[#allocation3 + $0x198] sm:$0xff] %vm3024, %v2935
  %3077 = vst.msk [vmem:[#allocation3 + $0x1a0] sm:$0xff] %vm3024, %v2937
  %3078 = vst.msk [vmem:[#allocation3 + $0x1a8] sm:$0xff] %vm3024, %v2939
  %3079 = vst.msk [vmem:[#allocation3 + $0x1b0] sm:$0xff] %vm3024, %v2941
  %3080 = vst.msk [vmem:[#allocation3 + $0x1b8] sm:$0xff] %vm3024, %v2943
  %3081 = vst.msk [vmem:[#allocation3 + $0x1c0] sm:$0xff] %vm3024, %v2945
  %3082 = vst.msk [vmem:[#allocation3 + $0x1c8] sm:$0xff] %vm3024, %v2947
  %3083 = vst.msk [vmem:[#allocation3 + $0x1d0] sm:$0xff] %vm3024, %v2949
  %3084 = vst.msk [vmem:[#allocation3 + $0x1d8] sm:$0xff] %vm3024, %v2951
  %3085 = vst.msk [vmem:[#allocation3 + $0x1e0] sm:$0xff] %vm3024, %v2953
  %3086 = vst.msk [vmem:[#allocation3 + $0x1e8] sm:$0xff] %vm3024, %v2955
  %3087 = vst.msk [vmem:[#allocation3 + $0x1f0] sm:$0xff] %vm3024, %v2957
  %3088 = vst.msk [vmem:[#allocation3 + $0x1f8] sm:$0xff] %vm3024, %v2959
  %v3089 = vld [vmem:[%s2318 + $0x2] sm:$0xff]
  %v3090 = vld [vmem:[%s2318 + $0xa] sm:$0xff]
  %v3091 = vld [vmem:[%s2318 + $0x1a] sm:$0xff]
  %v3092 = vld [vmem:[%s2318 + $0x22] sm:$0xff]
  %v3093 = vld [vmem:[%s2318 + $0x32] sm:$0xff]
  %v3094 = vld [vmem:[%s2318 + $0x3a] sm:$0xff]
  %v3095 = vld [vmem:[%s2318 + $0x4a] sm:$0xff]
  %v3096 = vld [vmem:[%s2318 + $0x52] sm:$0xff]
  %v3097 = vld [vmem:[%s2318 + $0x62] sm:$0xff]
  %v3098 = vld [vmem:[%s2318 + $0x6a] sm:$0xff]
  %v3099 = vld [vmem:[%s2318 + $0x7a] sm:$0xff]
  %v3100 = vld [vmem:[%s2318 + $0x82] sm:$0xff]
  %v3101 = vld [vmem:[%s2318 + $0x92] sm:$0xff]
  %v3102 = vld [vmem:[%s2318 + $0x9a] sm:$0xff]
  %v3103 = vld [vmem:[%s2318 + $0xaa] sm:$0xff]
  %v3104 = vld [vmem:[%s2318 + $0xb2] sm:$0xff]
  %v3105 = vld [vmem:[%s2318 + $0xc2] sm:$0xff]
  %v3106 = vld [vmem:[%s2318 + $0xca] sm:$0xff]
  %v3107 = vld [vmem:[%s2318 + $0xda] sm:$0xff]
  %v3108 = vld [vmem:[%s2318 + $0xe2] sm:$0xff]
  %v3109 = vld [vmem:[%s2318 + $0xf2] sm:$0xff]
  %v3110 = vld [vmem:[%s2318 + $0xfa] sm:$0xff]
  %v3111 = vld [vmem:[%s2318 + $0x10a] sm:$0xff]
  %v3112 = vld [vmem:[%s2318 + $0x112] sm:$0xff]
  %v3113 = vld [vmem:[%s2318 + $0x122] sm:$0xff]
  %v3114 = vld [vmem:[%s2318 + $0x12a] sm:$0xff]
  %v3115 = vld [vmem:[%s2318 + $0x13a] sm:$0xff]
  %v3116 = vld [vmem:[%s2318 + $0x142] sm:$0xff]
  %v3117 = vld [vmem:[%s2318 + $0x152] sm:$0xff]
  %v3118 = vld [vmem:[%s2318 + $0x15a] sm:$0xff]
  %v3119 = vld [vmem:[%s2318 + $0x16a] sm:$0xff]
  %v3120 = vld [vmem:[%s2318 + $0x172] sm:$0xff]
  %v3121 = vld [vmem:[%s2318 + $0x1b2] sm:$0xff]
  %v3122 = vld [vmem:[%s2318 + $0x1ba] sm:$0xff]
  %v3123 = vld [vmem:[%s2318 + $0x1ca] sm:$0xff]
  %v3124 = vld [vmem:[%s2318 + $0x1d2] sm:$0xff]
  %v3125 = vld [vmem:[%s2318 + $0x1e2] sm:$0xff]
  %v3126 = vld [vmem:[%s2318 + $0x1ea] sm:$0xff]
  %v3127 = vld [vmem:[%s2318 + $0x1fa] sm:$0xff]
  %v3128 = vld [vmem:[%s2318 + $0x202] sm:$0xff]
  %v3129 = vld [vmem:[%s2318 + $0x212] sm:$0xff]
  %v3130 = vld [vmem:[%s2318 + $0x21a] sm:$0xff]
  %v3131 = vld [vmem:[%s2318 + $0x22a] sm:$0xff]
  %v3132 = vld [vmem:[%s2318 + $0x232] sm:$0xff]
  %v3133 = vld [vmem:[%s2318 + $0x242] sm:$0xff]
  %v3134 = vld [vmem:[%s2318 + $0x24a] sm:$0xff]
  %v3135 = vld [vmem:[%s2318 + $0x25a] sm:$0xff]
  %v3136 = vld [vmem:[%s2318 + $0x262] sm:$0xff]
  %v3137 = vld [vmem:[%s2318 + $0x272] sm:$0xff]
  %v3138 = vld [vmem:[%s2318 + $0x27a] sm:$0xff]
  %v3139 = vld [vmem:[%s2318 + $0x28a] sm:$0xff]
  %v3140 = vld [vmem:[%s2318 + $0x292] sm:$0xff]
  %v3141 = vld [vmem:[%s2318 + $0x2a2] sm:$0xff]
  %v3142 = vld [vmem:[%s2318 + $0x2aa] sm:$0xff]
  %v3143 = vld [vmem:[%s2318 + $0x2ba] sm:$0xff]
  %v3144 = vld [vmem:[%s2318 + $0x2c2] sm:$0xff]
  %v3145 = vld [vmem:[%s2318 + $0x2d2] sm:$0xff]
  %v3146 = vld [vmem:[%s2318 + $0x2da] sm:$0xff]
  %v3147 = vld [vmem:[%s2318 + $0x2ea] sm:$0xff]
  %v3148 = vld [vmem:[%s2318 + $0x2f2] sm:$0xff]
  %v3149 = vld [vmem:[%s2318 + $0x302] sm:$0xff]
  %v3150 = vld [vmem:[%s2318 + $0x30a] sm:$0xff]
  %v3151 = vld [vmem:[%s2318 + $0x31a] sm:$0xff]
  %v3152 = vld [vmem:[%s2318 + $0x322] sm:$0xff]
  %3217 = vrot.lane.b32.xlu0 %v3089, 32
  %v3218 = vpop.permute.xlu0 %3217
  %3219 = vrot.lane.b32.xlu0 %v3090, 32
  %v3220 = vpop.permute.xlu0 %3219
  %3221 = vrot.lane.b32.xlu0 %v3091, 32
  %v3222 = vpop.permute.xlu0 %3221
  %3223 = vrot.lane.b32.xlu0 %v3092, 32
  %v3224 = vpop.permute.xlu0 %3223
  %3225 = vrot.lane.b32.xlu0 %v3093, 32
  %v3226 = vpop.permute.xlu0 %3225
  %3227 = vrot.lane.b32.xlu0 %v3094, 32
  %v3228 = vpop.permute.xlu0 %3227
  %3229 = vrot.lane.b32.xlu0 %v3095, 32
  %v3230 = vpop.permute.xlu0 %3229
  %3231 = vrot.lane.b32.xlu0 %v3096, 32
  %v3232 = vpop.permute.xlu0 %3231
  %3233 = vrot.lane.b32.xlu0 %v3097, 32
  %v3234 = vpop.permute.xlu0 %3233
  %3235 = vrot.lane.b32.xlu0 %v3098, 32
  %v3236 = vpop.permute.xlu0 %3235
  %3237 = vrot.lane.b32.xlu0 %v3099, 32
  %v3238 = vpop.permute.xlu0 %3237
  %3239 = vrot.lane.b32.xlu0 %v3100, 32
  %v3240 = vpop.permute.xlu0 %3239
  %3241 = vrot.lane.b32.xlu0 %v3101, 32
  %v3242 = vpop.permute.xlu0 %3241
  %3243 = vrot.lane.b32.xlu0 %v3102, 32
  %v3244 = vpop.permute.xlu0 %3243
  %3245 = vrot.lane.b32.xlu0 %v3103, 32
  %v3246 = vpop.permute.xlu0 %3245
  %3247 = vrot.lane.b32.xlu0 %v3104, 32
  %v3248 = vpop.permute.xlu0 %3247
  %3249 = vrot.lane.b32.xlu0 %v3105, 32
  %v3250 = vpop.permute.xlu0 %3249
  %3251 = vrot.lane.b32.xlu0 %v3106, 32
  %v3252 = vpop.permute.xlu0 %3251
  %3253 = vrot.lane.b32.xlu0 %v3107, 32
  %v3254 = vpop.permute.xlu0 %3253
  %3255 = vrot.lane.b32.xlu0 %v3108, 32
  %v3256 = vpop.permute.xlu0 %3255
  %3257 = vrot.lane.b32.xlu0 %v3109, 32
  %v3258 = vpop.permute.xlu0 %3257
  %3259 = vrot.lane.b32.xlu0 %v3110, 32
  %v3260 = vpop.permute.xlu0 %3259
  %3261 = vrot.lane.b32.xlu0 %v3111, 32
  %v3262 = vpop.permute.xlu0 %3261
  %3263 = vrot.lane.b32.xlu0 %v3112, 32
  %v3264 = vpop.permute.xlu0 %3263
  %3265 = vrot.lane.b32.xlu0 %v3113, 32
  %v3266 = vpop.permute.xlu0 %3265
  %3267 = vrot.lane.b32.xlu0 %v3114, 32
  %v3268 = vpop.permute.xlu0 %3267
  %3269 = vrot.lane.b32.xlu0 %v3115, 32
  %v3270 = vpop.permute.xlu0 %3269
  %3271 = vrot.lane.b32.xlu0 %v3116, 32
  %v3272 = vpop.permute.xlu0 %3271
  %3273 = vrot.lane.b32.xlu0 %v3117, 32
  %v3274 = vpop.permute.xlu0 %3273
  %3275 = vrot.lane.b32.xlu0 %v3118, 32
  %v3276 = vpop.permute.xlu0 %3275
  %3277 = vrot.lane.b32.xlu0 %v3119, 32
  %v3278 = vpop.permute.xlu0 %3277
  %3279 = vrot.lane.b32.xlu0 %v3120, 32
  %v3280 = vpop.permute.xlu0 %3279
  %3281 = vrot.lane.b32.xlu0 %v3121, 32
  %v3282 = vpop.permute.xlu0 %3281
  %3283 = vrot.lane.b32.xlu0 %v3122, 32
  %v3284 = vpop.permute.xlu0 %3283
  %3285 = vrot.lane.b32.xlu0 %v3123, 32
  %v3286 = vpop.permute.xlu0 %3285
  %3287 = vrot.lane.b32.xlu0 %v3124, 32
  %v3288 = vpop.permute.xlu0 %3287
  %3289 = vrot.lane.b32.xlu0 %v3125, 32
  %v3290 = vpop.permute.xlu0 %3289
  %3291 = vrot.lane.b32.xlu0 %v3126, 32
  %v3292 = vpop.permute.xlu0 %3291
  %3293 = vrot.lane.b32.xlu0 %v3127, 32
  %v3294 = vpop.permute.xlu0 %3293
  %3295 = vrot.lane.b32.xlu0 %v3128, 32
  %v3296 = vpop.permute.xlu0 %3295
  %3297 = vrot.lane.b32.xlu0 %v3129, 32
  %v3298 = vpop.permute.xlu0 %3297
  %3299 = vrot.lane.b32.xlu0 %v3130, 32
  %v3300 = vpop.permute.xlu0 %3299
  %3301 = vrot.lane.b32.xlu0 %v3131, 32
  %v3302 = vpop.permute.xlu0 %3301
  %3303 = vrot.lane.b32.xlu0 %v3132, 32
  %v3304 = vpop.permute.xlu0 %3303
  %3305 = vrot.lane.b32.xlu0 %v3133, 32
  %v3306 = vpop.permute.xlu0 %3305
  %3307 = vrot.lane.b32.xlu0 %v3134, 32
  %v3308 = vpop.permute.xlu0 %3307
  %3309 = vrot.lane.b32.xlu0 %v3135, 32
  %v3310 = vpop.permute.xlu0 %3309
  %3311 = vrot.lane.b32.xlu0 %v3136, 32
  %v3312 = vpop.permute.xlu0 %3311
  %3313 = vrot.lane.b32.xlu0 %v3137, 32
  %v3314 = vpop.permute.xlu0 %3313
  %3315 = vrot.lane.b32.xlu0 %v3138, 32
  %v3316 = vpop.permute.xlu0 %3315
  %3317 = vrot.lane.b32.xlu0 %v3139, 32
  %v3318 = vpop.permute.xlu0 %3317
  %3319 = vrot.lane.b32.xlu0 %v3140, 32
  %v3320 = vpop.permute.xlu0 %3319
  %3321 = vrot.lane.b32.xlu0 %v3141, 32
  %v3322 = vpop.permute.xlu0 %3321
  %3323 = vrot.lane.b32.xlu0 %v3142, 32
  %v3324 = vpop.permute.xlu0 %3323
  %3325 = vrot.lane.b32.xlu0 %v3143, 32
  %v3326 = vpop.permute.xlu0 %3325
  %3327 = vrot.lane.b32.xlu0 %v3144, 32
  %v3328 = vpop.permute.xlu0 %3327
  %3329 = vrot.lane.b32.xlu0 %v3145, 32
  %v3330 = vpop.permute.xlu0 %3329
  %3331 = vrot.lane.b32.xlu0 %v3146, 32
  %v3332 = vpop.permute.xlu0 %3331
  %3333 = vrot.lane.b32.xlu0 %v3147, 32
  %v3334 = vpop.permute.xlu0 %3333
  %3335 = vrot.lane.b32.xlu0 %v3148, 32
  %v3336 = vpop.permute.xlu0 %3335
  %3337 = vrot.lane.b32.xlu0 %v3149, 32
  %v3338 = vpop.permute.xlu0 %3337
  %3339 = vrot.lane.b32.xlu0 %v3150, 32
  %v3340 = vpop.permute.xlu0 %3339
  %3341 = vrot.lane.b32.xlu0 %v3151, 32
  %v3342 = vpop.permute.xlu0 %3341
  %3343 = vrot.lane.b32.xlu0 %v3152, 32
  %v3344 = vpop.permute.xlu0 %3343
  %vm3409 = vcmask 294144
  %3410 = vst.msk [vmem:[#allocation3] sm:$0xff] %vm3409, %v3218
  %3411 = vst.msk [vmem:[#allocation3 + $0x8] sm:$0xff] %vm3409, %v3220
  %3412 = vst.msk [vmem:[#allocation3 + $0x10] sm:$0xff] %vm3409, %v3222
  %3413 = vst.msk [vmem:[#allocation3 + $0x18] sm:$0xff] %vm3409, %v3224
  %3414 = vst.msk [vmem:[#allocation3 + $0x20] sm:$0xff] %vm3409, %v3226
  %3415 = vst.msk [vmem:[#allocation3 + $0x28] sm:$0xff] %vm3409, %v3228
  %3416 = vst.msk [vmem:[#allocation3 + $0x30] sm:$0xff] %vm3409, %v3230
  %3417 = vst.msk [vmem:[#allocation3 + $0x38] sm:$0xff] %vm3409, %v3232
  %3418 = vst.msk [vmem:[#allocation3 + $0x40] sm:$0xff] %vm3409, %v3234
  %3419 = vst.msk [vmem:[#allocation3 + $0x48] sm:$0xff] %vm3409, %v3236
  %3420 = vst.msk [vmem:[#allocation3 + $0x50] sm:$0xff] %vm3409, %v3238
  %3421 = vst.msk [vmem:[#allocation3 + $0x58] sm:$0xff] %vm3409, %v3240
  %3422 = vst.msk [vmem:[#allocation3 + $0x60] sm:$0xff] %vm3409, %v3242
  %3423 = vst.msk [vmem:[#allocation3 + $0x68] sm:$0xff] %vm3409, %v3244
  %3424 = vst.msk [vmem:[#allocation3 + $0x70] sm:$0xff] %vm3409, %v3246
  %3425 = vst.msk [vmem:[#allocation3 + $0x78] sm:$0xff] %vm3409, %v3248
  %3426 = vst.msk [vmem:[#allocation3 + $0x80] sm:$0xff] %vm3409, %v3250
  %3427 = vst.msk [vmem:[#allocation3 + $0x88] sm:$0xff] %vm3409, %v3252
  %3428 = vst.msk [vmem:[#allocation3 + $0x90] sm:$0xff] %vm3409, %v3254
  %3429 = vst.msk [vmem:[#allocation3 + $0x98] sm:$0xff] %vm3409, %v3256
  %3430 = vst.msk [vmem:[#allocation3 + $0xa0] sm:$0xff] %vm3409, %v3258
  %3431 = vst.msk [vmem:[#allocation3 + $0xa8] sm:$0xff] %vm3409, %v3260
  %3432 = vst.msk [vmem:[#allocation3 + $0xb0] sm:$0xff] %vm3409, %v3262
  %3433 = vst.msk [vmem:[#allocation3 + $0xb8] sm:$0xff] %vm3409, %v3264
  %3434 = vst.msk [vmem:[#allocation3 + $0xc0] sm:$0xff] %vm3409, %v3266
  %3435 = vst.msk [vmem:[#allocation3 + $0xc8] sm:$0xff] %vm3409, %v3268
  %3436 = vst.msk [vmem:[#allocation3 + $0xd0] sm:$0xff] %vm3409, %v3270
  %3437 = vst.msk [vmem:[#allocation3 + $0xd8] sm:$0xff] %vm3409, %v3272
  %3438 = vst.msk [vmem:[#allocation3 + $0xe0] sm:$0xff] %vm3409, %v3274
  %3439 = vst.msk [vmem:[#allocation3 + $0xe8] sm:$0xff] %vm3409, %v3276
  %3440 = vst.msk [vmem:[#allocation3 + $0xf0] sm:$0xff] %vm3409, %v3278
  %3441 = vst.msk [vmem:[#allocation3 + $0xf8] sm:$0xff] %vm3409, %v3280
  %3442 = vst.msk [vmem:[#allocation3 + $0x100] sm:$0xff] %vm3409, %v3282
  %3443 = vst.msk [vmem:[#allocation3 + $0x108] sm:$0xff] %vm3409, %v3284
  %3444 = vst.msk [vmem:[#allocation3 + $0x110] sm:$0xff] %vm3409, %v3286
  %3445 = vst.msk [vmem:[#allocation3 + $0x118] sm:$0xff] %vm3409, %v3288
  %3446 = vst.msk [vmem:[#allocation3 + $0x120] sm:$0xff] %vm3409, %v3290
  %3447 = vst.msk [vmem:[#allocation3 + $0x128] sm:$0xff] %vm3409, %v3292
  %3448 = vst.msk [vmem:[#allocation3 + $0x130] sm:$0xff] %vm3409, %v3294
  %3449 = vst.msk [vmem:[#allocation3 + $0x138] sm:$0xff] %vm3409, %v3296
  %3450 = vst.msk [vmem:[#allocation3 + $0x140] sm:$0xff] %vm3409, %v3298
  %3451 = vst.msk [vmem:[#allocation3 + $0x148] sm:$0xff] %vm3409, %v3300
  %3452 = vst.msk [vmem:[#allocation3 + $0x150] sm:$0xff] %vm3409, %v3302
  %3453 = vst.msk [vmem:[#allocation3 + $0x158] sm:$0xff] %vm3409, %v3304
  %3454 = vst.msk [vmem:[#allocation3 + $0x160] sm:$0xff] %vm3409, %v3306
  %3455 = vst.msk [vmem:[#allocation3 + $0x168] sm:$0xff] %vm3409, %v3308
  %3456 = vst.msk [vmem:[#allocation3 + $0x170] sm:$0xff] %vm3409, %v3310
  %3457 = vst.msk [vmem:[#allocation3 + $0x178] sm:$0xff] %vm3409, %v3312
  %3458 = vst.msk [vmem:[#allocation3 + $0x180] sm:$0xff] %vm3409, %v3314
  %3459 = vst.msk [vmem:[#allocation3 + $0x188] sm:$0xff] %vm3409, %v3316
  %3460 = vst.msk [vmem:[#allocation3 + $0x190] sm:$0xff] %vm3409, %v3318
  %3461 = vst.msk [vmem:[#allocation3 + $0x198] sm:$0xff] %vm3409, %v3320
  %3462 = vst.msk [vmem:[#allocation3 + $0x1a0] sm:$0xff] %vm3409, %v3322
  %3463 = vst.msk [vmem:[#allocation3 + $0x1a8] sm:$0xff] %vm3409, %v3324
  %3464 = vst.msk [vmem:[#allocation3 + $0x1b0] sm:$0xff] %vm3409, %v3326
  %3465 = vst.msk [vmem:[#allocation3 + $0x1b8] sm:$0xff] %vm3409, %v3328
  %3466 = vst.msk [vmem:[#allocation3 + $0x1c0] sm:$0xff] %vm3409, %v3330
  %3467 = vst.msk [vmem:[#allocation3 + $0x1c8] sm:$0xff] %vm3409, %v3332
  %3468 = vst.msk [vmem:[#allocation3 + $0x1d0] sm:$0xff] %vm3409, %v3334
  %3469 = vst.msk [vmem:[#allocation3 + $0x1d8] sm:$0xff] %vm3409, %v3336
  %3470 = vst.msk [vmem:[#allocation3 + $0x1e0] sm:$0xff] %vm3409, %v3338
  %3471 = vst.msk [vmem:[#allocation3 + $0x1e8] sm:$0xff] %vm3409, %v3340
  %3472 = vst.msk [vmem:[#allocation3 + $0x1f0] sm:$0xff] %vm3409, %v3342
  %3473 = vst.msk [vmem:[#allocation3 + $0x1f8] sm:$0xff] %vm3409, %v3344
  %v3474 = vld [vmem:[#allocation3] sm:$0xff]
  %v3475 = vld [vmem:[#allocation3 + $0x8] sm:$0xff]
  %v3476 = vld [vmem:[#allocation3 + $0x10] sm:$0xff]
  %v3477 = vld [vmem:[#allocation3 + $0x18] sm:$0xff]
  %v3478 = vld [vmem:[#allocation3 + $0x20] sm:$0xff]
  %v3479 = vld [vmem:[#allocation3 + $0x28] sm:$0xff]
  %v3480 = vld [vmem:[#allocation3 + $0x30] sm:$0xff]
  %v3481 = vld [vmem:[#allocation3 + $0x38] sm:$0xff]
  %v3482 = vld [vmem:[#allocation3 + $0x40] sm:$0xff]
  %v3483 = vld [vmem:[#allocation3 + $0x48] sm:$0xff]
  %v3484 = vld [vmem:[#allocation3 + $0x50] sm:$0xff]
  %v3485 = vld [vmem:[#allocation3 + $0x58] sm:$0xff]
  %v3486 = vld [vmem:[#allocation3 + $0x60] sm:$0xff]
  %v3487 = vld [vmem:[#allocation3 + $0x68] sm:$0xff]
  %v3488 = vld [vmem:[#allocation3 + $0x70] sm:$0xff]
  %v3489 = vld [vmem:[#allocation3 + $0x78] sm:$0xff]
  %v3490 = vld [vmem:[#allocation3 + $0x80] sm:$0xff]
  %v3491 = vld [vmem:[#allocation3 + $0x88] sm:$0xff]
  %v3492 = vld [vmem:[#allocation3 + $0x90] sm:$0xff]
  %v3493 = vld [vmem:[#allocation3 + $0x98] sm:$0xff]
  %v3494 = vld [vmem:[#allocation3 + $0xa0] sm:$0xff]
  %v3495 = vld [vmem:[#allocation3 + $0xa8] sm:$0xff]
  %v3496 = vld [vmem:[#allocation3 + $0xb0] sm:$0xff]
  %v3497 = vld [vmem:[#allocation3 + $0xb8] sm:$0xff]
  %v3498 = vld [vmem:[#allocation3 + $0xc0] sm:$0xff]
  %v3499 = vld [vmem:[#allocation3 + $0xc8] sm:$0xff]
  %v3500 = vld [vmem:[#allocation3 + $0xd0] sm:$0xff]
  %v3501 = vld [vmem:[#allocation3 + $0xd8] sm:$0xff]
  %v3502 = vld [vmem:[#allocation3 + $0xe0] sm:$0xff]
  %v3503 = vld [vmem:[#allocation3 + $0xe8] sm:$0xff]
  %v3504 = vld [vmem:[#allocation3 + $0xf0] sm:$0xff]
  %v3505 = vld [vmem:[#allocation3 + $0xf8] sm:$0xff]
  %v3506 = vld [vmem:[#allocation3 + $0x100] sm:$0xff]
  %v3507 = vld [vmem:[#allocation3 + $0x108] sm:$0xff]
  %v3508 = vld [vmem:[#allocation3 + $0x110] sm:$0xff]
  %v3509 = vld [vmem:[#allocation3 + $0x118] sm:$0xff]
  %v3510 = vld [vmem:[#allocation3 + $0x120] sm:$0xff]
  %v3511 = vld [vmem:[#allocation3 + $0x128] sm:$0xff]
  %v3512 = vld [vmem:[#allocation3 + $0x130] sm:$0xff]
  %v3513 = vld [vmem:[#allocation3 + $0x138] sm:$0xff]
  %v3514 = vld [vmem:[#allocation3 + $0x140] sm:$0xff]
  %v3515 = vld [vmem:[#allocation3 + $0x148] sm:$0xff]
  %v3516 = vld [vmem:[#allocation3 + $0x150] sm:$0xff]
  %v3517 = vld [vmem:[#allocation3 + $0x158] sm:$0xff]
  %v3518 = vld [vmem:[#allocation3 + $0x160] sm:$0xff]
  %v3519 = vld [vmem:[#allocation3 + $0x168] sm:$0xff]
  %v3520 = vld [vmem:[#allocation3 + $0x170] sm:$0xff]
  %v3521 = vld [vmem:[#allocation3 + $0x178] sm:$0xff]
  %v3522 = vld [vmem:[#allocation3 + $0x180] sm:$0xff]
  %v3523 = vld [vmem:[#allocation3 + $0x188] sm:$0xff]
  %v3524 = vld [vmem:[#allocation3 + $0x190] sm:$0xff]
  %v3525 = vld [vmem:[#allocation3 + $0x198] sm:$0xff]
  %v3526 = vld [vmem:[#allocation3 + $0x1a0] sm:$0xff]
  %v3527 = vld [vmem:[#allocation3 + $0x1a8] sm:$0xff]
  %v3528 = vld [vmem:[#allocation3 + $0x1b0] sm:$0xff]
  %v3529 = vld [vmem:[#allocation3 + $0x1b8] sm:$0xff]
  %v3530 = vld [vmem:[#allocation3 + $0x1c0] sm:$0xff]
  %v3531 = vld [vmem:[#allocation3 + $0x1c8] sm:$0xff]
  %v3532 = vld [vmem:[#allocation3 + $0x1d0] sm:$0xff]
  %v3533 = vld [vmem:[#allocation3 + $0x1d8] sm:$0xff]
  %v3534 = vld [vmem:[#allocation3 + $0x1e0] sm:$0xff]
  %v3535 = vld [vmem:[#allocation3 + $0x1e8] sm:$0xff]
  %v3536 = vld [vmem:[#allocation3 + $0x1f0] sm:$0xff]
  %v3537 = vld [vmem:[#allocation3 + $0x1f8] sm:$0xff]
  %v3538 = vld [vmem:[%s1] sm:$0xff]
  %v3539 = vld [vmem:[%s1 + $0x8] sm:$0xff]
  %v3540 = vld [vmem:[%s1 + $0x10] sm:$0xff]
  %v3541 = vld [vmem:[%s1 + $0x18] sm:$0xff]
  %v3542 = vld [vmem:[%s1 + $0x20] sm:$0xf]
  %vm3543 = vcmask 293888
  %v3545 = vsel %vm3543, %v3474, 0
  %v3548 = vsel %vm3543, %v3475, 0
  %v3551 = vsel %vm3543, %v3476, 0
  %v3554 = vsel %vm3543, %v3477, 0
  %v3557 = vsel %vm3543, %v3478, 0
  %v3560 = vsel %vm3543, %v3479, 0
  %v3563 = vsel %vm3543, %v3480, 0
  %v3566 = vsel %vm3543, %v3481, 0
  %v3569 = vsel %vm3543, %v3482, 0
  %v3572 = vsel %vm3543, %v3483, 0
  %v3575 = vsel %vm3543, %v3484, 0
  %v3578 = vsel %vm3543, %v3485, 0
  %v3581 = vsel %vm3543, %v3486, 0
  %v3584 = vsel %vm3543, %v3487, 0
  %v3587 = vsel %vm3543, %v3488, 0
  %v3590 = vsel %vm3543, %v3489, 0
  %v3593 = vsel %vm3543, %v3490, 0
  %v3596 = vsel %vm3543, %v3491, 0
  %v3599 = vsel %vm3543, %v3492, 0
  %v3602 = vsel %vm3543, %v3493, 0
  %v3605 = vsel %vm3543, %v3494, 0
  %v3608 = vsel %vm3543, %v3495, 0
  %v3611 = vsel %vm3543, %v3496, 0
  %v3614 = vsel %vm3543, %v3497, 0
  %v3617 = vsel %vm3543, %v3498, 0
  %v3620 = vsel %vm3543, %v3499, 0
  %v3623 = vsel %vm3543, %v3500, 0
  %v3626 = vsel %vm3543, %v3501, 0
  %v3629 = vsel %vm3543, %v3502, 0
  %v3632 = vsel %vm3543, %v3503, 0
  %v3635 = vsel %vm3543, %v3504, 0
  %v3638 = vsel %vm3543, %v3505, 0
  %v3641 = vsel %vm3543, %v3506, 0
  %v3644 = vsel %vm3543, %v3507, 0
  %v3647 = vsel %vm3543, %v3508, 0
  %v3650 = vsel %vm3543, %v3509, 0
  %v3653 = vsel %vm3543, %v3510, 0
  %v3656 = vsel %vm3543, %v3511, 0
  %v3659 = vsel %vm3543, %v3512, 0
  %v3662 = vsel %vm3543, %v3513, 0
  %v3665 = vsel %vm3543, %v3514, 0
  %v3668 = vsel %vm3543, %v3515, 0
  %v3671 = vsel %vm3543, %v3516, 0
  %v3674 = vsel %vm3543, %v3517, 0
  %v3677 = vsel %vm3543, %v3518, 0
  %v3680 = vsel %vm3543, %v3519, 0
  %v3683 = vsel %vm3543, %v3520, 0
  %v3686 = vsel %vm3543, %v3521, 0
  %v3689 = vsel %vm3543, %v3522, 0
  %v3692 = vsel %vm3543, %v3523, 0
  %v3695 = vsel %vm3543, %v3524, 0
  %v3698 = vsel %vm3543, %v3525, 0
  %v3701 = vsel %vm3543, %v3526, 0
  %v3704 = vsel %vm3543, %v3527, 0
  %v3707 = vsel %vm3543, %v3528, 0
  %v3710 = vsel %vm3543, %v3529, 0
  %v3713 = vsel %vm3543, %v3530, 0
  %v3716 = vsel %vm3543, %v3531, 0
  %v3719 = vsel %vm3543, %v3532, 0
  %v3722 = vsel %vm3543, %v3533, 0
  %v3725 = vsel %vm3543, %v3534, 0
  %v3728 = vsel %vm3543, %v3535, 0
  %v3731 = vsel %vm3543, %v3536, 0
  %v3734 = vsel %vm3543, %v3537, 0
  %vm3736 = vcmask 1043456
  %v3738 = vsel %vm3736, %v3542, 0
  %3740 = vmatprep.subr.mxu0 0.0
  %3741 = vmatpush1.msra.mxu0 %v3538
  %3742 = vmatprep.subr.mxu0 0.0
  %3743 = vmatpush1.msra.mxu0 %v3539
  %3744 = vmatprep.subr.mxu0 0.0
  %3745 = vmatpush1.msra.mxu0 %v3540
  %3746 = vmatprep.subr.mxu0 0.0
  %3747 = vmatpush1.msra.mxu0 %v3541
  %3748 = vmatprep.subr.mxu0 0.0
  %3749 = vmatpush1.msra.mxu0 %v3738
  %3750 = vmatprep.subr.mxu0 0.0
  %3751 = vmatpush1.msra.mxu0 0.0
  %3752 = vmatprep.subr.mxu0 0.0
  %3753 = vmatpush1.msra.mxu0 0.0
  %3754 = vmatprep.subr.mxu0 0.0
  %3755 = vmatpush1.msra.mxu0 0.0
  %3756 = vmatprep.subr.mxu0 0.0
  %3757 = vmatpush1.msra.mxu0 0.0
  %3758 = vmatprep.subr.mxu0 0.0
  %3759 = vmatpush1.msra.mxu0 0.0
  %3760 = vmatprep.subr.mxu0 0.0
  %3761 = vmatpush1.msra.mxu0 0.0
  %3762 = vmatprep.subr.mxu0 0.0
  %3763 = vmatpush1.msra.mxu0 0.0
  %3764 = vmatprep.subr.mxu0 0.0
  %3765 = vmatpush1.msra.mxu0 0.0
  %3766 = vmatprep.subr.mxu0 0.0
  %3767 = vmatpush1.msra.mxu0 0.0
  %3768 = vmatprep.subr.mxu0 0.0
  %3769 = vmatpush1.msra.mxu0 0.0
  %3770 = vmatprep.subr.mxu0 0.0
  %3771 = vmatpush1.msra.mxu0 0.0
  %3772 = vmatprep.subr.mxu0 0.0
  %3773 = vmatpush1.msra.mxu0 0.0
  %3774 = vmatprep.subr.mxu0 0.0
  %3775 = vmatpush1.msra.mxu0 0.0
  %3776 = vmatprep.subr.mxu0 0.0
  %3777 = vmatpush1.msra.mxu0 0.0
  %3778 = vmatprep.subr.mxu0 0.0
  %3779 = vmatpush1.msra.mxu0 0.0
  %3780 = vmatprep.subr.mxu0 0.0
  %3781 = vmatpush1.msra.mxu0 0.0
  %3782 = vmatprep.subr.mxu0 0.0
  %3783 = vmatpush1.msra.mxu0 0.0
  %3784 = vmatprep.subr.mxu0 0.0
  %3785 = vmatpush1.msra.mxu0 0.0
  %3786 = vmatprep.subr.mxu0 0.0
  %3787 = vmatpush1.msra.mxu0 0.0
  %3788 = vmatprep.subr.mxu0 0.0
  %3789 = vmatpush1.msra.mxu0 0.0
  %3790 = vmatprep.subr.mxu0 0.0
  %3791 = vmatpush1.msra.mxu0 0.0
  %3792 = vmatprep.subr.mxu0 0.0
  %3793 = vmatpush1.msra.mxu0 0.0
  %3794 = vmatprep.subr.mxu0 0.0
  %3795 = vmatpush1.msra.mxu0 0.0
  %3796 = vmatprep.subr.mxu0 0.0
  %3797 = vmatpush1.msra.mxu0 0.0
  %3798 = vmatprep.subr.mxu0 0.0
  %3799 = vmatpush1.msra.mxu0 0.0
  %3800 = vmatprep.subr.mxu0 0.0
  %3801 = vmatpush1.msra.mxu0 0.0
  %3802 = vmatprep.subr.mxu0 0.0
  %3803 = vmatpush1.msra.mxu0 0.0
  %3804 = vmatprep.mubr.f32.mxu0 0.0
  %3805 = vmatmul.mubr.f32.gmra.mrb[0].mxu0 %v3545
  %v3806 = vpop.f32.mrb[0].mxu0
  %v3807 = vadd.f32 0.0, %v3806
  %v3808 = vpop.f32.mrb[0].mxu0
  %3809 = vmatprep.mubr.f32.mxu0 0.0
  %3810 = vmatmul.mubr.f32.gmra.mrb[0].mxu0 %v3548
  %v3811 = vpop.f32.mrb[0].mxu0
  %v3812 = vadd.f32 0.0, %v3811
  %v3813 = vpop.f32.mrb[0].mxu0
  %3814 = vmatprep.mubr.f32.mxu0 0.0
  %3815 = vmatmul.mubr.f32.gmra.mrb[0].mxu0 %v3551
  %v3816 = vpop.f32.mrb[0].mxu0
  %v3817 = vadd.f32 0.0, %v3816
  %v3818 = vpop.f32.mrb[0].mxu0
  %3819 = vmatprep.mubr.f32.mxu0 0.0
  %3820 = vmatmul.mubr.f32.gmra.mrb[0].mxu0 %v3554
  %v3821 = vpop.f32.mrb[0].mxu0
  %v3822 = vadd.f32 0.0, %v3821
  %v3823 = vpop.f32.mrb[0].mxu0
  %3824 = vmatprep.mubr.f32.mxu0 0.0
  %3825 = vmatmul.mubr.f32.gmra.mrb[0].mxu0 %v3557
  %v3826 = vpop.f32.mrb[0].mxu0
  %v3827 = vadd.f32 0.0, %v3826
  %v3828 = vpop.f32.mrb[0].mxu0
  %3829 = vmatprep.mubr.f32.mxu0 0.0
  %3830 = vmatmul.mubr.f32.gmra.mrb[0].mxu0 %v3560
  %v3831 = vpop.f32.mrb[0].mxu0
  %v3832 = vadd.f32 0.0, %v3831
  %v3833 = vpop.f32.mrb[0].mxu0
  %3834 = vmatprep.mubr.f32.mxu0 0.0
  %3835 = vmatmul.mubr.f32.gmra.mrb[0].mxu0 %v3563
  %v3836 = vpop.f32.mrb[0].mxu0
  %v3837 = vadd.f32 0.0, %v3836
  %v3838 = vpop.f32.mrb[0].mxu0
  %3839 = vmatprep.mubr.f32.mxu0 0.0
  %3840 = vmatmul.mubr.f32.gmra.mrb[0].mxu0 %v3566
  %v3841 = vpop.f32.mrb[0].mxu0
  %v3842 = vadd.f32 0.0, %v3841
  %v3843 = vpop.f32.mrb[0].mxu0
  %3844 = vmatprep.mubr.f32.mxu0 0.0
  %3845 = vmatmul.mubr.f32.gmra.mrb[0].mxu0 %v3569
  %v3846 = vpop.f32.mrb[0].mxu0
  %v3847 = vadd.f32 0.0, %v3846
  %v3848 = vpop.f32.mrb[0].mxu0
  %3849 = vmatprep.mubr.f32.mxu0 0.0
  %3850 = vmatmul.mubr.f32.gmra.mrb[0].mxu0 %v3572
  %v3851 = vpop.f32.mrb[0].mxu0
  %v3852 = vadd.f32 0.0, %v3851
  %v3853 = vpop.f32.mrb[0].mxu0
  %3854 = vmatprep.mubr.f32.mxu0 0.0
  %3855 = vmatmul.mubr.f32.gmra.mrb[0].mxu0 %v3575
  %v3856 = vpop.f32.mrb[0].mxu0
  %v3857 = vadd.f32 0.0, %v3856
  %v3858 = vpop.f32.mrb[0].mxu0
  %3859 = vmatprep.mubr.f32.mxu0 0.0
  %3860 = vmatmul.mubr.f32.gmra.mrb[0].mxu0 %v3578
  %v3861 = vpop.f32.mrb[0].mxu0
  %v3862 = vadd.f32 0.0, %v3861
  %v3863 = vpop.f32.mrb[0].mxu0
  %3864 = vmatprep.mubr.f32.mxu0 0.0
  %3865 = vmatmul.mubr.f32.gmra.mrb[0].mxu0 %v3581
  %v3866 = vpop.f32.mrb[0].mxu0
  %v3867 = vadd.f32 0.0, %v3866
  %v3868 = vpop.f32.mrb[0].mxu0
  %3869 = vmatprep.mubr.f32.mxu0 0.0
  %3870 = vmatmul.mubr.f32.gmra.mrb[0].mxu0 %v3584
  %v3871 = vpop.f32.mrb[0].mxu0
  %v3872 = vadd.f32 0.0, %v3871
  %v3873 = vpop.f32.mrb[0].mxu0
  %3874 = vmatprep.mubr.f32.mxu0 0.0
  %3875 = vmatmul.mubr.f32.gmra.mrb[0].mxu0 %v3587
  %v3876 = vpop.f32.mrb[0].mxu0
  %v3877 = vadd.f32 0.0, %v3876
  %v3878 = vpop.f32.mrb[0].mxu0
  %3879 = vmatprep.mubr.f32.mxu0 0.0
  %3880 = vmatmul.mubr.f32.gmra.mrb[0].mxu0 %v3590
  %v3881 = vpop.f32.mrb[0].mxu0
  %v3882 = vadd.f32 0.0, %v3881
  %v3883 = vpop.f32.mrb[0].mxu0
  %3884 = vmatprep.mubr.f32.mxu0 0.0
  %3885 = vmatmul.mubr.f32.gmra.mrb[0].mxu0 %v3593
  %v3886 = vpop.f32.mrb[0].mxu0
  %v3887 = vadd.f32 0.0, %v3886
  %v3888 = vpop.f32.mrb[0].mxu0
  %3889 = vmatprep.mubr.f32.mxu0 0.0
  %3890 = vmatmul.mubr.f32.gmra.mrb[0].mxu0 %v3596
  %v3891 = vpop.f32.mrb[0].mxu0
  %v3892 = vadd.f32 0.0, %v3891
  %v3893 = vpop.f32.mrb[0].mxu0
  %3894 = vmatprep.mubr.f32.mxu0 0.0
  %3895 = vmatmul.mubr.f32.gmra.mrb[0].mxu0 %v3599
  %v3896 = vpop.f32.mrb[0].mxu0
  %v3897 = vadd.f32 0.0, %v3896
  %v3898 = vpop.f32.mrb[0].mxu0
  %3899 = vmatprep.mubr.f32.mxu0 0.0
  %3900 = vmatmul.mubr.f32.gmra.mrb[0].mxu0 %v3602
  %v3901 = vpop.f32.mrb[0].mxu0
  %v3902 = vadd.f32 0.0, %v3901
  %v3903 = vpop.f32.mrb[0].mxu0
  %3904 = vmatprep.mubr.f32.mxu0 0.0
  %3905 = vmatmul.mubr.f32.gmra.mrb[0].mxu0 %v3605
  %v3906 = vpop.f32.mrb[0].mxu0
  %v3907 = vadd.f32 0.0, %v3906
  %v3908 = vpop.f32.mrb[0].mxu0
  %3909 = vmatprep.mubr.f32.mxu0 0.0
  %3910 = vmatmul.mubr.f32.gmra.mrb[0].mxu0 %v3608
  %v3911 = vpop.f32.mrb[0].mxu0
  %v3912 = vadd.f32 0.0, %v3911
  %v3913 = vpop.f32.mrb[0].mxu0
  %3914 = vmatprep.mubr.f32.mxu0 0.0
  %3915 = vmatmul.mubr.f32.gmra.mrb[0].mxu0 %v3611
  %v3916 = vpop.f32.mrb[0].mxu0
  %v3917 = vadd.f32 0.0, %v3916
  %v3918 = vpop.f32.mrb[0].mxu0
  %3919 = vmatprep.mubr.f32.mxu0 0.0
  %3920 = vmatmul.mubr.f32.gmra.mrb[0].mxu0 %v3614
  %v3921 = vpop.f32.mrb[0].mxu0
  %v3922 = vadd.f32 0.0, %v3921
  %v3923 = vpop.f32.mrb[0].mxu0
  %3924 = vmatprep.mubr.f32.mxu0 0.0
  %3925 = vmatmul.mubr.f32.gmra.mrb[0].mxu0 %v3617
  %v3926 = vpop.f32.mrb[0].mxu0
  %v3927 = vadd.f32 0.0, %v3926
  %v3928 = vpop.f32.mrb[0].mxu0
  %3929 = vmatprep.mubr.f32.mxu0 0.0
  %3930 = vmatmul.mubr.f32.gmra.mrb[0].mxu0 %v3620
  %v3931 = vpop.f32.mrb[0].mxu0
  %v3932 = vadd.f32 0.0, %v3931
  %v3933 = vpop.f32.mrb[0].mxu0
  %3934 = vmatprep.mubr.f32.mxu0 0.0
  %3935 = vmatmul.mubr.f32.gmra.mrb[0].mxu0 %v3623
  %v3936 = vpop.f32.mrb[0].mxu0
  %v3937 = vadd.f32 0.0, %v3936
  %v3938 = vpop.f32.mrb[0].mxu0
  %3939 = vmatprep.mubr.f32.mxu0 0.0
  %3940 = vmatmul.mubr.f32.gmra.mrb[0].mxu0 %v3626
  %v3941 = vpop.f32.mrb[0].mxu0
  %v3942 = vadd.f32 0.0, %v3941
  %v3943 = vpop.f32.mrb[0].mxu0
  %3944 = vmatprep.mubr.f32.mxu0 0.0
  %3945 = vmatmul.mubr.f32.gmra.mrb[0].mxu0 %v3629
  %v3946 = vpop.f32.mrb[0].mxu0
  %v3947 = vadd.f32 0.0, %v3946
  %v3948 = vpop.f32.mrb[0].mxu0
  %3949 = vmatprep.mubr.f32.mxu0 0.0
  %3950 = vmatmul.mubr.f32.gmra.mrb[0].mxu0 %v3632
  %v3951 = vpop.f32.mrb[0].mxu0
  %v3952 = vadd.f32 0.0, %v3951
  %v3953 = vpop.f32.mrb[0].mxu0
  %3954 = vmatprep.mubr.f32.mxu0 0.0
  %3955 = vmatmul.mubr.f32.gmra.mrb[0].mxu0 %v3635
  %v3956 = vpop.f32.mrb[0].mxu0
  %v3957 = vadd.f32 0.0, %v3956
  %v3958 = vpop.f32.mrb[0].mxu0
  %3959 = vmatprep.mubr.f32.mxu0 0.0
  %3960 = vmatmul.mubr.f32.gmra.mrb[0].mxu0 %v3638
  %v3961 = vpop.f32.mrb[0].mxu0
  %v3962 = vadd.f32 0.0, %v3961
  %v3963 = vpop.f32.mrb[0].mxu0
  %3964 = vmatprep.mubr.f32.mxu0 0.0
  %3965 = vmatmul.mubr.f32.gmra.mrb[0].mxu0 %v3641
  %v3966 = vpop.f32.mrb[0].mxu0
  %v3967 = vadd.f32 0.0, %v3966
  %v3968 = vpop.f32.mrb[0].mxu0
  %3969 = vmatprep.mubr.f32.mxu0 0.0
  %3970 = vmatmul.mubr.f32.gmra.mrb[0].mxu0 %v3644
  %v3971 = vpop.f32.mrb[0].mxu0
  %v3972 = vadd.f32 0.0, %v3971
  %v3973 = vpop.f32.mrb[0].mxu0
  %3974 = vmatprep.mubr.f32.mxu0 0.0
  %3975 = vmatmul.mubr.f32.gmra.mrb[0].mxu0 %v3647
  %v3976 = vpop.f32.mrb[0].mxu0
  %v3977 = vadd.f32 0.0, %v3976
  %v3978 = vpop.f32.mrb[0].mxu0
  %3979 = vmatprep.mubr.f32.mxu0 0.0
  %3980 = vmatmul.mubr.f32.gmra.mrb[0].mxu0 %v3650
  %v3981 = vpop.f32.mrb[0].mxu0
  %v3982 = vadd.f32 0.0, %v3981
  %v3983 = vpop.f32.mrb[0].mxu0
  %3984 = vmatprep.mubr.f32.mxu0 0.0
  %3985 = vmatmul.mubr.f32.gmra.mrb[0].mxu0 %v3653
  %v3986 = vpop.f32.mrb[0].mxu0
  %v3987 = vadd.f32 0.0, %v3986
  %v3988 = vpop.f32.mrb[0].mxu0
  %3989 = vmatprep.mubr.f32.mxu0 0.0
  %3990 = vmatmul.mubr.f32.gmra.mrb[0].mxu0 %v3656
  %v3991 = vpop.f32.mrb[0].mxu0
  %v3992 = vadd.f32 0.0, %v3991
  %v3993 = vpop.f32.mrb[0].mxu0
  %3994 = vmatprep.mubr.f32.mxu0 0.0
  %3995 = vmatmul.mubr.f32.gmra.mrb[0].mxu0 %v3659
  %v3996 = vpop.f32.mrb[0].mxu0
  %v3997 = vadd.f32 0.0, %v3996
  %v3998 = vpop.f32.mrb[0].mxu0
  %3999 = vmatprep.mubr.f32.mxu0 0.0
  %4000 = vmatmul.mubr.f32.gmra.mrb[0].mxu0 %v3662
  %v4001 = vpop.f32.mrb[0].mxu0
  %v4002 = vadd.f32 0.0, %v4001
  %v4003 = vpop.f32.mrb[0].mxu0
  %4004 = vmatprep.mubr.f32.mxu0 0.0
  %4005 = vmatmul.mubr.f32.gmra.mrb[0].mxu0 %v3665
  %v4006 = vpop.f32.mrb[0].mxu0
  %v4007 = vadd.f32 0.0, %v4006
  %v4008 = vpop.f32.mrb[0].mxu0
  %4009 = vmatprep.mubr.f32.mxu0 0.0
  %4010 = vmatmul.mubr.f32.gmra.mrb[0].mxu0 %v3668
  %v4011 = vpop.f32.mrb[0].mxu0
  %v4012 = vadd.f32 0.0, %v4011
  %v4013 = vpop.f32.mrb[0].mxu0
  %4014 = vmatprep.mubr.f32.mxu0 0.0
  %4015 = vmatmul.mubr.f32.gmra.mrb[0].mxu0 %v3671
  %v4016 = vpop.f32.mrb[0].mxu0
  %v4017 = vadd.f32 0.0, %v4016
  %v4018 = vpop.f32.mrb[0].mxu0
  %4019 = vmatprep.mubr.f32.mxu0 0.0
  %4020 = vmatmul.mubr.f32.gmra.mrb[0].mxu0 %v3674
  %v4021 = vpop.f32.mrb[0].mxu0
  %v4022 = vadd.f32 0.0, %v4021
  %v4023 = vpop.f32.mrb[0].mxu0
  %4024 = vmatprep.mubr.f32.mxu0 0.0
  %4025 = vmatmul.mubr.f32.gmra.mrb[0].mxu0 %v3677
  %v4026 = vpop.f32.mrb[0].mxu0
  %v4027 = vadd.f32 0.0, %v4026
  %v4028 = vpop.f32.mrb[0].mxu0
  %4029 = vmatprep.mubr.f32.mxu0 0.0
  %4030 = vmatmul.mubr.f32.gmra.mrb[0].mxu0 %v3680
  %v4031 = vpop.f32.mrb[0].mxu0
  %v4032 = vadd.f32 0.0, %v4031
  %v4033 = vpop.f32.mrb[0].mxu0
  %4034 = vmatprep.mubr.f32.mxu0 0.0
  %4035 = vmatmul.mubr.f32.gmra.mrb[0].mxu0 %v3683
  %v4036 = vpop.f32.mrb[0].mxu0
  %v4037 = vadd.f32 0.0, %v4036
  %v4038 = vpop.f32.mrb[0].mxu0
  %4039 = vmatprep.mubr.f32.mxu0 0.0
  %4040 = vmatmul.mubr.f32.gmra.mrb[0].mxu0 %v3686
  %v4041 = vpop.f32.mrb[0].mxu0
  %v4042 = vadd.f32 0.0, %v4041
  %v4043 = vpop.f32.mrb[0].mxu0
  %4044 = vmatprep.mubr.f32.mxu0 0.0
  %4045 = vmatmul.mubr.f32.gmra.mrb[0].mxu0 %v3689
  %v4046 = vpop.f32.mrb[0].mxu0
  %v4047 = vadd.f32 0.0, %v4046
  %v4048 = vpop.f32.mrb[0].mxu0
  %4049 = vmatprep.mubr.f32.mxu0 0.0
  %4050 = vmatmul.mubr.f32.gmra.mrb[0].mxu0 %v3692
  %v4051 = vpop.f32.mrb[0].mxu0
  %v4052 = vadd.f32 0.0, %v4051
  %v4053 = vpop.f32.mrb[0].mxu0
  %4054 = vmatprep.mubr.f32.mxu0 0.0
  %4055 = vmatmul.mubr.f32.gmra.mrb[0].mxu0 %v3695
  %v4056 = vpop.f32.mrb[0].mxu0
  %v4057 = vadd.f32 0.0, %v4056
  %v4058 = vpop.f32.mrb[0].mxu0
  %4059 = vmatprep.mubr.f32.mxu0 0.0
  %4060 = vmatmul.mubr.f32.gmra.mrb[0].mxu0 %v3698
  %v4061 = vpop.f32.mrb[0].mxu0
  %v4062 = vadd.f32 0.0, %v4061
  %v4063 = vpop.f32.mrb[0].mxu0
  %4064 = vmatprep.mubr.f32.mxu0 0.0
  %4065 = vmatmul.mubr.f32.gmra.mrb[0].mxu0 %v3701
  %v4066 = vpop.f32.mrb[0].mxu0
  %v4067 = vadd.f32 0.0, %v4066
  %v4068 = vpop.f32.mrb[0].mxu0
  %4069 = vmatprep.mubr.f32.mxu0 0.0
  %4070 = vmatmul.mubr.f32.gmra.mrb[0].mxu0 %v3704
  %v4071 = vpop.f32.mrb[0].mxu0
  %v4072 = vadd.f32 0.0, %v4071
  %v4073 = vpop.f32.mrb[0].mxu0
  %4074 = vmatprep.mubr.f32.mxu0 0.0
  %4075 = vmatmul.mubr.f32.gmra.mrb[0].mxu0 %v3707
  %v4076 = vpop.f32.mrb[0].mxu0
  %v4077 = vadd.f32 0.0, %v4076
  %v4078 = vpop.f32.mrb[0].mxu0
  %4079 = vmatprep.mubr.f32.mxu0 0.0
  %4080 = vmatmul.mubr.f32.gmra.mrb[0].mxu0 %v3710
  %v4081 = vpop.f32.mrb[0].mxu0
  %v4082 = vadd.f32 0.0, %v4081
  %v4083 = vpop.f32.mrb[0].mxu0
  %4084 = vmatprep.mubr.f32.mxu0 0.0
  %4085 = vmatmul.mubr.f32.gmra.mrb[0].mxu0 %v3713
  %v4086 = vpop.f32.mrb[0].mxu0
  %v4087 = vadd.f32 0.0, %v4086
  %v4088 = vpop.f32.mrb[0].mxu0
  %4089 = vmatprep.mubr.f32.mxu0 0.0
  %4090 = vmatmul.mubr.f32.gmra.mrb[0].mxu0 %v3716
  %v4091 = vpop.f32.mrb[0].mxu0
  %v4092 = vadd.f32 0.0, %v4091
  %v4093 = vpop.f32.mrb[0].mxu0
  %4094 = vmatprep.mubr.f32.mxu0 0.0
  %4095 = vmatmul.mubr.f32.gmra.mrb[0].mxu0 %v3719
  %v4096 = vpop.f32.mrb[0].mxu0
  %v4097 = vadd.f32 0.0, %v4096
  %v4098 = vpop.f32.mrb[0].mxu0
  %4099 = vmatprep.mubr.f32.mxu0 0.0
  %4100 = vmatmul.mubr.f32.gmra.mrb[0].mxu0 %v3722
  %v4101 = vpop.f32.mrb[0].mxu0
  %v4102 = vadd.f32 0.0, %v4101
  %v4103 = vpop.f32.mrb[0].mxu0
  %4104 = vmatprep.mubr.f32.mxu0 0.0
  %4105 = vmatmul.mubr.f32.gmra.mrb[0].mxu0 %v3725
  %v4106 = vpop.f32.mrb[0].mxu0
  %v4107 = vadd.f32 0.0, %v4106
  %v4108 = vpop.f32.mrb[0].mxu0
  %4109 = vmatprep.mubr.f32.mxu0 0.0
  %4110 = vmatmul.mubr.f32.gmra.mrb[0].mxu0 %v3728
  %v4111 = vpop.f32.mrb[0].mxu0
  %v4112 = vadd.f32 0.0, %v4111
  %v4113 = vpop.f32.mrb[0].mxu0
  %4114 = vmatprep.mubr.f32.mxu0 0.0
  %4115 = vmatmul.mubr.f32.gmra.mrb[0].mxu0 %v3731
  %v4116 = vpop.f32.mrb[0].mxu0
  %v4117 = vadd.f32 0.0, %v4116
  %v4118 = vpop.f32.mrb[0].mxu0
  %4119 = vmatprep.mubr.f32.mxu0 0.0
  %4120 = vmatmul.mubr.f32.gmra.mrb[0].mxu0 %v3734
  %v4121 = vpop.f32.mrb[0].mxu0
  %v4122 = vadd.f32 0.0, %v4121
  %v4123 = vpop.f32.mrb[0].mxu0
  %4124 = vdwg.mxu0
  %v4125 = vsel %vm26, %v3807, 0.0
  %v4126 = vsel %vm26, %v3812, 0.0
  %v4127 = vadd.f32 %v4125, %v4126
  %v4128 = vsel %vm26, %v3817, 0.0
  %v4129 = vadd.f32 %v4127, %v4128
  %v4130 = vsel %vm26, %v3822, 0.0
  %v4131 = vadd.f32 %v4129, %v4130
  %v4132 = vsel %vm26, %v3827, 0.0
  %v4133 = vadd.f32 %v4131, %v4132
  %v4134 = vsel %vm26, %v3832, 0.0
  %v4135 = vadd.f32 %v4133, %v4134
  %v4136 = vsel %vm26, %v3837, 0.0
  %v4137 = vadd.f32 %v4135, %v4136
  %v4138 = vsel %vm26, %v3842, 0.0
  %v4139 = vadd.f32 %v4137, %v4138
  %v4140 = vsel %vm26, %v3847, 0.0
  %v4141 = vadd.f32 %v4139, %v4140
  %v4142 = vsel %vm26, %v3852, 0.0
  %v4143 = vadd.f32 %v4141, %v4142
  %v4144 = vsel %vm26, %v3857, 0.0
  %v4145 = vadd.f32 %v4143, %v4144
  %v4146 = vsel %vm26, %v3862, 0.0
  %v4147 = vadd.f32 %v4145, %v4146
  %v4148 = vsel %vm26, %v3867, 0.0
  %v4149 = vadd.f32 %v4147, %v4148
  %v4150 = vsel %vm26, %v3872, 0.0
  %v4151 = vadd.f32 %v4149, %v4150
  %v4152 = vsel %vm26, %v3877, 0.0
  %v4153 = vadd.f32 %v4151, %v4152
  %v4154 = vsel %vm26, %v3882, 0.0
  %v4155 = vadd.f32 %v4153, %v4154
  %v4156 = vsel %vm26, %v3887, 0.0
  %v4157 = vadd.f32 %v4155, %v4156
  %v4158 = vsel %vm26, %v3892, 0.0
  %v4159 = vadd.f32 %v4157, %v4158
  %v4160 = vsel %vm26, %v3897, 0.0
  %v4161 = vadd.f32 %v4159, %v4160
  %v4162 = vsel %vm26, %v3902, 0.0
  %v4163 = vadd.f32 %v4161, %v4162
  %v4164 = vsel %vm26, %v3907, 0.0
  %v4165 = vadd.f32 %v4163, %v4164
  %v4166 = vsel %vm26, %v3912, 0.0
  %v4167 = vadd.f32 %v4165, %v4166
  %v4168 = vsel %vm26, %v3917, 0.0
  %v4169 = vadd.f32 %v4167, %v4168
  %v4170 = vsel %vm26, %v3922, 0.0
  %v4171 = vadd.f32 %v4169, %v4170
  %v4172 = vsel %vm26, %v3927, 0.0
  %v4173 = vadd.f32 %v4171, %v4172
  %v4174 = vsel %vm26, %v3932, 0.0
  %v4175 = vadd.f32 %v4173, %v4174
  %v4176 = vsel %vm26, %v3937, 0.0
  %v4177 = vadd.f32 %v4175, %v4176
  %v4178 = vsel %vm26, %v3942, 0.0
  %v4179 = vadd.f32 %v4177, %v4178
  %v4180 = vsel %vm26, %v3947, 0.0
  %v4181 = vadd.f32 %v4179, %v4180
  %v4182 = vsel %vm26, %v3952, 0.0
  %v4183 = vadd.f32 %v4181, %v4182
  %v4184 = vsel %vm26, %v3957, 0.0
  %v4185 = vadd.f32 %v4183, %v4184
  %v4186 = vsel %vm26, %v3962, 0.0
  %v4187 = vadd.f32 %v4185, %v4186
  %v4188 = vsel %vm26, %v3967, 0.0
  %v4189 = vadd.f32 %v4187, %v4188
  %v4190 = vsel %vm26, %v3972, 0.0
  %v4191 = vadd.f32 %v4189, %v4190
  %v4192 = vsel %vm26, %v3977, 0.0
  %v4193 = vadd.f32 %v4191, %v4192
  %v4194 = vsel %vm26, %v3982, 0.0
  %v4195 = vadd.f32 %v4193, %v4194
  %v4196 = vsel %vm26, %v3987, 0.0
  %v4197 = vadd.f32 %v4195, %v4196
  %v4198 = vsel %vm26, %v3992, 0.0
  %v4199 = vadd.f32 %v4197, %v4198
  %v4200 = vsel %vm26, %v3997, 0.0
  %v4201 = vadd.f32 %v4199, %v4200
  %v4202 = vsel %vm26, %v4002, 0.0
  %v4203 = vadd.f32 %v4201, %v4202
  %v4204 = vsel %vm26, %v4007, 0.0
  %v4205 = vadd.f32 %v4203, %v4204
  %v4206 = vsel %vm26, %v4012, 0.0
  %v4207 = vadd.f32 %v4205, %v4206
  %v4208 = vsel %vm26, %v4017, 0.0
  %v4209 = vadd.f32 %v4207, %v4208
  %v4210 = vsel %vm26, %v4022, 0.0
  %v4211 = vadd.f32 %v4209, %v4210
  %v4212 = vsel %vm26, %v4027, 0.0
  %v4213 = vadd.f32 %v4211, %v4212
  %v4214 = vsel %vm26, %v4032, 0.0
  %v4215 = vadd.f32 %v4213, %v4214
  %v4216 = vsel %vm26, %v4037, 0.0
  %v4217 = vadd.f32 %v4215, %v4216
  %v4218 = vsel %vm26, %v4042, 0.0
  %v4219 = vadd.f32 %v4217, %v4218
  %v4220 = vsel %vm26, %v4047, 0.0
  %v4221 = vadd.f32 %v4219, %v4220
  %v4222 = vsel %vm26, %v4052, 0.0
  %v4223 = vadd.f32 %v4221, %v4222
  %v4224 = vsel %vm26, %v4057, 0.0
  %v4225 = vadd.f32 %v4223, %v4224
  %v4226 = vsel %vm26, %v4062, 0.0
  %v4227 = vadd.f32 %v4225, %v4226
  %v4228 = vsel %vm26, %v4067, 0.0
  %v4229 = vadd.f32 %v4227, %v4228
  %v4230 = vsel %vm26, %v4072, 0.0
  %v4231 = vadd.f32 %v4229, %v4230
  %v4232 = vsel %vm26, %v4077, 0.0
  %v4233 = vadd.f32 %v4231, %v4232
  %v4234 = vsel %vm26, %v4082, 0.0
  %v4235 = vadd.f32 %v4233, %v4234
  %v4236 = vsel %vm26, %v4087, 0.0
  %v4237 = vadd.f32 %v4235, %v4236
  %v4238 = vsel %vm26, %v4092, 0.0
  %v4239 = vadd.f32 %v4237, %v4238
  %v4240 = vsel %vm26, %v4097, 0.0
  %v4241 = vadd.f32 %v4239, %v4240
  %v4242 = vsel %vm26, %v4102, 0.0
  %v4243 = vadd.f32 %v4241, %v4242
  %v4244 = vsel %vm26, %v4107, 0.0
  %v4245 = vadd.f32 %v4243, %v4244
  %v4246 = vsel %vm26, %v4112, 0.0
  %v4247 = vadd.f32 %v4245, %v4246
  %v4248 = vsel %vm26, %v4117, 0.0
  %v4249 = vadd.f32 %v4247, %v4248
  %v4250 = vsel %vm26, %v4122, 0.0
  %v4251 = vadd.f32 %v4249, %v4250
  %v4252 = vrot.slane %v4251, 4
  %v4253 = vadd.f32 %v4251, %v4252
  %v4254 = vrot.slane %v4253, 2
  %v4255 = vadd.f32 %v4253, %v4254
  %v4256 = vrot.slane %v4255, 1
  %v4257 = vadd.f32 %v4255, %v4256
  %v4258 = vmul.f32 %v4257, 0.001953125
  %v4259 = vmul.f32 %v3807, %v3807
  %v4260 = vmul.f32 %v3812, %v3812
  %v4261 = vmul.f32 %v3817, %v3817
  %v4262 = vmul.f32 %v3822, %v3822
  %v4263 = vmul.f32 %v3827, %v3827
  %v4264 = vmul.f32 %v3832, %v3832
  %v4265 = vmul.f32 %v3837, %v3837
  %v4266 = vmul.f32 %v3842, %v3842
  %v4267 = vmul.f32 %v3847, %v3847
  %v4268 = vmul.f32 %v3852, %v3852
  %v4269 = vmul.f32 %v3857, %v3857
  %v4270 = vmul.f32 %v3862, %v3862
  %v4271 = vmul.f32 %v3867, %v3867
  %v4272 = vmul.f32 %v3872, %v3872
  %v4273 = vmul.f32 %v3877, %v3877
  %v4274 = vmul.f32 %v3882, %v3882
  %v4275 = vmul.f32 %v3887, %v3887
  %v4276 = vmul.f32 %v3892, %v3892
  %v4277 = vmul.f32 %v3897, %v3897
  %v4278 = vmul.f32 %v3902, %v3902
  %v4279 = vmul.f32 %v3907, %v3907
  %v4280 = vmul.f32 %v3912, %v3912
  %v4281 = vmul.f32 %v3917, %v3917
  %v4282 = vmul.f32 %v3922, %v3922
  %v4283 = vmul.f32 %v3927, %v3927
  %v4284 = vmul.f32 %v3932, %v3932
  %v4285 = vmul.f32 %v3937, %v3937
  %v4286 = vmul.f32 %v3942, %v3942
  %v4287 = vmul.f32 %v3947, %v3947
  %v4288 = vmul.f32 %v3952, %v3952
  %v4289 = vmul.f32 %v3957, %v3957
  %v4290 = vmul.f32 %v3962, %v3962
  %v4291 = vmul.f32 %v3967, %v3967
  %v4292 = vmul.f32 %v3972, %v3972
  %v4293 = vmul.f32 %v3977, %v3977
  %v4294 = vmul.f32 %v3982, %v3982
  %v4295 = vmul.f32 %v3987, %v3987
  %v4296 = vmul.f32 %v3992, %v3992
  %v4297 = vmul.f32 %v3997, %v3997
  %v4298 = vmul.f32 %v4002, %v4002
  %v4299 = vmul.f32 %v4007, %v4007
  %v4300 = vmul.f32 %v4012, %v4012
  %v4301 = vmul.f32 %v4017, %v4017
  %v4302 = vmul.f32 %v4022, %v4022
  %v4303 = vmul.f32 %v4027, %v4027
  %v4304 = vmul.f32 %v4032, %v4032
  %v4305 = vmul.f32 %v4037, %v4037
  %v4306 = vmul.f32 %v4042, %v4042
  %v4307 = vmul.f32 %v4047, %v4047
  %v4308 = vmul.f32 %v4052, %v4052
  %v4309 = vmul.f32 %v4057, %v4057
  %v4310 = vmul.f32 %v4062, %v4062
  %v4311 = vmul.f32 %v4067, %v4067
  %v4312 = vmul.f32 %v4072, %v4072
  %v4313 = vmul.f32 %v4077, %v4077
  %v4314 = vmul.f32 %v4082, %v4082
  %v4315 = vmul.f32 %v4087, %v4087
  %v4316 = vmul.f32 %v4092, %v4092
  %v4317 = vmul.f32 %v4097, %v4097
  %v4318 = vmul.f32 %v4102, %v4102
  %v4319 = vmul.f32 %v4107, %v4107
  %v4320 = vmul.f32 %v4112, %v4112
  %v4321 = vmul.f32 %v4117, %v4117
  %v4322 = vmul.f32 %v4122, %v4122
  %v4323 = vsel %vm26, %v4259, 0.0
  %v4324 = vsel %vm26, %v4260, 0.0
  %v4325 = vadd.f32 %v4323, %v4324
  %v4326 = vsel %vm26, %v4261, 0.0
  %v4327 = vadd.f32 %v4325, %v4326
  %v4328 = vsel %vm26, %v4262, 0.0
  %v4329 = vadd.f32 %v4327, %v4328
  %v4330 = vsel %vm26, %v4263, 0.0
  %v4331 = vadd.f32 %v4329, %v4330
  %v4332 = vsel %vm26, %v4264, 0.0
  %v4333 = vadd.f32 %v4331, %v4332
  %v4334 = vsel %vm26, %v4265, 0.0
  %v4335 = vadd.f32 %v4333, %v4334
  %v4336 = vsel %vm26, %v4266, 0.0
  %v4337 = vadd.f32 %v4335, %v4336
  %v4338 = vsel %vm26, %v4267, 0.0
  %v4339 = vadd.f32 %v4337, %v4338
  %v4340 = vsel %vm26, %v4268, 0.0
  %v4341 = vadd.f32 %v4339, %v4340
  %v4342 = vsel %vm26, %v4269, 0.0
  %v4343 = vadd.f32 %v4341, %v4342
  %v4344 = vsel %vm26, %v4270, 0.0
  %v4345 = vadd.f32 %v4343, %v4344
  %v4346 = vsel %vm26, %v4271, 0.0
  %v4347 = vadd.f32 %v4345, %v4346
  %v4348 = vsel %vm26, %v4272, 0.0
  %v4349 = vadd.f32 %v4347, %v4348
  %v4350 = vsel %vm26, %v4273, 0.0
  %v4351 = vadd.f32 %v4349, %v4350
  %v4352 = vsel %vm26, %v4274, 0.0
  %v4353 = vadd.f32 %v4351, %v4352
  %v4354 = vsel %vm26, %v4275, 0.0
  %v4355 = vadd.f32 %v4353, %v4354
  %v4356 = vsel %vm26, %v4276, 0.0
  %v4357 = vadd.f32 %v4355, %v4356
  %v4358 = vsel %vm26, %v4277, 0.0
  %v4359 = vadd.f32 %v4357, %v4358
  %v4360 = vsel %vm26, %v4278, 0.0
  %v4361 = vadd.f32 %v4359, %v4360
  %v4362 = vsel %vm26, %v4279, 0.0
  %v4363 = vadd.f32 %v4361, %v4362
  %v4364 = vsel %vm26, %v4280, 0.0
  %v4365 = vadd.f32 %v4363, %v4364
  %v4366 = vsel %vm26, %v4281, 0.0
  %v4367 = vadd.f32 %v4365, %v4366
  %v4368 = vsel %vm26, %v4282, 0.0
  %v4369 = vadd.f32 %v4367, %v4368
  %v4370 = vsel %vm26, %v4283, 0.0
  %v4371 = vadd.f32 %v4369, %v4370
  %v4372 = vsel %vm26, %v4284, 0.0
  %v4373 = vadd.f32 %v4371, %v4372
  %v4374 = vsel %vm26, %v4285, 0.0
  %v4375 = vadd.f32 %v4373, %v4374
  %v4376 = vsel %vm26, %v4286, 0.0
  %v4377 = vadd.f32 %v4375, %v4376
  %v4378 = vsel %vm26, %v4287, 0.0
  %v4379 = vadd.f32 %v4377, %v4378
  %v4380 = vsel %vm26, %v4288, 0.0
  %v4381 = vadd.f32 %v4379, %v4380
  %v4382 = vsel %vm26, %v4289, 0.0
  %v4383 = vadd.f32 %v4381, %v4382
  %v4384 = vsel %vm26, %v4290, 0.0
  %v4385 = vadd.f32 %v4383, %v4384
  %v4386 = vsel %vm26, %v4291, 0.0
  %v4387 = vadd.f32 %v4385, %v4386
  %v4388 = vsel %vm26, %v4292, 0.0
  %v4389 = vadd.f32 %v4387, %v4388
  %v4390 = vsel %vm26, %v4293, 0.0
  %v4391 = vadd.f32 %v4389, %v4390
  %v4392 = vsel %vm26, %v4294, 0.0
  %v4393 = vadd.f32 %v4391, %v4392
  %v4394 = vsel %vm26, %v4295, 0.0
  %v4395 = vadd.f32 %v4393, %v4394
  %v4396 = vsel %vm26, %v4296, 0.0
  %v4397 = vadd.f32 %v4395, %v4396
  %v4398 = vsel %vm26, %v4297, 0.0
  %v4399 = vadd.f32 %v4397, %v4398
  %v4400 = vsel %vm26, %v4298, 0.0
  %v4401 = vadd.f32 %v4399, %v4400
  %v4402 = vsel %vm26, %v4299, 0.0
  %v4403 = vadd.f32 %v4401, %v4402
  %v4404 = vsel %vm26, %v4300, 0.0
  %v4405 = vadd.f32 %v4403, %v4404
  %v4406 = vsel %vm26, %v4301, 0.0
  %v4407 = vadd.f32 %v4405, %v4406
  %v4408 = vsel %vm26, %v4302, 0.0
  %v4409 = vadd.f32 %v4407, %v4408
  %v4410 = vsel %vm26, %v4303, 0.0
  %v4411 = vadd.f32 %v4409, %v4410
  %v4412 = vsel %vm26, %v4304, 0.0
  %v4413 = vadd.f32 %v4411, %v4412
  %v4414 = vsel %vm26, %v4305, 0.0
  %v4415 = vadd.f32 %v4413, %v4414
  %v4416 = vsel %vm26, %v4306, 0.0
  %v4417 = vadd.f32 %v4415, %v4416
  %v4418 = vsel %vm26, %v4307, 0.0
  %v4419 = vadd.f32 %v4417, %v4418
  %v4420 = vsel %vm26, %v4308, 0.0
  %v4421 = vadd.f32 %v4419, %v4420
  %v4422 = vsel %vm26, %v4309, 0.0
  %v4423 = vadd.f32 %v4421, %v4422
  %v4424 = vsel %vm26, %v4310, 0.0
  %v4425 = vadd.f32 %v4423, %v4424
  %v4426 = vsel %vm26, %v4311, 0.0
  %v4427 = vadd.f32 %v4425, %v4426
  %v4428 = vsel %vm26, %v4312, 0.0
  %v4429 = vadd.f32 %v4427, %v4428
  %v4430 = vsel %vm26, %v4313, 0.0
  %v4431 = vadd.f32 %v4429, %v4430
  %v4432 = vsel %vm26, %v4314, 0.0
  %v4433 = vadd.f32 %v4431, %v4432
  %v4434 = vsel %vm26, %v4315, 0.0
  %v4435 = vadd.f32 %v4433, %v4434
  %v4436 = vsel %vm26, %v4316, 0.0
  %v4437 = vadd.f32 %v4435, %v4436
  %v4438 = vsel %vm26, %v4317, 0.0
  %v4439 = vadd.f32 %v4437, %v4438
  %v4440 = vsel %vm26, %v4318, 0.0
  %v4441 = vadd.f32 %v4439, %v4440
  %v4442 = vsel %vm26, %v4319, 0.0
  %v4443 = vadd.f32 %v4441, %v4442
  %v4444 = vsel %vm26, %v4320, 0.0
  %v4445 = vadd.f32 %v4443, %v4444
  %v4446 = vsel %vm26, %v4321, 0.0
  %v4447 = vadd.f32 %v4445, %v4446
  %v4448 = vsel %vm26, %v4322, 0.0
  %v4449 = vadd.f32 %v4447, %v4448
  %v4450 = vrot.slane %v4449, 4
  %v4451 = vadd.f32 %v4449, %v4450
  %v4452 = vrot.slane %v4451, 2
  %v4453 = vadd.f32 %v4451, %v4452
  %v4454 = vrot.slane %v4453, 1
  %v4455 = vadd.f32 %v4453, %v4454
  %v4456 = vmul.f32 %v4455, 0.001953125
  %v4457 = vmul.f32 %v4258, %v4258
  %v4458 = vsub.f32 %v4456, %v4457
  %v4459 = vld [vmem:[%s3] sm:$0x1]
  %v4460 = vadd.f32 %v4458, 1e-05
  %v4461 = vrsqrt.pop %v4460
  %v4462 = vmul.f32 %v4459, %v4461
  %v4463 = vld [vmem:[%s4] sm:$0x1]
  %v4464 = vmul.f32 %v4258, %v4462
  %v4465 = vsub.f32 %v4463, %v4464
  %v4467 = vlaneseq
  %v4468 = vshrl.u32 %v4467, 7
  %v4469 = vsub.s32 0, %v4468
  %v4470 = vrot.slane %v4462, %v4469
  %v4472 = vmul.f32 %v3807, %v4470
  %v4473 = vmul.f32 %v3812, %v4470
  %v4474 = vmul.f32 %v3817, %v4470
  %v4475 = vmul.f32 %v3822, %v4470
  %v4476 = vmul.f32 %v3827, %v4470
  %v4477 = vmul.f32 %v3832, %v4470
  %v4478 = vmul.f32 %v3837, %v4470
  %v4479 = vmul.f32 %v3842, %v4470
  %v4480 = vmul.f32 %v3847, %v4470
  %v4481 = vmul.f32 %v3852, %v4470
  %v4482 = vmul.f32 %v3857, %v4470
  %v4483 = vmul.f32 %v3862, %v4470
  %v4484 = vmul.f32 %v3867, %v4470
  %v4485 = vmul.f32 %v3872, %v4470
  %v4486 = vmul.f32 %v3877, %v4470
  %v4487 = vmul.f32 %v3882, %v4470
  %v4488 = vmul.f32 %v3887, %v4470
  %v4489 = vmul.f32 %v3892, %v4470
  %v4490 = vmul.f32 %v3897, %v4470
  %v4491 = vmul.f32 %v3902, %v4470
  %v4492 = vmul.f32 %v3907, %v4470
  %v4493 = vmul.f32 %v3912, %v4470
  %v4494 = vmul.f32 %v3917, %v4470
  %v4495 = vmul.f32 %v3922, %v4470
  %v4496 = vmul.f32 %v3927, %v4470
  %v4497 = vmul.f32 %v3932, %v4470
  %v4498 = vmul.f32 %v3937, %v4470
  %v4499 = vmul.f32 %v3942, %v4470
  %v4500 = vmul.f32 %v3947, %v4470
  %v4501 = vmul.f32 %v3952, %v4470
  %v4502 = vmul.f32 %v3957, %v4470
  %v4503 = vmul.f32 %v3962, %v4470
  %v4504 = vmul.f32 %v3967, %v4470
  %v4505 = vmul.f32 %v3972, %v4470
  %v4506 = vmul.f32 %v3977, %v4470
  %v4507 = vmul.f32 %v3982, %v4470
  %v4508 = vmul.f32 %v3987, %v4470
  %v4509 = vmul.f32 %v3992, %v4470
  %v4510 = vmul.f32 %v3997, %v4470
  %v4511 = vmul.f32 %v4002, %v4470
  %v4512 = vmul.f32 %v4007, %v4470
  %v4513 = vmul.f32 %v4012, %v4470
  %v4514 = vmul.f32 %v4017, %v4470
  %v4515 = vmul.f32 %v4022, %v4470
  %v4516 = vmul.f32 %v4027, %v4470
  %v4517 = vmul.f32 %v4032, %v4470
  %v4518 = vmul.f32 %v4037, %v4470
  %v4519 = vmul.f32 %v4042, %v4470
  %v4520 = vmul.f32 %v4047, %v4470
  %v4521 = vmul.f32 %v4052, %v4470
  %v4522 = vmul.f32 %v4057, %v4470
  %v4523 = vmul.f32 %v4062, %v4470
  %v4524 = vmul.f32 %v4067, %v4470
  %v4525 = vmul.f32 %v4072, %v4470
  %v4526 = vmul.f32 %v4077, %v4470
  %v4527 = vmul.f32 %v4082, %v4470
  %v4528 = vmul.f32 %v4087, %v4470
  %v4529 = vmul.f32 %v4092, %v4470
  %v4530 = vmul.f32 %v4097, %v4470
  %v4531 = vmul.f32 %v4102, %v4470
  %v4532 = vmul.f32 %v4107, %v4470
  %v4533 = vmul.f32 %v4112, %v4470
  %v4534 = vmul.f32 %v4117, %v4470
  %v4535 = vmul.f32 %v4122, %v4470
  %v4537 = vlaneseq
  %v4538 = vshrl.u32 %v4537, 7
  %v4539 = vsub.s32 0, %v4538
  %v4540 = vrot.slane %v4465, %v4539
  %v4542 = vadd.f32 %v4472, %v4540
  %v4543 = vadd.f32 %v4473, %v4540
  %v4544 = vadd.f32 %v4474, %v4540
  %v4545 = vadd.f32 %v4475, %v4540
  %v4546 = vadd.f32 %v4476, %v4540
  %v4547 = vadd.f32 %v4477, %v4540
  %v4548 = vadd.f32 %v4478, %v4540
  %v4549 = vadd.f32 %v4479, %v4540
  %v4550 = vadd.f32 %v4480, %v4540
  %v4551 = vadd.f32 %v4481, %v4540
  %v4552 = vadd.f32 %v4482, %v4540
  %v4553 = vadd.f32 %v4483, %v4540
  %v4554 = vadd.f32 %v4484, %v4540
  %v4555 = vadd.f32 %v4485, %v4540
  %v4556 = vadd.f32 %v4486, %v4540
  %v4557 = vadd.f32 %v4487, %v4540
  %v4558 = vadd.f32 %v4488, %v4540
  %v4559 = vadd.f32 %v4489, %v4540
  %v4560 = vadd.f32 %v4490, %v4540
  %v4561 = vadd.f32 %v4491, %v4540
  %v4562 = vadd.f32 %v4492, %v4540
  %v4563 = vadd.f32 %v4493, %v4540
  %v4564 = vadd.f32 %v4494, %v4540
  %v4565 = vadd.f32 %v4495, %v4540
  %v4566 = vadd.f32 %v4496, %v4540
  %v4567 = vadd.f32 %v4497, %v4540
  %v4568 = vadd.f32 %v4498, %v4540
  %v4569 = vadd.f32 %v4499, %v4540
  %v4570 = vadd.f32 %v4500, %v4540
  %v4571 = vadd.f32 %v4501, %v4540
  %v4572 = vadd.f32 %v4502, %v4540
  %v4573 = vadd.f32 %v4503, %v4540
  %v4574 = vadd.f32 %v4504, %v4540
  %v4575 = vadd.f32 %v4505, %v4540
  %v4576 = vadd.f32 %v4506, %v4540
  %v4577 = vadd.f32 %v4507, %v4540
  %v4578 = vadd.f32 %v4508, %v4540
  %v4579 = vadd.f32 %v4509, %v4540
  %v4580 = vadd.f32 %v4510, %v4540
  %v4581 = vadd.f32 %v4511, %v4540
  %v4582 = vadd.f32 %v4512, %v4540
  %v4583 = vadd.f32 %v4513, %v4540
  %v4584 = vadd.f32 %v4514, %v4540
  %v4585 = vadd.f32 %v4515, %v4540
  %v4586 = vadd.f32 %v4516, %v4540
  %v4587 = vadd.f32 %v4517, %v4540
  %v4588 = vadd.f32 %v4518, %v4540
  %v4589 = vadd.f32 %v4519, %v4540
  %v4590 = vadd.f32 %v4520, %v4540
  %v4591 = vadd.f32 %v4521, %v4540
  %v4592 = vadd.f32 %v4522, %v4540
  %v4593 = vadd.f32 %v4523, %v4540
  %v4594 = vadd.f32 %v4524, %v4540
  %v4595 = vadd.f32 %v4525, %v4540
  %v4596 = vadd.f32 %v4526, %v4540
  %v4597 = vadd.f32 %v4527, %v4540
  %v4598 = vadd.f32 %v4528, %v4540
  %v4599 = vadd.f32 %v4529, %v4540
  %v4600 = vadd.f32 %v4530, %v4540
  %v4601 = vadd.f32 %v4531, %v4540
  %v4602 = vadd.f32 %v4532, %v4540
  %v4603 = vadd.f32 %v4533, %v4540
  %v4604 = vadd.f32 %v4534, %v4540
  %v4605 = vadd.f32 %v4535, %v4540
  %v4606 = vmax.f32 %v4542, 0.0
  %v4607 = vmax.f32 %v4543, 0.0
  %v4608 = vmax.f32 %v4544, 0.0
  %v4609 = vmax.f32 %v4545, 0.0
  %v4610 = vmax.f32 %v4546, 0.0
  %v4611 = vmax.f32 %v4547, 0.0
  %v4612 = vmax.f32 %v4548, 0.0
  %v4613 = vmax.f32 %v4549, 0.0
  %v4614 = vmax.f32 %v4550, 0.0
  %v4615 = vmax.f32 %v4551, 0.0
  %v4616 = vmax.f32 %v4552, 0.0
  %v4617 = vmax.f32 %v4553, 0.0
  %v4618 = vmax.f32 %v4554, 0.0
  %v4619 = vmax.f32 %v4555, 0.0
  %v4620 = vmax.f32 %v4556, 0.0
  %v4621 = vmax.f32 %v4557, 0.0
  %v4622 = vmax.f32 %v4558, 0.0
  %v4623 = vmax.f32 %v4559, 0.0
  %v4624 = vmax.f32 %v4560, 0.0
  %v4625 = vmax.f32 %v4561, 0.0
  %v4626 = vmax.f32 %v4562, 0.0
  %v4627 = vmax.f32 %v4563, 0.0
  %v4628 = vmax.f32 %v4564, 0.0
  %v4629 = vmax.f32 %v4565, 0.0
  %v4630 = vmax.f32 %v4566, 0.0
  %v4631 = vmax.f32 %v4567, 0.0
  %v4632 = vmax.f32 %v4568, 0.0
  %v4633 = vmax.f32 %v4569, 0.0
  %v4634 = vmax.f32 %v4570, 0.0
  %v4635 = vmax.f32 %v4571, 0.0
  %v4636 = vmax.f32 %v4572, 0.0
  %v4637 = vmax.f32 %v4573, 0.0
  %v4638 = vmax.f32 %v4574, 0.0
  %v4639 = vmax.f32 %v4575, 0.0
  %v4640 = vmax.f32 %v4576, 0.0
  %v4641 = vmax.f32 %v4577, 0.0
  %v4642 = vmax.f32 %v4578, 0.0
  %v4643 = vmax.f32 %v4579, 0.0
  %v4644 = vmax.f32 %v4580, 0.0
  %v4645 = vmax.f32 %v4581, 0.0
  %v4646 = vmax.f32 %v4582, 0.0
  %v4647 = vmax.f32 %v4583, 0.0
  %v4648 = vmax.f32 %v4584, 0.0
  %v4649 = vmax.f32 %v4585, 0.0
  %v4650 = vmax.f32 %v4586, 0.0
  %v4651 = vmax.f32 %v4587, 0.0
  %v4652 = vmax.f32 %v4588, 0.0
  %v4653 = vmax.f32 %v4589, 0.0
  %v4654 = vmax.f32 %v4590, 0.0
  %v4655 = vmax.f32 %v4591, 0.0
  %v4656 = vmax.f32 %v4592, 0.0
  %v4657 = vmax.f32 %v4593, 0.0
  %v4658 = vmax.f32 %v4594, 0.0
  %v4659 = vmax.f32 %v4595, 0.0
  %v4660 = vmax.f32 %v4596, 0.0
  %v4661 = vmax.f32 %v4597, 0.0
  %v4662 = vmax.f32 %v4598, 0.0
  %v4663 = vmax.f32 %v4599, 0.0
  %v4664 = vmax.f32 %v4600, 0.0
  %v4665 = vmax.f32 %v4601, 0.0
  %v4666 = vmax.f32 %v4602, 0.0
  %v4667 = vmax.f32 %v4603, 0.0
  %v4668 = vmax.f32 %v4604, 0.0
  %v4669 = vmax.f32 %v4605, 0.0
  %4670 = vst.msk [vmem:[%s200 + $0x1] sm:$0xff] %vm26, %v4606
  %4671 = vst.msk [vmem:[%s200 + $0x9] sm:$0xff] %vm26, %v4607
  %4672 = vst.msk [vmem:[%s200 + $0x19] sm:$0xff] %vm26, %v4608
  %4673 = vst.msk [vmem:[%s200 + $0x21] sm:$0xff] %vm26, %v4609
  %4674 = vst.msk [vmem:[%s200 + $0x31] sm:$0xff] %vm26, %v4610
  %4675 = vst.msk [vmem:[%s200 + $0x39] sm:$0xff] %vm26, %v4611
  %4676 = vst.msk [vmem:[%s200 + $0x49] sm:$0xff] %vm26, %v4612
  %4677 = vst.msk [vmem:[%s200 + $0x51] sm:$0xff] %vm26, %v4613
  %4678 = vst.msk [vmem:[%s200 + $0x61] sm:$0xff] %vm26, %v4614
  %4679 = vst.msk [vmem:[%s200 + $0x69] sm:$0xff] %vm26, %v4615
  %4680 = vst.msk [vmem:[%s200 + $0x79] sm:$0xff] %vm26, %v4616
  %4681 = vst.msk [vmem:[%s200 + $0x81] sm:$0xff] %vm26, %v4617
  %4682 = vst.msk [vmem:[%s200 + $0x91] sm:$0xff] %vm26, %v4618
  %4683 = vst.msk [vmem:[%s200 + $0x99] sm:$0xff] %vm26, %v4619
  %4684 = vst.msk [vmem:[%s200 + $0xa9] sm:$0xff] %vm26, %v4620
  %4685 = vst.msk [vmem:[%s200 + $0xb1] sm:$0xff] %vm26, %v4621
  %4686 = vst.msk [vmem:[%s200 + $0xc1] sm:$0xff] %vm26, %v4622
  %4687 = vst.msk [vmem:[%s200 + $0xc9] sm:$0xff] %vm26, %v4623
  %4688 = vst.msk [vmem:[%s200 + $0xd9] sm:$0xff] %vm26, %v4624
  %4689 = vst.msk [vmem:[%s200 + $0xe1] sm:$0xff] %vm26, %v4625
  %4690 = vst.msk [vmem:[%s200 + $0xf1] sm:$0xff] %vm26, %v4626
  %4691 = vst.msk [vmem:[%s200 + $0xf9] sm:$0xff] %vm26, %v4627
  %4692 = vst.msk [vmem:[%s200 + $0x109] sm:$0xff] %vm26, %v4628
  %4693 = vst.msk [vmem:[%s200 + $0x111] sm:$0xff] %vm26, %v4629
  %4694 = vst.msk [vmem:[%s200 + $0x121] sm:$0xff] %vm26, %v4630
  %4695 = vst.msk [vmem:[%s200 + $0x129] sm:$0xff] %vm26, %v4631
  %4696 = vst.msk [vmem:[%s200 + $0x139] sm:$0xff] %vm26, %v4632
  %4697 = vst.msk [vmem:[%s200 + $0x141] sm:$0xff] %vm26, %v4633
  %4698 = vst.msk [vmem:[%s200 + $0x151] sm:$0xff] %vm26, %v4634
  %4699 = vst.msk [vmem:[%s200 + $0x159] sm:$0xff] %vm26, %v4635
  %4700 = vst.msk [vmem:[%s200 + $0x169] sm:$0xff] %vm26, %v4636
  %4701 = vst.msk [vmem:[%s200 + $0x171] sm:$0xff] %vm26, %v4637
  %4702 = vst.msk [vmem:[%s200 + $0x1b1] sm:$0xff] %vm26, %v4638
  %4703 = vst.msk [vmem:[%s200 + $0x1b9] sm:$0xff] %vm26, %v4639
  %4704 = vst.msk [vmem:[%s200 + $0x1c9] sm:$0xff] %vm26, %v4640
  %4705 = vst.msk [vmem:[%s200 + $0x1d1] sm:$0xff] %vm26, %v4641
  %4706 = vst.msk [vmem:[%s200 + $0x1e1] sm:$0xff] %vm26, %v4642
  %4707 = vst.msk [vmem:[%s200 + $0x1e9] sm:$0xff] %vm26, %v4643
  %4708 = vst.msk [vmem:[%s200 + $0x1f9] sm:$0xff] %vm26, %v4644
  %4709 = vst.msk [vmem:[%s200 + $0x201] sm:$0xff] %vm26, %v4645
  %4710 = vst.msk [vmem:[%s200 + $0x211] sm:$0xff] %vm26, %v4646
  %4711 = vst.msk [vmem:[%s200 + $0x219] sm:$0xff] %vm26, %v4647
  %4712 = vst.msk [vmem:[%s200 + $0x229] sm:$0xff] %vm26, %v4648
  %4713 = vst.msk [vmem:[%s200 + $0x231] sm:$0xff] %vm26, %v4649
  %4714 = vst.msk [vmem:[%s200 + $0x241] sm:$0xff] %vm26, %v4650
  %4715 = vst.msk [vmem:[%s200 + $0x249] sm:$0xff] %vm26, %v4651
  %4716 = vst.msk [vmem:[%s200 + $0x259] sm:$0xff] %vm26, %v4652
  %4717 = vst.msk [vmem:[%s200 + $0x261] sm:$0xff] %vm26, %v4653
  %4718 = vst.msk [vmem:[%s200 + $0x271] sm:$0xff] %vm26, %v4654
  %4719 = vst.msk [vmem:[%s200 + $0x279] sm:$0xff] %vm26, %v4655
  %4720 = vst.msk [vmem:[%s200 + $0x289] sm:$0xff] %vm26, %v4656
  %4721 = vst.msk [vmem:[%s200 + $0x291] sm:$0xff] %vm26, %v4657
  %4722 = vst.msk [vmem:[%s200 + $0x2a1] sm:$0xff] %vm26, %v4658
  %4723 = vst.msk [vmem:[%s200 + $0x2a9] sm:$0xff] %vm26, %v4659
  %4724 = vst.msk [vmem:[%s200 + $0x2b9] sm:$0xff] %vm26, %v4660
  %4725 = vst.msk [vmem:[%s200 + $0x2c1] sm:$0xff] %vm26, %v4661
  %4726 = vst.msk [vmem:[%s200 + $0x2d1] sm:$0xff] %vm26, %v4662
  %4727 = vst.msk [vmem:[%s200 + $0x2d9] sm:$0xff] %vm26, %v4663
  %4728 = vst.msk [vmem:[%s200 + $0x2e9] sm:$0xff] %vm26, %v4664
  %4729 = vst.msk [vmem:[%s200 + $0x2f1] sm:$0xff] %vm26, %v4665
  %4730 = vst.msk [vmem:[%s200 + $0x301] sm:$0xff] %vm26, %v4666
  %4731 = vst.msk [vmem:[%s200 + $0x309] sm:$0xff] %vm26, %v4667
  %4732 = vst.msk [vmem:[%s200 + $0x319] sm:$0xff] %vm26, %v4668
  %4733 = vst.msk [vmem:[%s200 + $0x321] sm:$0xff] %vm26, %v4669
  %v4734 = vld [vmem:[#allocation2] sm:$0xff]
  %v4735 = vld [vmem:[#allocation2 + $0x8] sm:$0xff]
  %v4736 = vld [vmem:[#allocation2 + $0x18] sm:$0xff]
  %v4737 = vld [vmem:[#allocation2 + $0x20] sm:$0xff]
  %v4738 = vld [vmem:[#allocation2 + $0x30] sm:$0xff]
  %v4739 = vld [vmem:[#allocation2 + $0x38] sm:$0xff]
  %v4740 = vld [vmem:[#allocation2 + $0x48] sm:$0xff]
  %v4741 = vld [vmem:[#allocation2 + $0x50] sm:$0xff]
  %v4742 = vld [vmem:[#allocation2 + $0x60] sm:$0xff]
  %v4743 = vld [vmem:[#allocation2 + $0x68] sm:$0xff]
  %v4744 = vld [vmem:[#allocation2 + $0x78] sm:$0xff]
  %v4745 = vld [vmem:[#allocation2 + $0x80] sm:$0xff]
  %v4746 = vld [vmem:[#allocation2 + $0x90] sm:$0xff]
  %v4747 = vld [vmem:[#allocation2 + $0x98] sm:$0xff]
  %v4748 = vld [vmem:[#allocation2 + $0xa8] sm:$0xff]
  %v4749 = vld [vmem:[#allocation2 + $0xb0] sm:$0xff]
  %v4750 = vld [vmem:[#allocation2 + $0xc0] sm:$0xff]
  %v4751 = vld [vmem:[#allocation2 + $0xc8] sm:$0xff]
  %v4752 = vld [vmem:[#allocation2 + $0xd8] sm:$0xff]
  %v4753 = vld [vmem:[#allocation2 + $0xe0] sm:$0xff]
  %v4754 = vld [vmem:[#allocation2 + $0xf0] sm:$0xff]
  %v4755 = vld [vmem:[#allocation2 + $0xf8] sm:$0xff]
  %v4756 = vld [vmem:[#allocation2 + $0x108] sm:$0xff]
  %v4757 = vld [vmem:[#allocation2 + $0x110] sm:$0xff]
  %v4758 = vld [vmem:[#allocation2 + $0x120] sm:$0xff]
  %v4759 = vld [vmem:[#allocation2 + $0x128] sm:$0xff]
  %v4760 = vld [vmem:[#allocation2 + $0x138] sm:$0xff]
  %v4761 = vld [vmem:[#allocation2 + $0x140] sm:$0xff]
  %v4762 = vld [vmem:[#allocation2 + $0x150] sm:$0xff]
  %v4763 = vld [vmem:[#allocation2 + $0x158] sm:$0xff]
  %v4764 = vld [vmem:[#allocation2 + $0x168] sm:$0xff]
  %v4765 = vld [vmem:[#allocation2 + $0x170] sm:$0xff]
  %v4766 = vld [vmem:[#allocation2 + $0x1b0] sm:$0xff]
  %v4767 = vld [vmem:[#allocation2 + $0x1b8] sm:$0xff]
  %v4768 = vld [vmem:[#allocation2 + $0x1c8] sm:$0xff]
  %v4769 = vld [vmem:[#allocation2 + $0x1d0] sm:$0xff]
  %v4770 = vld [vmem:[#allocation2 + $0x1e0] sm:$0xff]
  %v4771 = vld [vmem:[#allocation2 + $0x1e8] sm:$0xff]
  %v4772 = vld [vmem:[#allocation2 + $0x1f8] sm:$0xff]
  %v4773 = vld [vmem:[#allocation2 + $0x200] sm:$0xff]
  %v4774 = vld [vmem:[#allocation2 + $0x210] sm:$0xff]
  %v4775 = vld [vmem:[#allocation2 + $0x218] sm:$0xff]
  %v4776 = vld [vmem:[#allocation2 + $0x228] sm:$0xff]
  %v4777 = vld [vmem:[#allocation2 + $0x230] sm:$0xff]
  %v4778 = vld [vmem:[#allocation2 + $0x240] sm:$0xff]
  %v4779 = vld [vmem:[#allocation2 + $0x248] sm:$0xff]
  %v4780 = vld [vmem:[#allocation2 + $0x258] sm:$0xff]
  %v4781 = vld [vmem:[#allocation2 + $0x260] sm:$0xff]
  %v4782 = vld [vmem:[#allocation2 + $0x270] sm:$0xff]
  %v4783 = vld [vmem:[#allocation2 + $0x278] sm:$0xff]
  %v4784 = vld [vmem:[#allocation2 + $0x288] sm:$0xff]
  %v4785 = vld [vmem:[#allocation2 + $0x290] sm:$0xff]
  %v4786 = vld [vmem:[#allocation2 + $0x2a0] sm:$0xff]
  %v4787 = vld [vmem:[#allocation2 + $0x2a8] sm:$0xff]
  %v4788 = vld [vmem:[#allocation2 + $0x2b8] sm:$0xff]
  %v4789 = vld [vmem:[#allocation2 + $0x2c0] sm:$0xff]
  %v4790 = vld [vmem:[#allocation2 + $0x2d0] sm:$0xff]
  %v4791 = vld [vmem:[#allocation2 + $0x2d8] sm:$0xff]
  %v4792 = vld [vmem:[#allocation2 + $0x2e8] sm:$0xff]
  %v4793 = vld [vmem:[#allocation2 + $0x2f0] sm:$0xff]
  %v4794 = vld [vmem:[#allocation2 + $0x300] sm:$0xff]
  %v4795 = vld [vmem:[#allocation2 + $0x308] sm:$0xff]
  %v4796 = vld [vmem:[#allocation2 + $0x318] sm:$0xff]
  %v4797 = vld [vmem:[#allocation2 + $0x320] sm:$0xff]
  %4798 = vst.msk [vmem:[#allocation3] sm:$0xff] %vm26, %v4734
  %4799 = vst.msk [vmem:[#allocation3 + $0x8] sm:$0xff] %vm26, %v4735
  %4800 = vst.msk [vmem:[#allocation3 + $0x10] sm:$0xff] %vm26, %v4736
  %4801 = vst.msk [vmem:[#allocation3 + $0x18] sm:$0xff] %vm26, %v4737
  %4802 = vst.msk [vmem:[#allocation3 + $0x20] sm:$0xff] %vm26, %v4738
  %4803 = vst.msk [vmem:[#allocation3 + $0x28] sm:$0xff] %vm26, %v4739
  %4804 = vst.msk [vmem:[#allocation3 + $0x30] sm:$0xff] %vm26, %v4740
  %4805 = vst.msk [vmem:[#allocation3 + $0x38] sm:$0xff] %vm26, %v4741
  %4806 = vst.msk [vmem:[#allocation3 + $0x40] sm:$0xff] %vm26, %v4742
  %4807 = vst.msk [vmem:[#allocation3 + $0x48] sm:$0xff] %vm26, %v4743
  %4808 = vst.msk [vmem:[#allocation3 + $0x50] sm:$0xff] %vm26, %v4744
  %4809 = vst.msk [vmem:[#allocation3 + $0x58] sm:$0xff] %vm26, %v4745
  %4810 = vst.msk [vmem:[#allocation3 + $0x60] sm:$0xff] %vm26, %v4746
  %4811 = vst.msk [vmem:[#allocation3 + $0x68] sm:$0xff] %vm26, %v4747
  %4812 = vst.msk [vmem:[#allocation3 + $0x70] sm:$0xff] %vm26, %v4748
  %4813 = vst.msk [vmem:[#allocation3 + $0x78] sm:$0xff] %vm26, %v4749
  %4814 = vst.msk [vmem:[#allocation3 + $0x80] sm:$0xff] %vm26, %v4750
  %4815 = vst.msk [vmem:[#allocation3 + $0x88] sm:$0xff] %vm26, %v4751
  %4816 = vst.msk [vmem:[#allocation3 + $0x90] sm:$0xff] %vm26, %v4752
  %4817 = vst.msk [vmem:[#allocation3 + $0x98] sm:$0xff] %vm26, %v4753
  %4818 = vst.msk [vmem:[#allocation3 + $0xa0] sm:$0xff] %vm26, %v4754
  %4819 = vst.msk [vmem:[#allocation3 + $0xa8] sm:$0xff] %vm26, %v4755
  %4820 = vst.msk [vmem:[#allocation3 + $0xb0] sm:$0xff] %vm26, %v4756
  %4821 = vst.msk [vmem:[#allocation3 + $0xb8] sm:$0xff] %vm26, %v4757
  %4822 = vst.msk [vmem:[#allocation3 + $0xc0] sm:$0xff] %vm26, %v4758
  %4823 = vst.msk [vmem:[#allocation3 + $0xc8] sm:$0xff] %vm26, %v4759
  %4824 = vst.msk [vmem:[#allocation3 + $0xd0] sm:$0xff] %vm26, %v4760
  %4825 = vst.msk [vmem:[#allocation3 + $0xd8] sm:$0xff] %vm26, %v4761
  %4826 = vst.msk [vmem:[#allocation3 + $0xe0] sm:$0xff] %vm26, %v4762
  %4827 = vst.msk [vmem:[#allocation3 + $0xe8] sm:$0xff] %vm26, %v4763
  %4828 = vst.msk [vmem:[#allocation3 + $0xf0] sm:$0xff] %vm26, %v4764
  %4829 = vst.msk [vmem:[#allocation3 + $0xf8] sm:$0xff] %vm26, %v4765
  %4830 = vst.msk [vmem:[#allocation3 + $0x100] sm:$0xff] %vm26, %v4766
  %4831 = vst.msk [vmem:[#allocation3 + $0x108] sm:$0xff] %vm26, %v4767
  %4832 = vst.msk [vmem:[#allocation3 + $0x110] sm:$0xff] %vm26, %v4768
  %4833 = vst.msk [vmem:[#allocation3 + $0x118] sm:$0xff] %vm26, %v4769
  %4834 = vst.msk [vmem:[#allocation3 + $0x120] sm:$0xff] %vm26, %v4770
  %4835 = vst.msk [vmem:[#allocation3 + $0x128] sm:$0xff] %vm26, %v4771
  %4836 = vst.msk [vmem:[#allocation3 + $0x130] sm:$0xff] %vm26, %v4772
  %4837 = vst.msk [vmem:[#allocation3 + $0x138] sm:$0xff] %vm26, %v4773
  %4838 = vst.msk [vmem:[#allocation3 + $0x140] sm:$0xff] %vm26, %v4774
  %4839 = vst.msk [vmem:[#allocation3 + $0x148] sm:$0xff] %vm26, %v4775
  %4840 = vst.msk [vmem:[#allocation3 + $0x150] sm:$0xff] %vm26, %v4776
  %4841 = vst.msk [vmem:[#allocation3 + $0x158] sm:$0xff] %vm26, %v4777
  %4842 = vst.msk [vmem:[#allocation3 + $0x160] sm:$0xff] %vm26, %v4778
  %4843 = vst.msk [vmem:[#allocation3 + $0x168] sm:$0xff] %vm26, %v4779
  %4844 = vst.msk [vmem:[#allocation3 + $0x170] sm:$0xff] %vm26, %v4780
  %4845 = vst.msk [vmem:[#allocation3 + $0x178] sm:$0xff] %vm26, %v4781
  %4846 = vst.msk [vmem:[#allocation3 + $0x180] sm:$0xff] %vm26, %v4782
  %4847 = vst.msk [vmem:[#allocation3 + $0x188] sm:$0xff] %vm26, %v4783
  %4848 = vst.msk [vmem:[#allocation3 + $0x190] sm:$0xff] %vm26, %v4784
  %4849 = vst.msk [vmem:[#allocation3 + $0x198] sm:$0xff] %vm26, %v4785
  %4850 = vst.msk [vmem:[#allocation3 + $0x1a0] sm:$0xff] %vm26, %v4786
  %4851 = vst.msk [vmem:[#allocation3 + $0x1a8] sm:$0xff] %vm26, %v4787
  %4852 = vst.msk [vmem:[#allocation3 + $0x1b0] sm:$0xff] %vm26, %v4788
  %4853 = vst.msk [vmem:[#allocation3 + $0x1b8] sm:$0xff] %vm26, %v4789
  %4854 = vst.msk [vmem:[#allocation3 + $0x1c0] sm:$0xff] %vm26, %v4790
  %4855 = vst.msk [vmem:[#allocation3 + $0x1c8] sm:$0xff] %vm26, %v4791
  %4856 = vst.msk [vmem:[#allocation3 + $0x1d0] sm:$0xff] %vm26, %v4792
  %4857 = vst.msk [vmem:[#allocation3 + $0x1d8] sm:$0xff] %vm26, %v4793
  %4858 = vst.msk [vmem:[#allocation3 + $0x1e0] sm:$0xff] %vm26, %v4794
  %4859 = vst.msk [vmem:[#allocation3 + $0x1e8] sm:$0xff] %vm26, %v4795
  %4860 = vst.msk [vmem:[#allocation3 + $0x1f0] sm:$0xff] %vm26, %v4796
  %4861 = vst.msk [vmem:[#allocation3 + $0x1f8] sm:$0xff] %vm26, %v4797
  %v4862 = vld [vmem:[#allocation2 + $0x1] sm:$0xff]
  %v4863 = vld [vmem:[#allocation2 + $0x9] sm:$0xff]
  %v4864 = vld [vmem:[#allocation2 + $0x19] sm:$0xff]
  %v4865 = vld [vmem:[#allocation2 + $0x21] sm:$0xff]
  %v4866 = vld [vmem:[#allocation2 + $0x31] sm:$0xff]
  %v4867 = vld [vmem:[#allocation2 + $0x39] sm:$0xff]
  %v4868 = vld [vmem:[#allocation2 + $0x49] sm:$0xff]
  %v4869 = vld [vmem:[#allocation2 + $0x51] sm:$0xff]
  %v4870 = vld [vmem:[#allocation2 + $0x61] sm:$0xff]
  %v4871 = vld [vmem:[#allocation2 + $0x69] sm:$0xff]
  %v4872 = vld [vmem:[#allocation2 + $0x79] sm:$0xff]
  %v4873 = vld [vmem:[#allocation2 + $0x81] sm:$0xff]
  %v4874 = vld [vmem:[#allocation2 + $0x91] sm:$0xff]
  %v4875 = vld [vmem:[#allocation2 + $0x99] sm:$0xff]
  %v4876 = vld [vmem:[#allocation2 + $0xa9] sm:$0xff]
  %v4877 = vld [vmem:[#allocation2 + $0xb1] sm:$0xff]
  %v4878 = vld [vmem:[#allocation2 + $0xc1] sm:$0xff]
  %v4879 = vld [vmem:[#allocation2 + $0xc9] sm:$0xff]
  %v4880 = vld [vmem:[#allocation2 + $0xd9] sm:$0xff]
  %v4881 = vld [vmem:[#allocation2 + $0xe1] sm:$0xff]
  %v4882 = vld [vmem:[#allocation2 + $0xf1] sm:$0xff]
  %v4883 = vld [vmem:[#allocation2 + $0xf9] sm:$0xff]
  %v4884 = vld [vmem:[#allocation2 + $0x109] sm:$0xff]
  %v4885 = vld [vmem:[#allocation2 + $0x111] sm:$0xff]
  %v4886 = vld [vmem:[#allocation2 + $0x121] sm:$0xff]
  %v4887 = vld [vmem:[#allocation2 + $0x129] sm:$0xff]
  %v4888 = vld [vmem:[#allocation2 + $0x139] sm:$0xff]
  %v4889 = vld [vmem:[#allocation2 + $0x141] sm:$0xff]
  %v4890 = vld [vmem:[#allocation2 + $0x151] sm:$0xff]
  %v4891 = vld [vmem:[#allocation2 + $0x159] sm:$0xff]
  %v4892 = vld [vmem:[#allocation2 + $0x169] sm:$0xff]
  %v4893 = vld [vmem:[#allocation2 + $0x171] sm:$0xff]
  %v4894 = vld [vmem:[#allocation2 + $0x1b1] sm:$0xff]
  %v4895 = vld [vmem:[#allocation2 + $0x1b9] sm:$0xff]
  %v4896 = vld [vmem:[#allocation2 + $0x1c9] sm:$0xff]
  %v4897 = vld [vmem:[#allocation2 + $0x1d1] sm:$0xff]
  %v4898 = vld [vmem:[#allocation2 + $0x1e1] sm:$0xff]
  %v4899 = vld [vmem:[#allocation2 + $0x1e9] sm:$0xff]
  %v4900 = vld [vmem:[#allocation2 + $0x1f9] sm:$0xff]
  %v4901 = vld [vmem:[#allocation2 + $0x201] sm:$0xff]
  %v4902 = vld [vmem:[#allocation2 + $0x211] sm:$0xff]
  %v4903 = vld [vmem:[#allocation2 + $0x219] sm:$0xff]
  %v4904 = vld [vmem:[#allocation2 + $0x229] sm:$0xff]
  %v4905 = vld [vmem:[#allocation2 + $0x231] sm:$0xff]
  %v4906 = vld [vmem:[#allocation2 + $0x241] sm:$0xff]
  %v4907 = vld [vmem:[#allocation2 + $0x249] sm:$0xff]
  %v4908 = vld [vmem:[#allocation2 + $0x259] sm:$0xff]
  %v4909 = vld [vmem:[#allocation2 + $0x261] sm:$0xff]
  %v4910 = vld [vmem:[#allocation2 + $0x271] sm:$0xff]
  %v4911 = vld [vmem:[#allocation2 + $0x279] sm:$0xff]
  %v4912 = vld [vmem:[#allocation2 + $0x289] sm:$0xff]
  %v4913 = vld [vmem:[#allocation2 + $0x291] sm:$0xff]
  %v4914 = vld [vmem:[#allocation2 + $0x2a1] sm:$0xff]
  %v4915 = vld [vmem:[#allocation2 + $0x2a9] sm:$0xff]
  %v4916 = vld [vmem:[#allocation2 + $0x2b9] sm:$0xff]
  %v4917 = vld [vmem:[#allocation2 + $0x2c1] sm:$0xff]
  %v4918 = vld [vmem:[#allocation2 + $0x2d1] sm:$0xff]
  %v4919 = vld [vmem:[#allocation2 + $0x2d9] sm:$0xff]
  %v4920 = vld [vmem:[#allocation2 + $0x2e9] sm:$0xff]
  %v4921 = vld [vmem:[#allocation2 + $0x2f1] sm:$0xff]
  %v4922 = vld [vmem:[#allocation2 + $0x301] sm:$0xff]
  %v4923 = vld [vmem:[#allocation2 + $0x309] sm:$0xff]
  %v4924 = vld [vmem:[#allocation2 + $0x319] sm:$0xff]
  %v4925 = vld [vmem:[#allocation2 + $0x321] sm:$0xff]
  %4990 = vrot.lane.b32.xlu0 %v4862, 4
  %v4991 = vpop.permute.xlu0 %4990
  %4992 = vrot.lane.b32.xlu0 %v4863, 4
  %v4993 = vpop.permute.xlu0 %4992
  %4994 = vrot.lane.b32.xlu0 %v4864, 4
  %v4995 = vpop.permute.xlu0 %4994
  %4996 = vrot.lane.b32.xlu0 %v4865, 4
  %v4997 = vpop.permute.xlu0 %4996
  %4998 = vrot.lane.b32.xlu0 %v4866, 4
  %v4999 = vpop.permute.xlu0 %4998
  %5000 = vrot.lane.b32.xlu0 %v4867, 4
  %v5001 = vpop.permute.xlu0 %5000
  %5002 = vrot.lane.b32.xlu0 %v4868, 4
  %v5003 = vpop.permute.xlu0 %5002
  %5004 = vrot.lane.b32.xlu0 %v4869, 4
  %v5005 = vpop.permute.xlu0 %5004
  %5006 = vrot.lane.b32.xlu0 %v4870, 4
  %v5007 = vpop.permute.xlu0 %5006
  %5008 = vrot.lane.b32.xlu0 %v4871, 4
  %v5009 = vpop.permute.xlu0 %5008
  %5010 = vrot.lane.b32.xlu0 %v4872, 4
  %v5011 = vpop.permute.xlu0 %5010
  %5012 = vrot.lane.b32.xlu0 %v4873, 4
  %v5013 = vpop.permute.xlu0 %5012
  %5014 = vrot.lane.b32.xlu0 %v4874, 4
  %v5015 = vpop.permute.xlu0 %5014
  %5016 = vrot.lane.b32.xlu0 %v4875, 4
  %v5017 = vpop.permute.xlu0 %5016
  %5018 = vrot.lane.b32.xlu0 %v4876, 4
  %v5019 = vpop.permute.xlu0 %5018
  %5020 = vrot.lane.b32.xlu0 %v4877, 4
  %v5021 = vpop.permute.xlu0 %5020
  %5022 = vrot.lane.b32.xlu0 %v4878, 4
  %v5023 = vpop.permute.xlu0 %5022
  %5024 = vrot.lane.b32.xlu0 %v4879, 4
  %v5025 = vpop.permute.xlu0 %5024
  %5026 = vrot.lane.b32.xlu0 %v4880, 4
  %v5027 = vpop.permute.xlu0 %5026
  %5028 = vrot.lane.b32.xlu0 %v4881, 4
  %v5029 = vpop.permute.xlu0 %5028
  %5030 = vrot.lane.b32.xlu0 %v4882, 4
  %v5031 = vpop.permute.xlu0 %5030
  %5032 = vrot.lane.b32.xlu0 %v4883, 4
  %v5033 = vpop.permute.xlu0 %5032
  %5034 = vrot.lane.b32.xlu0 %v4884, 4
  %v5035 = vpop.permute.xlu0 %5034
  %5036 = vrot.lane.b32.xlu0 %v4885, 4
  %v5037 = vpop.permute.xlu0 %5036
  %5038 = vrot.lane.b32.xlu0 %v4886, 4
  %v5039 = vpop.permute.xlu0 %5038
  %5040 = vrot.lane.b32.xlu0 %v4887, 4
  %v5041 = vpop.permute.xlu0 %5040
  %5042 = vrot.lane.b32.xlu0 %v4888, 4
  %v5043 = vpop.permute.xlu0 %5042
  %5044 = vrot.lane.b32.xlu0 %v4889, 4
  %v5045 = vpop.permute.xlu0 %5044
  %5046 = vrot.lane.b32.xlu0 %v4890, 4
  %v5047 = vpop.permute.xlu0 %5046
  %5048 = vrot.lane.b32.xlu0 %v4891, 4
  %v5049 = vpop.permute.xlu0 %5048
  %5050 = vrot.lane.b32.xlu0 %v4892, 4
  %v5051 = vpop.permute.xlu0 %5050
  %5052 = vrot.lane.b32.xlu0 %v4893, 4
  %v5053 = vpop.permute.xlu0 %5052
  %5054 = vrot.lane.b32.xlu0 %v4894, 4
  %v5055 = vpop.permute.xlu0 %5054
  %5056 = vrot.lane.b32.xlu0 %v4895, 4
  %v5057 = vpop.permute.xlu0 %5056
  %5058 = vrot.lane.b32.xlu0 %v4896, 4
  %v5059 = vpop.permute.xlu0 %5058
  %5060 = vrot.lane.b32.xlu0 %v4897, 4
  %v5061 = vpop.permute.xlu0 %5060
  %5062 = vrot.lane.b32.xlu0 %v4898, 4
  %v5063 = vpop.permute.xlu0 %5062
  %5064 = vrot.lane.b32.xlu0 %v4899, 4
  %v5065 = vpop.permute.xlu0 %5064
  %5066 = vrot.lane.b32.xlu0 %v4900, 4
  %v5067 = vpop.permute.xlu0 %5066
  %5068 = vrot.lane.b32.xlu0 %v4901, 4
  %v5069 = vpop.permute.xlu0 %5068
  %5070 = vrot.lane.b32.xlu0 %v4902, 4
  %v5071 = vpop.permute.xlu0 %5070
  %5072 = vrot.lane.b32.xlu0 %v4903, 4
  %v5073 = vpop.permute.xlu0 %5072
  %5074 = vrot.lane.b32.xlu0 %v4904, 4
  %v5075 = vpop.permute.xlu0 %5074
  %5076 = vrot.lane.b32.xlu0 %v4905, 4
  %v5077 = vpop.permute.xlu0 %5076
  %5078 = vrot.lane.b32.xlu0 %v4906, 4
  %v5079 = vpop.permute.xlu0 %5078
  %5080 = vrot.lane.b32.xlu0 %v4907, 4
  %v5081 = vpop.permute.xlu0 %5080
  %5082 = vrot.lane.b32.xlu0 %v4908, 4
  %v5083 = vpop.permute.xlu0 %5082
  %5084 = vrot.lane.b32.xlu0 %v4909, 4
  %v5085 = vpop.permute.xlu0 %5084
  %5086 = vrot.lane.b32.xlu0 %v4910, 4
  %v5087 = vpop.permute.xlu0 %5086
  %5088 = vrot.lane.b32.xlu0 %v4911, 4
  %v5089 = vpop.permute.xlu0 %5088
  %5090 = vrot.lane.b32.xlu0 %v4912, 4
  %v5091 = vpop.permute.xlu0 %5090
  %5092 = vrot.lane.b32.xlu0 %v4913, 4
  %v5093 = vpop.permute.xlu0 %5092
  %5094 = vrot.lane.b32.xlu0 %v4914, 4
  %v5095 = vpop.permute.xlu0 %5094
  %5096 = vrot.lane.b32.xlu0 %v4915, 4
  %v5097 = vpop.permute.xlu0 %5096
  %5098 = vrot.lane.b32.xlu0 %v4916, 4
  %v5099 = vpop.permute.xlu0 %5098
  %5100 = vrot.lane.b32.xlu0 %v4917, 4
  %v5101 = vpop.permute.xlu0 %5100
  %5102 = vrot.lane.b32.xlu0 %v4918, 4
  %v5103 = vpop.permute.xlu0 %5102
  %5104 = vrot.lane.b32.xlu0 %v4919, 4
  %v5105 = vpop.permute.xlu0 %5104
  %5106 = vrot.lane.b32.xlu0 %v4920, 4
  %v5107 = vpop.permute.xlu0 %5106
  %5108 = vrot.lane.b32.xlu0 %v4921, 4
  %v5109 = vpop.permute.xlu0 %5108
  %5110 = vrot.lane.b32.xlu0 %v4922, 4
  %v5111 = vpop.permute.xlu0 %5110
  %5112 = vrot.lane.b32.xlu0 %v4923, 4
  %v5113 = vpop.permute.xlu0 %5112
  %5114 = vrot.lane.b32.xlu0 %v4924, 4
  %v5115 = vpop.permute.xlu0 %5114
  %5116 = vrot.lane.b32.xlu0 %v4925, 4
  %v5117 = vpop.permute.xlu0 %5116
  %5182 = vst.msk [vmem:[#allocation3] sm:$0xff] %vm713, %v4991
  %5183 = vst.msk [vmem:[#allocation3 + $0x8] sm:$0xff] %vm713, %v4993
  %5184 = vst.msk [vmem:[#allocation3 + $0x10] sm:$0xff] %vm713, %v4995
  %5185 = vst.msk [vmem:[#allocation3 + $0x18] sm:$0xff] %vm713, %v4997
  %5186 = vst.msk [vmem:[#allocation3 + $0x20] sm:$0xff] %vm713, %v4999
  %5187 = vst.msk [vmem:[#allocation3 + $0x28] sm:$0xff] %vm713, %v5001
  %5188 = vst.msk [vmem:[#allocation3 + $0x30] sm:$0xff] %vm713, %v5003
  %5189 = vst.msk [vmem:[#allocation3 + $0x38] sm:$0xff] %vm713, %v5005
  %5190 = vst.msk [vmem:[#allocation3 + $0x40] sm:$0xff] %vm713, %v5007
  %5191 = vst.msk [vmem:[#allocation3 + $0x48] sm:$0xff] %vm713, %v5009
  %5192 = vst.msk [vmem:[#allocation3 + $0x50] sm:$0xff] %vm713, %v5011
  %5193 = vst.msk [vmem:[#allocation3 + $0x58] sm:$0xff] %vm713, %v5013
  %5194 = vst.msk [vmem:[#allocation3 + $0x60] sm:$0xff] %vm713, %v5015
  %5195 = vst.msk [vmem:[#allocation3 + $0x68] sm:$0xff] %vm713, %v5017
  %5196 = vst.msk [vmem:[#allocation3 + $0x70] sm:$0xff] %vm713, %v5019
  %5197 = vst.msk [vmem:[#allocation3 + $0x78] sm:$0xff] %vm713, %v5021
  %5198 = vst.msk [vmem:[#allocation3 + $0x80] sm:$0xff] %vm713, %v5023
  %5199 = vst.msk [vmem:[#allocation3 + $0x88] sm:$0xff] %vm713, %v5025
  %5200 = vst.msk [vmem:[#allocation3 + $0x90] sm:$0xff] %vm713, %v5027
  %5201 = vst.msk [vmem:[#allocation3 + $0x98] sm:$0xff] %vm713, %v5029
  %5202 = vst.msk [vmem:[#allocation3 + $0xa0] sm:$0xff] %vm713, %v5031
  %5203 = vst.msk [vmem:[#allocation3 + $0xa8] sm:$0xff] %vm713, %v5033
  %5204 = vst.msk [vmem:[#allocation3 + $0xb0] sm:$0xff] %vm713, %v5035
  %5205 = vst.msk [vmem:[#allocation3 + $0xb8] sm:$0xff] %vm713, %v5037
  %5206 = vst.msk [vmem:[#allocation3 + $0xc0] sm:$0xff] %vm713, %v5039
  %5207 = vst.msk [vmem:[#allocation3 + $0xc8] sm:$0xff] %vm713, %v5041
  %5208 = vst.msk [vmem:[#allocation3 + $0xd0] sm:$0xff] %vm713, %v5043
  %5209 = vst.msk [vmem:[#allocation3 + $0xd8] sm:$0xff] %vm713, %v5045
  %5210 = vst.msk [vmem:[#allocation3 + $0xe0] sm:$0xff] %vm713, %v5047
  %5211 = vst.msk [vmem:[#allocation3 + $0xe8] sm:$0xff] %vm713, %v5049
  %5212 = vst.msk [vmem:[#allocation3 + $0xf0] sm:$0xff] %vm713, %v5051
  %5213 = vst.msk [vmem:[#allocation3 + $0xf8] sm:$0xff] %vm713, %v5053
  %5214 = vst.msk [vmem:[#allocation3 + $0x100] sm:$0xff] %vm713, %v5055
  %5215 = vst.msk [vmem:[#allocation3 + $0x108] sm:$0xff] %vm713, %v5057
  %5216 = vst.msk [vmem:[#allocation3 + $0x110] sm:$0xff] %vm713, %v5059
  %5217 = vst.msk [vmem:[#allocation3 + $0x118] sm:$0xff] %vm713, %v5061
  %5218 = vst.msk [vmem:[#allocation3 + $0x120] sm:$0xff] %vm713, %v5063
  %5219 = vst.msk [vmem:[#allocation3 + $0x128] sm:$0xff] %vm713, %v5065
  %5220 = vst.msk [vmem:[#allocation3 + $0x130] sm:$0xff] %vm713, %v5067
  %5221 = vst.msk [vmem:[#allocation3 + $0x138] sm:$0xff] %vm713, %v5069
  %5222 = vst.msk [vmem:[#allocation3 + $0x140] sm:$0xff] %vm713, %v5071
  %5223 = vst.msk [vmem:[#allocation3 + $0x148] sm:$0xff] %vm713, %v5073
  %5224 = vst.msk [vmem:[#allocation3 + $0x150] sm:$0xff] %vm713, %v5075
  %5225 = vst.msk [vmem:[#allocation3 + $0x158] sm:$0xff] %vm713, %v5077
  %5226 = vst.msk [vmem:[#allocation3 + $0x160] sm:$0xff] %vm713, %v5079
  %5227 = vst.msk [vmem:[#allocation3 + $0x168] sm:$0xff] %vm713, %v5081
  %5228 = vst.msk [vmem:[#allocation3 + $0x170] sm:$0xff] %vm713, %v5083
  %5229 = vst.msk [vmem:[#allocation3 + $0x178] sm:$0xff] %vm713, %v5085
  %5230 = vst.msk [vmem:[#allocation3 + $0x180] sm:$0xff] %vm713, %v5087
  %5231 = vst.msk [vmem:[#allocation3 + $0x188] sm:$0xff] %vm713, %v5089
  %5232 = vst.msk [vmem:[#allocation3 + $0x190] sm:$0xff] %vm713, %v5091
  %5233 = vst.msk [vmem:[#allocation3 + $0x198] sm:$0xff] %vm713, %v5093
  %5234 = vst.msk [vmem:[#allocation3 + $0x1a0] sm:$0xff] %vm713, %v5095
  %5235 = vst.msk [vmem:[#allocation3 + $0x1a8] sm:$0xff] %vm713, %v5097
  %5236 = vst.msk [vmem:[#allocation3 + $0x1b0] sm:$0xff] %vm713, %v5099
  %5237 = vst.msk [vmem:[#allocation3 + $0x1b8] sm:$0xff] %vm713, %v5101
  %5238 = vst.msk [vmem:[#allocation3 + $0x1c0] sm:$0xff] %vm713, %v5103
  %5239 = vst.msk [vmem:[#allocation3 + $0x1c8] sm:$0xff] %vm713, %v5105
  %5240 = vst.msk [vmem:[#allocation3 + $0x1d0] sm:$0xff] %vm713, %v5107
  %5241 = vst.msk [vmem:[#allocation3 + $0x1d8] sm:$0xff] %vm713, %v5109
  %5242 = vst.msk [vmem:[#allocation3 + $0x1e0] sm:$0xff] %vm713, %v5111
  %5243 = vst.msk [vmem:[#allocation3 + $0x1e8] sm:$0xff] %vm713, %v5113
  %5244 = vst.msk [vmem:[#allocation3 + $0x1f0] sm:$0xff] %vm713, %v5115
  %5245 = vst.msk [vmem:[#allocation3 + $0x1f8] sm:$0xff] %vm713, %v5117
  %v5246 = vld [vmem:[#allocation2 + $0x2] sm:$0xff]
  %v5247 = vld [vmem:[#allocation2 + $0xa] sm:$0xff]
  %v5248 = vld [vmem:[#allocation2 + $0x1a] sm:$0xff]
  %v5249 = vld [vmem:[#allocation2 + $0x22] sm:$0xff]
  %v5250 = vld [vmem:[#allocation2 + $0x32] sm:$0xff]
  %v5251 = vld [vmem:[#allocation2 + $0x3a] sm:$0xff]
  %v5252 = vld [vmem:[#allocation2 + $0x4a] sm:$0xff]
  %v5253 = vld [vmem:[#allocation2 + $0x52] sm:$0xff]
  %v5254 = vld [vmem:[#allocation2 + $0x62] sm:$0xff]
  %v5255 = vld [vmem:[#allocation2 + $0x6a] sm:$0xff]
  %v5256 = vld [vmem:[#allocation2 + $0x7a] sm:$0xff]
  %v5257 = vld [vmem:[#allocation2 + $0x82] sm:$0xff]
  %v5258 = vld [vmem:[#allocation2 + $0x92] sm:$0xff]
  %v5259 = vld [vmem:[#allocation2 + $0x9a] sm:$0xff]
  %v5260 = vld [vmem:[#allocation2 + $0xaa] sm:$0xff]
  %v5261 = vld [vmem:[#allocation2 + $0xb2] sm:$0xff]
  %v5262 = vld [vmem:[#allocation2 + $0xc2] sm:$0xff]
  %v5263 = vld [vmem:[#allocation2 + $0xca] sm:$0xff]
  %v5264 = vld [vmem:[#allocation2 + $0xda] sm:$0xff]
  %v5265 = vld [vmem:[#allocation2 + $0xe2] sm:$0xff]
  %v5266 = vld [vmem:[#allocation2 + $0xf2] sm:$0xff]
  %v5267 = vld [vmem:[#allocation2 + $0xfa] sm:$0xff]
  %v5268 = vld [vmem:[#allocation2 + $0x10a] sm:$0xff]
  %v5269 = vld [vmem:[#allocation2 + $0x112] sm:$0xff]
  %v5270 = vld [vmem:[#allocation2 + $0x122] sm:$0xff]
  %v5271 = vld [vmem:[#allocation2 + $0x12a] sm:$0xff]
  %v5272 = vld [vmem:[#allocation2 + $0x13a] sm:$0xff]
  %v5273 = vld [vmem:[#allocation2 + $0x142] sm:$0xff]
  %v5274 = vld [vmem:[#allocation2 + $0x152] sm:$0xff]
  %v5275 = vld [vmem:[#allocation2 + $0x15a] sm:$0xff]
  %v5276 = vld [vmem:[#allocation2 + $0x16a] sm:$0xff]
  %v5277 = vld [vmem:[#allocation2 + $0x172] sm:$0xff]
  %v5278 = vld [vmem:[#allocation2 + $0x1b2] sm:$0xff]
  %v5279 = vld [vmem:[#allocation2 + $0x1ba] sm:$0xff]
  %v5280 = vld [vmem:[#allocation2 + $0x1ca] sm:$0xff]
  %v5281 = vld [vmem:[#allocation2 + $0x1d2] sm:$0xff]
  %v5282 = vld [vmem:[#allocation2 + $0x1e2] sm:$0xff]
  %v5283 = vld [vmem:[#allocation2 + $0x1ea] sm:$0xff]
  %v5284 = vld [vmem:[#allocation2 + $0x1fa] sm:$0xff]
  %v5285 = vld [vmem:[#allocation2 + $0x202] sm:$0xff]
  %v5286 = vld [vmem:[#allocation2 + $0x212] sm:$0xff]
  %v5287 = vld [vmem:[#allocation2 + $0x21a] sm:$0xff]
  %v5288 = vld [vmem:[#allocation2 + $0x22a] sm:$0xff]
  %v5289 = vld [vmem:[#allocation2 + $0x232] sm:$0xff]
  %v5290 = vld [vmem:[#allocation2 + $0x242] sm:$0xff]
  %v5291 = vld [vmem:[#allocation2 + $0x24a] sm:$0xff]
  %v5292 = vld [vmem:[#allocation2 + $0x25a] sm:$0xff]
  %v5293 = vld [vmem:[#allocation2 + $0x262] sm:$0xff]
  %v5294 = vld [vmem:[#allocation2 + $0x272] sm:$0xff]
  %v5295 = vld [vmem:[#allocation2 + $0x27a] sm:$0xff]
  %v5296 = vld [vmem:[#allocation2 + $0x28a] sm:$0xff]
  %v5297 = vld [vmem:[#allocation2 + $0x292] sm:$0xff]
  %v5298 = vld [vmem:[#allocation2 + $0x2a2] sm:$0xff]
  %v5299 = vld [vmem:[#allocation2 + $0x2aa] sm:$0xff]
  %v5300 = vld [vmem:[#allocation2 + $0x2ba] sm:$0xff]
  %v5301 = vld [vmem:[#allocation2 + $0x2c2] sm:$0xff]
  %v5302 = vld [vmem:[#allocation2 + $0x2d2] sm:$0xff]
  %v5303 = vld [vmem:[#allocation2 + $0x2da] sm:$0xff]
  %v5304 = vld [vmem:[#allocation2 + $0x2ea] sm:$0xff]
  %v5305 = vld [vmem:[#allocation2 + $0x2f2] sm:$0xff]
  %v5306 = vld [vmem:[#allocation2 + $0x302] sm:$0xff]
  %v5307 = vld [vmem:[#allocation2 + $0x30a] sm:$0xff]
  %v5308 = vld [vmem:[#allocation2 + $0x31a] sm:$0xff]
  %v5309 = vld [vmem:[#allocation2 + $0x322] sm:$0xff]
  %5374 = vrot.lane.b32.xlu0 %v5246, 8
  %v5375 = vpop.permute.xlu0 %5374
  %5376 = vrot.lane.b32.xlu0 %v5247, 8
  %v5377 = vpop.permute.xlu0 %5376
  %5378 = vrot.lane.b32.xlu0 %v5248, 8
  %v5379 = vpop.permute.xlu0 %5378
  %5380 = vrot.lane.b32.xlu0 %v5249, 8
  %v5381 = vpop.permute.xlu0 %5380
  %5382 = vrot.lane.b32.xlu0 %v5250, 8
  %v5383 = vpop.permute.xlu0 %5382
  %5384 = vrot.lane.b32.xlu0 %v5251, 8
  %v5385 = vpop.permute.xlu0 %5384
  %5386 = vrot.lane.b32.xlu0 %v5252, 8
  %v5387 = vpop.permute.xlu0 %5386
  %5388 = vrot.lane.b32.xlu0 %v5253, 8
  %v5389 = vpop.permute.xlu0 %5388
  %5390 = vrot.lane.b32.xlu0 %v5254, 8
  %v5391 = vpop.permute.xlu0 %5390
  %5392 = vrot.lane.b32.xlu0 %v5255, 8
  %v5393 = vpop.permute.xlu0 %5392
  %5394 = vrot.lane.b32.xlu0 %v5256, 8
  %v5395 = vpop.permute.xlu0 %5394
  %5396 = vrot.lane.b32.xlu0 %v5257, 8
  %v5397 = vpop.permute.xlu0 %5396
  %5398 = vrot.lane.b32.xlu0 %v5258, 8
  %v5399 = vpop.permute.xlu0 %5398
  %5400 = vrot.lane.b32.xlu0 %v5259, 8
  %v5401 = vpop.permute.xlu0 %5400
  %5402 = vrot.lane.b32.xlu0 %v5260, 8
  %v5403 = vpop.permute.xlu0 %5402
  %5404 = vrot.lane.b32.xlu0 %v5261, 8
  %v5405 = vpop.permute.xlu0 %5404
  %5406 = vrot.lane.b32.xlu0 %v5262, 8
  %v5407 = vpop.permute.xlu0 %5406
  %5408 = vrot.lane.b32.xlu0 %v5263, 8
  %v5409 = vpop.permute.xlu0 %5408
  %5410 = vrot.lane.b32.xlu0 %v5264, 8
  %v5411 = vpop.permute.xlu0 %5410
  %5412 = vrot.lane.b32.xlu0 %v5265, 8
  %v5413 = vpop.permute.xlu0 %5412
  %5414 = vrot.lane.b32.xlu0 %v5266, 8
  %v5415 = vpop.permute.xlu0 %5414
  %5416 = vrot.lane.b32.xlu0 %v5267, 8
  %v5417 = vpop.permute.xlu0 %5416
  %5418 = vrot.lane.b32.xlu0 %v5268, 8
  %v5419 = vpop.permute.xlu0 %5418
  %5420 = vrot.lane.b32.xlu0 %v5269, 8
  %v5421 = vpop.permute.xlu0 %5420
  %5422 = vrot.lane.b32.xlu0 %v5270, 8
  %v5423 = vpop.permute.xlu0 %5422
  %5424 = vrot.lane.b32.xlu0 %v5271, 8
  %v5425 = vpop.permute.xlu0 %5424
  %5426 = vrot.lane.b32.xlu0 %v5272, 8
  %v5427 = vpop.permute.xlu0 %5426
  %5428 = vrot.lane.b32.xlu0 %v5273, 8
  %v5429 = vpop.permute.xlu0 %5428
  %5430 = vrot.lane.b32.xlu0 %v5274, 8
  %v5431 = vpop.permute.xlu0 %5430
  %5432 = vrot.lane.b32.xlu0 %v5275, 8
  %v5433 = vpop.permute.xlu0 %5432
  %5434 = vrot.lane.b32.xlu0 %v5276, 8
  %v5435 = vpop.permute.xlu0 %5434
  %5436 = vrot.lane.b32.xlu0 %v5277, 8
  %v5437 = vpop.permute.xlu0 %5436
  %5438 = vrot.lane.b32.xlu0 %v5278, 8
  %v5439 = vpop.permute.xlu0 %5438
  %5440 = vrot.lane.b32.xlu0 %v5279, 8
  %v5441 = vpop.permute.xlu0 %5440
  %5442 = vrot.lane.b32.xlu0 %v5280, 8
  %v5443 = vpop.permute.xlu0 %5442
  %5444 = vrot.lane.b32.xlu0 %v5281, 8
  %v5445 = vpop.permute.xlu0 %5444
  %5446 = vrot.lane.b32.xlu0 %v5282, 8
  %v5447 = vpop.permute.xlu0 %5446
  %5448 = vrot.lane.b32.xlu0 %v5283, 8
  %v5449 = vpop.permute.xlu0 %5448
  %5450 = vrot.lane.b32.xlu0 %v5284, 8
  %v5451 = vpop.permute.xlu0 %5450
  %5452 = vrot.lane.b32.xlu0 %v5285, 8
  %v5453 = vpop.permute.xlu0 %5452
  %5454 = vrot.lane.b32.xlu0 %v5286, 8
  %v5455 = vpop.permute.xlu0 %5454
  %5456 = vrot.lane.b32.xlu0 %v5287, 8
  %v5457 = vpop.permute.xlu0 %5456
  %5458 = vrot.lane.b32.xlu0 %v5288, 8
  %v5459 = vpop.permute.xlu0 %5458
  %5460 = vrot.lane.b32.xlu0 %v5289, 8
  %v5461 = vpop.permute.xlu0 %5460
  %5462 = vrot.lane.b32.xlu0 %v5290, 8
  %v5463 = vpop.permute.xlu0 %5462
  %5464 = vrot.lane.b32.xlu0 %v5291, 8
  %v5465 = vpop.permute.xlu0 %5464
  %5466 = vrot.lane.b32.xlu0 %v5292, 8
  %v5467 = vpop.permute.xlu0 %5466
  %5468 = vrot.lane.b32.xlu0 %v5293, 8
  %v5469 = vpop.permute.xlu0 %5468
  %5470 = vrot.lane.b32.xlu0 %v5294, 8
  %v5471 = vpop.permute.xlu0 %5470
  %5472 = vrot.lane.b32.xlu0 %v5295, 8
  %v5473 = vpop.permute.xlu0 %5472
  %5474 = vrot.lane.b32.xlu0 %v5296, 8
  %v5475 = vpop.permute.xlu0 %5474
  %5476 = vrot.lane.b32.xlu0 %v5297, 8
  %v5477 = vpop.permute.xlu0 %5476
  %5478 = vrot.lane.b32.xlu0 %v5298, 8
  %v5479 = vpop.permute.xlu0 %5478
  %5480 = vrot.lane.b32.xlu0 %v5299, 8
  %v5481 = vpop.permute.xlu0 %5480
  %5482 = vrot.lane.b32.xlu0 %v5300, 8
  %v5483 = vpop.permute.xlu0 %5482
  %5484 = vrot.lane.b32.xlu0 %v5301, 8
  %v5485 = vpop.permute.xlu0 %5484
  %5486 = vrot.lane.b32.xlu0 %v5302, 8
  %v5487 = vpop.permute.xlu0 %5486
  %5488 = vrot.lane.b32.xlu0 %v5303, 8
  %v5489 = vpop.permute.xlu0 %5488
  %5490 = vrot.lane.b32.xlu0 %v5304, 8
  %v5491 = vpop.permute.xlu0 %5490
  %5492 = vrot.lane.b32.xlu0 %v5305, 8
  %v5493 = vpop.permute.xlu0 %5492
  %5494 = vrot.lane.b32.xlu0 %v5306, 8
  %v5495 = vpop.permute.xlu0 %5494
  %5496 = vrot.lane.b32.xlu0 %v5307, 8
  %v5497 = vpop.permute.xlu0 %5496
  %5498 = vrot.lane.b32.xlu0 %v5308, 8
  %v5499 = vpop.permute.xlu0 %5498
  %5500 = vrot.lane.b32.xlu0 %v5309, 8
  %v5501 = vpop.permute.xlu0 %5500
  %5566 = vst.msk [vmem:[#allocation3] sm:$0xff] %vm1098, %v5375
  %5567 = vst.msk [vmem:[#allocation3 + $0x8] sm:$0xff] %vm1098, %v5377
  %5568 = vst.msk [vmem:[#allocation3 + $0x10] sm:$0xff] %vm1098, %v5379
  %5569 = vst.msk [vmem:[#allocation3 + $0x18] sm:$0xff] %vm1098, %v5381
  %5570 = vst.msk [vmem:[#allocation3 + $0x20] sm:$0xff] %vm1098, %v5383
  %5571 = vst.msk [vmem:[#allocation3 + $0x28] sm:$0xff] %vm1098, %v5385
  %5572 = vst.msk [vmem:[#allocation3 + $0x30] sm:$0xff] %vm1098, %v5387
  %5573 = vst.msk [vmem:[#allocation3 + $0x38] sm:$0xff] %vm1098, %v5389
  %5574 = vst.msk [vmem:[#allocation3 + $0x40] sm:$0xff] %vm1098, %v5391
  %5575 = vst.msk [vmem:[#allocation3 + $0x48] sm:$0xff] %vm1098, %v5393
  %5576 = vst.msk [vmem:[#allocation3 + $0x50] sm:$0xff] %vm1098, %v5395
  %5577 = vst.msk [vmem:[#allocation3 + $0x58] sm:$0xff] %vm1098, %v5397
  %5578 = vst.msk [vmem:[#allocation3 + $0x60] sm:$0xff] %vm1098, %v5399
  %5579 = vst.msk [vmem:[#allocation3 + $0x68] sm:$0xff] %vm1098, %v5401
  %5580 = vst.msk [vmem:[#allocation3 + $0x70] sm:$0xff] %vm1098, %v5403
  %5581 = vst.msk [vmem:[#allocation3 + $0x78] sm:$0xff] %vm1098, %v5405
  %5582 = vst.msk [vmem:[#allocation3 + $0x80] sm:$0xff] %vm1098, %v5407
  %5583 = vst.msk [vmem:[#allocation3 + $0x88] sm:$0xff] %vm1098, %v5409
  %5584 = vst.msk [vmem:[#allocation3 + $0x90] sm:$0xff] %vm1098, %v5411
  %5585 = vst.msk [vmem:[#allocation3 + $0x98] sm:$0xff] %vm1098, %v5413
  %5586 = vst.msk [vmem:[#allocation3 + $0xa0] sm:$0xff] %vm1098, %v5415
  %5587 = vst.msk [vmem:[#allocation3 + $0xa8] sm:$0xff] %vm1098, %v5417
  %5588 = vst.msk [vmem:[#allocation3 + $0xb0] sm:$0xff] %vm1098, %v5419
  %5589 = vst.msk [vmem:[#allocation3 + $0xb8] sm:$0xff] %vm1098, %v5421
  %5590 = vst.msk [vmem:[#allocation3 + $0xc0] sm:$0xff] %vm1098, %v5423
  %5591 = vst.msk [vmem:[#allocation3 + $0xc8] sm:$0xff] %vm1098, %v5425
  %5592 = vst.msk [vmem:[#allocation3 + $0xd0] sm:$0xff] %vm1098, %v5427
  %5593 = vst.msk [vmem:[#allocation3 + $0xd8] sm:$0xff] %vm1098, %v5429
  %5594 = vst.msk [vmem:[#allocation3 + $0xe0] sm:$0xff] %vm1098, %v5431
  %5595 = vst.msk [vmem:[#allocation3 + $0xe8] sm:$0xff] %vm1098, %v5433
  %5596 = vst.msk [vmem:[#allocation3 + $0xf0] sm:$0xff] %vm1098, %v5435
  %5597 = vst.msk [vmem:[#allocation3 + $0xf8] sm:$0xff] %vm1098, %v5437
  %5598 = vst.msk [vmem:[#allocation3 + $0x100] sm:$0xff] %vm1098, %v5439
  %5599 = vst.msk [vmem:[#allocation3 + $0x108] sm:$0xff] %vm1098, %v5441
  %5600 = vst.msk [vmem:[#allocation3 + $0x110] sm:$0xff] %vm1098, %v5443
  %5601 = vst.msk [vmem:[#allocation3 + $0x118] sm:$0xff] %vm1098, %v5445
  %5602 = vst.msk [vmem:[#allocation3 + $0x120] sm:$0xff] %vm1098, %v5447
  %5603 = vst.msk [vmem:[#allocation3 + $0x128] sm:$0xff] %vm1098, %v5449
  %5604 = vst.msk [vmem:[#allocation3 + $0x130] sm:$0xff] %vm1098, %v5451
  %5605 = vst.msk [vmem:[#allocation3 + $0x138] sm:$0xff] %vm1098, %v5453
  %5606 = vst.msk [vmem:[#allocation3 + $0x140] sm:$0xff] %vm1098, %v5455
  %5607 = vst.msk [vmem:[#allocation3 + $0x148] sm:$0xff] %vm1098, %v5457
  %5608 = vst.msk [vmem:[#allocation3 + $0x150] sm:$0xff] %vm1098, %v5459
  %5609 = vst.msk [vmem:[#allocation3 + $0x158] sm:$0xff] %vm1098, %v5461
  %5610 = vst.msk [vmem:[#allocation3 + $0x160] sm:$0xff] %vm1098, %v5463
  %5611 = vst.msk [vmem:[#allocation3 + $0x168] sm:$0xff] %vm1098, %v5465
  %5612 = vst.msk [vmem:[#allocation3 + $0x170] sm:$0xff] %vm1098, %v5467
  %5613 = vst.msk [vmem:[#allocation3 + $0x178] sm:$0xff] %vm1098, %v5469
  %5614 = vst.msk [vmem:[#allocation3 + $0x180] sm:$0xff] %vm1098, %v5471
  %5615 = vst.msk [vmem:[#allocation3 + $0x188] sm:$0xff] %vm1098, %v5473
  %5616 = vst.msk [vmem:[#allocation3 + $0x190] sm:$0xff] %vm1098, %v5475
  %5617 = vst.msk [vmem:[#allocation3 + $0x198] sm:$0xff] %vm1098, %v5477
  %5618 = vst.msk [vmem:[#allocation3 + $0x1a0] sm:$0xff] %vm1098, %v5479
  %5619 = vst.msk [vmem:[#allocation3 + $0x1a8] sm:$0xff] %vm1098, %v5481
  %5620 = vst.msk [vmem:[#allocation3 + $0x1b0] sm:$0xff] %vm1098, %v5483
  %5621 = vst.msk [vmem:[#allocation3 + $0x1b8] sm:$0xff] %vm1098, %v5485
  %5622 = vst.msk [vmem:[#allocation3 + $0x1c0] sm:$0xff] %vm1098, %v5487
  %5623 = vst.msk [vmem:[#allocation3 + $0x1c8] sm:$0xff] %vm1098, %v5489
  %5624 = vst.msk [vmem:[#allocation3 + $0x1d0] sm:$0xff] %vm1098, %v5491
  %5625 = vst.msk [vmem:[#allocation3 + $0x1d8] sm:$0xff] %vm1098, %v5493
  %5626 = vst.msk [vmem:[#allocation3 + $0x1e0] sm:$0xff] %vm1098, %v5495
  %5627 = vst.msk [vmem:[#allocation3 + $0x1e8] sm:$0xff] %vm1098, %v5497
  %5628 = vst.msk [vmem:[#allocation3 + $0x1f0] sm:$0xff] %vm1098, %v5499
  %5629 = vst.msk [vmem:[#allocation3 + $0x1f8] sm:$0xff] %vm1098, %v5501
  %v5630 = vld [vmem:[%s200] sm:$0xff]
  %v5631 = vld [vmem:[%s200 + $0x8] sm:$0xff]
  %v5632 = vld [vmem:[%s200 + $0x18] sm:$0xff]
  %v5633 = vld [vmem:[%s200 + $0x20] sm:$0xff]
  %v5634 = vld [vmem:[%s200 + $0x30] sm:$0xff]
  %v5635 = vld [vmem:[%s200 + $0x38] sm:$0xff]
  %v5636 = vld [vmem:[%s200 + $0x48] sm:$0xff]
  %v5637 = vld [vmem:[%s200 + $0x50] sm:$0xff]
  %v5638 = vld [vmem:[%s200 + $0x60] sm:$0xff]
  %v5639 = vld [vmem:[%s200 + $0x68] sm:$0xff]
  %v5640 = vld [vmem:[%s200 + $0x78] sm:$0xff]
  %v5641 = vld [vmem:[%s200 + $0x80] sm:$0xff]
  %v5642 = vld [vmem:[%s200 + $0x90] sm:$0xff]
  %v5643 = vld [vmem:[%s200 + $0x98] sm:$0xff]
  %v5644 = vld [vmem:[%s200 + $0xa8] sm:$0xff]
  %v5645 = vld [vmem:[%s200 + $0xb0] sm:$0xff]
  %v5646 = vld [vmem:[%s200 + $0xc0] sm:$0xff]
  %v5647 = vld [vmem:[%s200 + $0xc8] sm:$0xff]
  %v5648 = vld [vmem:[%s200 + $0xd8] sm:$0xff]
  %v5649 = vld [vmem:[%s200 + $0xe0] sm:$0xff]
  %v5650 = vld [vmem:[%s200 + $0xf0] sm:$0xff]
  %v5651 = vld [vmem:[%s200 + $0xf8] sm:$0xff]
  %v5652 = vld [vmem:[%s200 + $0x108] sm:$0xff]
  %v5653 = vld [vmem:[%s200 + $0x110] sm:$0xff]
  %v5654 = vld [vmem:[%s200 + $0x120] sm:$0xff]
  %v5655 = vld [vmem:[%s200 + $0x128] sm:$0xff]
  %v5656 = vld [vmem:[%s200 + $0x138] sm:$0xff]
  %v5657 = vld [vmem:[%s200 + $0x140] sm:$0xff]
  %v5658 = vld [vmem:[%s200 + $0x150] sm:$0xff]
  %v5659 = vld [vmem:[%s200 + $0x158] sm:$0xff]
  %v5660 = vld [vmem:[%s200 + $0x168] sm:$0xff]
  %v5661 = vld [vmem:[%s200 + $0x170] sm:$0xff]
  %v5662 = vld [vmem:[%s200 + $0x1b0] sm:$0xff]
  %v5663 = vld [vmem:[%s200 + $0x1b8] sm:$0xff]
  %v5664 = vld [vmem:[%s200 + $0x1c8] sm:$0xff]
  %v5665 = vld [vmem:[%s200 + $0x1d0] sm:$0xff]
  %v5666 = vld [vmem:[%s200 + $0x1e0] sm:$0xff]
  %v5667 = vld [vmem:[%s200 + $0x1e8] sm:$0xff]
  %v5668 = vld [vmem:[%s200 + $0x1f8] sm:$0xff]
  %v5669 = vld [vmem:[%s200 + $0x200] sm:$0xff]
  %v5670 = vld [vmem:[%s200 + $0x210] sm:$0xff]
  %v5671 = vld [vmem:[%s200 + $0x218] sm:$0xff]
  %v5672 = vld [vmem:[%s200 + $0x228] sm:$0xff]
  %v5673 = vld [vmem:[%s200 + $0x230] sm:$0xff]
  %v5674 = vld [vmem:[%s200 + $0x240] sm:$0xff]
  %v5675 = vld [vmem:[%s200 + $0x248] sm:$0xff]
  %v5676 = vld [vmem:[%s200 + $0x258] sm:$0xff]
  %v5677 = vld [vmem:[%s200 + $0x260] sm:$0xff]
  %v5678 = vld [vmem:[%s200 + $0x270] sm:$0xff]
  %v5679 = vld [vmem:[%s200 + $0x278] sm:$0xff]
  %v5680 = vld [vmem:[%s200 + $0x288] sm:$0xff]
  %v5681 = vld [vmem:[%s200 + $0x290] sm:$0xff]
  %v5682 = vld [vmem:[%s200 + $0x2a0] sm:$0xff]
  %v5683 = vld [vmem:[%s200 + $0x2a8] sm:$0xff]
  %v5684 = vld [vmem:[%s200 + $0x2b8] sm:$0xff]
  %v5685 = vld [vmem:[%s200 + $0x2c0] sm:$0xff]
  %v5686 = vld [vmem:[%s200 + $0x2d0] sm:$0xff]
  %v5687 = vld [vmem:[%s200 + $0x2d8] sm:$0xff]
  %v5688 = vld [vmem:[%s200 + $0x2e8] sm:$0xff]
  %v5689 = vld [vmem:[%s200 + $0x2f0] sm:$0xff]
  %v5690 = vld [vmem:[%s200 + $0x300] sm:$0xff]
  %v5691 = vld [vmem:[%s200 + $0x308] sm:$0xff]
  %v5692 = vld [vmem:[%s200 + $0x318] sm:$0xff]
  %v5693 = vld [vmem:[%s200 + $0x320] sm:$0xff]
  %5758 = vrot.lane.b32.xlu0 %v5630, 12
  %v5759 = vpop.permute.xlu0 %5758
  %5760 = vrot.lane.b32.xlu0 %v5631, 12
  %v5761 = vpop.permute.xlu0 %5760
  %5762 = vrot.lane.b32.xlu0 %v5632, 12
  %v5763 = vpop.permute.xlu0 %5762
  %5764 = vrot.lane.b32.xlu0 %v5633, 12
  %v5765 = vpop.permute.xlu0 %5764
  %5766 = vrot.lane.b32.xlu0 %v5634, 12
  %v5767 = vpop.permute.xlu0 %5766
  %5768 = vrot.lane.b32.xlu0 %v5635, 12
  %v5769 = vpop.permute.xlu0 %5768
  %5770 = vrot.lane.b32.xlu0 %v5636, 12
  %v5771 = vpop.permute.xlu0 %5770
  %5772 = vrot.lane.b32.xlu0 %v5637, 12
  %v5773 = vpop.permute.xlu0 %5772
  %5774 = vrot.lane.b32.xlu0 %v5638, 12
  %v5775 = vpop.permute.xlu0 %5774
  %5776 = vrot.lane.b32.xlu0 %v5639, 12
  %v5777 = vpop.permute.xlu0 %5776
  %5778 = vrot.lane.b32.xlu0 %v5640, 12
  %v5779 = vpop.permute.xlu0 %5778
  %5780 = vrot.lane.b32.xlu0 %v5641, 12
  %v5781 = vpop.permute.xlu0 %5780
  %5782 = vrot.lane.b32.xlu0 %v5642, 12
  %v5783 = vpop.permute.xlu0 %5782
  %5784 = vrot.lane.b32.xlu0 %v5643, 12
  %v5785 = vpop.permute.xlu0 %5784
  %5786 = vrot.lane.b32.xlu0 %v5644, 12
  %v5787 = vpop.permute.xlu0 %5786
  %5788 = vrot.lane.b32.xlu0 %v5645, 12
  %v5789 = vpop.permute.xlu0 %5788
  %5790 = vrot.lane.b32.xlu0 %v5646, 12
  %v5791 = vpop.permute.xlu0 %5790
  %5792 = vrot.lane.b32.xlu0 %v5647, 12
  %v5793 = vpop.permute.xlu0 %5792
  %5794 = vrot.lane.b32.xlu0 %v5648, 12
  %v5795 = vpop.permute.xlu0 %5794
  %5796 = vrot.lane.b32.xlu0 %v5649, 12
  %v5797 = vpop.permute.xlu0 %5796
  %5798 = vrot.lane.b32.xlu0 %v5650, 12
  %v5799 = vpop.permute.xlu0 %5798
  %5800 = vrot.lane.b32.xlu0 %v5651, 12
  %v5801 = vpop.permute.xlu0 %5800
  %5802 = vrot.lane.b32.xlu0 %v5652, 12
  %v5803 = vpop.permute.xlu0 %5802
  %5804 = vrot.lane.b32.xlu0 %v5653, 12
  %v5805 = vpop.permute.xlu0 %5804
  %5806 = vrot.lane.b32.xlu0 %v5654, 12
  %v5807 = vpop.permute.xlu0 %5806
  %5808 = vrot.lane.b32.xlu0 %v5655, 12
  %v5809 = vpop.permute.xlu0 %5808
  %5810 = vrot.lane.b32.xlu0 %v5656, 12
  %v5811 = vpop.permute.xlu0 %5810
  %5812 = vrot.lane.b32.xlu0 %v5657, 12
  %v5813 = vpop.permute.xlu0 %5812
  %5814 = vrot.lane.b32.xlu0 %v5658, 12
  %v5815 = vpop.permute.xlu0 %5814
  %5816 = vrot.lane.b32.xlu0 %v5659, 12
  %v5817 = vpop.permute.xlu0 %5816
  %5818 = vrot.lane.b32.xlu0 %v5660, 12
  %v5819 = vpop.permute.xlu0 %5818
  %5820 = vrot.lane.b32.xlu0 %v5661, 12
  %v5821 = vpop.permute.xlu0 %5820
  %5822 = vrot.lane.b32.xlu0 %v5662, 12
  %v5823 = vpop.permute.xlu0 %5822
  %5824 = vrot.lane.b32.xlu0 %v5663, 12
  %v5825 = vpop.permute.xlu0 %5824
  %5826 = vrot.lane.b32.xlu0 %v5664, 12
  %v5827 = vpop.permute.xlu0 %5826
  %5828 = vrot.lane.b32.xlu0 %v5665, 12
  %v5829 = vpop.permute.xlu0 %5828
  %5830 = vrot.lane.b32.xlu0 %v5666, 12
  %v5831 = vpop.permute.xlu0 %5830
  %5832 = vrot.lane.b32.xlu0 %v5667, 12
  %v5833 = vpop.permute.xlu0 %5832
  %5834 = vrot.lane.b32.xlu0 %v5668, 12
  %v5835 = vpop.permute.xlu0 %5834
  %5836 = vrot.lane.b32.xlu0 %v5669, 12
  %v5837 = vpop.permute.xlu0 %5836
  %5838 = vrot.lane.b32.xlu0 %v5670, 12
  %v5839 = vpop.permute.xlu0 %5838
  %5840 = vrot.lane.b32.xlu0 %v5671, 12
  %v5841 = vpop.permute.xlu0 %5840
  %5842 = vrot.lane.b32.xlu0 %v5672, 12
  %v5843 = vpop.permute.xlu0 %5842
  %5844 = vrot.lane.b32.xlu0 %v5673, 12
  %v5845 = vpop.permute.xlu0 %5844
  %5846 = vrot.lane.b32.xlu0 %v5674, 12
  %v5847 = vpop.permute.xlu0 %5846
  %5848 = vrot.lane.b32.xlu0 %v5675, 12
  %v5849 = vpop.permute.xlu0 %5848
  %5850 = vrot.lane.b32.xlu0 %v5676, 12
  %v5851 = vpop.permute.xlu0 %5850
  %5852 = vrot.lane.b32.xlu0 %v5677, 12
  %v5853 = vpop.permute.xlu0 %5852
  %5854 = vrot.lane.b32.xlu0 %v5678, 12
  %v5855 = vpop.permute.xlu0 %5854
  %5856 = vrot.lane.b32.xlu0 %v5679, 12
  %v5857 = vpop.permute.xlu0 %5856
  %5858 = vrot.lane.b32.xlu0 %v5680, 12
  %v5859 = vpop.permute.xlu0 %5858
  %5860 = vrot.lane.b32.xlu0 %v5681, 12
  %v5861 = vpop.permute.xlu0 %5860
  %5862 = vrot.lane.b32.xlu0 %v5682, 12
  %v5863 = vpop.permute.xlu0 %5862
  %5864 = vrot.lane.b32.xlu0 %v5683, 12
  %v5865 = vpop.permute.xlu0 %5864
  %5866 = vrot.lane.b32.xlu0 %v5684, 12
  %v5867 = vpop.permute.xlu0 %5866
  %5868 = vrot.lane.b32.xlu0 %v5685, 12
  %v5869 = vpop.permute.xlu0 %5868
  %5870 = vrot.lane.b32.xlu0 %v5686, 12
  %v5871 = vpop.permute.xlu0 %5870
  %5872 = vrot.lane.b32.xlu0 %v5687, 12
  %v5873 = vpop.permute.xlu0 %5872
  %5874 = vrot.lane.b32.xlu0 %v5688, 12
  %v5875 = vpop.permute.xlu0 %5874
  %5876 = vrot.lane.b32.xlu0 %v5689, 12
  %v5877 = vpop.permute.xlu0 %5876
  %5878 = vrot.lane.b32.xlu0 %v5690, 12
  %v5879 = vpop.permute.xlu0 %5878
  %5880 = vrot.lane.b32.xlu0 %v5691, 12
  %v5881 = vpop.permute.xlu0 %5880
  %5882 = vrot.lane.b32.xlu0 %v5692, 12
  %v5883 = vpop.permute.xlu0 %5882
  %5884 = vrot.lane.b32.xlu0 %v5693, 12
  %v5885 = vpop.permute.xlu0 %5884
  %5950 = vst.msk [vmem:[#allocation3] sm:$0xff] %vm1483, %v5759
  %5951 = vst.msk [vmem:[#allocation3 + $0x8] sm:$0xff] %vm1483, %v5761
  %5952 = vst.msk [vmem:[#allocation3 + $0x10] sm:$0xff] %vm1483, %v5763
  %5953 = vst.msk [vmem:[#allocation3 + $0x18] sm:$0xff] %vm1483, %v5765
  %5954 = vst.msk [vmem:[#allocation3 + $0x20] sm:$0xff] %vm1483, %v5767
  %5955 = vst.msk [vmem:[#allocation3 + $0x28] sm:$0xff] %vm1483, %v5769
  %5956 = vst.msk [vmem:[#allocation3 + $0x30] sm:$0xff] %vm1483, %v5771
  %5957 = vst.msk [vmem:[#allocation3 + $0x38] sm:$0xff] %vm1483, %v5773
  %5958 = vst.msk [vmem:[#allocation3 + $0x40] sm:$0xff] %vm1483, %v5775
  %5959 = vst.msk [vmem:[#allocation3 + $0x48] sm:$0xff] %vm1483, %v5777
  %5960 = vst.msk [vmem:[#allocation3 + $0x50] sm:$0xff] %vm1483, %v5779
  %5961 = vst.msk [vmem:[#allocation3 + $0x58] sm:$0xff] %vm1483, %v5781
  %5962 = vst.msk [vmem:[#allocation3 + $0x60] sm:$0xff] %vm1483, %v5783
  %5963 = vst.msk [vmem:[#allocation3 + $0x68] sm:$0xff] %vm1483, %v5785
  %5964 = vst.msk [vmem:[#allocation3 + $0x70] sm:$0xff] %vm1483, %v5787
  %5965 = vst.msk [vmem:[#allocation3 + $0x78] sm:$0xff] %vm1483, %v5789
  %5966 = vst.msk [vmem:[#allocation3 + $0x80] sm:$0xff] %vm1483, %v5791
  %5967 = vst.msk [vmem:[#allocation3 + $0x88] sm:$0xff] %vm1483, %v5793
  %5968 = vst.msk [vmem:[#allocation3 + $0x90] sm:$0xff] %vm1483, %v5795
  %5969 = vst.msk [vmem:[#allocation3 + $0x98] sm:$0xff] %vm1483, %v5797
  %5970 = vst.msk [vmem:[#allocation3 + $0xa0] sm:$0xff] %vm1483, %v5799
  %5971 = vst.msk [vmem:[#allocation3 + $0xa8] sm:$0xff] %vm1483, %v5801
  %5972 = vst.msk [vmem:[#allocation3 + $0xb0] sm:$0xff] %vm1483, %v5803
  %5973 = vst.msk [vmem:[#allocation3 + $0xb8] sm:$0xff] %vm1483, %v5805
  %5974 = vst.msk [vmem:[#allocation3 + $0xc0] sm:$0xff] %vm1483, %v5807
  %5975 = vst.msk [vmem:[#allocation3 + $0xc8] sm:$0xff] %vm1483, %v5809
  %5976 = vst.msk [vmem:[#allocation3 + $0xd0] sm:$0xff] %vm1483, %v5811
  %5977 = vst.msk [vmem:[#allocation3 + $0xd8] sm:$0xff] %vm1483, %v5813
  %5978 = vst.msk [vmem:[#allocation3 + $0xe0] sm:$0xff] %vm1483, %v5815
  %5979 = vst.msk [vmem:[#allocation3 + $0xe8] sm:$0xff] %vm1483, %v5817
  %5980 = vst.msk [vmem:[#allocation3 + $0xf0] sm:$0xff] %vm1483, %v5819
  %5981 = vst.msk [vmem:[#allocation3 + $0xf8] sm:$0xff] %vm1483, %v5821
  %5982 = vst.msk [vmem:[#allocation3 + $0x100] sm:$0xff] %vm1483, %v5823
  %5983 = vst.msk [vmem:[#allocation3 + $0x108] sm:$0xff] %vm1483, %v5825
  %5984 = vst.msk [vmem:[#allocation3 + $0x110] sm:$0xff] %vm1483, %v5827
  %5985 = vst.msk [vmem:[#allocation3 + $0x118] sm:$0xff] %vm1483, %v5829
  %5986 = vst.msk [vmem:[#allocation3 + $0x120] sm:$0xff] %vm1483, %v5831
  %5987 = vst.msk [vmem:[#allocation3 + $0x128] sm:$0xff] %vm1483, %v5833
  %5988 = vst.msk [vmem:[#allocation3 + $0x130] sm:$0xff] %vm1483, %v5835
  %5989 = vst.msk [vmem:[#allocation3 + $0x138] sm:$0xff] %vm1483, %v5837
  %5990 = vst.msk [vmem:[#allocation3 + $0x140] sm:$0xff] %vm1483, %v5839
  %5991 = vst.msk [vmem:[#allocation3 + $0x148] sm:$0xff] %vm1483, %v5841
  %5992 = vst.msk [vmem:[#allocation3 + $0x150] sm:$0xff] %vm1483, %v5843
  %5993 = vst.msk [vmem:[#allocation3 + $0x158] sm:$0xff] %vm1483, %v5845
  %5994 = vst.msk [vmem:[#allocation3 + $0x160] sm:$0xff] %vm1483, %v5847
  %5995 = vst.msk [vmem:[#allocation3 + $0x168] sm:$0xff] %vm1483, %v5849
  %5996 = vst.msk [vmem:[#allocation3 + $0x170] sm:$0xff] %vm1483, %v5851
  %5997 = vst.msk [vmem:[#allocation3 + $0x178] sm:$0xff] %vm1483, %v5853
  %5998 = vst.msk [vmem:[#allocation3 + $0x180] sm:$0xff] %vm1483, %v5855
  %5999 = vst.msk [vmem:[#allocation3 + $0x188] sm:$0xff] %vm1483, %v5857
  %6000 = vst.msk [vmem:[#allocation3 + $0x190] sm:$0xff] %vm1483, %v5859
  %6001 = vst.msk [vmem:[#allocation3 + $0x198] sm:$0xff] %vm1483, %v5861
  %6002 = vst.msk [vmem:[#allocation3 + $0x1a0] sm:$0xff] %vm1483, %v5863
  %6003 = vst.msk [vmem:[#allocation3 + $0x1a8] sm:$0xff] %vm1483, %v5865
  %6004 = vst.msk [vmem:[#allocation3 + $0x1b0] sm:$0xff] %vm1483, %v5867
  %6005 = vst.msk [vmem:[#allocation3 + $0x1b8] sm:$0xff] %vm1483, %v5869
  %6006 = vst.msk [vmem:[#allocation3 + $0x1c0] sm:$0xff] %vm1483, %v5871
  %6007 = vst.msk [vmem:[#allocation3 + $0x1c8] sm:$0xff] %vm1483, %v5873
  %6008 = vst.msk [vmem:[#allocation3 + $0x1d0] sm:$0xff] %vm1483, %v5875
  %6009 = vst.msk [vmem:[#allocation3 + $0x1d8] sm:$0xff] %vm1483, %v5877
  %6010 = vst.msk [vmem:[#allocation3 + $0x1e0] sm:$0xff] %vm1483, %v5879
  %6011 = vst.msk [vmem:[#allocation3 + $0x1e8] sm:$0xff] %vm1483, %v5881
  %6012 = vst.msk [vmem:[#allocation3 + $0x1f0] sm:$0xff] %vm1483, %v5883
  %6013 = vst.msk [vmem:[#allocation3 + $0x1f8] sm:$0xff] %vm1483, %v5885
  %v6014 = vld [vmem:[%s200 + $0x1] sm:$0xff]
  %v6015 = vld [vmem:[%s200 + $0x9] sm:$0xff]
  %v6016 = vld [vmem:[%s200 + $0x19] sm:$0xff]
  %v6017 = vld [vmem:[%s200 + $0x21] sm:$0xff]
  %v6018 = vld [vmem:[%s200 + $0x31] sm:$0xff]
  %v6019 = vld [vmem:[%s200 + $0x39] sm:$0xff]
  %v6020 = vld [vmem:[%s200 + $0x49] sm:$0xff]
  %v6021 = vld [vmem:[%s200 + $0x51] sm:$0xff]
  %v6022 = vld [vmem:[%s200 + $0x61] sm:$0xff]
  %v6023 = vld [vmem:[%s200 + $0x69] sm:$0xff]
  %v6024 = vld [vmem:[%s200 + $0x79] sm:$0xff]
  %v6025 = vld [vmem:[%s200 + $0x81] sm:$0xff]
  %v6026 = vld [vmem:[%s200 + $0x91] sm:$0xff]
  %v6027 = vld [vmem:[%s200 + $0x99] sm:$0xff]
  %v6028 = vld [vmem:[%s200 + $0xa9] sm:$0xff]
  %v6029 = vld [vmem:[%s200 + $0xb1] sm:$0xff]
  %v6030 = vld [vmem:[%s200 + $0xc1] sm:$0xff]
  %v6031 = vld [vmem:[%s200 + $0xc9] sm:$0xff]
  %v6032 = vld [vmem:[%s200 + $0xd9] sm:$0xff]
  %v6033 = vld [vmem:[%s200 + $0xe1] sm:$0xff]
  %v6034 = vld [vmem:[%s200 + $0xf1] sm:$0xff]
  %v6035 = vld [vmem:[%s200 + $0xf9] sm:$0xff]
  %v6036 = vld [vmem:[%s200 + $0x109] sm:$0xff]
  %v6037 = vld [vmem:[%s200 + $0x111] sm:$0xff]
  %v6038 = vld [vmem:[%s200 + $0x121] sm:$0xff]
  %v6039 = vld [vmem:[%s200 + $0x129] sm:$0xff]
  %v6040 = vld [vmem:[%s200 + $0x139] sm:$0xff]
  %v6041 = vld [vmem:[%s200 + $0x141] sm:$0xff]
  %v6042 = vld [vmem:[%s200 + $0x151] sm:$0xff]
  %v6043 = vld [vmem:[%s200 + $0x159] sm:$0xff]
  %v6044 = vld [vmem:[%s200 + $0x169] sm:$0xff]
  %v6045 = vld [vmem:[%s200 + $0x171] sm:$0xff]
  %v6046 = vld [vmem:[%s200 + $0x1b1] sm:$0xff]
  %v6047 = vld [vmem:[%s200 + $0x1b9] sm:$0xff]
  %v6048 = vld [vmem:[%s200 + $0x1c9] sm:$0xff]
  %v6049 = vld [vmem:[%s200 + $0x1d1] sm:$0xff]
  %v6050 = vld [vmem:[%s200 + $0x1e1] sm:$0xff]
  %v6051 = vld [vmem:[%s200 + $0x1e9] sm:$0xff]
  %v6052 = vld [vmem:[%s200 + $0x1f9] sm:$0xff]
  %v6053 = vld [vmem:[%s200 + $0x201] sm:$0xff]
  %v6054 = vld [vmem:[%s200 + $0x211] sm:$0xff]
  %v6055 = vld [vmem:[%s200 + $0x219] sm:$0xff]
  %v6056 = vld [vmem:[%s200 + $0x229] sm:$0xff]
  %v6057 = vld [vmem:[%s200 + $0x231] sm:$0xff]
  %v6058 = vld [vmem:[%s200 + $0x241] sm:$0xff]
  %v6059 = vld [vmem:[%s200 + $0x249] sm:$0xff]
  %v6060 = vld [vmem:[%s200 + $0x259] sm:$0xff]
  %v6061 = vld [vmem:[%s200 + $0x261] sm:$0xff]
  %v6062 = vld [vmem:[%s200 + $0x271] sm:$0xff]
  %v6063 = vld [vmem:[%s200 + $0x279] sm:$0xff]
  %v6064 = vld [vmem:[%s200 + $0x289] sm:$0xff]
  %v6065 = vld [vmem:[%s200 + $0x291] sm:$0xff]
  %v6066 = vld [vmem:[%s200 + $0x2a1] sm:$0xff]
  %v6067 = vld [vmem:[%s200 + $0x2a9] sm:$0xff]
  %v6068 = vld [vmem:[%s200 + $0x2b9] sm:$0xff]
  %v6069 = vld [vmem:[%s200 + $0x2c1] sm:$0xff]
  %v6070 = vld [vmem:[%s200 + $0x2d1] sm:$0xff]
  %v6071 = vld [vmem:[%s200 + $0x2d9] sm:$0xff]
  %v6072 = vld [vmem:[%s200 + $0x2e9] sm:$0xff]
  %v6073 = vld [vmem:[%s200 + $0x2f1] sm:$0xff]
  %v6074 = vld [vmem:[%s200 + $0x301] sm:$0xff]
  %v6075 = vld [vmem:[%s200 + $0x309] sm:$0xff]
  %v6076 = vld [vmem:[%s200 + $0x319] sm:$0xff]
  %v6077 = vld [vmem:[%s200 + $0x321] sm:$0xff]
  %6142 = vrot.lane.b32.xlu0 %v6014, 16
  %v6143 = vpop.permute.xlu0 %6142
  %6144 = vrot.lane.b32.xlu0 %v6015, 16
  %v6145 = vpop.permute.xlu0 %6144
  %6146 = vrot.lane.b32.xlu0 %v6016, 16
  %v6147 = vpop.permute.xlu0 %6146
  %6148 = vrot.lane.b32.xlu0 %v6017, 16
  %v6149 = vpop.permute.xlu0 %6148
  %6150 = vrot.lane.b32.xlu0 %v6018, 16
  %v6151 = vpop.permute.xlu0 %6150
  %6152 = vrot.lane.b32.xlu0 %v6019, 16
  %v6153 = vpop.permute.xlu0 %6152
  %6154 = vrot.lane.b32.xlu0 %v6020, 16
  %v6155 = vpop.permute.xlu0 %6154
  %6156 = vrot.lane.b32.xlu0 %v6021, 16
  %v6157 = vpop.permute.xlu0 %6156
  %6158 = vrot.lane.b32.xlu0 %v6022, 16
  %v6159 = vpop.permute.xlu0 %6158
  %6160 = vrot.lane.b32.xlu0 %v6023, 16
  %v6161 = vpop.permute.xlu0 %6160
  %6162 = vrot.lane.b32.xlu0 %v6024, 16
  %v6163 = vpop.permute.xlu0 %6162
  %6164 = vrot.lane.b32.xlu0 %v6025, 16
  %v6165 = vpop.permute.xlu0 %6164
  %6166 = vrot.lane.b32.xlu0 %v6026, 16
  %v6167 = vpop.permute.xlu0 %6166
  %6168 = vrot.lane.b32.xlu0 %v6027, 16
  %v6169 = vpop.permute.xlu0 %6168
  %6170 = vrot.lane.b32.xlu0 %v6028, 16
  %v6171 = vpop.permute.xlu0 %6170
  %6172 = vrot.lane.b32.xlu0 %v6029, 16
  %v6173 = vpop.permute.xlu0 %6172
  %6174 = vrot.lane.b32.xlu0 %v6030, 16
  %v6175 = vpop.permute.xlu0 %6174
  %6176 = vrot.lane.b32.xlu0 %v6031, 16
  %v6177 = vpop.permute.xlu0 %6176
  %6178 = vrot.lane.b32.xlu0 %v6032, 16
  %v6179 = vpop.permute.xlu0 %6178
  %6180 = vrot.lane.b32.xlu0 %v6033, 16
  %v6181 = vpop.permute.xlu0 %6180
  %6182 = vrot.lane.b32.xlu0 %v6034, 16
  %v6183 = vpop.permute.xlu0 %6182
  %6184 = vrot.lane.b32.xlu0 %v6035, 16
  %v6185 = vpop.permute.xlu0 %6184
  %6186 = vrot.lane.b32.xlu0 %v6036, 16
  %v6187 = vpop.permute.xlu0 %6186
  %6188 = vrot.lane.b32.xlu0 %v6037, 16
  %v6189 = vpop.permute.xlu0 %6188
  %6190 = vrot.lane.b32.xlu0 %v6038, 16
  %v6191 = vpop.permute.xlu0 %6190
  %6192 = vrot.lane.b32.xlu0 %v6039, 16
  %v6193 = vpop.permute.xlu0 %6192
  %6194 = vrot.lane.b32.xlu0 %v6040, 16
  %v6195 = vpop.permute.xlu0 %6194
  %6196 = vrot.lane.b32.xlu0 %v6041, 16
  %v6197 = vpop.permute.xlu0 %6196
  %6198 = vrot.lane.b32.xlu0 %v6042, 16
  %v6199 = vpop.permute.xlu0 %6198
  %6200 = vrot.lane.b32.xlu0 %v6043, 16
  %v6201 = vpop.permute.xlu0 %6200
  %6202 = vrot.lane.b32.xlu0 %v6044, 16
  %v6203 = vpop.permute.xlu0 %6202
  %6204 = vrot.lane.b32.xlu0 %v6045, 16
  %v6205 = vpop.permute.xlu0 %6204
  %6206 = vrot.lane.b32.xlu0 %v6046, 16
  %v6207 = vpop.permute.xlu0 %6206
  %6208 = vrot.lane.b32.xlu0 %v6047, 16
  %v6209 = vpop.permute.xlu0 %6208
  %6210 = vrot.lane.b32.xlu0 %v6048, 16
  %v6211 = vpop.permute.xlu0 %6210
  %6212 = vrot.lane.b32.xlu0 %v6049, 16
  %v6213 = vpop.permute.xlu0 %6212
  %6214 = vrot.lane.b32.xlu0 %v6050, 16
  %v6215 = vpop.permute.xlu0 %6214
  %6216 = vrot.lane.b32.xlu0 %v6051, 16
  %v6217 = vpop.permute.xlu0 %6216
  %6218 = vrot.lane.b32.xlu0 %v6052, 16
  %v6219 = vpop.permute.xlu0 %6218
  %6220 = vrot.lane.b32.xlu0 %v6053, 16
  %v6221 = vpop.permute.xlu0 %6220
  %6222 = vrot.lane.b32.xlu0 %v6054, 16
  %v6223 = vpop.permute.xlu0 %6222
  %6224 = vrot.lane.b32.xlu0 %v6055, 16
  %v6225 = vpop.permute.xlu0 %6224
  %6226 = vrot.lane.b32.xlu0 %v6056, 16
  %v6227 = vpop.permute.xlu0 %6226
  %6228 = vrot.lane.b32.xlu0 %v6057, 16
  %v6229 = vpop.permute.xlu0 %6228
  %6230 = vrot.lane.b32.xlu0 %v6058, 16
  %v6231 = vpop.permute.xlu0 %6230
  %6232 = vrot.lane.b32.xlu0 %v6059, 16
  %v6233 = vpop.permute.xlu0 %6232
  %6234 = vrot.lane.b32.xlu0 %v6060, 16
  %v6235 = vpop.permute.xlu0 %6234
  %6236 = vrot.lane.b32.xlu0 %v6061, 16
  %v6237 = vpop.permute.xlu0 %6236
  %6238 = vrot.lane.b32.xlu0 %v6062, 16
  %v6239 = vpop.permute.xlu0 %6238
  %6240 = vrot.lane.b32.xlu0 %v6063, 16
  %v6241 = vpop.permute.xlu0 %6240
  %6242 = vrot.lane.b32.xlu0 %v6064, 16
  %v6243 = vpop.permute.xlu0 %6242
  %6244 = vrot.lane.b32.xlu0 %v6065, 16
  %v6245 = vpop.permute.xlu0 %6244
  %6246 = vrot.lane.b32.xlu0 %v6066, 16
  %v6247 = vpop.permute.xlu0 %6246
  %6248 = vrot.lane.b32.xlu0 %v6067, 16
  %v6249 = vpop.permute.xlu0 %6248
  %6250 = vrot.lane.b32.xlu0 %v6068, 16
  %v6251 = vpop.permute.xlu0 %6250
  %6252 = vrot.lane.b32.xlu0 %v6069, 16
  %v6253 = vpop.permute.xlu0 %6252
  %6254 = vrot.lane.b32.xlu0 %v6070, 16
  %v6255 = vpop.permute.xlu0 %6254
  %6256 = vrot.lane.b32.xlu0 %v6071, 16
  %v6257 = vpop.permute.xlu0 %6256
  %6258 = vrot.lane.b32.xlu0 %v6072, 16
  %v6259 = vpop.permute.xlu0 %6258
  %6260 = vrot.lane.b32.xlu0 %v6073, 16
  %v6261 = vpop.permute.xlu0 %6260
  %6262 = vrot.lane.b32.xlu0 %v6074, 16
  %v6263 = vpop.permute.xlu0 %6262
  %6264 = vrot.lane.b32.xlu0 %v6075, 16
  %v6265 = vpop.permute.xlu0 %6264
  %6266 = vrot.lane.b32.xlu0 %v6076, 16
  %v6267 = vpop.permute.xlu0 %6266
  %6268 = vrot.lane.b32.xlu0 %v6077, 16
  %v6269 = vpop.permute.xlu0 %6268
  %6334 = vst.msk [vmem:[#allocation3] sm:$0xff] %vm1868, %v6143
  %6335 = vst.msk [vmem:[#allocation3 + $0x8] sm:$0xff] %vm1868, %v6145
  %6336 = vst.msk [vmem:[#allocation3 + $0x10] sm:$0xff] %vm1868, %v6147
  %6337 = vst.msk [vmem:[#allocation3 + $0x18] sm:$0xff] %vm1868, %v6149
  %6338 = vst.msk [vmem:[#allocation3 + $0x20] sm:$0xff] %vm1868, %v6151
  %6339 = vst.msk [vmem:[#allocation3 + $0x28] sm:$0xff] %vm1868, %v6153
  %6340 = vst.msk [vmem:[#allocation3 + $0x30] sm:$0xff] %vm1868, %v6155
  %6341 = vst.msk [vmem:[#allocation3 + $0x38] sm:$0xff] %vm1868, %v6157
  %6342 = vst.msk [vmem:[#allocation3 + $0x40] sm:$0xff] %vm1868, %v6159
  %6343 = vst.msk [vmem:[#allocation3 + $0x48] sm:$0xff] %vm1868, %v6161
  %6344 = vst.msk [vmem:[#allocation3 + $0x50] sm:$0xff] %vm1868, %v6163
  %6345 = vst.msk [vmem:[#allocation3 + $0x58] sm:$0xff] %vm1868, %v6165
  %6346 = vst.msk [vmem:[#allocation3 + $0x60] sm:$0xff] %vm1868, %v6167
  %6347 = vst.msk [vmem:[#allocation3 + $0x68] sm:$0xff] %vm1868, %v6169
  %6348 = vst.msk [vmem:[#allocation3 + $0x70] sm:$0xff] %vm1868, %v6171
  %6349 = vst.msk [vmem:[#allocation3 + $0x78] sm:$0xff] %vm1868, %v6173
  %6350 = vst.msk [vmem:[#allocation3 + $0x80] sm:$0xff] %vm1868, %v6175
  %6351 = vst.msk [vmem:[#allocation3 + $0x88] sm:$0xff] %vm1868, %v6177
  %6352 = vst.msk [vmem:[#allocation3 + $0x90] sm:$0xff] %vm1868, %v6179
  %6353 = vst.msk [vmem:[#allocation3 + $0x98] sm:$0xff] %vm1868, %v6181
  %6354 = vst.msk [vmem:[#allocation3 + $0xa0] sm:$0xff] %vm1868, %v6183
  %6355 = vst.msk [vmem:[#allocation3 + $0xa8] sm:$0xff] %vm1868, %v6185
  %6356 = vst.msk [vmem:[#allocation3 + $0xb0] sm:$0xff] %vm1868, %v6187
  %6357 = vst.msk [vmem:[#allocation3 + $0xb8] sm:$0xff] %vm1868, %v6189
  %6358 = vst.msk [vmem:[#allocation3 + $0xc0] sm:$0xff] %vm1868, %v6191
  %6359 = vst.msk [vmem:[#allocation3 + $0xc8] sm:$0xff] %vm1868, %v6193
  %6360 = vst.msk [vmem:[#allocation3 + $0xd0] sm:$0xff] %vm1868, %v6195
  %6361 = vst.msk [vmem:[#allocation3 + $0xd8] sm:$0xff] %vm1868, %v6197
  %6362 = vst.msk [vmem:[#allocation3 + $0xe0] sm:$0xff] %vm1868, %v6199
  %6363 = vst.msk [vmem:[#allocation3 + $0xe8] sm:$0xff] %vm1868, %v6201
  %6364 = vst.msk [vmem:[#allocation3 + $0xf0] sm:$0xff] %vm1868, %v6203
  %6365 = vst.msk [vmem:[#allocation3 + $0xf8] sm:$0xff] %vm1868, %v6205
  %6366 = vst.msk [vmem:[#allocation3 + $0x100] sm:$0xff] %vm1868, %v6207
  %6367 = vst.msk [vmem:[#allocation3 + $0x108] sm:$0xff] %vm1868, %v6209
  %6368 = vst.msk [vmem:[#allocation3 + $0x110] sm:$0xff] %vm1868, %v6211
  %6369 = vst.msk [vmem:[#allocation3 + $0x118] sm:$0xff] %vm1868, %v6213
  %6370 = vst.msk [vmem:[#allocation3 + $0x120] sm:$0xff] %vm1868, %v6215
  %6371 = vst.msk [vmem:[#allocation3 + $0x128] sm:$0xff] %vm1868, %v6217
  %6372 = vst.msk [vmem:[#allocation3 + $0x130] sm:$0xff] %vm1868, %v6219
  %6373 = vst.msk [vmem:[#allocation3 + $0x138] sm:$0xff] %vm1868, %v6221
  %6374 = vst.msk [vmem:[#allocation3 + $0x140] sm:$0xff] %vm1868, %v6223
  %6375 = vst.msk [vmem:[#allocation3 + $0x148] sm:$0xff] %vm1868, %v6225
  %6376 = vst.msk [vmem:[#allocation3 + $0x150] sm:$0xff] %vm1868, %v6227
  %6377 = vst.msk [vmem:[#allocation3 + $0x158] sm:$0xff] %vm1868, %v6229
  %6378 = vst.msk [vmem:[#allocation3 + $0x160] sm:$0xff] %vm1868, %v6231
  %6379 = vst.msk [vmem:[#allocation3 + $0x168] sm:$0xff] %vm1868, %v6233
  %6380 = vst.msk [vmem:[#allocation3 + $0x170] sm:$0xff] %vm1868, %v6235
  %6381 = vst.msk [vmem:[#allocation3 + $0x178] sm:$0xff] %vm1868, %v6237
  %6382 = vst.msk [vmem:[#allocation3 + $0x180] sm:$0xff] %vm1868, %v6239
  %6383 = vst.msk [vmem:[#allocation3 + $0x188] sm:$0xff] %vm1868, %v6241
  %6384 = vst.msk [vmem:[#allocation3 + $0x190] sm:$0xff] %vm1868, %v6243
  %6385 = vst.msk [vmem:[#allocation3 + $0x198] sm:$0xff] %vm1868, %v6245
  %6386 = vst.msk [vmem:[#allocation3 + $0x1a0] sm:$0xff] %vm1868, %v6247
  %6387 = vst.msk [vmem:[#allocation3 + $0x1a8] sm:$0xff] %vm1868, %v6249
  %6388 = vst.msk [vmem:[#allocation3 + $0x1b0] sm:$0xff] %vm1868, %v6251
  %6389 = vst.msk [vmem:[#allocation3 + $0x1b8] sm:$0xff] %vm1868, %v6253
  %6390 = vst.msk [vmem:[#allocation3 + $0x1c0] sm:$0xff] %vm1868, %v6255
  %6391 = vst.msk [vmem:[#allocation3 + $0x1c8] sm:$0xff] %vm1868, %v6257
  %6392 = vst.msk [vmem:[#allocation3 + $0x1d0] sm:$0xff] %vm1868, %v6259
  %6393 = vst.msk [vmem:[#allocation3 + $0x1d8] sm:$0xff] %vm1868, %v6261
  %6394 = vst.msk [vmem:[#allocation3 + $0x1e0] sm:$0xff] %vm1868, %v6263
  %6395 = vst.msk [vmem:[#allocation3 + $0x1e8] sm:$0xff] %vm1868, %v6265
  %6396 = vst.msk [vmem:[#allocation3 + $0x1f0] sm:$0xff] %vm1868, %v6267
  %6397 = vst.msk [vmem:[#allocation3 + $0x1f8] sm:$0xff] %vm1868, %v6269
  %v6398 = vld [vmem:[%s200 + $0x2] sm:$0xff]
  %v6399 = vld [vmem:[%s200 + $0xa] sm:$0xff]
  %v6400 = vld [vmem:[%s200 + $0x1a] sm:$0xff]
  %v6401 = vld [vmem:[%s200 + $0x22] sm:$0xff]
  %v6402 = vld [vmem:[%s200 + $0x32] sm:$0xff]
  %v6403 = vld [vmem:[%s200 + $0x3a] sm:$0xff]
  %v6404 = vld [vmem:[%s200 + $0x4a] sm:$0xff]
  %v6405 = vld [vmem:[%s200 + $0x52] sm:$0xff]
  %v6406 = vld [vmem:[%s200 + $0x62] sm:$0xff]
  %v6407 = vld [vmem:[%s200 + $0x6a] sm:$0xff]
  %v6408 = vld [vmem:[%s200 + $0x7a] sm:$0xff]
  %v6409 = vld [vmem:[%s200 + $0x82] sm:$0xff]
  %v6410 = vld [vmem:[%s200 + $0x92] sm:$0xff]
  %v6411 = vld [vmem:[%s200 + $0x9a] sm:$0xff]
  %v6412 = vld [vmem:[%s200 + $0xaa] sm:$0xff]
  %v6413 = vld [vmem:[%s200 + $0xb2] sm:$0xff]
  %v6414 = vld [vmem:[%s200 + $0xc2] sm:$0xff]
  %v6415 = vld [vmem:[%s200 + $0xca] sm:$0xff]
  %v6416 = vld [vmem:[%s200 + $0xda] sm:$0xff]
  %v6417 = vld [vmem:[%s200 + $0xe2] sm:$0xff]
  %v6418 = vld [vmem:[%s200 + $0xf2] sm:$0xff]
  %v6419 = vld [vmem:[%s200 + $0xfa] sm:$0xff]
  %v6420 = vld [vmem:[%s200 + $0x10a] sm:$0xff]
  %v6421 = vld [vmem:[%s200 + $0x112] sm:$0xff]
  %v6422 = vld [vmem:[%s200 + $0x122] sm:$0xff]
  %v6423 = vld [vmem:[%s200 + $0x12a] sm:$0xff]
  %v6424 = vld [vmem:[%s200 + $0x13a] sm:$0xff]
  %v6425 = vld [vmem:[%s200 + $0x142] sm:$0xff]
  %v6426 = vld [vmem:[%s200 + $0x152] sm:$0xff]
  %v6427 = vld [vmem:[%s200 + $0x15a] sm:$0xff]
  %v6428 = vld [vmem:[%s200 + $0x16a] sm:$0xff]
  %v6429 = vld [vmem:[%s200 + $0x172] sm:$0xff]
  %v6430 = vld [vmem:[%s200 + $0x1b2] sm:$0xff]
  %v6431 = vld [vmem:[%s200 + $0x1ba] sm:$0xff]
  %v6432 = vld [vmem:[%s200 + $0x1ca] sm:$0xff]
  %v6433 = vld [vmem:[%s200 + $0x1d2] sm:$0xff]
  %v6434 = vld [vmem:[%s200 + $0x1e2] sm:$0xff]
  %v6435 = vld [vmem:[%s200 + $0x1ea] sm:$0xff]
  %v6436 = vld [vmem:[%s200 + $0x1fa] sm:$0xff]
  %v6437 = vld [vmem:[%s200 + $0x202] sm:$0xff]
  %v6438 = vld [vmem:[%s200 + $0x212] sm:$0xff]
  %v6439 = vld [vmem:[%s200 + $0x21a] sm:$0xff]
  %v6440 = vld [vmem:[%s200 + $0x22a] sm:$0xff]
  %v6441 = vld [vmem:[%s200 + $0x232] sm:$0xff]
  %v6442 = vld [vmem:[%s200 + $0x242] sm:$0xff]
  %v6443 = vld [vmem:[%s200 + $0x24a] sm:$0xff]
  %v6444 = vld [vmem:[%s200 + $0x25a] sm:$0xff]
  %v6445 = vld [vmem:[%s200 + $0x262] sm:$0xff]
  %v6446 = vld [vmem:[%s200 + $0x272] sm:$0xff]
  %v6447 = vld [vmem:[%s200 + $0x27a] sm:$0xff]
  %v6448 = vld [vmem:[%s200 + $0x28a] sm:$0xff]
  %v6449 = vld [vmem:[%s200 + $0x292] sm:$0xff]
  %v6450 = vld [vmem:[%s200 + $0x2a2] sm:$0xff]
  %v6451 = vld [vmem:[%s200 + $0x2aa] sm:$0xff]
  %v6452 = vld [vmem:[%s200 + $0x2ba] sm:$0xff]
  %v6453 = vld [vmem:[%s200 + $0x2c2] sm:$0xff]
  %v6454 = vld [vmem:[%s200 + $0x2d2] sm:$0xff]
  %v6455 = vld [vmem:[%s200 + $0x2da] sm:$0xff]
  %v6456 = vld [vmem:[%s200 + $0x2ea] sm:$0xff]
  %v6457 = vld [vmem:[%s200 + $0x2f2] sm:$0xff]
  %v6458 = vld [vmem:[%s200 + $0x302] sm:$0xff]
  %v6459 = vld [vmem:[%s200 + $0x30a] sm:$0xff]
  %v6460 = vld [vmem:[%s200 + $0x31a] sm:$0xff]
  %v6461 = vld [vmem:[%s200 + $0x322] sm:$0xff]
  %6526 = vrot.lane.b32.xlu0 %v6398, 20
  %v6527 = vpop.permute.xlu0 %6526
  %6528 = vrot.lane.b32.xlu0 %v6399, 20
  %v6529 = vpop.permute.xlu0 %6528
  %6530 = vrot.lane.b32.xlu0 %v6400, 20
  %v6531 = vpop.permute.xlu0 %6530
  %6532 = vrot.lane.b32.xlu0 %v6401, 20
  %v6533 = vpop.permute.xlu0 %6532
  %6534 = vrot.lane.b32.xlu0 %v6402, 20
  %v6535 = vpop.permute.xlu0 %6534
  %6536 = vrot.lane.b32.xlu0 %v6403, 20
  %v6537 = vpop.permute.xlu0 %6536
  %6538 = vrot.lane.b32.xlu0 %v6404, 20
  %v6539 = vpop.permute.xlu0 %6538
  %6540 = vrot.lane.b32.xlu0 %v6405, 20
  %v6541 = vpop.permute.xlu0 %6540
  %6542 = vrot.lane.b32.xlu0 %v6406, 20
  %v6543 = vpop.permute.xlu0 %6542
  %6544 = vrot.lane.b32.xlu0 %v6407, 20
  %v6545 = vpop.permute.xlu0 %6544
  %6546 = vrot.lane.b32.xlu0 %v6408, 20
  %v6547 = vpop.permute.xlu0 %6546
  %6548 = vrot.lane.b32.xlu0 %v6409, 20
  %v6549 = vpop.permute.xlu0 %6548
  %6550 = vrot.lane.b32.xlu0 %v6410, 20
  %v6551 = vpop.permute.xlu0 %6550
  %6552 = vrot.lane.b32.xlu0 %v6411, 20
  %v6553 = vpop.permute.xlu0 %6552
  %6554 = vrot.lane.b32.xlu0 %v6412, 20
  %v6555 = vpop.permute.xlu0 %6554
  %6556 = vrot.lane.b32.xlu0 %v6413, 20
  %v6557 = vpop.permute.xlu0 %6556
  %6558 = vrot.lane.b32.xlu0 %v6414, 20
  %v6559 = vpop.permute.xlu0 %6558
  %6560 = vrot.lane.b32.xlu0 %v6415, 20
  %v6561 = vpop.permute.xlu0 %6560
  %6562 = vrot.lane.b32.xlu0 %v6416, 20
  %v6563 = vpop.permute.xlu0 %6562
  %6564 = vrot.lane.b32.xlu0 %v6417, 20
  %v6565 = vpop.permute.xlu0 %6564
  %6566 = vrot.lane.b32.xlu0 %v6418, 20
  %v6567 = vpop.permute.xlu0 %6566
  %6568 = vrot.lane.b32.xlu0 %v6419, 20
  %v6569 = vpop.permute.xlu0 %6568
  %6570 = vrot.lane.b32.xlu0 %v6420, 20
  %v6571 = vpop.permute.xlu0 %6570
  %6572 = vrot.lane.b32.xlu0 %v6421, 20
  %v6573 = vpop.permute.xlu0 %6572
  %6574 = vrot.lane.b32.xlu0 %v6422, 20
  %v6575 = vpop.permute.xlu0 %6574
  %6576 = vrot.lane.b32.xlu0 %v6423, 20
  %v6577 = vpop.permute.xlu0 %6576
  %6578 = vrot.lane.b32.xlu0 %v6424, 20
  %v6579 = vpop.permute.xlu0 %6578
  %6580 = vrot.lane.b32.xlu0 %v6425, 20
  %v6581 = vpop.permute.xlu0 %6580
  %6582 = vrot.lane.b32.xlu0 %v6426, 20
  %v6583 = vpop.permute.xlu0 %6582
  %6584 = vrot.lane.b32.xlu0 %v6427, 20
  %v6585 = vpop.permute.xlu0 %6584
  %6586 = vrot.lane.b32.xlu0 %v6428, 20
  %v6587 = vpop.permute.xlu0 %6586
  %6588 = vrot.lane.b32.xlu0 %v6429, 20
  %v6589 = vpop.permute.xlu0 %6588
  %6590 = vrot.lane.b32.xlu0 %v6430, 20
  %v6591 = vpop.permute.xlu0 %6590
  %6592 = vrot.lane.b32.xlu0 %v6431, 20
  %v6593 = vpop.permute.xlu0 %6592
  %6594 = vrot.lane.b32.xlu0 %v6432, 20
  %v6595 = vpop.permute.xlu0 %6594
  %6596 = vrot.lane.b32.xlu0 %v6433, 20
  %v6597 = vpop.permute.xlu0 %6596
  %6598 = vrot.lane.b32.xlu0 %v6434, 20
  %v6599 = vpop.permute.xlu0 %6598
  %6600 = vrot.lane.b32.xlu0 %v6435, 20
  %v6601 = vpop.permute.xlu0 %6600
  %6602 = vrot.lane.b32.xlu0 %v6436, 20
  %v6603 = vpop.permute.xlu0 %6602
  %6604 = vrot.lane.b32.xlu0 %v6437, 20
  %v6605 = vpop.permute.xlu0 %6604
  %6606 = vrot.lane.b32.xlu0 %v6438, 20
  %v6607 = vpop.permute.xlu0 %6606
  %6608 = vrot.lane.b32.xlu0 %v6439, 20
  %v6609 = vpop.permute.xlu0 %6608
  %6610 = vrot.lane.b32.xlu0 %v6440, 20
  %v6611 = vpop.permute.xlu0 %6610
  %6612 = vrot.lane.b32.xlu0 %v6441, 20
  %v6613 = vpop.permute.xlu0 %6612
  %6614 = vrot.lane.b32.xlu0 %v6442, 20
  %v6615 = vpop.permute.xlu0 %6614
  %6616 = vrot.lane.b32.xlu0 %v6443, 20
  %v6617 = vpop.permute.xlu0 %6616
  %6618 = vrot.lane.b32.xlu0 %v6444, 20
  %v6619 = vpop.permute.xlu0 %6618
  %6620 = vrot.lane.b32.xlu0 %v6445, 20
  %v6621 = vpop.permute.xlu0 %6620
  %6622 = vrot.lane.b32.xlu0 %v6446, 20
  %v6623 = vpop.permute.xlu0 %6622
  %6624 = vrot.lane.b32.xlu0 %v6447, 20
  %v6625 = vpop.permute.xlu0 %6624
  %6626 = vrot.lane.b32.xlu0 %v6448, 20
  %v6627 = vpop.permute.xlu0 %6626
  %6628 = vrot.lane.b32.xlu0 %v6449, 20
  %v6629 = vpop.permute.xlu0 %6628
  %6630 = vrot.lane.b32.xlu0 %v6450, 20
  %v6631 = vpop.permute.xlu0 %6630
  %6632 = vrot.lane.b32.xlu0 %v6451, 20
  %v6633 = vpop.permute.xlu0 %6632
  %6634 = vrot.lane.b32.xlu0 %v6452, 20
  %v6635 = vpop.permute.xlu0 %6634
  %6636 = vrot.lane.b32.xlu0 %v6453, 20
  %v6637 = vpop.permute.xlu0 %6636
  %6638 = vrot.lane.b32.xlu0 %v6454, 20
  %v6639 = vpop.permute.xlu0 %6638
  %6640 = vrot.lane.b32.xlu0 %v6455, 20
  %v6641 = vpop.permute.xlu0 %6640
  %6642 = vrot.lane.b32.xlu0 %v6456, 20
  %v6643 = vpop.permute.xlu0 %6642
  %6644 = vrot.lane.b32.xlu0 %v6457, 20
  %v6645 = vpop.permute.xlu0 %6644
  %6646 = vrot.lane.b32.xlu0 %v6458, 20
  %v6647 = vpop.permute.xlu0 %6646
  %6648 = vrot.lane.b32.xlu0 %v6459, 20
  %v6649 = vpop.permute.xlu0 %6648
  %6650 = vrot.lane.b32.xlu0 %v6460, 20
  %v6651 = vpop.permute.xlu0 %6650
  %6652 = vrot.lane.b32.xlu0 %v6461, 20
  %v6653 = vpop.permute.xlu0 %6652
  %6718 = vst.msk [vmem:[#allocation3] sm:$0xff] %vm2253, %v6527
  %6719 = vst.msk [vmem:[#allocation3 + $0x8] sm:$0xff] %vm2253, %v6529
  %6720 = vst.msk [vmem:[#allocation3 + $0x10] sm:$0xff] %vm2253, %v6531
  %6721 = vst.msk [vmem:[#allocation3 + $0x18] sm:$0xff] %vm2253, %v6533
  %6722 = vst.msk [vmem:[#allocation3 + $0x20] sm:$0xff] %vm2253, %v6535
  %6723 = vst.msk [vmem:[#allocation3 + $0x28] sm:$0xff] %vm2253, %v6537
  %6724 = vst.msk [vmem:[#allocation3 + $0x30] sm:$0xff] %vm2253, %v6539
  %6725 = vst.msk [vmem:[#allocation3 + $0x38] sm:$0xff] %vm2253, %v6541
  %6726 = vst.msk [vmem:[#allocation3 + $0x40] sm:$0xff] %vm2253, %v6543
  %6727 = vst.msk [vmem:[#allocation3 + $0x48] sm:$0xff] %vm2253, %v6545
  %6728 = vst.msk [vmem:[#allocation3 + $0x50] sm:$0xff] %vm2253, %v6547
  %6729 = vst.msk [vmem:[#allocation3 + $0x58] sm:$0xff] %vm2253, %v6549
  %6730 = vst.msk [vmem:[#allocation3 + $0x60] sm:$0xff] %vm2253, %v6551
  %6731 = vst.msk [vmem:[#allocation3 + $0x68] sm:$0xff] %vm2253, %v6553
  %6732 = vst.msk [vmem:[#allocation3 + $0x70] sm:$0xff] %vm2253, %v6555
  %6733 = vst.msk [vmem:[#allocation3 + $0x78] sm:$0xff] %vm2253, %v6557
  %6734 = vst.msk [vmem:[#allocation3 + $0x80] sm:$0xff] %vm2253, %v6559
  %6735 = vst.msk [vmem:[#allocation3 + $0x88] sm:$0xff] %vm2253, %v6561
  %6736 = vst.msk [vmem:[#allocation3 + $0x90] sm:$0xff] %vm2253, %v6563
  %6737 = vst.msk [vmem:[#allocation3 + $0x98] sm:$0xff] %vm2253, %v6565
  %6738 = vst.msk [vmem:[#allocation3 + $0xa0] sm:$0xff] %vm2253, %v6567
  %6739 = vst.msk [vmem:[#allocation3 + $0xa8] sm:$0xff] %vm2253, %v6569
  %6740 = vst.msk [vmem:[#allocation3 + $0xb0] sm:$0xff] %vm2253, %v6571
  %6741 = vst.msk [vmem:[#allocation3 + $0xb8] sm:$0xff] %vm2253, %v6573
  %6742 = vst.msk [vmem:[#allocation3 + $0xc0] sm:$0xff] %vm2253, %v6575
  %6743 = vst.msk [vmem:[#allocation3 + $0xc8] sm:$0xff] %vm2253, %v6577
  %6744 = vst.msk [vmem:[#allocation3 + $0xd0] sm:$0xff] %vm2253, %v6579
  %6745 = vst.msk [vmem:[#allocation3 + $0xd8] sm:$0xff] %vm2253, %v6581
  %6746 = vst.msk [vmem:[#allocation3 + $0xe0] sm:$0xff] %vm2253, %v6583
  %6747 = vst.msk [vmem:[#allocation3 + $0xe8] sm:$0xff] %vm2253, %v6585
  %6748 = vst.msk [vmem:[#allocation3 + $0xf0] sm:$0xff] %vm2253, %v6587
  %6749 = vst.msk [vmem:[#allocation3 + $0xf8] sm:$0xff] %vm2253, %v6589
  %6750 = vst.msk [vmem:[#allocation3 + $0x100] sm:$0xff] %vm2253, %v6591
  %6751 = vst.msk [vmem:[#allocation3 + $0x108] sm:$0xff] %vm2253, %v6593
  %6752 = vst.msk [vmem:[#allocation3 + $0x110] sm:$0xff] %vm2253, %v6595
  %6753 = vst.msk [vmem:[#allocation3 + $0x118] sm:$0xff] %vm2253, %v6597
  %6754 = vst.msk [vmem:[#allocation3 + $0x120] sm:$0xff] %vm2253, %v6599
  %6755 = vst.msk [vmem:[#allocation3 + $0x128] sm:$0xff] %vm2253, %v6601
  %6756 = vst.msk [vmem:[#allocation3 + $0x130] sm:$0xff] %vm2253, %v6603
  %6757 = vst.msk [vmem:[#allocation3 + $0x138] sm:$0xff] %vm2253, %v6605
  %6758 = vst.msk [vmem:[#allocation3 + $0x140] sm:$0xff] %vm2253, %v6607
  %6759 = vst.msk [vmem:[#allocation3 + $0x148] sm:$0xff] %vm2253, %v6609
  %6760 = vst.msk [vmem:[#allocation3 + $0x150] sm:$0xff] %vm2253, %v6611
  %6761 = vst.msk [vmem:[#allocation3 + $0x158] sm:$0xff] %vm2253, %v6613
  %6762 = vst.msk [vmem:[#allocation3 + $0x160] sm:$0xff] %vm2253, %v6615
  %6763 = vst.msk [vmem:[#allocation3 + $0x168] sm:$0xff] %vm2253, %v6617
  %6764 = vst.msk [vmem:[#allocation3 + $0x170] sm:$0xff] %vm2253, %v6619
  %6765 = vst.msk [vmem:[#allocation3 + $0x178] sm:$0xff] %vm2253, %v6621
  %6766 = vst.msk [vmem:[#allocation3 + $0x180] sm:$0xff] %vm2253, %v6623
  %6767 = vst.msk [vmem:[#allocation3 + $0x188] sm:$0xff] %vm2253, %v6625
  %6768 = vst.msk [vmem:[#allocation3 + $0x190] sm:$0xff] %vm2253, %v6627
  %6769 = vst.msk [vmem:[#allocation3 + $0x198] sm:$0xff] %vm2253, %v6629
  %6770 = vst.msk [vmem:[#allocation3 + $0x1a0] sm:$0xff] %vm2253, %v6631
  %6771 = vst.msk [vmem:[#allocation3 + $0x1a8] sm:$0xff] %vm2253, %v6633
  %6772 = vst.msk [vmem:[#allocation3 + $0x1b0] sm:$0xff] %vm2253, %v6635
  %6773 = vst.msk [vmem:[#allocation3 + $0x1b8] sm:$0xff] %vm2253, %v6637
  %6774 = vst.msk [vmem:[#allocation3 + $0x1c0] sm:$0xff] %vm2253, %v6639
  %6775 = vst.msk [vmem:[#allocation3 + $0x1c8] sm:$0xff] %vm2253, %v6641
  %6776 = vst.msk [vmem:[#allocation3 + $0x1d0] sm:$0xff] %vm2253, %v6643
  %6777 = vst.msk [vmem:[#allocation3 + $0x1d8] sm:$0xff] %vm2253, %v6645
  %6778 = vst.msk [vmem:[#allocation3 + $0x1e0] sm:$0xff] %vm2253, %v6647
  %6779 = vst.msk [vmem:[#allocation3 + $0x1e8] sm:$0xff] %vm2253, %v6649
  %6780 = vst.msk [vmem:[#allocation3 + $0x1f0] sm:$0xff] %vm2253, %v6651
  %6781 = vst.msk [vmem:[#allocation3 + $0x1f8] sm:$0xff] %vm2253, %v6653
  %v6782 = vld [vmem:[%s2318] sm:$0xff]
  %v6783 = vld [vmem:[%s2318 + $0x8] sm:$0xff]
  %v6784 = vld [vmem:[%s2318 + $0x18] sm:$0xff]
  %v6785 = vld [vmem:[%s2318 + $0x20] sm:$0xff]
  %v6786 = vld [vmem:[%s2318 + $0x30] sm:$0xff]
  %v6787 = vld [vmem:[%s2318 + $0x38] sm:$0xff]
  %v6788 = vld [vmem:[%s2318 + $0x48] sm:$0xff]
  %v6789 = vld [vmem:[%s2318 + $0x50] sm:$0xff]
  %v6790 = vld [vmem:[%s2318 + $0x60] sm:$0xff]
  %v6791 = vld [vmem:[%s2318 + $0x68] sm:$0xff]
  %v6792 = vld [vmem:[%s2318 + $0x78] sm:$0xff]
  %v6793 = vld [vmem:[%s2318 + $0x80] sm:$0xff]
  %v6794 = vld [vmem:[%s2318 + $0x90] sm:$0xff]
  %v6795 = vld [vmem:[%s2318 + $0x98] sm:$0xff]
  %v6796 = vld [vmem:[%s2318 + $0xa8] sm:$0xff]
  %v6797 = vld [vmem:[%s2318 + $0xb0] sm:$0xff]
  %v6798 = vld [vmem:[%s2318 + $0xc0] sm:$0xff]
  %v6799 = vld [vmem:[%s2318 + $0xc8] sm:$0xff]
  %v6800 = vld [vmem:[%s2318 + $0xd8] sm:$0xff]
  %v6801 = vld [vmem:[%s2318 + $0xe0] sm:$0xff]
  %v6802 = vld [vmem:[%s2318 + $0xf0] sm:$0xff]
  %v6803 = vld [vmem:[%s2318 + $0xf8] sm:$0xff]
  %v6804 = vld [vmem:[%s2318 + $0x108] sm:$0xff]
  %v6805 = vld [vmem:[%s2318 + $0x110] sm:$0xff]
  %v6806 = vld [vmem:[%s2318 + $0x120] sm:$0xff]
  %v6807 = vld [vmem:[%s2318 + $0x128] sm:$0xff]
  %v6808 = vld [vmem:[%s2318 + $0x138] sm:$0xff]
  %v6809 = vld [vmem:[%s2318 + $0x140] sm:$0xff]
  %v6810 = vld [vmem:[%s2318 + $0x150] sm:$0xff]
  %v6811 = vld [vmem:[%s2318 + $0x158] sm:$0xff]
  %v6812 = vld [vmem:[%s2318 + $0x168] sm:$0xff]
  %v6813 = vld [vmem:[%s2318 + $0x170] sm:$0xff]
  %v6814 = vld [vmem:[%s2318 + $0x1b0] sm:$0xff]
  %v6815 = vld [vmem:[%s2318 + $0x1b8] sm:$0xff]
  %v6816 = vld [vmem:[%s2318 + $0x1c8] sm:$0xff]
  %v6817 = vld [vmem:[%s2318 + $0x1d0] sm:$0xff]
  %v6818 = vld [vmem:[%s2318 + $0x1e0] sm:$0xff]
  %v6819 = vld [vmem:[%s2318 + $0x1e8] sm:$0xff]
  %v6820 = vld [vmem:[%s2318 + $0x1f8] sm:$0xff]
  %v6821 = vld [vmem:[%s2318 + $0x200] sm:$0xff]
  %v6822 = vld [vmem:[%s2318 + $0x210] sm:$0xff]
  %v6823 = vld [vmem:[%s2318 + $0x218] sm:$0xff]
  %v6824 = vld [vmem:[%s2318 + $0x228] sm:$0xff]
  %v6825 = vld [vmem:[%s2318 + $0x230] sm:$0xff]
  %v6826 = vld [vmem:[%s2318 + $0x240] sm:$0xff]
  %v6827 = vld [vmem:[%s2318 + $0x248] sm:$0xff]
  %v6828 = vld [vmem:[%s2318 + $0x258] sm:$0xff]
  %v6829 = vld [vmem:[%s2318 + $0x260] sm:$0xff]
  %v6830 = vld [vmem:[%s2318 + $0x270] sm:$0xff]
  %v6831 = vld [vmem:[%s2318 + $0x278] sm:$0xff]
  %v6832 = vld [vmem:[%s2318 + $0x288] sm:$0xff]
  %v6833 = vld [vmem:[%s2318 + $0x290] sm:$0xff]
  %v6834 = vld [vmem:[%s2318 + $0x2a0] sm:$0xff]
  %v6835 = vld [vmem:[%s2318 + $0x2a8] sm:$0xff]
  %v6836 = vld [vmem:[%s2318 + $0x2b8] sm:$0xff]
  %v6837 = vld [vmem:[%s2318 + $0x2c0] sm:$0xff]
  %v6838 = vld [vmem:[%s2318 + $0x2d0] sm:$0xff]
  %v6839 = vld [vmem:[%s2318 + $0x2d8] sm:$0xff]
  %v6840 = vld [vmem:[%s2318 + $0x2e8] sm:$0xff]
  %v6841 = vld [vmem:[%s2318 + $0x2f0] sm:$0xff]
  %v6842 = vld [vmem:[%s2318 + $0x300] sm:$0xff]
  %v6843 = vld [vmem:[%s2318 + $0x308] sm:$0xff]
  %v6844 = vld [vmem:[%s2318 + $0x318] sm:$0xff]
  %v6845 = vld [vmem:[%s2318 + $0x320] sm:$0xff]
  %6910 = vrot.lane.b32.xlu0 %v6782, 24
  %v6911 = vpop.permute.xlu0 %6910
  %6912 = vrot.lane.b32.xlu0 %v6783, 24
  %v6913 = vpop.permute.xlu0 %6912
  %6914 = vrot.lane.b32.xlu0 %v6784, 24
  %v6915 = vpop.permute.xlu0 %6914
  %6916 = vrot.lane.b32.xlu0 %v6785, 24
  %v6917 = vpop.permute.xlu0 %6916
  %6918 = vrot.lane.b32.xlu0 %v6786, 24
  %v6919 = vpop.permute.xlu0 %6918
  %6920 = vrot.lane.b32.xlu0 %v6787, 24
  %v6921 = vpop.permute.xlu0 %6920
  %6922 = vrot.lane.b32.xlu0 %v6788, 24
  %v6923 = vpop.permute.xlu0 %6922
  %6924 = vrot.lane.b32.xlu0 %v6789, 24
  %v6925 = vpop.permute.xlu0 %6924
  %6926 = vrot.lane.b32.xlu0 %v6790, 24
  %v6927 = vpop.permute.xlu0 %6926
  %6928 = vrot.lane.b32.xlu0 %v6791, 24
  %v6929 = vpop.permute.xlu0 %6928
  %6930 = vrot.lane.b32.xlu0 %v6792, 24
  %v6931 = vpop.permute.xlu0 %6930
  %6932 = vrot.lane.b32.xlu0 %v6793, 24
  %v6933 = vpop.permute.xlu0 %6932
  %6934 = vrot.lane.b32.xlu0 %v6794, 24
  %v6935 = vpop.permute.xlu0 %6934
  %6936 = vrot.lane.b32.xlu0 %v6795, 24
  %v6937 = vpop.permute.xlu0 %6936
  %6938 = vrot.lane.b32.xlu0 %v6796, 24
  %v6939 = vpop.permute.xlu0 %6938
  %6940 = vrot.lane.b32.xlu0 %v6797, 24
  %v6941 = vpop.permute.xlu0 %6940
  %6942 = vrot.lane.b32.xlu0 %v6798, 24
  %v6943 = vpop.permute.xlu0 %6942
  %6944 = vrot.lane.b32.xlu0 %v6799, 24
  %v6945 = vpop.permute.xlu0 %6944
  %6946 = vrot.lane.b32.xlu0 %v6800, 24
  %v6947 = vpop.permute.xlu0 %6946
  %6948 = vrot.lane.b32.xlu0 %v6801, 24
  %v6949 = vpop.permute.xlu0 %6948
  %6950 = vrot.lane.b32.xlu0 %v6802, 24
  %v6951 = vpop.permute.xlu0 %6950
  %6952 = vrot.lane.b32.xlu0 %v6803, 24
  %v6953 = vpop.permute.xlu0 %6952
  %6954 = vrot.lane.b32.xlu0 %v6804, 24
  %v6955 = vpop.permute.xlu0 %6954
  %6956 = vrot.lane.b32.xlu0 %v6805, 24
  %v6957 = vpop.permute.xlu0 %6956
  %6958 = vrot.lane.b32.xlu0 %v6806, 24
  %v6959 = vpop.permute.xlu0 %6958
  %6960 = vrot.lane.b32.xlu0 %v6807, 24
  %v6961 = vpop.permute.xlu0 %6960
  %6962 = vrot.lane.b32.xlu0 %v6808, 24
  %v6963 = vpop.permute.xlu0 %6962
  %6964 = vrot.lane.b32.xlu0 %v6809, 24
  %v6965 = vpop.permute.xlu0 %6964
  %6966 = vrot.lane.b32.xlu0 %v6810, 24
  %v6967 = vpop.permute.xlu0 %6966
  %6968 = vrot.lane.b32.xlu0 %v6811, 24
  %v6969 = vpop.permute.xlu0 %6968
  %6970 = vrot.lane.b32.xlu0 %v6812, 24
  %v6971 = vpop.permute.xlu0 %6970
  %6972 = vrot.lane.b32.xlu0 %v6813, 24
  %v6973 = vpop.permute.xlu0 %6972
  %6974 = vrot.lane.b32.xlu0 %v6814, 24
  %v6975 = vpop.permute.xlu0 %6974
  %6976 = vrot.lane.b32.xlu0 %v6815, 24
  %v6977 = vpop.permute.xlu0 %6976
  %6978 = vrot.lane.b32.xlu0 %v6816, 24
  %v6979 = vpop.permute.xlu0 %6978
  %6980 = vrot.lane.b32.xlu0 %v6817, 24
  %v6981 = vpop.permute.xlu0 %6980
  %6982 = vrot.lane.b32.xlu0 %v6818, 24
  %v6983 = vpop.permute.xlu0 %6982
  %6984 = vrot.lane.b32.xlu0 %v6819, 24
  %v6985 = vpop.permute.xlu0 %6984
  %6986 = vrot.lane.b32.xlu0 %v6820, 24
  %v6987 = vpop.permute.xlu0 %6986
  %6988 = vrot.lane.b32.xlu0 %v6821, 24
  %v6989 = vpop.permute.xlu0 %6988
  %6990 = vrot.lane.b32.xlu0 %v6822, 24
  %v6991 = vpop.permute.xlu0 %6990
  %6992 = vrot.lane.b32.xlu0 %v6823, 24
  %v6993 = vpop.permute.xlu0 %6992
  %6994 = vrot.lane.b32.xlu0 %v6824, 24
  %v6995 = vpop.permute.xlu0 %6994
  %6996 = vrot.lane.b32.xlu0 %v6825, 24
  %v6997 = vpop.permute.xlu0 %6996
  %6998 = vrot.lane.b32.xlu0 %v6826, 24
  %v6999 = vpop.permute.xlu0 %6998
  %7000 = vrot.lane.b32.xlu0 %v6827, 24
  %v7001 = vpop.permute.xlu0 %7000
  %7002 = vrot.lane.b32.xlu0 %v6828, 24
  %v7003 = vpop.permute.xlu0 %7002
  %7004 = vrot.lane.b32.xlu0 %v6829, 24
  %v7005 = vpop.permute.xlu0 %7004
  %7006 = vrot.lane.b32.xlu0 %v6830, 24
  %v7007 = vpop.permute.xlu0 %7006
  %7008 = vrot.lane.b32.xlu0 %v6831, 24
  %v7009 = vpop.permute.xlu0 %7008
  %7010 = vrot.lane.b32.xlu0 %v6832, 24
  %v7011 = vpop.permute.xlu0 %7010
  %7012 = vrot.lane.b32.xlu0 %v6833, 24
  %v7013 = vpop.permute.xlu0 %7012
  %7014 = vrot.lane.b32.xlu0 %v6834, 24
  %v7015 = vpop.permute.xlu0 %7014
  %7016 = vrot.lane.b32.xlu0 %v6835, 24
  %v7017 = vpop.permute.xlu0 %7016
  %7018 = vrot.lane.b32.xlu0 %v6836, 24
  %v7019 = vpop.permute.xlu0 %7018
  %7020 = vrot.lane.b32.xlu0 %v6837, 24
  %v7021 = vpop.permute.xlu0 %7020
  %7022 = vrot.lane.b32.xlu0 %v6838, 24
  %v7023 = vpop.permute.xlu0 %7022
  %7024 = vrot.lane.b32.xlu0 %v6839, 24
  %v7025 = vpop.permute.xlu0 %7024
  %7026 = vrot.lane.b32.xlu0 %v6840, 24
  %v7027 = vpop.permute.xlu0 %7026
  %7028 = vrot.lane.b32.xlu0 %v6841, 24
  %v7029 = vpop.permute.xlu0 %7028
  %7030 = vrot.lane.b32.xlu0 %v6842, 24
  %v7031 = vpop.permute.xlu0 %7030
  %7032 = vrot.lane.b32.xlu0 %v6843, 24
  %v7033 = vpop.permute.xlu0 %7032
  %7034 = vrot.lane.b32.xlu0 %v6844, 24
  %v7035 = vpop.permute.xlu0 %7034
  %7036 = vrot.lane.b32.xlu0 %v6845, 24
  %v7037 = vpop.permute.xlu0 %7036
  %7102 = vst.msk [vmem:[#allocation3] sm:$0xff] %vm2639, %v6911
  %7103 = vst.msk [vmem:[#allocation3 + $0x8] sm:$0xff] %vm2639, %v6913
  %7104 = vst.msk [vmem:[#allocation3 + $0x10] sm:$0xff] %vm2639, %v6915
  %7105 = vst.msk [vmem:[#allocation3 + $0x18] sm:$0xff] %vm2639, %v6917
  %7106 = vst.msk [vmem:[#allocation3 + $0x20] sm:$0xff] %vm2639, %v6919
  %7107 = vst.msk [vmem:[#allocation3 + $0x28] sm:$0xff] %vm2639, %v6921
  %7108 = vst.msk [vmem:[#allocation3 + $0x30] sm:$0xff] %vm2639, %v6923
  %7109 = vst.msk [vmem:[#allocation3 + $0x38] sm:$0xff] %vm2639, %v6925
  %7110 = vst.msk [vmem:[#allocation3 + $0x40] sm:$0xff] %vm2639, %v6927
  %7111 = vst.msk [vmem:[#allocation3 + $0x48] sm:$0xff] %vm2639, %v6929
  %7112 = vst.msk [vmem:[#allocation3 + $0x50] sm:$0xff] %vm2639, %v6931
  %7113 = vst.msk [vmem:[#allocation3 + $0x58] sm:$0xff] %vm2639, %v6933
  %7114 = vst.msk [vmem:[#allocation3 + $0x60] sm:$0xff] %vm2639, %v6935
  %7115 = vst.msk [vmem:[#allocation3 + $0x68] sm:$0xff] %vm2639, %v6937
  %7116 = vst.msk [vmem:[#allocation3 + $0x70] sm:$0xff] %vm2639, %v6939
  %7117 = vst.msk [vmem:[#allocation3 + $0x78] sm:$0xff] %vm2639, %v6941
  %7118 = vst.msk [vmem:[#allocation3 + $0x80] sm:$0xff] %vm2639, %v6943
  %7119 = vst.msk [vmem:[#allocation3 + $0x88] sm:$0xff] %vm2639, %v6945
  %7120 = vst.msk [vmem:[#allocation3 + $0x90] sm:$0xff] %vm2639, %v6947
  %7121 = vst.msk [vmem:[#allocation3 + $0x98] sm:$0xff] %vm2639, %v6949
  %7122 = vst.msk [vmem:[#allocation3 + $0xa0] sm:$0xff] %vm2639, %v6951
  %7123 = vst.msk [vmem:[#allocation3 + $0xa8] sm:$0xff] %vm2639, %v6953
  %7124 = vst.msk [vmem:[#allocation3 + $0xb0] sm:$0xff] %vm2639, %v6955
  %7125 = vst.msk [vmem:[#allocation3 + $0xb8] sm:$0xff] %vm2639, %v6957
  %7126 = vst.msk [vmem:[#allocation3 + $0xc0] sm:$0xff] %vm2639, %v6959
  %7127 = vst.msk [vmem:[#allocation3 + $0xc8] sm:$0xff] %vm2639, %v6961
  %7128 = vst.msk [vmem:[#allocation3 + $0xd0] sm:$0xff] %vm2639, %v6963
  %7129 = vst.msk [vmem:[#allocation3 + $0xd8] sm:$0xff] %vm2639, %v6965
  %7130 = vst.msk [vmem:[#allocation3 + $0xe0] sm:$0xff] %vm2639, %v6967
  %7131 = vst.msk [vmem:[#allocation3 + $0xe8] sm:$0xff] %vm2639, %v6969
  %7132 = vst.msk [vmem:[#allocation3 + $0xf0] sm:$0xff] %vm2639, %v6971
  %7133 = vst.msk [vmem:[#allocation3 + $0xf8] sm:$0xff] %vm2639, %v6973
  %7134 = vst.msk [vmem:[#allocation3 + $0x100] sm:$0xff] %vm2639, %v6975
  %7135 = vst.msk [vmem:[#allocation3 + $0x108] sm:$0xff] %vm2639, %v6977
  %7136 = vst.msk [vmem:[#allocation3 + $0x110] sm:$0xff] %vm2639, %v6979
  %7137 = vst.msk [vmem:[#allocation3 + $0x118] sm:$0xff] %vm2639, %v6981
  %7138 = vst.msk [vmem:[#allocation3 + $0x120] sm:$0xff] %vm2639, %v6983
  %7139 = vst.msk [vmem:[#allocation3 + $0x128] sm:$0xff] %vm2639, %v6985
  %7140 = vst.msk [vmem:[#allocation3 + $0x130] sm:$0xff] %vm2639, %v6987
  %7141 = vst.msk [vmem:[#allocation3 + $0x138] sm:$0xff] %vm2639, %v6989
  %7142 = vst.msk [vmem:[#allocation3 + $0x140] sm:$0xff] %vm2639, %v6991
  %7143 = vst.msk [vmem:[#allocation3 + $0x148] sm:$0xff] %vm2639, %v6993
  %7144 = vst.msk [vmem:[#allocation3 + $0x150] sm:$0xff] %vm2639, %v6995
  %7145 = vst.msk [vmem:[#allocation3 + $0x158] sm:$0xff] %vm2639, %v6997
  %7146 = vst.msk [vmem:[#allocation3 + $0x160] sm:$0xff] %vm2639, %v6999
  %7147 = vst.msk [vmem:[#allocation3 + $0x168] sm:$0xff] %vm2639, %v7001
  %7148 = vst.msk [vmem:[#allocation3 + $0x170] sm:$0xff] %vm2639, %v7003
  %7149 = vst.msk [vmem:[#allocation3 + $0x178] sm:$0xff] %vm2639, %v7005
  %7150 = vst.msk [vmem:[#allocation3 + $0x180] sm:$0xff] %vm2639, %v7007
  %7151 = vst.msk [vmem:[#allocation3 + $0x188] sm:$0xff] %vm2639, %v7009
  %7152 = vst.msk [vmem:[#allocation3 + $0x190] sm:$0xff] %vm2639, %v7011
  %7153 = vst.msk [vmem:[#allocation3 + $0x198] sm:$0xff] %vm2639, %v7013
  %7154 = vst.msk [vmem:[#allocation3 + $0x1a0] sm:$0xff] %vm2639, %v7015
  %7155 = vst.msk [vmem:[#allocation3 + $0x1a8] sm:$0xff] %vm2639, %v7017
  %7156 = vst.msk [vmem:[#allocation3 + $0x1b0] sm:$0xff] %vm2639, %v7019
  %7157 = vst.msk [vmem:[#allocation3 + $0x1b8] sm:$0xff] %vm2639, %v7021
  %7158 = vst.msk [vmem:[#allocation3 + $0x1c0] sm:$0xff] %vm2639, %v7023
  %7159 = vst.msk [vmem:[#allocation3 + $0x1c8] sm:$0xff] %vm2639, %v7025
  %7160 = vst.msk [vmem:[#allocation3 + $0x1d0] sm:$0xff] %vm2639, %v7027
  %7161 = vst.msk [vmem:[#allocation3 + $0x1d8] sm:$0xff] %vm2639, %v7029
  %7162 = vst.msk [vmem:[#allocation3 + $0x1e0] sm:$0xff] %vm2639, %v7031
  %7163 = vst.msk [vmem:[#allocation3 + $0x1e8] sm:$0xff] %vm2639, %v7033
  %7164 = vst.msk [vmem:[#allocation3 + $0x1f0] sm:$0xff] %vm2639, %v7035
  %7165 = vst.msk [vmem:[#allocation3 + $0x1f8] sm:$0xff] %vm2639, %v7037
  %v7166 = vld [vmem:[%s2318 + $0x1] sm:$0xff]
  %v7167 = vld [vmem:[%s2318 + $0x9] sm:$0xff]
  %v7168 = vld [vmem:[%s2318 + $0x19] sm:$0xff]
  %v7169 = vld [vmem:[%s2318 + $0x21] sm:$0xff]
  %v7170 = vld [vmem:[%s2318 + $0x31] sm:$0xff]
  %v7171 = vld [vmem:[%s2318 + $0x39] sm:$0xff]
  %v7172 = vld [vmem:[%s2318 + $0x49] sm:$0xff]
  %v7173 = vld [vmem:[%s2318 + $0x51] sm:$0xff]
  %v7174 = vld [vmem:[%s2318 + $0x61] sm:$0xff]
  %v7175 = vld [vmem:[%s2318 + $0x69] sm:$0xff]
  %v7176 = vld [vmem:[%s2318 + $0x79] sm:$0xff]
  %v7177 = vld [vmem:[%s2318 + $0x81] sm:$0xff]
  %v7178 = vld [vmem:[%s2318 + $0x91] sm:$0xff]
  %v7179 = vld [vmem:[%s2318 + $0x99] sm:$0xff]
  %v7180 = vld [vmem:[%s2318 + $0xa9] sm:$0xff]
  %v7181 = vld [vmem:[%s2318 + $0xb1] sm:$0xff]
  %v7182 = vld [vmem:[%s2318 + $0xc1] sm:$0xff]
  %v7183 = vld [vmem:[%s2318 + $0xc9] sm:$0xff]
  %v7184 = vld [vmem:[%s2318 + $0xd9] sm:$0xff]
  %v7185 = vld [vmem:[%s2318 + $0xe1] sm:$0xff]
  %v7186 = vld [vmem:[%s2318 + $0xf1] sm:$0xff]
  %v7187 = vld [vmem:[%s2318 + $0xf9] sm:$0xff]
  %v7188 = vld [vmem:[%s2318 + $0x109] sm:$0xff]
  %v7189 = vld [vmem:[%s2318 + $0x111] sm:$0xff]
  %v7190 = vld [vmem:[%s2318 + $0x121] sm:$0xff]
  %v7191 = vld [vmem:[%s2318 + $0x129] sm:$0xff]
  %v7192 = vld [vmem:[%s2318 + $0x139] sm:$0xff]
  %v7193 = vld [vmem:[%s2318 + $0x141] sm:$0xff]
  %v7194 = vld [vmem:[%s2318 + $0x151] sm:$0xff]
  %v7195 = vld [vmem:[%s2318 + $0x159] sm:$0xff]
  %v7196 = vld [vmem:[%s2318 + $0x169] sm:$0xff]
  %v7197 = vld [vmem:[%s2318 + $0x171] sm:$0xff]
  %v7198 = vld [vmem:[%s2318 + $0x1b1] sm:$0xff]
  %v7199 = vld [vmem:[%s2318 + $0x1b9] sm:$0xff]
  %v7200 = vld [vmem:[%s2318 + $0x1c9] sm:$0xff]
  %v7201 = vld [vmem:[%s2318 + $0x1d1] sm:$0xff]
  %v7202 = vld [vmem:[%s2318 + $0x1e1] sm:$0xff]
  %v7203 = vld [vmem:[%s2318 + $0x1e9] sm:$0xff]
  %v7204 = vld [vmem:[%s2318 + $0x1f9] sm:$0xff]
  %v7205 = vld [vmem:[%s2318 + $0x201] sm:$0xff]
  %v7206 = vld [vmem:[%s2318 + $0x211] sm:$0xff]
  %v7207 = vld [vmem:[%s2318 + $0x219] sm:$0xff]
  %v7208 = vld [vmem:[%s2318 + $0x229] sm:$0xff]
  %v7209 = vld [vmem:[%s2318 + $0x231] sm:$0xff]
  %v7210 = vld [vmem:[%s2318 + $0x241] sm:$0xff]
  %v7211 = vld [vmem:[%s2318 + $0x249] sm:$0xff]
  %v7212 = vld [vmem:[%s2318 + $0x259] sm:$0xff]
  %v7213 = vld [vmem:[%s2318 + $0x261] sm:$0xff]
  %v7214 = vld [vmem:[%s2318 + $0x271] sm:$0xff]
  %v7215 = vld [vmem:[%s2318 + $0x279] sm:$0xff]
  %v7216 = vld [vmem:[%s2318 + $0x289] sm:$0xff]
  %v7217 = vld [vmem:[%s2318 + $0x291] sm:$0xff]
  %v7218 = vld [vmem:[%s2318 + $0x2a1] sm:$0xff]
  %v7219 = vld [vmem:[%s2318 + $0x2a9] sm:$0xff]
  %v7220 = vld [vmem:[%s2318 + $0x2b9] sm:$0xff]
  %v7221 = vld [vmem:[%s2318 + $0x2c1] sm:$0xff]
  %v7222 = vld [vmem:[%s2318 + $0x2d1] sm:$0xff]
  %v7223 = vld [vmem:[%s2318 + $0x2d9] sm:$0xff]
  %v7224 = vld [vmem:[%s2318 + $0x2e9] sm:$0xff]
  %v7225 = vld [vmem:[%s2318 + $0x2f1] sm:$0xff]
  %v7226 = vld [vmem:[%s2318 + $0x301] sm:$0xff]
  %v7227 = vld [vmem:[%s2318 + $0x309] sm:$0xff]
  %v7228 = vld [vmem:[%s2318 + $0x319] sm:$0xff]
  %v7229 = vld [vmem:[%s2318 + $0x321] sm:$0xff]
  %7294 = vrot.lane.b32.xlu0 %v7166, 28
  %v7295 = vpop.permute.xlu0 %7294
  %7296 = vrot.lane.b32.xlu0 %v7167, 28
  %v7297 = vpop.permute.xlu0 %7296
  %7298 = vrot.lane.b32.xlu0 %v7168, 28
  %v7299 = vpop.permute.xlu0 %7298
  %7300 = vrot.lane.b32.xlu0 %v7169, 28
  %v7301 = vpop.permute.xlu0 %7300
  %7302 = vrot.lane.b32.xlu0 %v7170, 28
  %v7303 = vpop.permute.xlu0 %7302
  %7304 = vrot.lane.b32.xlu0 %v7171, 28
  %v7305 = vpop.permute.xlu0 %7304
  %7306 = vrot.lane.b32.xlu0 %v7172, 28
  %v7307 = vpop.permute.xlu0 %7306
  %7308 = vrot.lane.b32.xlu0 %v7173, 28
  %v7309 = vpop.permute.xlu0 %7308
  %7310 = vrot.lane.b32.xlu0 %v7174, 28
  %v7311 = vpop.permute.xlu0 %7310
  %7312 = vrot.lane.b32.xlu0 %v7175, 28
  %v7313 = vpop.permute.xlu0 %7312
  %7314 = vrot.lane.b32.xlu0 %v7176, 28
  %v7315 = vpop.permute.xlu0 %7314
  %7316 = vrot.lane.b32.xlu0 %v7177, 28
  %v7317 = vpop.permute.xlu0 %7316
  %7318 = vrot.lane.b32.xlu0 %v7178, 28
  %v7319 = vpop.permute.xlu0 %7318
  %7320 = vrot.lane.b32.xlu0 %v7179, 28
  %v7321 = vpop.permute.xlu0 %7320
  %7322 = vrot.lane.b32.xlu0 %v7180, 28
  %v7323 = vpop.permute.xlu0 %7322
  %7324 = vrot.lane.b32.xlu0 %v7181, 28
  %v7325 = vpop.permute.xlu0 %7324
  %7326 = vrot.lane.b32.xlu0 %v7182, 28
  %v7327 = vpop.permute.xlu0 %7326
  %7328 = vrot.lane.b32.xlu0 %v7183, 28
  %v7329 = vpop.permute.xlu0 %7328
  %7330 = vrot.lane.b32.xlu0 %v7184, 28
  %v7331 = vpop.permute.xlu0 %7330
  %7332 = vrot.lane.b32.xlu0 %v7185, 28
  %v7333 = vpop.permute.xlu0 %7332
  %7334 = vrot.lane.b32.xlu0 %v7186, 28
  %v7335 = vpop.permute.xlu0 %7334
  %7336 = vrot.lane.b32.xlu0 %v7187, 28
  %v7337 = vpop.permute.xlu0 %7336
  %7338 = vrot.lane.b32.xlu0 %v7188, 28
  %v7339 = vpop.permute.xlu0 %7338
  %7340 = vrot.lane.b32.xlu0 %v7189, 28
  %v7341 = vpop.permute.xlu0 %7340
  %7342 = vrot.lane.b32.xlu0 %v7190, 28
  %v7343 = vpop.permute.xlu0 %7342
  %7344 = vrot.lane.b32.xlu0 %v7191, 28
  %v7345 = vpop.permute.xlu0 %7344
  %7346 = vrot.lane.b32.xlu0 %v7192, 28
  %v7347 = vpop.permute.xlu0 %7346
  %7348 = vrot.lane.b32.xlu0 %v7193, 28
  %v7349 = vpop.permute.xlu0 %7348
  %7350 = vrot.lane.b32.xlu0 %v7194, 28
  %v7351 = vpop.permute.xlu0 %7350
  %7352 = vrot.lane.b32.xlu0 %v7195, 28
  %v7353 = vpop.permute.xlu0 %7352
  %7354 = vrot.lane.b32.xlu0 %v7196, 28
  %v7355 = vpop.permute.xlu0 %7354
  %7356 = vrot.lane.b32.xlu0 %v7197, 28
  %v7357 = vpop.permute.xlu0 %7356
  %7358 = vrot.lane.b32.xlu0 %v7198, 28
  %v7359 = vpop.permute.xlu0 %7358
  %7360 = vrot.lane.b32.xlu0 %v7199, 28
  %v7361 = vpop.permute.xlu0 %7360
  %7362 = vrot.lane.b32.xlu0 %v7200, 28
  %v7363 = vpop.permute.xlu0 %7362
  %7364 = vrot.lane.b32.xlu0 %v7201, 28
  %v7365 = vpop.permute.xlu0 %7364
  %7366 = vrot.lane.b32.xlu0 %v7202, 28
  %v7367 = vpop.permute.xlu0 %7366
  %7368 = vrot.lane.b32.xlu0 %v7203, 28
  %v7369 = vpop.permute.xlu0 %7368
  %7370 = vrot.lane.b32.xlu0 %v7204, 28
  %v7371 = vpop.permute.xlu0 %7370
  %7372 = vrot.lane.b32.xlu0 %v7205, 28
  %v7373 = vpop.permute.xlu0 %7372
  %7374 = vrot.lane.b32.xlu0 %v7206, 28
  %v7375 = vpop.permute.xlu0 %7374
  %7376 = vrot.lane.b32.xlu0 %v7207, 28
  %v7377 = vpop.permute.xlu0 %7376
  %7378 = vrot.lane.b32.xlu0 %v7208, 28
  %v7379 = vpop.permute.xlu0 %7378
  %7380 = vrot.lane.b32.xlu0 %v7209, 28
  %v7381 = vpop.permute.xlu0 %7380
  %7382 = vrot.lane.b32.xlu0 %v7210, 28
  %v7383 = vpop.permute.xlu0 %7382
  %7384 = vrot.lane.b32.xlu0 %v7211, 28
  %v7385 = vpop.permute.xlu0 %7384
  %7386 = vrot.lane.b32.xlu0 %v7212, 28
  %v7387 = vpop.permute.xlu0 %7386
  %7388 = vrot.lane.b32.xlu0 %v7213, 28
  %v7389 = vpop.permute.xlu0 %7388
  %7390 = vrot.lane.b32.xlu0 %v7214, 28
  %v7391 = vpop.permute.xlu0 %7390
  %7392 = vrot.lane.b32.xlu0 %v7215, 28
  %v7393 = vpop.permute.xlu0 %7392
  %7394 = vrot.lane.b32.xlu0 %v7216, 28
  %v7395 = vpop.permute.xlu0 %7394
  %7396 = vrot.lane.b32.xlu0 %v7217, 28
  %v7397 = vpop.permute.xlu0 %7396
  %7398 = vrot.lane.b32.xlu0 %v7218, 28
  %v7399 = vpop.permute.xlu0 %7398
  %7400 = vrot.lane.b32.xlu0 %v7219, 28
  %v7401 = vpop.permute.xlu0 %7400
  %7402 = vrot.lane.b32.xlu0 %v7220, 28
  %v7403 = vpop.permute.xlu0 %7402
  %7404 = vrot.lane.b32.xlu0 %v7221, 28
  %v7405 = vpop.permute.xlu0 %7404
  %7406 = vrot.lane.b32.xlu0 %v7222, 28
  %v7407 = vpop.permute.xlu0 %7406
  %7408 = vrot.lane.b32.xlu0 %v7223, 28
  %v7409 = vpop.permute.xlu0 %7408
  %7410 = vrot.lane.b32.xlu0 %v7224, 28
  %v7411 = vpop.permute.xlu0 %7410
  %7412 = vrot.lane.b32.xlu0 %v7225, 28
  %v7413 = vpop.permute.xlu0 %7412
  %7414 = vrot.lane.b32.xlu0 %v7226, 28
  %v7415 = vpop.permute.xlu0 %7414
  %7416 = vrot.lane.b32.xlu0 %v7227, 28
  %v7417 = vpop.permute.xlu0 %7416
  %7418 = vrot.lane.b32.xlu0 %v7228, 28
  %v7419 = vpop.permute.xlu0 %7418
  %7420 = vrot.lane.b32.xlu0 %v7229, 28
  %v7421 = vpop.permute.xlu0 %7420
  %7486 = vst.msk [vmem:[#allocation3] sm:$0xff] %vm3024, %v7295
  %7487 = vst.msk [vmem:[#allocation3 + $0x8] sm:$0xff] %vm3024, %v7297
  %7488 = vst.msk [vmem:[#allocation3 + $0x10] sm:$0xff] %vm3024, %v7299
  %7489 = vst.msk [vmem:[#allocation3 + $0x18] sm:$0xff] %vm3024, %v7301
  %7490 = vst.msk [vmem:[#allocation3 + $0x20] sm:$0xff] %vm3024, %v7303
  %7491 = vst.msk [vmem:[#allocation3 + $0x28] sm:$0xff] %vm3024, %v7305
  %7492 = vst.msk [vmem:[#allocation3 + $0x30] sm:$0xff] %vm3024, %v7307
  %7493 = vst.msk [vmem:[#allocation3 + $0x38] sm:$0xff] %vm3024, %v7309
  %7494 = vst.msk [vmem:[#allocation3 + $0x40] sm:$0xff] %vm3024, %v7311
  %7495 = vst.msk [vmem:[#allocation3 + $0x48] sm:$0xff] %vm3024, %v7313
  %7496 = vst.msk [vmem:[#allocation3 + $0x50] sm:$0xff] %vm3024, %v7315
  %7497 = vst.msk [vmem:[#allocation3 + $0x58] sm:$0xff] %vm3024, %v7317
  %7498 = vst.msk [vmem:[#allocation3 + $0x60] sm:$0xff] %vm3024, %v7319
  %7499 = vst.msk [vmem:[#allocation3 + $0x68] sm:$0xff] %vm3024, %v7321
  %7500 = vst.msk [vmem:[#allocation3 + $0x70] sm:$0xff] %vm3024, %v7323
  %7501 = vst.msk [vmem:[#allocation3 + $0x78] sm:$0xff] %vm3024, %v7325
  %7502 = vst.msk [vmem:[#allocation3 + $0x80] sm:$0xff] %vm3024, %v7327
  %7503 = vst.msk [vmem:[#allocation3 + $0x88] sm:$0xff] %vm3024, %v7329
  %7504 = vst.msk [vmem:[#allocation3 + $0x90] sm:$0xff] %vm3024, %v7331
  %7505 = vst.msk [vmem:[#allocation3 + $0x98] sm:$0xff] %vm3024, %v7333
  %7506 = vst.msk [vmem:[#allocation3 + $0xa0] sm:$0xff] %vm3024, %v7335
  %7507 = vst.msk [vmem:[#allocation3 + $0xa8] sm:$0xff] %vm3024, %v7337
  %7508 = vst.msk [vmem:[#allocation3 + $0xb0] sm:$0xff] %vm3024, %v7339
  %7509 = vst.msk [vmem:[#allocation3 + $0xb8] sm:$0xff] %vm3024, %v7341
  %7510 = vst.msk [vmem:[#allocation3 + $0xc0] sm:$0xff] %vm3024, %v7343
  %7511 = vst.msk [vmem:[#allocation3 + $0xc8] sm:$0xff] %vm3024, %v7345
  %7512 = vst.msk [vmem:[#allocation3 + $0xd0] sm:$0xff] %vm3024, %v7347
  %7513 = vst.msk [vmem:[#allocation3 + $0xd8] sm:$0xff] %vm3024, %v7349
  %7514 = vst.msk [vmem:[#allocation3 + $0xe0] sm:$0xff] %vm3024, %v7351
  %7515 = vst.msk [vmem:[#allocation3 + $0xe8] sm:$0xff] %vm3024, %v7353
  %7516 = vst.msk [vmem:[#allocation3 + $0xf0] sm:$0xff] %vm3024, %v7355
  %7517 = vst.msk [vmem:[#allocation3 + $0xf8] sm:$0xff] %vm3024, %v7357
  %7518 = vst.msk [vmem:[#allocation3 + $0x100] sm:$0xff] %vm3024, %v7359
  %7519 = vst.msk [vmem:[#allocation3 + $0x108] sm:$0xff] %vm3024, %v7361
  %7520 = vst.msk [vmem:[#allocation3 + $0x110] sm:$0xff] %vm3024, %v7363
  %7521 = vst.msk [vmem:[#allocation3 + $0x118] sm:$0xff] %vm3024, %v7365
  %7522 = vst.msk [vmem:[#allocation3 + $0x120] sm:$0xff] %vm3024, %v7367
  %7523 = vst.msk [vmem:[#allocation3 + $0x128] sm:$0xff] %vm3024, %v7369
  %7524 = vst.msk [vmem:[#allocation3 + $0x130] sm:$0xff] %vm3024, %v7371
  %7525 = vst.msk [vmem:[#allocation3 + $0x138] sm:$0xff] %vm3024, %v7373
  %7526 = vst.msk [vmem:[#allocation3 + $0x140] sm:$0xff] %vm3024, %v7375
  %7527 = vst.msk [vmem:[#allocation3 + $0x148] sm:$0xff] %vm3024, %v7377
  %7528 = vst.msk [vmem:[#allocation3 + $0x150] sm:$0xff] %vm3024, %v7379
  %7529 = vst.msk [vmem:[#allocation3 + $0x158] sm:$0xff] %vm3024, %v7381
  %7530 = vst.msk [vmem:[#allocation3 + $0x160] sm:$0xff] %vm3024, %v7383
  %7531 = vst.msk [vmem:[#allocation3 + $0x168] sm:$0xff] %vm3024, %v7385
  %7532 = vst.msk [vmem:[#allocation3 + $0x170] sm:$0xff] %vm3024, %v7387
  %7533 = vst.msk [vmem:[#allocation3 + $0x178] sm:$0xff] %vm3024, %v7389
  %7534 = vst.msk [vmem:[#allocation3 + $0x180] sm:$0xff] %vm3024, %v7391
  %7535 = vst.msk [vmem:[#allocation3 + $0x188] sm:$0xff] %vm3024, %v7393
  %7536 = vst.msk [vmem:[#allocation3 + $0x190] sm:$0xff] %vm3024, %v7395
  %7537 = vst.msk [vmem:[#allocation3 + $0x198] sm:$0xff] %vm3024, %v7397
  %7538 = vst.msk [vmem:[#allocation3 + $0x1a0] sm:$0xff] %vm3024, %v7399
  %7539 = vst.msk [vmem:[#allocation3 + $0x1a8] sm:$0xff] %vm3024, %v7401
  %7540 = vst.msk [vmem:[#allocation3 + $0x1b0] sm:$0xff] %vm3024, %v7403
  %7541 = vst.msk [vmem:[#allocation3 + $0x1b8] sm:$0xff] %vm3024, %v7405
  %7542 = vst.msk [vmem:[#allocation3 + $0x1c0] sm:$0xff] %vm3024, %v7407
  %7543 = vst.msk [vmem:[#allocation3 + $0x1c8] sm:$0xff] %vm3024, %v7409
  %7544 = vst.msk [vmem:[#allocation3 + $0x1d0] sm:$0xff] %vm3024, %v7411
  %7545 = vst.msk [vmem:[#allocation3 + $0x1d8] sm:$0xff] %vm3024, %v7413
  %7546 = vst.msk [vmem:[#allocation3 + $0x1e0] sm:$0xff] %vm3024, %v7415
  %7547 = vst.msk [vmem:[#allocation3 + $0x1e8] sm:$0xff] %vm3024, %v7417
  %7548 = vst.msk [vmem:[#allocation3 + $0x1f0] sm:$0xff] %vm3024, %v7419
  %7549 = vst.msk [vmem:[#allocation3 + $0x1f8] sm:$0xff] %vm3024, %v7421
  %v7550 = vld [vmem:[%s2318 + $0x2] sm:$0xff]
  %v7551 = vld [vmem:[%s2318 + $0xa] sm:$0xff]
  %v7552 = vld [vmem:[%s2318 + $0x1a] sm:$0xff]
  %v7553 = vld [vmem:[%s2318 + $0x22] sm:$0xff]
  %v7554 = vld [vmem:[%s2318 + $0x32] sm:$0xff]
  %v7555 = vld [vmem:[%s2318 + $0x3a] sm:$0xff]
  %v7556 = vld [vmem:[%s2318 + $0x4a] sm:$0xff]
  %v7557 = vld [vmem:[%s2318 + $0x52] sm:$0xff]
  %v7558 = vld [vmem:[%s2318 + $0x62] sm:$0xff]
  %v7559 = vld [vmem:[%s2318 + $0x6a] sm:$0xff]
  %v7560 = vld [vmem:[%s2318 + $0x7a] sm:$0xff]
  %v7561 = vld [vmem:[%s2318 + $0x82] sm:$0xff]
  %v7562 = vld [vmem:[%s2318 + $0x92] sm:$0xff]
  %v7563 = vld [vmem:[%s2318 + $0x9a] sm:$0xff]
  %v7564 = vld [vmem:[%s2318 + $0xaa] sm:$0xff]
  %v7565 = vld [vmem:[%s2318 + $0xb2] sm:$0xff]
  %v7566 = vld [vmem:[%s2318 + $0xc2] sm:$0xff]
  %v7567 = vld [vmem:[%s2318 + $0xca] sm:$0xff]
  %v7568 = vld [vmem:[%s2318 + $0xda] sm:$0xff]
  %v7569 = vld [vmem:[%s2318 + $0xe2] sm:$0xff]
  %v7570 = vld [vmem:[%s2318 + $0xf2] sm:$0xff]
  %v7571 = vld [vmem:[%s2318 + $0xfa] sm:$0xff]
  %v7572 = vld [vmem:[%s2318 + $0x10a] sm:$0xff]
  %v7573 = vld [vmem:[%s2318 + $0x112] sm:$0xff]
  %v7574 = vld [vmem:[%s2318 + $0x122] sm:$0xff]
  %v7575 = vld [vmem:[%s2318 + $0x12a] sm:$0xff]
  %v7576 = vld [vmem:[%s2318 + $0x13a] sm:$0xff]
  %v7577 = vld [vmem:[%s2318 + $0x142] sm:$0xff]
  %v7578 = vld [vmem:[%s2318 + $0x152] sm:$0xff]
  %v7579 = vld [vmem:[%s2318 + $0x15a] sm:$0xff]
  %v7580 = vld [vmem:[%s2318 + $0x16a] sm:$0xff]
  %v7581 = vld [vmem:[%s2318 + $0x172] sm:$0xff]
  %v7582 = vld [vmem:[%s2318 + $0x1b2] sm:$0xff]
  %v7583 = vld [vmem:[%s2318 + $0x1ba] sm:$0xff]
  %v7584 = vld [vmem:[%s2318 + $0x1ca] sm:$0xff]
  %v7585 = vld [vmem:[%s2318 + $0x1d2] sm:$0xff]
  %v7586 = vld [vmem:[%s2318 + $0x1e2] sm:$0xff]
  %v7587 = vld [vmem:[%s2318 + $0x1ea] sm:$0xff]
  %v7588 = vld [vmem:[%s2318 + $0x1fa] sm:$0xff]
  %v7589 = vld [vmem:[%s2318 + $0x202] sm:$0xff]
  %v7590 = vld [vmem:[%s2318 + $0x212] sm:$0xff]
  %v7591 = vld [vmem:[%s2318 + $0x21a] sm:$0xff]
  %v7592 = vld [vmem:[%s2318 + $0x22a] sm:$0xff]
  %v7593 = vld [vmem:[%s2318 + $0x232] sm:$0xff]
  %v7594 = vld [vmem:[%s2318 + $0x242] sm:$0xff]
  %v7595 = vld [vmem:[%s2318 + $0x24a] sm:$0xff]
  %v7596 = vld [vmem:[%s2318 + $0x25a] sm:$0xff]
  %v7597 = vld [vmem:[%s2318 + $0x262] sm:$0xff]
  %v7598 = vld [vmem:[%s2318 + $0x272] sm:$0xff]
  %v7599 = vld [vmem:[%s2318 + $0x27a] sm:$0xff]
  %v7600 = vld [vmem:[%s2318 + $0x28a] sm:$0xff]
  %v7601 = vld [vmem:[%s2318 + $0x292] sm:$0xff]
  %v7602 = vld [vmem:[%s2318 + $0x2a2] sm:$0xff]
  %v7603 = vld [vmem:[%s2318 + $0x2aa] sm:$0xff]
  %v7604 = vld [vmem:[%s2318 + $0x2ba] sm:$0xff]
  %v7605 = vld [vmem:[%s2318 + $0x2c2] sm:$0xff]
  %v7606 = vld [vmem:[%s2318 + $0x2d2] sm:$0xff]
  %v7607 = vld [vmem:[%s2318 + $0x2da] sm:$0xff]
  %v7608 = vld [vmem:[%s2318 + $0x2ea] sm:$0xff]
  %v7609 = vld [vmem:[%s2318 + $0x2f2] sm:$0xff]
  %v7610 = vld [vmem:[%s2318 + $0x302] sm:$0xff]
  %v7611 = vld [vmem:[%s2318 + $0x30a] sm:$0xff]
  %v7612 = vld [vmem:[%s2318 + $0x31a] sm:$0xff]
  %v7613 = vld [vmem:[%s2318 + $0x322] sm:$0xff]
  %7678 = vrot.lane.b32.xlu0 %v7550, 32
  %v7679 = vpop.permute.xlu0 %7678
  %7680 = vrot.lane.b32.xlu0 %v7551, 32
  %v7681 = vpop.permute.xlu0 %7680
  %7682 = vrot.lane.b32.xlu0 %v7552, 32
  %v7683 = vpop.permute.xlu0 %7682
  %7684 = vrot.lane.b32.xlu0 %v7553, 32
  %v7685 = vpop.permute.xlu0 %7684
  %7686 = vrot.lane.b32.xlu0 %v7554, 32
  %v7687 = vpop.permute.xlu0 %7686
  %7688 = vrot.lane.b32.xlu0 %v7555, 32
  %v7689 = vpop.permute.xlu0 %7688
  %7690 = vrot.lane.b32.xlu0 %v7556, 32
  %v7691 = vpop.permute.xlu0 %7690
  %7692 = vrot.lane.b32.xlu0 %v7557, 32
  %v7693 = vpop.permute.xlu0 %7692
  %7694 = vrot.lane.b32.xlu0 %v7558, 32
  %v7695 = vpop.permute.xlu0 %7694
  %7696 = vrot.lane.b32.xlu0 %v7559, 32
  %v7697 = vpop.permute.xlu0 %7696
  %7698 = vrot.lane.b32.xlu0 %v7560, 32
  %v7699 = vpop.permute.xlu0 %7698
  %7700 = vrot.lane.b32.xlu0 %v7561, 32
  %v7701 = vpop.permute.xlu0 %7700
  %7702 = vrot.lane.b32.xlu0 %v7562, 32
  %v7703 = vpop.permute.xlu0 %7702
  %7704 = vrot.lane.b32.xlu0 %v7563, 32
  %v7705 = vpop.permute.xlu0 %7704
  %7706 = vrot.lane.b32.xlu0 %v7564, 32
  %v7707 = vpop.permute.xlu0 %7706
  %7708 = vrot.lane.b32.xlu0 %v7565, 32
  %v7709 = vpop.permute.xlu0 %7708
  %7710 = vrot.lane.b32.xlu0 %v7566, 32
  %v7711 = vpop.permute.xlu0 %7710
  %7712 = vrot.lane.b32.xlu0 %v7567, 32
  %v7713 = vpop.permute.xlu0 %7712
  %7714 = vrot.lane.b32.xlu0 %v7568, 32
  %v7715 = vpop.permute.xlu0 %7714
  %7716 = vrot.lane.b32.xlu0 %v7569, 32
  %v7717 = vpop.permute.xlu0 %7716
  %7718 = vrot.lane.b32.xlu0 %v7570, 32
  %v7719 = vpop.permute.xlu0 %7718
  %7720 = vrot.lane.b32.xlu0 %v7571, 32
  %v7721 = vpop.permute.xlu0 %7720
  %7722 = vrot.lane.b32.xlu0 %v7572, 32
  %v7723 = vpop.permute.xlu0 %7722
  %7724 = vrot.lane.b32.xlu0 %v7573, 32
  %v7725 = vpop.permute.xlu0 %7724
  %7726 = vrot.lane.b32.xlu0 %v7574, 32
  %v7727 = vpop.permute.xlu0 %7726
  %7728 = vrot.lane.b32.xlu0 %v7575, 32
  %v7729 = vpop.permute.xlu0 %7728
  %7730 = vrot.lane.b32.xlu0 %v7576, 32
  %v7731 = vpop.permute.xlu0 %7730
  %7732 = vrot.lane.b32.xlu0 %v7577, 32
  %v7733 = vpop.permute.xlu0 %7732
  %7734 = vrot.lane.b32.xlu0 %v7578, 32
  %v7735 = vpop.permute.xlu0 %7734
  %7736 = vrot.lane.b32.xlu0 %v7579, 32
  %v7737 = vpop.permute.xlu0 %7736
  %7738 = vrot.lane.b32.xlu0 %v7580, 32
  %v7739 = vpop.permute.xlu0 %7738
  %7740 = vrot.lane.b32.xlu0 %v7581, 32
  %v7741 = vpop.permute.xlu0 %7740
  %7742 = vrot.lane.b32.xlu0 %v7582, 32
  %v7743 = vpop.permute.xlu0 %7742
  %7744 = vrot.lane.b32.xlu0 %v7583, 32
  %v7745 = vpop.permute.xlu0 %7744
  %7746 = vrot.lane.b32.xlu0 %v7584, 32
  %v7747 = vpop.permute.xlu0 %7746
  %7748 = vrot.lane.b32.xlu0 %v7585, 32
  %v7749 = vpop.permute.xlu0 %7748
  %7750 = vrot.lane.b32.xlu0 %v7586, 32
  %v7751 = vpop.permute.xlu0 %7750
  %7752 = vrot.lane.b32.xlu0 %v7587, 32
  %v7753 = vpop.permute.xlu0 %7752
  %7754 = vrot.lane.b32.xlu0 %v7588, 32
  %v7755 = vpop.permute.xlu0 %7754
  %7756 = vrot.lane.b32.xlu0 %v7589, 32
  %v7757 = vpop.permute.xlu0 %7756
  %7758 = vrot.lane.b32.xlu0 %v7590, 32
  %v7759 = vpop.permute.xlu0 %7758
  %7760 = vrot.lane.b32.xlu0 %v7591, 32
  %v7761 = vpop.permute.xlu0 %7760
  %7762 = vrot.lane.b32.xlu0 %v7592, 32
  %v7763 = vpop.permute.xlu0 %7762
  %7764 = vrot.lane.b32.xlu0 %v7593, 32
  %v7765 = vpop.permute.xlu0 %7764
  %7766 = vrot.lane.b32.xlu0 %v7594, 32
  %v7767 = vpop.permute.xlu0 %7766
  %7768 = vrot.lane.b32.xlu0 %v7595, 32
  %v7769 = vpop.permute.xlu0 %7768
  %7770 = vrot.lane.b32.xlu0 %v7596, 32
  %v7771 = vpop.permute.xlu0 %7770
  %7772 = vrot.lane.b32.xlu0 %v7597, 32
  %v7773 = vpop.permute.xlu0 %7772
  %7774 = vrot.lane.b32.xlu0 %v7598, 32
  %v7775 = vpop.permute.xlu0 %7774
  %7776 = vrot.lane.b32.xlu0 %v7599, 32
  %v7777 = vpop.permute.xlu0 %7776
  %7778 = vrot.lane.b32.xlu0 %v7600, 32
  %v7779 = vpop.permute.xlu0 %7778
  %7780 = vrot.lane.b32.xlu0 %v7601, 32
  %v7781 = vpop.permute.xlu0 %7780
  %7782 = vrot.lane.b32.xlu0 %v7602, 32
  %v7783 = vpop.permute.xlu0 %7782
  %7784 = vrot.lane.b32.xlu0 %v7603, 32
  %v7785 = vpop.permute.xlu0 %7784
  %7786 = vrot.lane.b32.xlu0 %v7604, 32
  %v7787 = vpop.permute.xlu0 %7786
  %7788 = vrot.lane.b32.xlu0 %v7605, 32
  %v7789 = vpop.permute.xlu0 %7788
  %7790 = vrot.lane.b32.xlu0 %v7606, 32
  %v7791 = vpop.permute.xlu0 %7790
  %7792 = vrot.lane.b32.xlu0 %v7607, 32
  %v7793 = vpop.permute.xlu0 %7792
  %7794 = vrot.lane.b32.xlu0 %v7608, 32
  %v7795 = vpop.permute.xlu0 %7794
  %7796 = vrot.lane.b32.xlu0 %v7609, 32
  %v7797 = vpop.permute.xlu0 %7796
  %7798 = vrot.lane.b32.xlu0 %v7610, 32
  %v7799 = vpop.permute.xlu0 %7798
  %7800 = vrot.lane.b32.xlu0 %v7611, 32
  %v7801 = vpop.permute.xlu0 %7800
  %7802 = vrot.lane.b32.xlu0 %v7612, 32
  %v7803 = vpop.permute.xlu0 %7802
  %7804 = vrot.lane.b32.xlu0 %v7613, 32
  %v7805 = vpop.permute.xlu0 %7804
  %7870 = vst.msk [vmem:[#allocation3] sm:$0xff] %vm3409, %v7679
  %7871 = vst.msk [vmem:[#allocation3 + $0x8] sm:$0xff] %vm3409, %v7681
  %7872 = vst.msk [vmem:[#allocation3 + $0x10] sm:$0xff] %vm3409, %v7683
  %7873 = vst.msk [vmem:[#allocation3 + $0x18] sm:$0xff] %vm3409, %v7685
  %7874 = vst.msk [vmem:[#allocation3 + $0x20] sm:$0xff] %vm3409, %v7687
  %7875 = vst.msk [vmem:[#allocation3 + $0x28] sm:$0xff] %vm3409, %v7689
  %7876 = vst.msk [vmem:[#allocation3 + $0x30] sm:$0xff] %vm3409, %v7691
  %7877 = vst.msk [vmem:[#allocation3 + $0x38] sm:$0xff] %vm3409, %v7693
  %7878 = vst.msk [vmem:[#allocation3 + $0x40] sm:$0xff] %vm3409, %v7695
  %7879 = vst.msk [vmem:[#allocation3 + $0x48] sm:$0xff] %vm3409, %v7697
  %7880 = vst.msk [vmem:[#allocation3 + $0x50] sm:$0xff] %vm3409, %v7699
  %7881 = vst.msk [vmem:[#allocation3 + $0x58] sm:$0xff] %vm3409, %v7701
  %7882 = vst.msk [vmem:[#allocation3 + $0x60] sm:$0xff] %vm3409, %v7703
  %7883 = vst.msk [vmem:[#allocation3 + $0x68] sm:$0xff] %vm3409, %v7705
  %7884 = vst.msk [vmem:[#allocation3 + $0x70] sm:$0xff] %vm3409, %v7707
  %7885 = vst.msk [vmem:[#allocation3 + $0x78] sm:$0xff] %vm3409, %v7709
  %7886 = vst.msk [vmem:[#allocation3 + $0x80] sm:$0xff] %vm3409, %v7711
  %7887 = vst.msk [vmem:[#allocation3 + $0x88] sm:$0xff] %vm3409, %v7713
  %7888 = vst.msk [vmem:[#allocation3 + $0x90] sm:$0xff] %vm3409, %v7715
  %7889 = vst.msk [vmem:[#allocation3 + $0x98] sm:$0xff] %vm3409, %v7717
  %7890 = vst.msk [vmem:[#allocation3 + $0xa0] sm:$0xff] %vm3409, %v7719
  %7891 = vst.msk [vmem:[#allocation3 + $0xa8] sm:$0xff] %vm3409, %v7721
  %7892 = vst.msk [vmem:[#allocation3 + $0xb0] sm:$0xff] %vm3409, %v7723
  %7893 = vst.msk [vmem:[#allocation3 + $0xb8] sm:$0xff] %vm3409, %v7725
  %7894 = vst.msk [vmem:[#allocation3 + $0xc0] sm:$0xff] %vm3409, %v7727
  %7895 = vst.msk [vmem:[#allocation3 + $0xc8] sm:$0xff] %vm3409, %v7729
  %7896 = vst.msk [vmem:[#allocation3 + $0xd0] sm:$0xff] %vm3409, %v7731
  %7897 = vst.msk [vmem:[#allocation3 + $0xd8] sm:$0xff] %vm3409, %v7733
  %7898 = vst.msk [vmem:[#allocation3 + $0xe0] sm:$0xff] %vm3409, %v7735
  %7899 = vst.msk [vmem:[#allocation3 + $0xe8] sm:$0xff] %vm3409, %v7737
  %7900 = vst.msk [vmem:[#allocation3 + $0xf0] sm:$0xff] %vm3409, %v7739
  %7901 = vst.msk [vmem:[#allocation3 + $0xf8] sm:$0xff] %vm3409, %v7741
  %7902 = vst.msk [vmem:[#allocation3 + $0x100] sm:$0xff] %vm3409, %v7743
  %7903 = vst.msk [vmem:[#allocation3 + $0x108] sm:$0xff] %vm3409, %v7745
  %7904 = vst.msk [vmem:[#allocation3 + $0x110] sm:$0xff] %vm3409, %v7747
  %7905 = vst.msk [vmem:[#allocation3 + $0x118] sm:$0xff] %vm3409, %v7749
  %7906 = vst.msk [vmem:[#allocation3 + $0x120] sm:$0xff] %vm3409, %v7751
  %7907 = vst.msk [vmem:[#allocation3 + $0x128] sm:$0xff] %vm3409, %v7753
  %7908 = vst.msk [vmem:[#allocation3 + $0x130] sm:$0xff] %vm3409, %v7755
  %7909 = vst.msk [vmem:[#allocation3 + $0x138] sm:$0xff] %vm3409, %v7757
  %7910 = vst.msk [vmem:[#allocation3 + $0x140] sm:$0xff] %vm3409, %v7759
  %7911 = vst.msk [vmem:[#allocation3 + $0x148] sm:$0xff] %vm3409, %v7761
  %7912 = vst.msk [vmem:[#allocation3 + $0x150] sm:$0xff] %vm3409, %v7763
  %7913 = vst.msk [vmem:[#allocation3 + $0x158] sm:$0xff] %vm3409, %v7765
  %7914 = vst.msk [vmem:[#allocation3 + $0x160] sm:$0xff] %vm3409, %v7767
  %7915 = vst.msk [vmem:[#allocation3 + $0x168] sm:$0xff] %vm3409, %v7769
  %7916 = vst.msk [vmem:[#allocation3 + $0x170] sm:$0xff] %vm3409, %v7771
  %7917 = vst.msk [vmem:[#allocation3 + $0x178] sm:$0xff] %vm3409, %v7773
  %7918 = vst.msk [vmem:[#allocation3 + $0x180] sm:$0xff] %vm3409, %v7775
  %7919 = vst.msk [vmem:[#allocation3 + $0x188] sm:$0xff] %vm3409, %v7777
  %7920 = vst.msk [vmem:[#allocation3 + $0x190] sm:$0xff] %vm3409, %v7779
  %7921 = vst.msk [vmem:[#allocation3 + $0x198] sm:$0xff] %vm3409, %v7781
  %7922 = vst.msk [vmem:[#allocation3 + $0x1a0] sm:$0xff] %vm3409, %v7783
  %7923 = vst.msk [vmem:[#allocation3 + $0x1a8] sm:$0xff] %vm3409, %v7785
  %7924 = vst.msk [vmem:[#allocation3 + $0x1b0] sm:$0xff] %vm3409, %v7787
  %7925 = vst.msk [vmem:[#allocation3 + $0x1b8] sm:$0xff] %vm3409, %v7789
  %7926 = vst.msk [vmem:[#allocation3 + $0x1c0] sm:$0xff] %vm3409, %v7791
  %7927 = vst.msk [vmem:[#allocation3 + $0x1c8] sm:$0xff] %vm3409, %v7793
  %7928 = vst.msk [vmem:[#allocation3 + $0x1d0] sm:$0xff] %vm3409, %v7795
  %7929 = vst.msk [vmem:[#allocation3 + $0x1d8] sm:$0xff] %vm3409, %v7797
  %7930 = vst.msk [vmem:[#allocation3 + $0x1e0] sm:$0xff] %vm3409, %v7799
  %7931 = vst.msk [vmem:[#allocation3 + $0x1e8] sm:$0xff] %vm3409, %v7801
  %7932 = vst.msk [vmem:[#allocation3 + $0x1f0] sm:$0xff] %vm3409, %v7803
  %7933 = vst.msk [vmem:[#allocation3 + $0x1f8] sm:$0xff] %vm3409, %v7805
  %v7934 = vld [vmem:[#allocation3] sm:$0xff]
  %v7935 = vld [vmem:[#allocation3 + $0x8] sm:$0xff]
  %v7936 = vld [vmem:[#allocation3 + $0x10] sm:$0xff]
  %v7937 = vld [vmem:[#allocation3 + $0x18] sm:$0xff]
  %v7938 = vld [vmem:[#allocation3 + $0x20] sm:$0xff]
  %v7939 = vld [vmem:[#allocation3 + $0x28] sm:$0xff]
  %v7940 = vld [vmem:[#allocation3 + $0x30] sm:$0xff]
  %v7941 = vld [vmem:[#allocation3 + $0x38] sm:$0xff]
  %v7942 = vld [vmem:[#allocation3 + $0x40] sm:$0xff]
  %v7943 = vld [vmem:[#allocation3 + $0x48] sm:$0xff]
  %v7944 = vld [vmem:[#allocation3 + $0x50] sm:$0xff]
  %v7945 = vld [vmem:[#allocation3 + $0x58] sm:$0xff]
  %v7946 = vld [vmem:[#allocation3 + $0x60] sm:$0xff]
  %v7947 = vld [vmem:[#allocation3 + $0x68] sm:$0xff]
  %v7948 = vld [vmem:[#allocation3 + $0x70] sm:$0xff]
  %v7949 = vld [vmem:[#allocation3 + $0x78] sm:$0xff]
  %v7950 = vld [vmem:[#allocation3 + $0x80] sm:$0xff]
  %v7951 = vld [vmem:[#allocation3 + $0x88] sm:$0xff]
  %v7952 = vld [vmem:[#allocation3 + $0x90] sm:$0xff]
  %v7953 = vld [vmem:[#allocation3 + $0x98] sm:$0xff]
  %v7954 = vld [vmem:[#allocation3 + $0xa0] sm:$0xff]
  %v7955 = vld [vmem:[#allocation3 + $0xa8] sm:$0xff]
  %v7956 = vld [vmem:[#allocation3 + $0xb0] sm:$0xff]
  %v7957 = vld [vmem:[#allocation3 + $0xb8] sm:$0xff]
  %v7958 = vld [vmem:[#allocation3 + $0xc0] sm:$0xff]
  %v7959 = vld [vmem:[#allocation3 + $0xc8] sm:$0xff]
  %v7960 = vld [vmem:[#allocation3 + $0xd0] sm:$0xff]
  %v7961 = vld [vmem:[#allocation3 + $0xd8] sm:$0xff]
  %v7962 = vld [vmem:[#allocation3 + $0xe0] sm:$0xff]
  %v7963 = vld [vmem:[#allocation3 + $0xe8] sm:$0xff]
  %v7964 = vld [vmem:[#allocation3 + $0xf0] sm:$0xff]
  %v7965 = vld [vmem:[#allocation3 + $0xf8] sm:$0xff]
  %v7966 = vld [vmem:[#allocation3 + $0x100] sm:$0xff]
  %v7967 = vld [vmem:[#allocation3 + $0x108] sm:$0xff]
  %v7968 = vld [vmem:[#allocation3 + $0x110] sm:$0xff]
  %v7969 = vld [vmem:[#allocation3 + $0x118] sm:$0xff]
  %v7970 = vld [vmem:[#allocation3 + $0x120] sm:$0xff]
  %v7971 = vld [vmem:[#allocation3 + $0x128] sm:$0xff]
  %v7972 = vld [vmem:[#allocation3 + $0x130] sm:$0xff]
  %v7973 = vld [vmem:[#allocation3 + $0x138] sm:$0xff]
  %v7974 = vld [vmem:[#allocation3 + $0x140] sm:$0xff]
  %v7975 = vld [vmem:[#allocation3 + $0x148] sm:$0xff]
  %v7976 = vld [vmem:[#allocation3 + $0x150] sm:$0xff]
  %v7977 = vld [vmem:[#allocation3 + $0x158] sm:$0xff]
  %v7978 = vld [vmem:[#allocation3 + $0x160] sm:$0xff]
  %v7979 = vld [vmem:[#allocation3 + $0x168] sm:$0xff]
  %v7980 = vld [vmem:[#allocation3 + $0x170] sm:$0xff]
  %v7981 = vld [vmem:[#allocation3 + $0x178] sm:$0xff]
  %v7982 = vld [vmem:[#allocation3 + $0x180] sm:$0xff]
  %v7983 = vld [vmem:[#allocation3 + $0x188] sm:$0xff]
  %v7984 = vld [vmem:[#allocation3 + $0x190] sm:$0xff]
  %v7985 = vld [vmem:[#allocation3 + $0x198] sm:$0xff]
  %v7986 = vld [vmem:[#allocation3 + $0x1a0] sm:$0xff]
  %v7987 = vld [vmem:[#allocation3 + $0x1a8] sm:$0xff]
  %v7988 = vld [vmem:[#allocation3 + $0x1b0] sm:$0xff]
  %v7989 = vld [vmem:[#allocation3 + $0x1b8] sm:$0xff]
  %v7990 = vld [vmem:[#allocation3 + $0x1c0] sm:$0xff]
  %v7991 = vld [vmem:[#allocation3 + $0x1c8] sm:$0xff]
  %v7992 = vld [vmem:[#allocation3 + $0x1d0] sm:$0xff]
  %v7993 = vld [vmem:[#allocation3 + $0x1d8] sm:$0xff]
  %v7994 = vld [vmem:[#allocation3 + $0x1e0] sm:$0xff]
  %v7995 = vld [vmem:[#allocation3 + $0x1e8] sm:$0xff]
  %v7996 = vld [vmem:[#allocation3 + $0x1f0] sm:$0xff]
  %v7997 = vld [vmem:[#allocation3 + $0x1f8] sm:$0xff]
  %v7998 = vld [vmem:[%s2] sm:$0xff]
  %v7999 = vld [vmem:[%s2 + $0x8] sm:$0xff]
  %v8000 = vld [vmem:[%s2 + $0x10] sm:$0xff]
  %v8001 = vld [vmem:[%s2 + $0x18] sm:$0xff]
  %v8002 = vld [vmem:[%s2 + $0x20] sm:$0xf]
  %v8004 = vsel %vm3543, %v7934, 0
  %v8007 = vsel %vm3543, %v7935, 0
  %v8010 = vsel %vm3543, %v7936, 0
  %v8013 = vsel %vm3543, %v7937, 0
  %v8016 = vsel %vm3543, %v7938, 0
  %v8019 = vsel %vm3543, %v7939, 0
  %v8022 = vsel %vm3543, %v7940, 0
  %v8025 = vsel %vm3543, %v7941, 0
  %v8028 = vsel %vm3543, %v7942, 0
  %v8031 = vsel %vm3543, %v7943, 0
  %v8034 = vsel %vm3543, %v7944, 0
  %v8037 = vsel %vm3543, %v7945, 0
  %v8040 = vsel %vm3543, %v7946, 0
  %v8043 = vsel %vm3543, %v7947, 0
  %v8046 = vsel %vm3543, %v7948, 0
  %v8049 = vsel %vm3543, %v7949, 0
  %v8052 = vsel %vm3543, %v7950, 0
  %v8055 = vsel %vm3543, %v7951, 0
  %v8058 = vsel %vm3543, %v7952, 0
  %v8061 = vsel %vm3543, %v7953, 0
  %v8064 = vsel %vm3543, %v7954, 0
  %v8067 = vsel %vm3543, %v7955, 0
  %v8070 = vsel %vm3543, %v7956, 0
  %v8073 = vsel %vm3543, %v7957, 0
  %v8076 = vsel %vm3543, %v7958, 0
  %v8079 = vsel %vm3543, %v7959, 0
  %v8082 = vsel %vm3543, %v7960, 0
  %v8085 = vsel %vm3543, %v7961, 0
  %v8088 = vsel %vm3543, %v7962, 0
  %v8091 = vsel %vm3543, %v7963, 0
  %v8094 = vsel %vm3543, %v7964, 0
  %v8097 = vsel %vm3543, %v7965, 0
  %v8100 = vsel %vm3543, %v7966, 0
  %v8103 = vsel %vm3543, %v7967, 0
  %v8106 = vsel %vm3543, %v7968, 0
  %v8109 = vsel %vm3543, %v7969, 0
  %v8112 = vsel %vm3543, %v7970, 0
  %v8115 = vsel %vm3543, %v7971, 0
  %v8118 = vsel %vm3543, %v7972, 0
  %v8121 = vsel %vm3543, %v7973, 0
  %v8124 = vsel %vm3543, %v7974, 0
  %v8127 = vsel %vm3543, %v7975, 0
  %v8130 = vsel %vm3543, %v7976, 0
  %v8133 = vsel %vm3543, %v7977, 0
  %v8136 = vsel %vm3543, %v7978, 0
  %v8139 = vsel %vm3543, %v7979, 0
  %v8142 = vsel %vm3543, %v7980, 0
  %v8145 = vsel %vm3543, %v7981, 0
  %v8148 = vsel %vm3543, %v7982, 0
  %v8151 = vsel %vm3543, %v7983, 0
  %v8154 = vsel %vm3543, %v7984, 0
  %v8157 = vsel %vm3543, %v7985, 0
  %v8160 = vsel %vm3543, %v7986, 0
  %v8163 = vsel %vm3543, %v7987, 0
  %v8166 = vsel %vm3543, %v7988, 0
  %v8169 = vsel %vm3543, %v7989, 0
  %v8172 = vsel %vm3543, %v7990, 0
  %v8175 = vsel %vm3543, %v7991, 0
  %v8178 = vsel %vm3543, %v7992, 0
  %v8181 = vsel %vm3543, %v7993, 0
  %v8184 = vsel %vm3543, %v7994, 0
  %v8187 = vsel %vm3543, %v7995, 0
  %v8190 = vsel %vm3543, %v7996, 0
  %v8193 = vsel %vm3543, %v7997, 0
  %v8196 = vsel %vm3736, %v8002, 0
  %8198 = vmatprep.subr.mxu0 0.0
  %8199 = vmatpush1.msra.mxu0 %v7998
  %8200 = vmatprep.subr.mxu0 0.0
  %8201 = vmatpush1.msra.mxu0 %v7999
  %8202 = vmatprep.subr.mxu0 0.0
  %8203 = vmatpush1.msra.mxu0 %v8000
  %8204 = vmatprep.subr.mxu0 0.0
  %8205 = vmatpush1.msra.mxu0 %v8001
  %8206 = vmatprep.subr.mxu0 0.0
  %8207 = vmatpush1.msra.mxu0 %v8196
  %8208 = vmatprep.subr.mxu0 0.0
  %8209 = vmatpush1.msra.mxu0 0.0
  %8210 = vmatprep.subr.mxu0 0.0
  %8211 = vmatpush1.msra.mxu0 0.0
  %8212 = vmatprep.subr.mxu0 0.0
  %8213 = vmatpush1.msra.mxu0 0.0
  %8214 = vmatprep.subr.mxu0 0.0
  %8215 = vmatpush1.msra.mxu0 0.0
  %8216 = vmatprep.subr.mxu0 0.0
  %8217 = vmatpush1.msra.mxu0 0.0
  %8218 = vmatprep.subr.mxu0 0.0
  %8219 = vmatpush1.msra.mxu0 0.0
  %8220 = vmatprep.subr.mxu0 0.0
  %8221 = vmatpush1.msra.mxu0 0.0
  %8222 = vmatprep.subr.mxu0 0.0
  %8223 = vmatpush1.msra.mxu0 0.0
  %8224 = vmatprep.subr.mxu0 0.0
  %8225 = vmatpush1.msra.mxu0 0.0
  %8226 = vmatprep.subr.mxu0 0.0
  %8227 = vmatpush1.msra.mxu0 0.0
  %8228 = vmatprep.subr.mxu0 0.0
  %8229 = vmatpush1.msra.mxu0 0.0
  %8230 = vmatprep.subr.mxu0 0.0
  %8231 = vmatpush1.msra.mxu0 0.0
  %8232 = vmatprep.subr.mxu0 0.0
  %8233 = vmatpush1.msra.mxu0 0.0
  %8234 = vmatprep.subr.mxu0 0.0
  %8235 = vmatpush1.msra.mxu0 0.0
  %8236 = vmatprep.subr.mxu0 0.0
  %8237 = vmatpush1.msra.mxu0 0.0
  %8238 = vmatprep.subr.mxu0 0.0
  %8239 = vmatpush1.msra.mxu0 0.0
  %8240 = vmatprep.subr.mxu0 0.0
  %8241 = vmatpush1.msra.mxu0 0.0
  %8242 = vmatprep.subr.mxu0 0.0
  %8243 = vmatpush1.msra.mxu0 0.0
  %8244 = vmatprep.subr.mxu0 0.0
  %8245 = vmatpush1.msra.mxu0 0.0
  %8246 = vmatprep.subr.mxu0 0.0
  %8247 = vmatpush1.msra.mxu0 0.0
  %8248 = vmatprep.subr.mxu0 0.0
  %8249 = vmatpush1.msra.mxu0 0.0
  %8250 = vmatprep.subr.mxu0 0.0
  %8251 = vmatpush1.msra.mxu0 0.0
  %8252 = vmatprep.subr.mxu0 0.0
  %8253 = vmatpush1.msra.mxu0 0.0
  %8254 = vmatprep.subr.mxu0 0.0
  %8255 = vmatpush1.msra.mxu0 0.0
  %8256 = vmatprep.subr.mxu0 0.0
  %8257 = vmatpush1.msra.mxu0 0.0
  %8258 = vmatprep.subr.mxu0 0.0
  %8259 = vmatpush1.msra.mxu0 0.0
  %8260 = vmatprep.subr.mxu0 0.0
  %8261 = vmatpush1.msra.mxu0 0.0
  %8262 = vmatprep.mubr.f32.mxu0 0.0
  %8263 = vmatmul.mubr.f32.gmra.mrb[0].mxu0 %v8004
  %v8264 = vpop.f32.mrb[0].mxu0
  %v8265 = vadd.f32 0.0, %v8264
  %v8266 = vpop.f32.mrb[0].mxu0
  %8267 = vmatprep.mubr.f32.mxu0 0.0
  %8268 = vmatmul.mubr.f32.gmra.mrb[0].mxu0 %v8007
  %v8269 = vpop.f32.mrb[0].mxu0
  %v8270 = vadd.f32 0.0, %v8269
  %v8271 = vpop.f32.mrb[0].mxu0
  %8272 = vmatprep.mubr.f32.mxu0 0.0
  %8273 = vmatmul.mubr.f32.gmra.mrb[0].mxu0 %v8010
  %v8274 = vpop.f32.mrb[0].mxu0
  %v8275 = vadd.f32 0.0, %v8274
  %v8276 = vpop.f32.mrb[0].mxu0
  %8277 = vmatprep.mubr.f32.mxu0 0.0
  %8278 = vmatmul.mubr.f32.gmra.mrb[0].mxu0 %v8013
  %v8279 = vpop.f32.mrb[0].mxu0
  %v8280 = vadd.f32 0.0, %v8279
  %v8281 = vpop.f32.mrb[0].mxu0
  %8282 = vmatprep.mubr.f32.mxu0 0.0
  %8283 = vmatmul.mubr.f32.gmra.mrb[0].mxu0 %v8016
  %v8284 = vpop.f32.mrb[0].mxu0
  %v8285 = vadd.f32 0.0, %v8284
  %v8286 = vpop.f32.mrb[0].mxu0
  %8287 = vmatprep.mubr.f32.mxu0 0.0
  %8288 = vmatmul.mubr.f32.gmra.mrb[0].mxu0 %v8019
  %v8289 = vpop.f32.mrb[0].mxu0
  %v8290 = vadd.f32 0.0, %v8289
  %v8291 = vpop.f32.mrb[0].mxu0
  %8292 = vmatprep.mubr.f32.mxu0 0.0
  %8293 = vmatmul.mubr.f32.gmra.mrb[0].mxu0 %v8022
  %v8294 = vpop.f32.mrb[0].mxu0
  %v8295 = vadd.f32 0.0, %v8294
  %v8296 = vpop.f32.mrb[0].mxu0
  %8297 = vmatprep.mubr.f32.mxu0 0.0
  %8298 = vmatmul.mubr.f32.gmra.mrb[0].mxu0 %v8025
  %v8299 = vpop.f32.mrb[0].mxu0
  %v8300 = vadd.f32 0.0, %v8299
  %v8301 = vpop.f32.mrb[0].mxu0
  %8302 = vmatprep.mubr.f32.mxu0 0.0
  %8303 = vmatmul.mubr.f32.gmra.mrb[0].mxu0 %v8028
  %v8304 = vpop.f32.mrb[0].mxu0
  %v8305 = vadd.f32 0.0, %v8304
  %v8306 = vpop.f32.mrb[0].mxu0
  %8307 = vmatprep.mubr.f32.mxu0 0.0
  %8308 = vmatmul.mubr.f32.gmra.mrb[0].mxu0 %v8031
  %v8309 = vpop.f32.mrb[0].mxu0
  %v8310 = vadd.f32 0.0, %v8309
  %v8311 = vpop.f32.mrb[0].mxu0
  %8312 = vmatprep.mubr.f32.mxu0 0.0
  %8313 = vmatmul.mubr.f32.gmra.mrb[0].mxu0 %v8034
  %v8314 = vpop.f32.mrb[0].mxu0
  %v8315 = vadd.f32 0.0, %v8314
  %v8316 = vpop.f32.mrb[0].mxu0
  %8317 = vmatprep.mubr.f32.mxu0 0.0
  %8318 = vmatmul.mubr.f32.gmra.mrb[0].mxu0 %v8037
  %v8319 = vpop.f32.mrb[0].mxu0
  %v8320 = vadd.f32 0.0, %v8319
  %v8321 = vpop.f32.mrb[0].mxu0
  %8322 = vmatprep.mubr.f32.mxu0 0.0
  %8323 = vmatmul.mubr.f32.gmra.mrb[0].mxu0 %v8040
  %v8324 = vpop.f32.mrb[0].mxu0
  %v8325 = vadd.f32 0.0, %v8324
  %v8326 = vpop.f32.mrb[0].mxu0
  %8327 = vmatprep.mubr.f32.mxu0 0.0
  %8328 = vmatmul.mubr.f32.gmra.mrb[0].mxu0 %v8043
  %v8329 = vpop.f32.mrb[0].mxu0
  %v8330 = vadd.f32 0.0, %v8329
  %v8331 = vpop.f32.mrb[0].mxu0
  %8332 = vmatprep.mubr.f32.mxu0 0.0
  %8333 = vmatmul.mubr.f32.gmra.mrb[0].mxu0 %v8046
  %v8334 = vpop.f32.mrb[0].mxu0
  %v8335 = vadd.f32 0.0, %v8334
  %v8336 = vpop.f32.mrb[0].mxu0
  %8337 = vmatprep.mubr.f32.mxu0 0.0
  %8338 = vmatmul.mubr.f32.gmra.mrb[0].mxu0 %v8049
  %v8339 = vpop.f32.mrb[0].mxu0
  %v8340 = vadd.f32 0.0, %v8339
  %v8341 = vpop.f32.mrb[0].mxu0
  %8342 = vmatprep.mubr.f32.mxu0 0.0
  %8343 = vmatmul.mubr.f32.gmra.mrb[0].mxu0 %v8052
  %v8344 = vpop.f32.mrb[0].mxu0
  %v8345 = vadd.f32 0.0, %v8344
  %v8346 = vpop.f32.mrb[0].mxu0
  %8347 = vmatprep.mubr.f32.mxu0 0.0
  %8348 = vmatmul.mubr.f32.gmra.mrb[0].mxu0 %v8055
  %v8349 = vpop.f32.mrb[0].mxu0
  %v8350 = vadd.f32 0.0, %v8349
  %v8351 = vpop.f32.mrb[0].mxu0
  %8352 = vmatprep.mubr.f32.mxu0 0.0
  %8353 = vmatmul.mubr.f32.gmra.mrb[0].mxu0 %v8058
  %v8354 = vpop.f32.mrb[0].mxu0
  %v8355 = vadd.f32 0.0, %v8354
  %v8356 = vpop.f32.mrb[0].mxu0
  %8357 = vmatprep.mubr.f32.mxu0 0.0
  %8358 = vmatmul.mubr.f32.gmra.mrb[0].mxu0 %v8061
  %v8359 = vpop.f32.mrb[0].mxu0
  %v8360 = vadd.f32 0.0, %v8359
  %v8361 = vpop.f32.mrb[0].mxu0
  %8362 = vmatprep.mubr.f32.mxu0 0.0
  %8363 = vmatmul.mubr.f32.gmra.mrb[0].mxu0 %v8064
  %v8364 = vpop.f32.mrb[0].mxu0
  %v8365 = vadd.f32 0.0, %v8364
  %v8366 = vpop.f32.mrb[0].mxu0
  %8367 = vmatprep.mubr.f32.mxu0 0.0
  %8368 = vmatmul.mubr.f32.gmra.mrb[0].mxu0 %v8067
  %v8369 = vpop.f32.mrb[0].mxu0
  %v8370 = vadd.f32 0.0, %v8369
  %v8371 = vpop.f32.mrb[0].mxu0
  %8372 = vmatprep.mubr.f32.mxu0 0.0
  %8373 = vmatmul.mubr.f32.gmra.mrb[0].mxu0 %v8070
  %v8374 = vpop.f32.mrb[0].mxu0
  %v8375 = vadd.f32 0.0, %v8374
  %v8376 = vpop.f32.mrb[0].mxu0
  %8377 = vmatprep.mubr.f32.mxu0 0.0
  %8378 = vmatmul.mubr.f32.gmra.mrb[0].mxu0 %v8073
  %v8379 = vpop.f32.mrb[0].mxu0
  %v8380 = vadd.f32 0.0, %v8379
  %v8381 = vpop.f32.mrb[0].mxu0
  %8382 = vmatprep.mubr.f32.mxu0 0.0
  %8383 = vmatmul.mubr.f32.gmra.mrb[0].mxu0 %v8076
  %v8384 = vpop.f32.mrb[0].mxu0
  %v8385 = vadd.f32 0.0, %v8384
  %v8386 = vpop.f32.mrb[0].mxu0
  %8387 = vmatprep.mubr.f32.mxu0 0.0
  %8388 = vmatmul.mubr.f32.gmra.mrb[0].mxu0 %v8079
  %v8389 = vpop.f32.mrb[0].mxu0
  %v8390 = vadd.f32 0.0, %v8389
  %v8391 = vpop.f32.mrb[0].mxu0
  %8392 = vmatprep.mubr.f32.mxu0 0.0
  %8393 = vmatmul.mubr.f32.gmra.mrb[0].mxu0 %v8082
  %v8394 = vpop.f32.mrb[0].mxu0
  %v8395 = vadd.f32 0.0, %v8394
  %v8396 = vpop.f32.mrb[0].mxu0
  %8397 = vmatprep.mubr.f32.mxu0 0.0
  %8398 = vmatmul.mubr.f32.gmra.mrb[0].mxu0 %v8085
  %v8399 = vpop.f32.mrb[0].mxu0
  %v8400 = vadd.f32 0.0, %v8399
  %v8401 = vpop.f32.mrb[0].mxu0
  %8402 = vmatprep.mubr.f32.mxu0 0.0
  %8403 = vmatmul.mubr.f32.gmra.mrb[0].mxu0 %v8088
  %v8404 = vpop.f32.mrb[0].mxu0
  %v8405 = vadd.f32 0.0, %v8404
  %v8406 = vpop.f32.mrb[0].mxu0
  %8407 = vmatprep.mubr.f32.mxu0 0.0
  %8408 = vmatmul.mubr.f32.gmra.mrb[0].mxu0 %v8091
  %v8409 = vpop.f32.mrb[0].mxu0
  %v8410 = vadd.f32 0.0, %v8409
  %v8411 = vpop.f32.mrb[0].mxu0
  %8412 = vmatprep.mubr.f32.mxu0 0.0
  %8413 = vmatmul.mubr.f32.gmra.mrb[0].mxu0 %v8094
  %v8414 = vpop.f32.mrb[0].mxu0
  %v8415 = vadd.f32 0.0, %v8414
  %v8416 = vpop.f32.mrb[0].mxu0
  %8417 = vmatprep.mubr.f32.mxu0 0.0
  %8418 = vmatmul.mubr.f32.gmra.mrb[0].mxu0 %v8097
  %v8419 = vpop.f32.mrb[0].mxu0
  %v8420 = vadd.f32 0.0, %v8419
  %v8421 = vpop.f32.mrb[0].mxu0
  %8422 = vmatprep.mubr.f32.mxu0 0.0
  %8423 = vmatmul.mubr.f32.gmra.mrb[0].mxu0 %v8100
  %v8424 = vpop.f32.mrb[0].mxu0
  %v8425 = vadd.f32 0.0, %v8424
  %v8426 = vpop.f32.mrb[0].mxu0
  %8427 = vmatprep.mubr.f32.mxu0 0.0
  %8428 = vmatmul.mubr.f32.gmra.mrb[0].mxu0 %v8103
  %v8429 = vpop.f32.mrb[0].mxu0
  %v8430 = vadd.f32 0.0, %v8429
  %v8431 = vpop.f32.mrb[0].mxu0
  %8432 = vmatprep.mubr.f32.mxu0 0.0
  %8433 = vmatmul.mubr.f32.gmra.mrb[0].mxu0 %v8106
  %v8434 = vpop.f32.mrb[0].mxu0
  %v8435 = vadd.f32 0.0, %v8434
  %v8436 = vpop.f32.mrb[0].mxu0
  %8437 = vmatprep.mubr.f32.mxu0 0.0
  %8438 = vmatmul.mubr.f32.gmra.mrb[0].mxu0 %v8109
  %v8439 = vpop.f32.mrb[0].mxu0
  %v8440 = vadd.f32 0.0, %v8439
  %v8441 = vpop.f32.mrb[0].mxu0
  %8442 = vmatprep.mubr.f32.mxu0 0.0
  %8443 = vmatmul.mubr.f32.gmra.mrb[0].mxu0 %v8112
  %v8444 = vpop.f32.mrb[0].mxu0
  %v8445 = vadd.f32 0.0, %v8444
  %v8446 = vpop.f32.mrb[0].mxu0
  %8447 = vmatprep.mubr.f32.mxu0 0.0
  %8448 = vmatmul.mubr.f32.gmra.mrb[0].mxu0 %v8115
  %v8449 = vpop.f32.mrb[0].mxu0
  %v8450 = vadd.f32 0.0, %v8449
  %v8451 = vpop.f32.mrb[0].mxu0
  %8452 = vmatprep.mubr.f32.mxu0 0.0
  %8453 = vmatmul.mubr.f32.gmra.mrb[0].mxu0 %v8118
  %v8454 = vpop.f32.mrb[0].mxu0
  %v8455 = vadd.f32 0.0, %v8454
  %v8456 = vpop.f32.mrb[0].mxu0
  %8457 = vmatprep.mubr.f32.mxu0 0.0
  %8458 = vmatmul.mubr.f32.gmra.mrb[0].mxu0 %v8121
  %v8459 = vpop.f32.mrb[0].mxu0
  %v8460 = vadd.f32 0.0, %v8459
  %v8461 = vpop.f32.mrb[0].mxu0
  %8462 = vmatprep.mubr.f32.mxu0 0.0
  %8463 = vmatmul.mubr.f32.gmra.mrb[0].mxu0 %v8124
  %v8464 = vpop.f32.mrb[0].mxu0
  %v8465 = vadd.f32 0.0, %v8464
  %v8466 = vpop.f32.mrb[0].mxu0
  %8467 = vmatprep.mubr.f32.mxu0 0.0
  %8468 = vmatmul.mubr.f32.gmra.mrb[0].mxu0 %v8127
  %v8469 = vpop.f32.mrb[0].mxu0
  %v8470 = vadd.f32 0.0, %v8469
  %v8471 = vpop.f32.mrb[0].mxu0
  %8472 = vmatprep.mubr.f32.mxu0 0.0
  %8473 = vmatmul.mubr.f32.gmra.mrb[0].mxu0 %v8130
  %v8474 = vpop.f32.mrb[0].mxu0
  %v8475 = vadd.f32 0.0, %v8474
  %v8476 = vpop.f32.mrb[0].mxu0
  %8477 = vmatprep.mubr.f32.mxu0 0.0
  %8478 = vmatmul.mubr.f32.gmra.mrb[0].mxu0 %v8133
  %v8479 = vpop.f32.mrb[0].mxu0
  %v8480 = vadd.f32 0.0, %v8479
  %v8481 = vpop.f32.mrb[0].mxu0
  %8482 = vmatprep.mubr.f32.mxu0 0.0
  %8483 = vmatmul.mubr.f32.gmra.mrb[0].mxu0 %v8136
  %v8484 = vpop.f32.mrb[0].mxu0
  %v8485 = vadd.f32 0.0, %v8484
  %v8486 = vpop.f32.mrb[0].mxu0
  %8487 = vmatprep.mubr.f32.mxu0 0.0
  %8488 = vmatmul.mubr.f32.gmra.mrb[0].mxu0 %v8139
  %v8489 = vpop.f32.mrb[0].mxu0
  %v8490 = vadd.f32 0.0, %v8489
  %v8491 = vpop.f32.mrb[0].mxu0
  %8492 = vmatprep.mubr.f32.mxu0 0.0
  %8493 = vmatmul.mubr.f32.gmra.mrb[0].mxu0 %v8142
  %v8494 = vpop.f32.mrb[0].mxu0
  %v8495 = vadd.f32 0.0, %v8494
  %v8496 = vpop.f32.mrb[0].mxu0
  %8497 = vmatprep.mubr.f32.mxu0 0.0
  %8498 = vmatmul.mubr.f32.gmra.mrb[0].mxu0 %v8145
  %v8499 = vpop.f32.mrb[0].mxu0
  %v8500 = vadd.f32 0.0, %v8499
  %v8501 = vpop.f32.mrb[0].mxu0
  %8502 = vmatprep.mubr.f32.mxu0 0.0
  %8503 = vmatmul.mubr.f32.gmra.mrb[0].mxu0 %v8148
  %v8504 = vpop.f32.mrb[0].mxu0
  %v8505 = vadd.f32 0.0, %v8504
  %v8506 = vpop.f32.mrb[0].mxu0
  %8507 = vmatprep.mubr.f32.mxu0 0.0
  %8508 = vmatmul.mubr.f32.gmra.mrb[0].mxu0 %v8151
  %v8509 = vpop.f32.mrb[0].mxu0
  %v8510 = vadd.f32 0.0, %v8509
  %v8511 = vpop.f32.mrb[0].mxu0
  %8512 = vmatprep.mubr.f32.mxu0 0.0
  %8513 = vmatmul.mubr.f32.gmra.mrb[0].mxu0 %v8154
  %v8514 = vpop.f32.mrb[0].mxu0
  %v8515 = vadd.f32 0.0, %v8514
  %v8516 = vpop.f32.mrb[0].mxu0
  %8517 = vmatprep.mubr.f32.mxu0 0.0
  %8518 = vmatmul.mubr.f32.gmra.mrb[0].mxu0 %v8157
  %v8519 = vpop.f32.mrb[0].mxu0
  %v8520 = vadd.f32 0.0, %v8519
  %v8521 = vpop.f32.mrb[0].mxu0
  %8522 = vmatprep.mubr.f32.mxu0 0.0
  %8523 = vmatmul.mubr.f32.gmra.mrb[0].mxu0 %v8160
  %v8524 = vpop.f32.mrb[0].mxu0
  %v8525 = vadd.f32 0.0, %v8524
  %v8526 = vpop.f32.mrb[0].mxu0
  %8527 = vmatprep.mubr.f32.mxu0 0.0
  %8528 = vmatmul.mubr.f32.gmra.mrb[0].mxu0 %v8163
  %v8529 = vpop.f32.mrb[0].mxu0
  %v8530 = vadd.f32 0.0, %v8529
  %v8531 = vpop.f32.mrb[0].mxu0
  %8532 = vmatprep.mubr.f32.mxu0 0.0
  %8533 = vmatmul.mubr.f32.gmra.mrb[0].mxu0 %v8166
  %v8534 = vpop.f32.mrb[0].mxu0
  %v8535 = vadd.f32 0.0, %v8534
  %v8536 = vpop.f32.mrb[0].mxu0
  %8537 = vmatprep.mubr.f32.mxu0 0.0
  %8538 = vmatmul.mubr.f32.gmra.mrb[0].mxu0 %v8169
  %v8539 = vpop.f32.mrb[0].mxu0
  %v8540 = vadd.f32 0.0, %v8539
  %v8541 = vpop.f32.mrb[0].mxu0
  %8542 = vmatprep.mubr.f32.mxu0 0.0
  %8543 = vmatmul.mubr.f32.gmra.mrb[0].mxu0 %v8172
  %v8544 = vpop.f32.mrb[0].mxu0
  %v8545 = vadd.f32 0.0, %v8544
  %v8546 = vpop.f32.mrb[0].mxu0
  %8547 = vmatprep.mubr.f32.mxu0 0.0
  %8548 = vmatmul.mubr.f32.gmra.mrb[0].mxu0 %v8175
  %v8549 = vpop.f32.mrb[0].mxu0
  %v8550 = vadd.f32 0.0, %v8549
  %v8551 = vpop.f32.mrb[0].mxu0
  %8552 = vmatprep.mubr.f32.mxu0 0.0
  %8553 = vmatmul.mubr.f32.gmra.mrb[0].mxu0 %v8178
  %v8554 = vpop.f32.mrb[0].mxu0
  %v8555 = vadd.f32 0.0, %v8554
  %v8556 = vpop.f32.mrb[0].mxu0
  %8557 = vmatprep.mubr.f32.mxu0 0.0
  %8558 = vmatmul.mubr.f32.gmra.mrb[0].mxu0 %v8181
  %v8559 = vpop.f32.mrb[0].mxu0
  %v8560 = vadd.f32 0.0, %v8559
  %v8561 = vpop.f32.mrb[0].mxu0
  %8562 = vmatprep.mubr.f32.mxu0 0.0
  %8563 = vmatmul.mubr.f32.gmra.mrb[0].mxu0 %v8184
  %v8564 = vpop.f32.mrb[0].mxu0
  %v8565 = vadd.f32 0.0, %v8564
  %v8566 = vpop.f32.mrb[0].mxu0
  %8567 = vmatprep.mubr.f32.mxu0 0.0
  %8568 = vmatmul.mubr.f32.gmra.mrb[0].mxu0 %v8187
  %v8569 = vpop.f32.mrb[0].mxu0
  %v8570 = vadd.f32 0.0, %v8569
  %v8571 = vpop.f32.mrb[0].mxu0
  %8572 = vmatprep.mubr.f32.mxu0 0.0
  %8573 = vmatmul.mubr.f32.gmra.mrb[0].mxu0 %v8190
  %v8574 = vpop.f32.mrb[0].mxu0
  %v8575 = vadd.f32 0.0, %v8574
  %v8576 = vpop.f32.mrb[0].mxu0
  %8577 = vmatprep.mubr.f32.mxu0 0.0
  %8578 = vmatmul.mubr.f32.gmra.mrb[0].mxu0 %v8193
  %v8579 = vpop.f32.mrb[0].mxu0
  %v8580 = vadd.f32 0.0, %v8579
  %v8581 = vpop.f32.mrb[0].mxu0
  %8582 = vdwg.mxu0
  %v8583 = vsel %vm26, %v8265, 0.0
  %v8584 = vsel %vm26, %v8270, 0.0
  %v8585 = vadd.f32 %v8583, %v8584
  %v8586 = vsel %vm26, %v8275, 0.0
  %v8587 = vadd.f32 %v8585, %v8586
  %v8588 = vsel %vm26, %v8280, 0.0
  %v8589 = vadd.f32 %v8587, %v8588
  %v8590 = vsel %vm26, %v8285, 0.0
  %v8591 = vadd.f32 %v8589, %v8590
  %v8592 = vsel %vm26, %v8290, 0.0
  %v8593 = vadd.f32 %v8591, %v8592
  %v8594 = vsel %vm26, %v8295, 0.0
  %v8595 = vadd.f32 %v8593, %v8594
  %v8596 = vsel %vm26, %v8300, 0.0
  %v8597 = vadd.f32 %v8595, %v8596
  %v8598 = vsel %vm26, %v8305, 0.0
  %v8599 = vadd.f32 %v8597, %v8598
  %v8600 = vsel %vm26, %v8310, 0.0
  %v8601 = vadd.f32 %v8599, %v8600
  %v8602 = vsel %vm26, %v8315, 0.0
  %v8603 = vadd.f32 %v8601, %v8602
  %v8604 = vsel %vm26, %v8320, 0.0
  %v8605 = vadd.f32 %v8603, %v8604
  %v8606 = vsel %vm26, %v8325, 0.0
  %v8607 = vadd.f32 %v8605, %v8606
  %v8608 = vsel %vm26, %v8330, 0.0
  %v8609 = vadd.f32 %v8607, %v8608
  %v8610 = vsel %vm26, %v8335, 0.0
  %v8611 = vadd.f32 %v8609, %v8610
  %v8612 = vsel %vm26, %v8340, 0.0
  %v8613 = vadd.f32 %v8611, %v8612
  %v8614 = vsel %vm26, %v8345, 0.0
  %v8615 = vadd.f32 %v8613, %v8614
  %v8616 = vsel %vm26, %v8350, 0.0
  %v8617 = vadd.f32 %v8615, %v8616
  %v8618 = vsel %vm26, %v8355, 0.0
  %v8619 = vadd.f32 %v8617, %v8618
  %v8620 = vsel %vm26, %v8360, 0.0
  %v8621 = vadd.f32 %v8619, %v8620
  %v8622 = vsel %vm26, %v8365, 0.0
  %v8623 = vadd.f32 %v8621, %v8622
  %v8624 = vsel %vm26, %v8370, 0.0
  %v8625 = vadd.f32 %v8623, %v8624
  %v8626 = vsel %vm26, %v8375, 0.0
  %v8627 = vadd.f32 %v8625, %v8626
  %v8628 = vsel %vm26, %v8380, 0.0
  %v8629 = vadd.f32 %v8627, %v8628
  %v8630 = vsel %vm26, %v8385, 0.0
  %v8631 = vadd.f32 %v8629, %v8630
  %v8632 = vsel %vm26, %v8390, 0.0
  %v8633 = vadd.f32 %v8631, %v8632
  %v8634 = vsel %vm26, %v8395, 0.0
  %v8635 = vadd.f32 %v8633, %v8634
  %v8636 = vsel %vm26, %v8400, 0.0
  %v8637 = vadd.f32 %v8635, %v8636
  %v8638 = vsel %vm26, %v8405, 0.0
  %v8639 = vadd.f32 %v8637, %v8638
  %v8640 = vsel %vm26, %v8410, 0.0
  %v8641 = vadd.f32 %v8639, %v8640
  %v8642 = vsel %vm26, %v8415, 0.0
  %v8643 = vadd.f32 %v8641, %v8642
  %v8644 = vsel %vm26, %v8420, 0.0
  %v8645 = vadd.f32 %v8643, %v8644
  %v8646 = vsel %vm26, %v8425, 0.0
  %v8647 = vadd.f32 %v8645, %v8646
  %v8648 = vsel %vm26, %v8430, 0.0
  %v8649 = vadd.f32 %v8647, %v8648
  %v8650 = vsel %vm26, %v8435, 0.0
  %v8651 = vadd.f32 %v8649, %v8650
  %v8652 = vsel %vm26, %v8440, 0.0
  %v8653 = vadd.f32 %v8651, %v8652
  %v8654 = vsel %vm26, %v8445, 0.0
  %v8655 = vadd.f32 %v8653, %v8654
  %v8656 = vsel %vm26, %v8450, 0.0
  %v8657 = vadd.f32 %v8655, %v8656
  %v8658 = vsel %vm26, %v8455, 0.0
  %v8659 = vadd.f32 %v8657, %v8658
  %v8660 = vsel %vm26, %v8460, 0.0
  %v8661 = vadd.f32 %v8659, %v8660
  %v8662 = vsel %vm26, %v8465, 0.0
  %v8663 = vadd.f32 %v8661, %v8662
  %v8664 = vsel %vm26, %v8470, 0.0
  %v8665 = vadd.f32 %v8663, %v8664
  %v8666 = vsel %vm26, %v8475, 0.0
  %v8667 = vadd.f32 %v8665, %v8666
  %v8668 = vsel %vm26, %v8480, 0.0
  %v8669 = vadd.f32 %v8667, %v8668
  %v8670 = vsel %vm26, %v8485, 0.0
  %v8671 = vadd.f32 %v8669, %v8670
  %v8672 = vsel %vm26, %v8490, 0.0
  %v8673 = vadd.f32 %v8671, %v8672
  %v8674 = vsel %vm26, %v8495, 0.0
  %v8675 = vadd.f32 %v8673, %v8674
  %v8676 = vsel %vm26, %v8500, 0.0
  %v8677 = vadd.f32 %v8675, %v8676
  %v8678 = vsel %vm26, %v8505, 0.0
  %v8679 = vadd.f32 %v8677, %v8678
  %v8680 = vsel %vm26, %v8510, 0.0
  %v8681 = vadd.f32 %v8679, %v8680
  %v8682 = vsel %vm26, %v8515, 0.0
  %v8683 = vadd.f32 %v8681, %v8682
  %v8684 = vsel %vm26, %v8520, 0.0
  %v8685 = vadd.f32 %v8683, %v8684
  %v8686 = vsel %vm26, %v8525, 0.0
  %v8687 = vadd.f32 %v8685, %v8686
  %v8688 = vsel %vm26, %v8530, 0.0
  %v8689 = vadd.f32 %v8687, %v8688
  %v8690 = vsel %vm26, %v8535, 0.0
  %v8691 = vadd.f32 %v8689, %v8690
  %v8692 = vsel %vm26, %v8540, 0.0
  %v8693 = vadd.f32 %v8691, %v8692
  %v8694 = vsel %vm26, %v8545, 0.0
  %v8695 = vadd.f32 %v8693, %v8694
  %v8696 = vsel %vm26, %v8550, 0.0
  %v8697 = vadd.f32 %v8695, %v8696
  %v8698 = vsel %vm26, %v8555, 0.0
  %v8699 = vadd.f32 %v8697, %v8698
  %v8700 = vsel %vm26, %v8560, 0.0
  %v8701 = vadd.f32 %v8699, %v8700
  %v8702 = vsel %vm26, %v8565, 0.0
  %v8703 = vadd.f32 %v8701, %v8702
  %v8704 = vsel %vm26, %v8570, 0.0
  %v8705 = vadd.f32 %v8703, %v8704
  %v8706 = vsel %vm26, %v8575, 0.0
  %v8707 = vadd.f32 %v8705, %v8706
  %v8708 = vsel %vm26, %v8580, 0.0
  %v8709 = vadd.f32 %v8707, %v8708
  %v8710 = vrot.slane %v8709, 4
  %v8711 = vadd.f32 %v8709, %v8710
  %v8712 = vrot.slane %v8711, 2
  %v8713 = vadd.f32 %v8711, %v8712
  %v8714 = vrot.slane %v8713, 1
  %v8715 = vadd.f32 %v8713, %v8714
  %v8716 = vmul.f32 %v8715, 0.001953125
  %v8717 = vmul.f32 %v8265, %v8265
  %v8718 = vmul.f32 %v8270, %v8270
  %v8719 = vmul.f32 %v8275, %v8275
  %v8720 = vmul.f32 %v8280, %v8280
  %v8721 = vmul.f32 %v8285, %v8285
  %v8722 = vmul.f32 %v8290, %v8290
  %v8723 = vmul.f32 %v8295, %v8295
  %v8724 = vmul.f32 %v8300, %v8300
  %v8725 = vmul.f32 %v8305, %v8305
  %v8726 = vmul.f32 %v8310, %v8310
  %v8727 = vmul.f32 %v8315, %v8315
  %v8728 = vmul.f32 %v8320, %v8320
  %v8729 = vmul.f32 %v8325, %v8325
  %v8730 = vmul.f32 %v8330, %v8330
  %v8731 = vmul.f32 %v8335, %v8335
  %v8732 = vmul.f32 %v8340, %v8340
  %v8733 = vmul.f32 %v8345, %v8345
  %v8734 = vmul.f32 %v8350, %v8350
  %v8735 = vmul.f32 %v8355, %v8355
  %v8736 = vmul.f32 %v8360, %v8360
  %v8737 = vmul.f32 %v8365, %v8365
  %v8738 = vmul.f32 %v8370, %v8370
  %v8739 = vmul.f32 %v8375, %v8375
  %v8740 = vmul.f32 %v8380, %v8380
  %v8741 = vmul.f32 %v8385, %v8385
  %v8742 = vmul.f32 %v8390, %v8390
  %v8743 = vmul.f32 %v8395, %v8395
  %v8744 = vmul.f32 %v8400, %v8400
  %v8745 = vmul.f32 %v8405, %v8405
  %v8746 = vmul.f32 %v8410, %v8410
  %v8747 = vmul.f32 %v8415, %v8415
  %v8748 = vmul.f32 %v8420, %v8420
  %v8749 = vmul.f32 %v8425, %v8425
  %v8750 = vmul.f32 %v8430, %v8430
  %v8751 = vmul.f32 %v8435, %v8435
  %v8752 = vmul.f32 %v8440, %v8440
  %v8753 = vmul.f32 %v8445, %v8445
  %v8754 = vmul.f32 %v8450, %v8450
  %v8755 = vmul.f32 %v8455, %v8455
  %v8756 = vmul.f32 %v8460, %v8460
  %v8757 = vmul.f32 %v8465, %v8465
  %v8758 = vmul.f32 %v8470, %v8470
  %v8759 = vmul.f32 %v8475, %v8475
  %v8760 = vmul.f32 %v8480, %v8480
  %v8761 = vmul.f32 %v8485, %v8485
  %v8762 = vmul.f32 %v8490, %v8490
  %v8763 = vmul.f32 %v8495, %v8495
  %v8764 = vmul.f32 %v8500, %v8500
  %v8765 = vmul.f32 %v8505, %v8505
  %v8766 = vmul.f32 %v8510, %v8510
  %v8767 = vmul.f32 %v8515, %v8515
  %v8768 = vmul.f32 %v8520, %v8520
  %v8769 = vmul.f32 %v8525, %v8525
  %v8770 = vmul.f32 %v8530, %v8530
  %v8771 = vmul.f32 %v8535, %v8535
  %v8772 = vmul.f32 %v8540, %v8540
  %v8773 = vmul.f32 %v8545, %v8545
  %v8774 = vmul.f32 %v8550, %v8550
  %v8775 = vmul.f32 %v8555, %v8555
  %v8776 = vmul.f32 %v8560, %v8560
  %v8777 = vmul.f32 %v8565, %v8565
  %v8778 = vmul.f32 %v8570, %v8570
  %v8779 = vmul.f32 %v8575, %v8575
  %v8780 = vmul.f32 %v8580, %v8580
  %v8781 = vsel %vm26, %v8717, 0.0
  %v8782 = vsel %vm26, %v8718, 0.0
  %v8783 = vadd.f32 %v8781, %v8782
  %v8784 = vsel %vm26, %v8719, 0.0
  %v8785 = vadd.f32 %v8783, %v8784
  %v8786 = vsel %vm26, %v8720, 0.0
  %v8787 = vadd.f32 %v8785, %v8786
  %v8788 = vsel %vm26, %v8721, 0.0
  %v8789 = vadd.f32 %v8787, %v8788
  %v8790 = vsel %vm26, %v8722, 0.0
  %v8791 = vadd.f32 %v8789, %v8790
  %v8792 = vsel %vm26, %v8723, 0.0
  %v8793 = vadd.f32 %v8791, %v8792
  %v8794 = vsel %vm26, %v8724, 0.0
  %v8795 = vadd.f32 %v8793, %v8794
  %v8796 = vsel %vm26, %v8725, 0.0
  %v8797 = vadd.f32 %v8795, %v8796
  %v8798 = vsel %vm26, %v8726, 0.0
  %v8799 = vadd.f32 %v8797, %v8798
  %v8800 = vsel %vm26, %v8727, 0.0
  %v8801 = vadd.f32 %v8799, %v8800
  %v8802 = vsel %vm26, %v8728, 0.0
  %v8803 = vadd.f32 %v8801, %v8802
  %v8804 = vsel %vm26, %v8729, 0.0
  %v8805 = vadd.f32 %v8803, %v8804
  %v8806 = vsel %vm26, %v8730, 0.0
  %v8807 = vadd.f32 %v8805, %v8806
  %v8808 = vsel %vm26, %v8731, 0.0
  %v8809 = vadd.f32 %v8807, %v8808
  %v8810 = vsel %vm26, %v8732, 0.0
  %v8811 = vadd.f32 %v8809, %v8810
  %v8812 = vsel %vm26, %v8733, 0.0
  %v8813 = vadd.f32 %v8811, %v8812
  %v8814 = vsel %vm26, %v8734, 0.0
  %v8815 = vadd.f32 %v8813, %v8814
  %v8816 = vsel %vm26, %v8735, 0.0
  %v8817 = vadd.f32 %v8815, %v8816
  %v8818 = vsel %vm26, %v8736, 0.0
  %v8819 = vadd.f32 %v8817, %v8818
  %v8820 = vsel %vm26, %v8737, 0.0
  %v8821 = vadd.f32 %v8819, %v8820
  %v8822 = vsel %vm26, %v8738, 0.0
  %v8823 = vadd.f32 %v8821, %v8822
  %v8824 = vsel %vm26, %v8739, 0.0
  %v8825 = vadd.f32 %v8823, %v8824
  %v8826 = vsel %vm26, %v8740, 0.0
  %v8827 = vadd.f32 %v8825, %v8826
  %v8828 = vsel %vm26, %v8741, 0.0
  %v8829 = vadd.f32 %v8827, %v8828
  %v8830 = vsel %vm26, %v8742, 0.0
  %v8831 = vadd.f32 %v8829, %v8830
  %v8832 = vsel %vm26, %v8743, 0.0
  %v8833 = vadd.f32 %v8831, %v8832
  %v8834 = vsel %vm26, %v8744, 0.0
  %v8835 = vadd.f32 %v8833, %v8834
  %v8836 = vsel %vm26, %v8745, 0.0
  %v8837 = vadd.f32 %v8835, %v8836
  %v8838 = vsel %vm26, %v8746, 0.0
  %v8839 = vadd.f32 %v8837, %v8838
  %v8840 = vsel %vm26, %v8747, 0.0
  %v8841 = vadd.f32 %v8839, %v8840
  %v8842 = vsel %vm26, %v8748, 0.0
  %v8843 = vadd.f32 %v8841, %v8842
  %v8844 = vsel %vm26, %v8749, 0.0
  %v8845 = vadd.f32 %v8843, %v8844
  %v8846 = vsel %vm26, %v8750, 0.0
  %v8847 = vadd.f32 %v8845, %v8846
  %v8848 = vsel %vm26, %v8751, 0.0
  %v8849 = vadd.f32 %v8847, %v8848
  %v8850 = vsel %vm26, %v8752, 0.0
  %v8851 = vadd.f32 %v8849, %v8850
  %v8852 = vsel %vm26, %v8753, 0.0
  %v8853 = vadd.f32 %v8851, %v8852
  %v8854 = vsel %vm26, %v8754, 0.0
  %v8855 = vadd.f32 %v8853, %v8854
  %v8856 = vsel %vm26, %v8755, 0.0
  %v8857 = vadd.f32 %v8855, %v8856
  %v8858 = vsel %vm26, %v8756, 0.0
  %v8859 = vadd.f32 %v8857, %v8858
  %v8860 = vsel %vm26, %v8757, 0.0
  %v8861 = vadd.f32 %v8859, %v8860
  %v8862 = vsel %vm26, %v8758, 0.0
  %v8863 = vadd.f32 %v8861, %v8862
  %v8864 = vsel %vm26, %v8759, 0.0
  %v8865 = vadd.f32 %v8863, %v8864
  %v8866 = vsel %vm26, %v8760, 0.0
  %v8867 = vadd.f32 %v8865, %v8866
  %v8868 = vsel %vm26, %v8761, 0.0
  %v8869 = vadd.f32 %v8867, %v8868
  %v8870 = vsel %vm26, %v8762, 0.0
  %v8871 = vadd.f32 %v8869, %v8870
  %v8872 = vsel %vm26, %v8763, 0.0
  %v8873 = vadd.f32 %v8871, %v8872
  %v8874 = vsel %vm26, %v8764, 0.0
  %v8875 = vadd.f32 %v8873, %v8874
  %v8876 = vsel %vm26, %v8765, 0.0
  %v8877 = vadd.f32 %v8875, %v8876
  %v8878 = vsel %vm26, %v8766, 0.0
  %v8879 = vadd.f32 %v8877, %v8878
  %v8880 = vsel %vm26, %v8767, 0.0
  %v8881 = vadd.f32 %v8879, %v8880
  %v8882 = vsel %vm26, %v8768, 0.0
  %v8883 = vadd.f32 %v8881, %v8882
  %v8884 = vsel %vm26, %v8769, 0.0
  %v8885 = vadd.f32 %v8883, %v8884
  %v8886 = vsel %vm26, %v8770, 0.0
  %v8887 = vadd.f32 %v8885, %v8886
  %v8888 = vsel %vm26, %v8771, 0.0
  %v8889 = vadd.f32 %v8887, %v8888
  %v8890 = vsel %vm26, %v8772, 0.0
  %v8891 = vadd.f32 %v8889, %v8890
  %v8892 = vsel %vm26, %v8773, 0.0
  %v8893 = vadd.f32 %v8891, %v8892
  %v8894 = vsel %vm26, %v8774, 0.0
  %v8895 = vadd.f32 %v8893, %v8894
  %v8896 = vsel %vm26, %v8775, 0.0
  %v8897 = vadd.f32 %v8895, %v8896
  %v8898 = vsel %vm26, %v8776, 0.0
  %v8899 = vadd.f32 %v8897, %v8898
  %v8900 = vsel %vm26, %v8777, 0.0
  %v8901 = vadd.f32 %v8899, %v8900
  %v8902 = vsel %vm26, %v8778, 0.0
  %v8903 = vadd.f32 %v8901, %v8902
  %v8904 = vsel %vm26, %v8779, 0.0
  %v8905 = vadd.f32 %v8903, %v8904
  %v8906 = vsel %vm26, %v8780, 0.0
  %v8907 = vadd.f32 %v8905, %v8906
  %v8908 = vrot.slane %v8907, 4
  %v8909 = vadd.f32 %v8907, %v8908
  %v8910 = vrot.slane %v8909, 2
  %v8911 = vadd.f32 %v8909, %v8910
  %v8912 = vrot.slane %v8911, 1
  %v8913 = vadd.f32 %v8911, %v8912
  %v8914 = vmul.f32 %v8913, 0.001953125
  %v8915 = vmul.f32 %v8716, %v8716
  %v8916 = vsub.f32 %v8914, %v8915
  %v8917 = vld [vmem:[%s5] sm:$0x1]
  %v8918 = vadd.f32 %v8916, 1e-05
  %v8919 = vrsqrt.pop %v8918
  %v8920 = vmul.f32 %v8917, %v8919
  %v8921 = vld [vmem:[%s6] sm:$0x1]
  %v8922 = vmul.f32 %v8716, %v8920
  %v8923 = vsub.f32 %v8921, %v8922
  %v8925 = vlaneseq
  %v8926 = vshrl.u32 %v8925, 7
  %v8927 = vsub.s32 0, %v8926
  %v8928 = vrot.slane %v8920, %v8927
  %v8930 = vmul.f32 %v8265, %v8928
  %v8931 = vmul.f32 %v8270, %v8928
  %v8932 = vmul.f32 %v8275, %v8928
  %v8933 = vmul.f32 %v8280, %v8928
  %v8934 = vmul.f32 %v8285, %v8928
  %v8935 = vmul.f32 %v8290, %v8928
  %v8936 = vmul.f32 %v8295, %v8928
  %v8937 = vmul.f32 %v8300, %v8928
  %v8938 = vmul.f32 %v8305, %v8928
  %v8939 = vmul.f32 %v8310, %v8928
  %v8940 = vmul.f32 %v8315, %v8928
  %v8941 = vmul.f32 %v8320, %v8928
  %v8942 = vmul.f32 %v8325, %v8928
  %v8943 = vmul.f32 %v8330, %v8928
  %v8944 = vmul.f32 %v8335, %v8928
  %v8945 = vmul.f32 %v8340, %v8928
  %v8946 = vmul.f32 %v8345, %v8928
  %v8947 = vmul.f32 %v8350, %v8928
  %v8948 = vmul.f32 %v8355, %v8928
  %v8949 = vmul.f32 %v8360, %v8928
  %v8950 = vmul.f32 %v8365, %v8928
  %v8951 = vmul.f32 %v8370, %v8928
  %v8952 = vmul.f32 %v8375, %v8928
  %v8953 = vmul.f32 %v8380, %v8928
  %v8954 = vmul.f32 %v8385, %v8928
  %v8955 = vmul.f32 %v8390, %v8928
  %v8956 = vmul.f32 %v8395, %v8928
  %v8957 = vmul.f32 %v8400, %v8928
  %v8958 = vmul.f32 %v8405, %v8928
  %v8959 = vmul.f32 %v8410, %v8928
  %v8960 = vmul.f32 %v8415, %v8928
  %v8961 = vmul.f32 %v8420, %v8928
  %v8962 = vmul.f32 %v8425, %v8928
  %v8963 = vmul.f32 %v8430, %v8928
  %v8964 = vmul.f32 %v8435, %v8928
  %v8965 = vmul.f32 %v8440, %v8928
  %v8966 = vmul.f32 %v8445, %v8928
  %v8967 = vmul.f32 %v8450, %v8928
  %v8968 = vmul.f32 %v8455, %v8928
  %v8969 = vmul.f32 %v8460, %v8928
  %v8970 = vmul.f32 %v8465, %v8928
  %v8971 = vmul.f32 %v8470, %v8928
  %v8972 = vmul.f32 %v8475, %v8928
  %v8973 = vmul.f32 %v8480, %v8928
  %v8974 = vmul.f32 %v8485, %v8928
  %v8975 = vmul.f32 %v8490, %v8928
  %v8976 = vmul.f32 %v8495, %v8928
  %v8977 = vmul.f32 %v8500, %v8928
  %v8978 = vmul.f32 %v8505, %v8928
  %v8979 = vmul.f32 %v8510, %v8928
  %v8980 = vmul.f32 %v8515, %v8928
  %v8981 = vmul.f32 %v8520, %v8928
  %v8982 = vmul.f32 %v8525, %v8928
  %v8983 = vmul.f32 %v8530, %v8928
  %v8984 = vmul.f32 %v8535, %v8928
  %v8985 = vmul.f32 %v8540, %v8928
  %v8986 = vmul.f32 %v8545, %v8928
  %v8987 = vmul.f32 %v8550, %v8928
  %v8988 = vmul.f32 %v8555, %v8928
  %v8989 = vmul.f32 %v8560, %v8928
  %v8990 = vmul.f32 %v8565, %v8928
  %v8991 = vmul.f32 %v8570, %v8928
  %v8992 = vmul.f32 %v8575, %v8928
  %v8993 = vmul.f32 %v8580, %v8928
  %v8995 = vlaneseq
  %v8996 = vshrl.u32 %v8995, 7
  %v8997 = vsub.s32 0, %v8996
  %v8998 = vrot.slane %v8923, %v8997
  %v9000 = vadd.f32 %v8930, %v8998
  %v9001 = vadd.f32 %v8931, %v8998
  %v9002 = vadd.f32 %v8932, %v8998
  %v9003 = vadd.f32 %v8933, %v8998
  %v9004 = vadd.f32 %v8934, %v8998
  %v9005 = vadd.f32 %v8935, %v8998
  %v9006 = vadd.f32 %v8936, %v8998
  %v9007 = vadd.f32 %v8937, %v8998
  %v9008 = vadd.f32 %v8938, %v8998
  %v9009 = vadd.f32 %v8939, %v8998
  %v9010 = vadd.f32 %v8940, %v8998
  %v9011 = vadd.f32 %v8941, %v8998
  %v9012 = vadd.f32 %v8942, %v8998
  %v9013 = vadd.f32 %v8943, %v8998
  %v9014 = vadd.f32 %v8944, %v8998
  %v9015 = vadd.f32 %v8945, %v8998
  %v9016 = vadd.f32 %v8946, %v8998
  %v9017 = vadd.f32 %v8947, %v8998
  %v9018 = vadd.f32 %v8948, %v8998
  %v9019 = vadd.f32 %v8949, %v8998
  %v9020 = vadd.f32 %v8950, %v8998
  %v9021 = vadd.f32 %v8951, %v8998
  %v9022 = vadd.f32 %v8952, %v8998
  %v9023 = vadd.f32 %v8953, %v8998
  %v9024 = vadd.f32 %v8954, %v8998
  %v9025 = vadd.f32 %v8955, %v8998
  %v9026 = vadd.f32 %v8956, %v8998
  %v9027 = vadd.f32 %v8957, %v8998
  %v9028 = vadd.f32 %v8958, %v8998
  %v9029 = vadd.f32 %v8959, %v8998
  %v9030 = vadd.f32 %v8960, %v8998
  %v9031 = vadd.f32 %v8961, %v8998
  %v9032 = vadd.f32 %v8962, %v8998
  %v9033 = vadd.f32 %v8963, %v8998
  %v9034 = vadd.f32 %v8964, %v8998
  %v9035 = vadd.f32 %v8965, %v8998
  %v9036 = vadd.f32 %v8966, %v8998
  %v9037 = vadd.f32 %v8967, %v8998
  %v9038 = vadd.f32 %v8968, %v8998
  %v9039 = vadd.f32 %v8969, %v8998
  %v9040 = vadd.f32 %v8970, %v8998
  %v9041 = vadd.f32 %v8971, %v8998
  %v9042 = vadd.f32 %v8972, %v8998
  %v9043 = vadd.f32 %v8973, %v8998
  %v9044 = vadd.f32 %v8974, %v8998
  %v9045 = vadd.f32 %v8975, %v8998
  %v9046 = vadd.f32 %v8976, %v8998
  %v9047 = vadd.f32 %v8977, %v8998
  %v9048 = vadd.f32 %v8978, %v8998
  %v9049 = vadd.f32 %v8979, %v8998
  %v9050 = vadd.f32 %v8980, %v8998
  %v9051 = vadd.f32 %v8981, %v8998
  %v9052 = vadd.f32 %v8982, %v8998
  %v9053 = vadd.f32 %v8983, %v8998
  %v9054 = vadd.f32 %v8984, %v8998
  %v9055 = vadd.f32 %v8985, %v8998
  %v9056 = vadd.f32 %v8986, %v8998
  %v9057 = vadd.f32 %v8987, %v8998
  %v9058 = vadd.f32 %v8988, %v8998
  %v9059 = vadd.f32 %v8989, %v8998
  %v9060 = vadd.f32 %v8990, %v8998
  %v9061 = vadd.f32 %v8991, %v8998
  %v9062 = vadd.f32 %v8992, %v8998
  %v9063 = vadd.f32 %v8993, %v8998
  %v9064 = vadd.f32 %v9000, %v136
  %v9065 = vadd.f32 %v9001, %v137
  %v9066 = vadd.f32 %v9002, %v138
  %v9067 = vadd.f32 %v9003, %v139
  %v9068 = vadd.f32 %v9004, %v140
  %v9069 = vadd.f32 %v9005, %v141
  %v9070 = vadd.f32 %v9006, %v142
  %v9071 = vadd.f32 %v9007, %v143
  %v9072 = vadd.f32 %v9008, %v144
  %v9073 = vadd.f32 %v9009, %v145
  %v9074 = vadd.f32 %v9010, %v146
  %v9075 = vadd.f32 %v9011, %v147
  %v9076 = vadd.f32 %v9012, %v148
  %v9077 = vadd.f32 %v9013, %v149
  %v9078 = vadd.f32 %v9014, %v150
  %v9079 = vadd.f32 %v9015, %v151
  %v9080 = vadd.f32 %v9016, %v152
  %v9081 = vadd.f32 %v9017, %v153
  %v9082 = vadd.f32 %v9018, %v154
  %v9083 = vadd.f32 %v9019, %v155
  %v9084 = vadd.f32 %v9020, %v156
  %v9085 = vadd.f32 %v9021, %v157
  %v9086 = vadd.f32 %v9022, %v158
  %v9087 = vadd.f32 %v9023, %v159
  %v9088 = vadd.f32 %v9024, %v160
  %v9089 = vadd.f32 %v9025, %v161
  %v9090 = vadd.f32 %v9026, %v162
  %v9091 = vadd.f32 %v9027, %v163
  %v9092 = vadd.f32 %v9028, %v164
  %v9093 = vadd.f32 %v9029, %v165
  %v9094 = vadd.f32 %v9030, %v166
  %v9095 = vadd.f32 %v9031, %v167
  %v9096 = vadd.f32 %v9032, %v168
  %v9097 = vadd.f32 %v9033, %v169
  %v9098 = vadd.f32 %v9034, %v170
  %v9099 = vadd.f32 %v9035, %v171
  %v9100 = vadd.f32 %v9036, %v172
  %v9101 = vadd.f32 %v9037, %v173
  %v9102 = vadd.f32 %v9038, %v174
  %v9103 = vadd.f32 %v9039, %v175
  %v9104 = vadd.f32 %v9040, %v176
  %v9105 = vadd.f32 %v9041, %v177
  %v9106 = vadd.f32 %v9042, %v178
  %v9107 = vadd.f32 %v9043, %v179
  %v9108 = vadd.f32 %v9044, %v180
  %v9109 = vadd.f32 %v9045, %v181
  %v9110 = vadd.f32 %v9046, %v182
  %v9111 = vadd.f32 %v9047, %v183
  %v9112 = vadd.f32 %v9048, %v184
  %v9113 = vadd.f32 %v9049, %v185
  %v9114 = vadd.f32 %v9050, %v186
  %v9115 = vadd.f32 %v9051, %v187
  %v9116 = vadd.f32 %v9052, %v188
  %v9117 = vadd.f32 %v9053, %v189
  %v9118 = vadd.f32 %v9054, %v190
  %v9119 = vadd.f32 %v9055, %v191
  %v9120 = vadd.f32 %v9056, %v192
  %v9121 = vadd.f32 %v9057, %v193
  %v9122 = vadd.f32 %v9058, %v194
  %v9123 = vadd.f32 %v9059, %v195
  %v9124 = vadd.f32 %v9060, %v196
  %v9125 = vadd.f32 %v9061, %v197
  %v9126 = vadd.f32 %v9062, %v198
  %v9127 = vadd.f32 %v9063, %v199
  %v9128 = vmax.f32 %v9064, 0.0
  %v9129 = vmax.f32 %v9065, 0.0
  %v9130 = vmax.f32 %v9066, 0.0
  %v9131 = vmax.f32 %v9067, 0.0
  %v9132 = vmax.f32 %v9068, 0.0
  %v9133 = vmax.f32 %v9069, 0.0
  %v9134 = vmax.f32 %v9070, 0.0
  %v9135 = vmax.f32 %v9071, 0.0
  %v9136 = vmax.f32 %v9072, 0.0
  %v9137 = vmax.f32 %v9073, 0.0
  %v9138 = vmax.f32 %v9074, 0.0
  %v9139 = vmax.f32 %v9075, 0.0
  %v9140 = vmax.f32 %v9076, 0.0
  %v9141 = vmax.f32 %v9077, 0.0
  %v9142 = vmax.f32 %v9078, 0.0
  %v9143 = vmax.f32 %v9079, 0.0
  %v9144 = vmax.f32 %v9080, 0.0
  %v9145 = vmax.f32 %v9081, 0.0
  %v9146 = vmax.f32 %v9082, 0.0
  %v9147 = vmax.f32 %v9083, 0.0
  %v9148 = vmax.f32 %v9084, 0.0
  %v9149 = vmax.f32 %v9085, 0.0
  %v9150 = vmax.f32 %v9086, 0.0
  %v9151 = vmax.f32 %v9087, 0.0
  %v9152 = vmax.f32 %v9088, 0.0
  %v9153 = vmax.f32 %v9089, 0.0
  %v9154 = vmax.f32 %v9090, 0.0
  %v9155 = vmax.f32 %v9091, 0.0
  %v9156 = vmax.f32 %v9092, 0.0
  %v9157 = vmax.f32 %v9093, 0.0
  %v9158 = vmax.f32 %v9094, 0.0
  %v9159 = vmax.f32 %v9095, 0.0
  %v9160 = vmax.f32 %v9096, 0.0
  %v9161 = vmax.f32 %v9097, 0.0
  %v9162 = vmax.f32 %v9098, 0.0
  %v9163 = vmax.f32 %v9099, 0.0
  %v9164 = vmax.f32 %v9100, 0.0
  %v9165 = vmax.f32 %v9101, 0.0
  %v9166 = vmax.f32 %v9102, 0.0
  %v9167 = vmax.f32 %v9103, 0.0
  %v9168 = vmax.f32 %v9104, 0.0
  %v9169 = vmax.f32 %v9105, 0.0
  %v9170 = vmax.f32 %v9106, 0.0
  %v9171 = vmax.f32 %v9107, 0.0
  %v9172 = vmax.f32 %v9108, 0.0
  %v9173 = vmax.f32 %v9109, 0.0
  %v9174 = vmax.f32 %v9110, 0.0
  %v9175 = vmax.f32 %v9111, 0.0
  %v9176 = vmax.f32 %v9112, 0.0
  %v9177 = vmax.f32 %v9113, 0.0
  %v9178 = vmax.f32 %v9114, 0.0
  %v9179 = vmax.f32 %v9115, 0.0
  %v9180 = vmax.f32 %v9116, 0.0
  %v9181 = vmax.f32 %v9117, 0.0
  %v9182 = vmax.f32 %v9118, 0.0
  %v9183 = vmax.f32 %v9119, 0.0
  %v9184 = vmax.f32 %v9120, 0.0
  %v9185 = vmax.f32 %v9121, 0.0
  %v9186 = vmax.f32 %v9122, 0.0
  %v9187 = vmax.f32 %v9123, 0.0
  %v9188 = vmax.f32 %v9124, 0.0
  %v9189 = vmax.f32 %v9125, 0.0
  %v9190 = vmax.f32 %v9126, 0.0
  %v9191 = vmax.f32 %v9127, 0.0
  %9192 = vxpose.xlu0.b32.start [1/16] %v9128, 128
  %9193 = vxpose.xlu0.b32.cont [2/16] %v9129, 128
  %9194 = vxpose.xlu0.b32.cont [3/16] %v9130, 128
  %9195 = vxpose.xlu0.b32.cont [4/16] %v9131, 128
  %9196 = vxpose.xlu0.b32.cont [5/16] %v9132, 128
  %9197 = vxpose.xlu0.b32.cont [6/16] %v9133, 128
  %9198 = vxpose.xlu0.b32.cont [7/16] %v9134, 128
  %9199 = vxpose.xlu0.b32.cont [8/16] %v9135, 128
  %9200 = vxpose.xlu0.b32.cont [9/16] %v9136, 128
  %9201 = vxpose.xlu0.b32.cont [10/16] %v9137, 128
  %9202 = vxpose.xlu0.b32.cont [11/16] %v9138, 128
  %9203 = vxpose.xlu0.b32.cont [12/16] %v9139, 128
  %9204 = vxpose.xlu0.b32.cont [13/16] %v9140, 128
  %9205 = vxpose.xlu0.b32.cont [14/16] %v9141, 128
  %9206 = vxpose.xlu0.b32.cont [15/16] %v9142, 128
  %9207 = vxpose.xlu0.b32.end [16/16] %v9143, 128
  %v9208 = vpop.trf.xlu0
  %v9209 = vpop.trf.xlu0
  %v9210 = vpop.trf.xlu0
  %v9211 = vpop.trf.xlu0
  %v9212 = vpop.trf.xlu0
  %v9213 = vpop.trf.xlu0
  %v9214 = vpop.trf.xlu0
  %v9215 = vpop.trf.xlu0
  %v9216 = vpop.trf.xlu0
  %v9217 = vpop.trf.xlu0
  %v9218 = vpop.trf.xlu0
  %v9219 = vpop.trf.xlu0
  %v9220 = vpop.trf.xlu0
  %v9221 = vpop.trf.xlu0
  %v9222 = vpop.trf.xlu0
  %v9223 = vpop.trf.xlu0
  %9224 = vxpose.xlu0.b32.start [1/16] %v9144, 128
  %9225 = vxpose.xlu0.b32.cont [2/16] %v9145, 128
  %9226 = vxpose.xlu0.b32.cont [3/16] %v9146, 128
  %9227 = vxpose.xlu0.b32.cont [4/16] %v9147, 128
  %9228 = vxpose.xlu0.b32.cont [5/16] %v9148, 128
  %9229 = vxpose.xlu0.b32.cont [6/16] %v9149, 128
  %9230 = vxpose.xlu0.b32.cont [7/16] %v9150, 128
  %9231 = vxpose.xlu0.b32.cont [8/16] %v9151, 128
  %9232 = vxpose.xlu0.b32.cont [9/16] %v9152, 128
  %9233 = vxpose.xlu0.b32.cont [10/16] %v9153, 128
  %9234 = vxpose.xlu0.b32.cont [11/16] %v9154, 128
  %9235 = vxpose.xlu0.b32.cont [12/16] %v9155, 128
  %9236 = vxpose.xlu0.b32.cont [13/16] %v9156, 128
  %9237 = vxpose.xlu0.b32.cont [14/16] %v9157, 128
  %9238 = vxpose.xlu0.b32.cont [15/16] %v9158, 128
  %9239 = vxpose.xlu0.b32.end [16/16] %v9159, 128
  %v9240 = vpop.trf.xlu0
  %v9241 = vpop.trf.xlu0
  %v9242 = vpop.trf.xlu0
  %v9243 = vpop.trf.xlu0
  %v9244 = vpop.trf.xlu0
  %v9245 = vpop.trf.xlu0
  %v9246 = vpop.trf.xlu0
  %v9247 = vpop.trf.xlu0
  %v9248 = vpop.trf.xlu0
  %v9249 = vpop.trf.xlu0
  %v9250 = vpop.trf.xlu0
  %v9251 = vpop.trf.xlu0
  %v9252 = vpop.trf.xlu0
  %v9253 = vpop.trf.xlu0
  %v9254 = vpop.trf.xlu0
  %v9255 = vpop.trf.xlu0
  %9256 = vxpose.xlu0.b32.start [1/16] %v9160, 128
  %9257 = vxpose.xlu0.b32.cont [2/16] %v9161, 128
  %9258 = vxpose.xlu0.b32.cont [3/16] %v9162, 128
  %9259 = vxpose.xlu0.b32.cont [4/16] %v9163, 128
  %9260 = vxpose.xlu0.b32.cont [5/16] %v9164, 128
  %9261 = vxpose.xlu0.b32.cont [6/16] %v9165, 128
  %9262 = vxpose.xlu0.b32.cont [7/16] %v9166, 128
  %9263 = vxpose.xlu0.b32.cont [8/16] %v9167, 128
  %9264 = vxpose.xlu0.b32.cont [9/16] %v9168, 128
  %9265 = vxpose.xlu0.b32.cont [10/16] %v9169, 128
  %9266 = vxpose.xlu0.b32.cont [11/16] %v9170, 128
  %9267 = vxpose.xlu0.b32.cont [12/16] %v9171, 128
  %9268 = vxpose.xlu0.b32.cont [13/16] %v9172, 128
  %9269 = vxpose.xlu0.b32.cont [14/16] %v9173, 128
  %9270 = vxpose.xlu0.b32.cont [15/16] %v9174, 128
  %9271 = vxpose.xlu0.b32.end [16/16] %v9175, 128
  %v9272 = vpop.trf.xlu0
  %v9273 = vpop.trf.xlu0
  %v9274 = vpop.trf.xlu0
  %v9275 = vpop.trf.xlu0
  %v9276 = vpop.trf.xlu0
  %v9277 = vpop.trf.xlu0
  %v9278 = vpop.trf.xlu0
  %v9279 = vpop.trf.xlu0
  %v9280 = vpop.trf.xlu0
  %v9281 = vpop.trf.xlu0
  %v9282 = vpop.trf.xlu0
  %v9283 = vpop.trf.xlu0
  %v9284 = vpop.trf.xlu0
  %v9285 = vpop.trf.xlu0
  %v9286 = vpop.trf.xlu0
  %v9287 = vpop.trf.xlu0
  %9288 = vxpose.xlu0.b32.start [1/16] %v9176, 128
  %9289 = vxpose.xlu0.b32.cont [2/16] %v9177, 128
  %9290 = vxpose.xlu0.b32.cont [3/16] %v9178, 128
  %9291 = vxpose.xlu0.b32.cont [4/16] %v9179, 128
  %9292 = vxpose.xlu0.b32.cont [5/16] %v9180, 128
  %9293 = vxpose.xlu0.b32.cont [6/16] %v9181, 128
  %9294 = vxpose.xlu0.b32.cont [7/16] %v9182, 128
  %9295 = vxpose.xlu0.b32.cont [8/16] %v9183, 128
  %9296 = vxpose.xlu0.b32.cont [9/16] %v9184, 128
  %9297 = vxpose.xlu0.b32.cont [10/16] %v9185, 128
  %9298 = vxpose.xlu0.b32.cont [11/16] %v9186, 128
  %9299 = vxpose.xlu0.b32.cont [12/16] %v9187, 128
  %9300 = vxpose.xlu0.b32.cont [13/16] %v9188, 128
  %9301 = vxpose.xlu0.b32.cont [14/16] %v9189, 128
  %9302 = vxpose.xlu0.b32.cont [15/16] %v9190, 128
  %9303 = vxpose.xlu0.b32.end [16/16] %v9191, 128
  %v9304 = vpop.trf.xlu0
  %v9305 = vpop.trf.xlu0
  %v9306 = vpop.trf.xlu0
  %v9307 = vpop.trf.xlu0
  %v9308 = vpop.trf.xlu0
  %v9309 = vpop.trf.xlu0
  %v9310 = vpop.trf.xlu0
  %v9311 = vpop.trf.xlu0
  %v9312 = vpop.trf.xlu0
  %v9313 = vpop.trf.xlu0
  %v9314 = vpop.trf.xlu0
  %v9315 = vpop.trf.xlu0
  %v9316 = vpop.trf.xlu0
  %v9317 = vpop.trf.xlu0
  %v9318 = vpop.trf.xlu0
  %v9319 = vpop.trf.xlu0
  %v9324 = vcombine.low %v9208, %v9240
  %v9325 = vcombine.low %v9272, %v9304
  %9328 = vst [vmem:[%s7] sm:$0xff] %v9324
  %9329 = vst [vmem:[%s7 + $0x8] sm:$0xff] %v9325
  // Predicated region
  $region30: #{identi_block.1} parent=0 // pred_check
    _
  $region31: #{identi_block.1} parent=0 // pred_check_branch
    %9331 = sbr.rel (0) target = $region33
  $region32: #{identi_block.1} parent=0 // pred_region
    _
  $region33: #{identi_block.1} parent=0 // pred_fallthru
    _
  // Predicated region
  $region34: #{identi_block.1} parent=0 // pred_check
    _
  $region35: #{identi_block.1} parent=0 // pred_check_branch
    %9333 = sbr.rel (0) target = $region37
  $region36: #{identi_block.1} parent=0 // pred_region
    _
  $region37: #{identi_block.1} parent=0 // pred_fallthru
    _

</llo_original>
